<compile_context>
chip_gen: v6e
topology: v6e:2x2x1
jax: 0.10.0
libtpu: 0.0.40
codegen_flags: <defaults>
</compile_context>

<pallas_src>
import jax
import jax.numpy as jnp
from jax import lax
from jax.experimental import pallas as pl
from jax.experimental.pallas import tpu as pltpu


TILE_M = 512     # rows per grid step (multiple of 8); sized to fit v7x VMEM
LANE = 128       # lane width: channel dims are padded to multiples of this


def _round_up(x, m):
    return ((x + m - 1) // m) * m


def _row_tile(m, tile_m=TILE_M):
    return min(tile_m, _round_up(m, 8))


def _pad_rows(a, tile):
    m = a.shape[0]
    mp = _round_up(m, tile)
    if mp != m:
        a = jnp.pad(a, ((0, mp - m),) + ((0, 0),) * (a.ndim - 1))
    return a


# ----------------------------- Pallas kernels ------------------------------

def _matmul_bn_kernel(x_ref, w_ref, s_ref, b_ref, o_ref):
    # (conv-as-matmul) + folded BatchNorm:  o = (x @ w) * scale + bias
    y = jnp.dot(x_ref[...], w_ref[...], preferred_element_type=jnp.float32)
    o_ref[...] = (y * s_ref[...] + b_ref[...]).astype(o_ref.dtype)


def _matmul_bn_add_relu_kernel(x_ref, w_ref, s_ref, b_ref, r_ref, o_ref):
    # conv3(1x1) + bn3 + residual add + final ReLU, fused.
    y = jnp.dot(x_ref[...], w_ref[...], preferred_element_type=jnp.float32)
    y = y * s_ref[...] + b_ref[...] + r_ref[...].astype(jnp.float32)
    o_ref[...] = jnp.maximum(y, 0.0).astype(o_ref.dtype)


# ----------------------------- kernel wrappers ------------------------------

def _common_specs(tile_m, K, N):
    return [
        pl.BlockSpec((tile_m, K), lambda i: (i, 0)),   # activation tile (pipelined)
        pl.BlockSpec((K, N), lambda i: (0, 0)),        # weights, VMEM-resident
        pl.BlockSpec((1, N), lambda i: (0, 0)),        # scale, VMEM-resident
        pl.BlockSpec((1, N), lambda i: (0, 0)),        # bias,  VMEM-resident
    ]


def matmul_bn(x, w, scale, bias, *, tile_m, out_dtype=jnp.float32):
    M, K = x.shape
    N = w.shape[1]
    assert M % tile_m == 0
    flops = 2 * M * K * N
    bytes_accessed = int(x.size * x.dtype.itemsize + w.size * w.dtype.itemsize
                         + (scale.size + bias.size) * 4
                         + M * N * jnp.dtype(out_dtype).itemsize)
    return pl.pallas_call(
        _matmul_bn_kernel,
        out_shape=jax.ShapeDtypeStruct((M, N), out_dtype),
        grid=(M // tile_m,),
        in_specs=_common_specs(tile_m, K, N),
        out_specs=pl.BlockSpec((tile_m, N), lambda i: (i, 0)),
        compiler_params=pltpu.CompilerParams(
            dimension_semantics=("parallel",)),
        cost_estimate=pl.CostEstimate(flops=flops, transcendentals=0,
                                      bytes_accessed=bytes_accessed),
    )(x, w, scale, bias)


def matmul_bn_add_relu(x, w, scale, bias, residual, *, tile_m,
                       out_dtype=jnp.float32):
    M, K = x.shape
    N = w.shape[1]
    assert M % tile_m == 0 and residual.shape == (M, N)
    flops = 2 * M * K * N
    bytes_accessed = int(x.size * x.dtype.itemsize + w.size * w.dtype.itemsize
                         + (scale.size + bias.size) * 4
                         + residual.size * residual.dtype.itemsize
                         + M * N * jnp.dtype(out_dtype).itemsize)
    in_specs = _common_specs(tile_m, K, N) + [
        pl.BlockSpec((tile_m, N), lambda i: (i, 0)),   # residual tile (pipelined)
    ]
    return pl.pallas_call(
        _matmul_bn_add_relu_kernel,
        out_shape=jax.ShapeDtypeStruct((M, N), out_dtype),
        grid=(M // tile_m,),
        in_specs=in_specs,
        out_specs=pl.BlockSpec((tile_m, N), lambda i: (i, 0)),
        compiler_params=pltpu.CompilerParams(
            dimension_semantics=("parallel",)),
        cost_estimate=pl.CostEstimate(flops=flops, transcendentals=0,
                                      bytes_accessed=bytes_accessed),
    )(x, w, scale, bias, residual)


# --------------------------- parameter construction -------------------------

def init_params(key, in_chan, out_chan, stride=1, lane=LANE):
    assert out_chan % 4 == 0
    mid = out_chan // 4
    cin_p = _round_up(in_chan, lane)
    mid_p = _round_up(mid, lane)
    cout_p = _round_up(out_chan, lane)
    keys = jax.random.split(key, 8)

    def kaiming(k, shape, fan_in):  # kaiming_normal_ with a=1 -> std = 1/sqrt(fan_in)
        return jax.random.normal(k, shape, jnp.float32) / jnp.sqrt(fan_in)

    def bn(k, c, c_p):
        k1, k2, k3, k4 = jax.random.split(k, 4)
        gamma = 1.0 + 0.1 * jax.random.normal(k1, (c,), jnp.float32)
        beta = 0.1 * jax.random.normal(k2, (c,), jnp.float32)
        mean = 0.1 * jax.random.normal(k3, (c,), jnp.float32)
        var = 0.5 + jax.random.uniform(k4, (c,), jnp.float32)
        scale = gamma / jnp.sqrt(var + 1e-5)
        bias = beta - mean * scale
        scale = jnp.pad(scale, (0, c_p - c))   # zero-pad: padded channels stay 0
        bias = jnp.pad(bias, (0, c_p - c))
        return scale[None, :].astype(jnp.float32), bias[None, :].astype(jnp.float32)

    p = {"dims": (in_chan, mid, out_chan, cin_p, mid_p, cout_p)}

    # conv1: torch weight (mid, in, 1, 1) -> matmul weight (in, mid), padded, bf16
    w1 = kaiming(keys[0], (mid, in_chan), in_chan).T
    p["w1"] = jnp.pad(w1, ((0, cin_p - in_chan), (0, mid_p - mid))).astype(jnp.bfloat16)
    p["s1"], p["b1"] = bn(keys[1], mid, mid_p)

    # conv2: (mid, mid, 3, 3) -> (kh, kw, in, out) -> padded -> (9*mid_p, mid_p)
    w2 = kaiming(keys[2], (mid, mid, 3, 3), mid * 9)
    w2 = jnp.transpose(w2, (2, 3, 1, 0))                         # (3, 3, in, out)
    w2 = jnp.pad(w2, ((0, 0), (0, 0), (0, mid_p - mid), (0, mid_p - mid)))
    p["w2"] = w2.reshape(9 * mid_p, mid_p).astype(jnp.bfloat16)
    p["s2"], p["b2"] = bn(keys[3], mid, mid_p)

    # conv3: (out, mid, 1, 1) -> (mid, out), padded, bf16
    w3 = kaiming(keys[4], (out_chan, mid), mid).T
    p["w3"] = jnp.pad(w3, ((0, mid_p - mid), (0, cout_p - out_chan))).astype(jnp.bfloat16)
    p["s3"], p["b3"] = bn(keys[5], out_chan, cout_p)

    if in_chan != out_chan or stride != 1:
        wd = kaiming(keys[6], (out_chan, in_chan), in_chan).T
        p["wd"] = jnp.pad(wd, ((0, cin_p - in_chan),
                               (0, cout_p - out_chan))).astype(jnp.bfloat16)
        p["sd"], p["bd"] = bn(keys[7], out_chan, cout_p)
    return p


# ------------------------------- forward pass --------------------------------

def bottleneck_forward(x_nchw, params, out_chan, stride=1,
                       stride_at_1x1=False, dilation=1, tile_m=TILE_M):
    in_chan, mid, out_c, cin_p, mid_p, cout_p = params["dims"]
    assert out_c == out_chan
    s1, s3 = (stride, 1) if stride_at_1x1 else (1, stride)
    d = dilation

    # layout glue (outside the kernels): NCHW -> NHWC, pad channels to lane width
    x = jnp.transpose(x_nchw, (0, 2, 3, 1)).astype(jnp.float32)
    N, H, W, Cin = x.shape
    assert Cin == in_chan
    x_p = jnp.pad(x, ((0, 0), (0, 0), (0, 0), (0, cin_p - Cin)))

    # ---- conv1 (1x1, stride s1) + bn1  (no ReLU here: faithful to the module) ----
    x1 = x_p[:, ::s1, ::s1, :] if s1 > 1 else x_p
    N1, H1, W1, _ = x1.shape
    M1 = N1 * H1 * W1
    t1 = _row_tile(M1, tile_m)
    xr = _pad_rows(x1.reshape(M1, cin_p).astype(jnp.bfloat16), t1)
    y1 = matmul_bn(xr, params["w1"], params["s1"], params["b1"],
                   tile_m=t1, out_dtype=jnp.bfloat16)[:M1]
    y1 = y1.reshape(N1, H1, W1, mid_p)

    # ---- conv2 (3x3, stride s3, padding=d, dilation=d) + bn2 ----
    H2 = (H1 - 1) // s3 + 1
    W2 = (W1 - 1) // s3 + 1
    M2 = N1 * H2 * W2
    y1p = jnp.pad(y1, ((0, 0), (d, d), (d, d), (0, 0)))
    taps = []
    for i in range(3):            # im2col slab building = XLA glue; matmul in Pallas
        for j in range(3):
            t = y1p[:, i * d: i * d + (H2 - 1) * s3 + 1: s3,
                       j * d: j * d + (W2 - 1) * s3 + 1: s3, :]
            taps.append(t.reshape(M2, mid_p))
    slab = jnp.concatenate(taps, axis=1)              # (M2, 9*mid_p): one big K
    t2 = _row_tile(M2, tile_m)
    slab = _pad_rows(slab, t2)
    y2 = matmul_bn(slab, params["w2"], params["s2"], params["b2"],
                   tile_m=t2, out_dtype=jnp.bfloat16)  # rows kept padded

    # ---- residual path (downsample if present) ----
    if "wd" in params:
        xd = x_p[:, ::stride, ::stride, :] if stride > 1 else x_p
        xd = xd.reshape(-1, cin_p)
        assert xd.shape[0] == M2
        xd = _pad_rows(xd.astype(jnp.bfloat16), t2)
        res = matmul_bn(xd, params["wd"], params["sd"], params["bd"],
                        tile_m=t2, out_dtype=jnp.float32)
    else:
        assert in_chan == out_chan and stride == 1 and cin_p == cout_p
        res = _pad_rows(x_p.reshape(M1, cin_p), t2)

    # ---- conv3 (1x1) + bn3 + residual add + final ReLU (one fused kernel) ----
    out = matmul_bn_add_relu(y2, params["w3"], params["s3"], params["b3"], res,
                             tile_m=t2, out_dtype=jnp.float32)
    out = out[:M2, :out_chan].reshape(N1, H2, W2, out_chan)
    return jnp.transpose(out, (0, 3, 1, 2))           # back to NCHW (module contract)


# ------------------------------ pure-JAX reference ---------------------------

def _reference_forward(x_nchw, params, out_chan, stride=1,
                       stride_at_1x1=False, dilation=1):
    in_chan, mid, out_c, cin_p, mid_p, cout_p = params["dims"]
    s1, s3 = (stride, 1) if stride_at_1x1 else (1, stride)
    d = dilation
    dn = ("NHWC", "HWIO", "NHWC")

    w1 = params["w1"][:in_chan, :mid].astype(jnp.float32)
    w2 = params["w2"].astype(jnp.float32).reshape(3, 3, mid_p, mid_p)[:, :, :mid, :mid]
    w3 = params["w3"][:mid, :out_chan].astype(jnp.float32)

    x = jnp.transpose(x_nchw, (0, 2, 3, 1)).astype(jnp.float32)
    y = lax.conv_general_dilated(x, w1[None, None], (s1, s1), "VALID",
                                 dimension_numbers=dn)
    y = y * params["s1"][0, :mid] + params["b1"][0, :mid]
    y = lax.conv_general_dilated(y, w2, (s3, s3), [(d, d), (d, d)],
                                 rhs_dilation=(d, d), dimension_numbers=dn)
    y = y * params["s2"][0, :mid] + params["b2"][0, :mid]
    y = lax.conv_general_dilated(y, w3[None, None], (1, 1), "VALID",
                                 dimension_numbers=dn)
    y = y * params["s3"][0, :out_chan] + params["b3"][0, :out_chan]
    if "wd" in params:
        wd = params["wd"][:in_chan, :out_chan].astype(jnp.float32)
        r = lax.conv_general_dilated(x, wd[None, None], (stride, stride), "VALID",
                                     dimension_numbers=dn)
        r = r * params["sd"][0, :out_chan] + params["bd"][0, :out_chan]
    else:
        r = x
    out = jnp.maximum(y + r, 0.0)
    return jnp.transpose(out, (0, 3, 1, 2))


if __name__ == "__main__":
    key = jax.random.PRNGKey(0)
    kx, kp = jax.random.split(key)

    N, Cin, H, W = 2, 16, 32, 32
    Cout = 32   # divisible by 4; Cin != Cout -> downsample branch active
    stride = 1

    x = jax.random.normal(kx, (N, Cin, H, W), jnp.float32)
    params = init_params(kp, Cin, Cout, stride=stride)

    fwd = jax.jit(lambda xx: bottleneck_forward(xx, params, Cout, stride=stride))
    out = jax.block_until_ready(fwd(x))

    assert out.shape == (N, Cout, H, W), out.shape
    assert bool(jnp.all(out >= 0.0))               # final ReLU
    assert bool(jnp.all(jnp.isfinite(out)))

    # loose numerical check vs. f32 XLA reference (kernel uses bf16 matmul inputs)
    ref = _reference_forward(x, params, Cout, stride=stride)
    max_err = float(jnp.max(jnp.abs(out - ref)))
    assert max_err < 0.5, max_err

    print("KERNEL_OK")
</pallas_src>

<mosaic_0001>
module attributes {stable_mosaic.version = 11 : i64} {
  func.func @_matmul_bn_kernel(%arg0: i32, %arg1: memref<512x128xbf16, #tpu.memory_space<vmem>>, %arg2: memref<128x128xbf16, #tpu.memory_space<vmem>>, %arg3: memref<1x128xf32, #tpu.memory_space<vmem>>, %arg4: memref<1x128xf32, #tpu.memory_space<vmem>>, %arg5: memref<512x128xbf16, #tpu.memory_space<vmem>>) attributes {dimension_semantics = [#tpu.dimension_semantics<parallel>], iteration_bounds = array<i64: 4>, scalar_prefetch = 0 : i64, scratch_operands = 0 : i64, tpu.core_type = #tpu.core_type<tc>, window_params = [{transform_indices = @transform_0, window_bounds = array<i64: 512, 128>}, {pipeline_mode = #tpu.pipeline_mode<synchronous>, transform_indices = @transform_1, window_bounds = array<i64: 128, 128>}, {pipeline_mode = #tpu.pipeline_mode<synchronous>, transform_indices = @transform_2, window_bounds = array<i64: 1, 128>}, {pipeline_mode = #tpu.pipeline_mode<synchronous>, transform_indices = @transform_3, window_bounds = array<i64: 1, 128>}, {transform_indices = @transform_4, window_bounds = array<i64: 512, 128>}]} {
    %c0 = arith.constant 0 : index
    %c0_0 = arith.constant 0 : index
    %0 = vector.load %arg1[%c0, %c0_0] : memref<512x128xbf16, #tpu.memory_space<vmem>>, vector<512x128xbf16>
    %c0_1 = arith.constant 0 : index
    %c0_2 = arith.constant 0 : index
    %1 = vector.load %arg2[%c0_1, %c0_2] : memref<128x128xbf16, #tpu.memory_space<vmem>>, vector<128x128xbf16>
    %cst = arith.constant dense<0.000000e+00> : vector<512x128xf32>
    %2 = tpu.matmul %0, %1, %cst {dimension_numbers = #tpu.dot_dimension_numbers<[1], [0], [0], [1], [0, 0, 1, 1], [], []>} : vector<512x128xbf16>, vector<128x128xbf16>, vector<512x128xf32> -> vector<512x128xf32>
    %c0_3 = arith.constant 0 : index
    %c0_4 = arith.constant 0 : index
    %3 = vector.load %arg3[%c0_3, %c0_4] : memref<1x128xf32, #tpu.memory_space<vmem>>, vector<1x128xf32>
    %4 = vector.broadcast %3 : vector<1x128xf32> to vector<512x128xf32>
    %5 = arith.mulf %2, %4 : vector<512x128xf32>
    %c0_5 = arith.constant 0 : index
    %c0_6 = arith.constant 0 : index
    %6 = vector.load %arg4[%c0_5, %c0_6] : memref<1x128xf32, #tpu.memory_space<vmem>>, vector<1x128xf32>
    %7 = vector.broadcast %6 : vector<1x128xf32> to vector<512x128xf32>
    %8 = arith.addf %5, %7 : vector<512x128xf32>
    %9 = arith.truncf %8 : vector<512x128xf32> to vector<512x128xbf16>
    %c0_7 = arith.constant 0 : index
    %c0_8 = arith.constant 0 : index
    %10 = vector.load %arg5[%c0_7, %c0_8] : memref<512x128xbf16, #tpu.memory_space<vmem>>, vector<512x128xbf16>
    tpu.vector_store %arg5[%c0_7, %c0_8], %9 {strides = array<i32>} : memref<512x128xbf16, #tpu.memory_space<vmem>>, vector<512x128xbf16>,
    return
  }
  func.func @transform_0(%arg0: i32) -> (i32, i32) {
    %c0_i32 = arith.constant 0 : i32
    %c0_i32_0 = arith.constant 0 : i32
    return %arg0, %c0_i32 : i32, i32
  }
  func.func @transform_1(%arg0: i32) -> (i32, i32) {
    %c0_i32 = arith.constant 0 : i32
    %c0_i32_0 = arith.constant 0 : i32
    %c0_i32_1 = arith.constant 0 : i32
    return %c0_i32, %c0_i32_0 : i32, i32
  }
  func.func @transform_2(%arg0: i32) -> (i32, i32) {
    %c0_i32 = arith.constant 0 : i32
    %c0_i32_0 = arith.constant 0 : i32
    %c0_i32_1 = arith.constant 0 : i32
    return %c0_i32, %c0_i32_0 : i32, i32
  }
  func.func @transform_3(%arg0: i32) -> (i32, i32) {
    %c0_i32 = arith.constant 0 : i32
    %c0_i32_0 = arith.constant 0 : i32
    %c0_i32_1 = arith.constant 0 : i32
    return %c0_i32, %c0_i32_0 : i32, i32
  }
  func.func @transform_4(%arg0: i32) -> (i32, i32) {
    %c0_i32 = arith.constant 0 : i32
    %c0_i32_0 = arith.constant 0 : i32
    return %arg0, %c0_i32 : i32, i32
  }
}

module attributes {stable_mosaic.version = 11 : i64} {
  func.func @_matmul_bn_kernel(%arg0: i32, %arg1: memref<512x1152xbf16, #tpu.memory_space<vmem>>, %arg2: memref<1152x128xbf16, #tpu.memory_space<vmem>>, %arg3: memref<1x128xf32, #tpu.memory_space<vmem>>, %arg4: memref<1x128xf32, #tpu.memory_space<vmem>>, %arg5: memref<512x128xbf16, #tpu.memory_space<vmem>>) attributes {dimension_semantics = [#tpu.dimension_semantics<parallel>], iteration_bounds = array<i64: 4>, scalar_prefetch = 0 : i64, scratch_operands = 0 : i64, tpu.core_type = #tpu.core_type<tc>, window_params = [{transform_indices = @transform_0, window_bounds = array<i64: 512, 1152>}, {pipeline_mode = #tpu.pipeline_mode<synchronous>, transform_indices = @transform_1, window_bounds = array<i64: 1152, 128>}, {pipeline_mode = #tpu.pipeline_mode<synchronous>, transform_indices = @transform_2, window_bounds = array<i64: 1, 128>}, {pipeline_mode = #tpu.pipeline_mode<synchronous>, transform_indices = @transform_3, window_bounds = array<i64: 1, 128>}, {transform_indices = @transform_4, window_bounds = array<i64: 512, 128>}]} {
    %c0 = arith.constant 0 : index
    %c0_0 = arith.constant 0 : index
    %0 = vector.load %arg1[%c0, %c0_0] : memref<512x1152xbf16, #tpu.memory_space<vmem>>, vector<512x1152xbf16>
    %c0_1 = arith.constant 0 : index
    %c0_2 = arith.constant 0 : index
    %1 = vector.load %arg2[%c0_1, %c0_2] : memref<1152x128xbf16, #tpu.memory_space<vmem>>, vector<1152x128xbf16>
    %cst = arith.constant dense<0.000000e+00> : vector<512x128xf32>
    %2 = tpu.matmul %0, %1, %cst {dimension_numbers = #tpu.dot_dimension_numbers<[1], [0], [0], [1], [0, 0, 1, 1], [], []>} : vector<512x1152xbf16>, vector<1152x128xbf16>, vector<512x128xf32> -> vector<512x128xf32>
    %c0_3 = arith.constant 0 : index
    %c0_4 = arith.constant 0 : index
    %3 = vector.load %arg3[%c0_3, %c0_4] : memref<1x128xf32, #tpu.memory_space<vmem>>, vector<1x128xf32>
    %4 = vector.broadcast %3 : vector<1x128xf32> to vector<512x128xf32>
    %5 = arith.mulf %2, %4 : vector<512x128xf32>
    %c0_5 = arith.constant 0 : index
    %c0_6 = arith.constant 0 : index
    %6 = vector.load %arg4[%c0_5, %c0_6] : memref<1x128xf32, #tpu.memory_space<vmem>>, vector<1x128xf32>
    %7 = vector.broadcast %6 : vector<1x128xf32> to vector<512x128xf32>
    %8 = arith.addf %5, %7 : vector<512x128xf32>
    %9 = arith.truncf %8 : vector<512x128xf32> to vector<512x128xbf16>
    %c0_7 = arith.constant 0 : index
    %c0_8 = arith.constant 0 : index
    %10 = vector.load %arg5[%c0_7, %c0_8] : memref<512x128xbf16, #tpu.memory_space<vmem>>, vector<512x128xbf16>
    tpu.vector_store %arg5[%c0_7, %c0_8], %9 {strides = array<i32>} : memref<512x128xbf16, #tpu.memory_space<vmem>>, vector<512x128xbf16>,
    return
  }
  func.func @transform_0(%arg0: i32) -> (i32, i32) {
    %c0_i32 = arith.constant 0 : i32
    %c0_i32_0 = arith.constant 0 : i32
    return %arg0, %c0_i32 : i32, i32
  }
  func.func @transform_1(%arg0: i32) -> (i32, i32) {
    %c0_i32 = arith.constant 0 : i32
    %c0_i32_0 = arith.constant 0 : i32
    %c0_i32_1 = arith.constant 0 : i32
    return %c0_i32, %c0_i32_0 : i32, i32
  }
  func.func @transform_2(%arg0: i32) -> (i32, i32) {
    %c0_i32 = arith.constant 0 : i32
    %c0_i32_0 = arith.constant 0 : i32
    %c0_i32_1 = arith.constant 0 : i32
    return %c0_i32, %c0_i32_0 : i32, i32
  }
  func.func @transform_3(%arg0: i32) -> (i32, i32) {
    %c0_i32 = arith.constant 0 : i32
    %c0_i32_0 = arith.constant 0 : i32
    %c0_i32_1 = arith.constant 0 : i32
    return %c0_i32, %c0_i32_0 : i32, i32
  }
  func.func @transform_4(%arg0: i32) -> (i32, i32) {
    %c0_i32 = arith.constant 0 : i32
    %c0_i32_0 = arith.constant 0 : i32
    return %arg0, %c0_i32 : i32, i32
  }
}

module attributes {stable_mosaic.version = 11 : i64} {
  func.func @_matmul_bn_kernel(%arg0: i32, %arg1: memref<512x128xbf16, #tpu.memory_space<vmem>>, %arg2: memref<128x128xbf16, #tpu.memory_space<vmem>>, %arg3: memref<1x128xf32, #tpu.memory_space<vmem>>, %arg4: memref<1x128xf32, #tpu.memory_space<vmem>>, %arg5: memref<512x128xf32, #tpu.memory_space<vmem>>) attributes {dimension_semantics = [#tpu.dimension_semantics<parallel>], iteration_bounds = array<i64: 4>, scalar_prefetch = 0 : i64, scratch_operands = 0 : i64, tpu.core_type = #tpu.core_type<tc>, window_params = [{transform_indices = @transform_0, window_bounds = array<i64: 512, 128>}, {pipeline_mode = #tpu.pipeline_mode<synchronous>, transform_indices = @transform_1, window_bounds = array<i64: 128, 128>}, {pipeline_mode = #tpu.pipeline_mode<synchronous>, transform_indices = @transform_2, window_bounds = array<i64: 1, 128>}, {pipeline_mode = #tpu.pipeline_mode<synchronous>, transform_indices = @transform_3, window_bounds = array<i64: 1, 128>}, {transform_indices = @transform_4, window_bounds = array<i64: 512, 128>}]} {
    %c0 = arith.constant 0 : index
    %c0_0 = arith.constant 0 : index
    %0 = vector.load %arg1[%c0, %c0_0] : memref<512x128xbf16, #tpu.memory_space<vmem>>, vector<512x128xbf16>
    %c0_1 = arith.constant 0 : index
    %c0_2 = arith.constant 0 : index
    %1 = vector.load %arg2[%c0_1, %c0_2] : memref<128x128xbf16, #tpu.memory_space<vmem>>, vector<128x128xbf16>
    %cst = arith.constant dense<0.000000e+00> : vector<512x128xf32>
    %2 = tpu.matmul %0, %1, %cst {dimension_numbers = #tpu.dot_dimension_numbers<[1], [0], [0], [1], [0, 0, 1, 1], [], []>} : vector<512x128xbf16>, vector<128x128xbf16>, vector<512x128xf32> -> vector<512x128xf32>
    %c0_3 = arith.constant 0 : index
    %c0_4 = arith.constant 0 : index
    %3 = vector.load %arg3[%c0_3, %c0_4] : memref<1x128xf32, #tpu.memory_space<vmem>>, vector<1x128xf32>
    %4 = vector.broadcast %3 : vector<1x128xf32> to vector<512x128xf32>
    %5 = arith.mulf %2, %4 : vector<512x128xf32>
    %c0_5 = arith.constant 0 : index
    %c0_6 = arith.constant 0 : index
    %6 = vector.load %arg4[%c0_5, %c0_6] : memref<1x128xf32, #tpu.memory_space<vmem>>, vector<1x128xf32>
    %7 = vector.broadcast %6 : vector<1x128xf32> to vector<512x128xf32>
    %8 = arith.addf %5, %7 : vector<512x128xf32>
    %c0_7 = arith.constant 0 : index
    %c0_8 = arith.constant 0 : index
    %9 = vector.load %arg5[%c0_7, %c0_8] : memref<512x128xf32, #tpu.memory_space<vmem>>, vector<512x128xf32>
    tpu.vector_store %arg5[%c0_7, %c0_8], %8 {strides = array<i32>} : memref<512x128xf32, #tpu.memory_space<vmem>>, vector<512x128xf32>,
    return
  }
  func.func @transform_0(%arg0: i32) -> (i32, i32) {
    %c0_i32 = arith.constant 0 : i32
    %c0_i32_0 = arith.constant 0 : i32
    return %arg0, %c0_i32 : i32, i32
  }
  func.func @transform_1(%arg0: i32) -> (i32, i32) {
    %c0_i32 = arith.constant 0 : i32
    %c0_i32_0 = arith.constant 0 : i32
    %c0_i32_1 = arith.constant 0 : i32
    return %c0_i32, %c0_i32_0 : i32, i32
  }
  func.func @transform_2(%arg0: i32) -> (i32, i32) {
    %c0_i32 = arith.constant 0 : i32
    %c0_i32_0 = arith.constant 0 : i32
    %c0_i32_1 = arith.constant 0 : i32
    return %c0_i32, %c0_i32_0 : i32, i32
  }
  func.func @transform_3(%arg0: i32) -> (i32, i32) {
    %c0_i32 = arith.constant 0 : i32
    %c0_i32_0 = arith.constant 0 : i32
    %c0_i32_1 = arith.constant 0 : i32
    return %c0_i32, %c0_i32_0 : i32, i32
  }
  func.func @transform_4(%arg0: i32) -> (i32, i32) {
    %c0_i32 = arith.constant 0 : i32
    %c0_i32_0 = arith.constant 0 : i32
    return %arg0, %c0_i32 : i32, i32
  }
}

module attributes {stable_mosaic.version = 11 : i64} {
  func.func @_matmul_bn_add_relu_kernel(%arg0: i32, %arg1: memref<512x128xbf16, #tpu.memory_space<vmem>>, %arg2: memref<128x128xbf16, #tpu.memory_space<vmem>>, %arg3: memref<1x128xf32, #tpu.memory_space<vmem>>, %arg4: memref<1x128xf32, #tpu.memory_space<vmem>>, %arg5: memref<512x128xf32, #tpu.memory_space<vmem>>, %arg6: memref<512x128xf32, #tpu.memory_space<vmem>>) attributes {dimension_semantics = [#tpu.dimension_semantics<parallel>], iteration_bounds = array<i64: 4>, scalar_prefetch = 0 : i64, scratch_operands = 0 : i64, tpu.core_type = #tpu.core_type<tc>, window_params = [{transform_indices = @transform_0, window_bounds = array<i64: 512, 128>}, {pipeline_mode = #tpu.pipeline_mode<synchronous>, transform_indices = @transform_1, window_bounds = array<i64: 128, 128>}, {pipeline_mode = #tpu.pipeline_mode<synchronous>, transform_indices = @transform_2, window_bounds = array<i64: 1, 128>}, {pipeline_mode = #tpu.pipeline_mode<synchronous>, transform_indices = @transform_3, window_bounds = array<i64: 1, 128>}, {transform_indices = @transform_4, window_bounds = array<i64: 512, 128>}, {transform_indices = @transform_5, window_bounds = array<i64: 512, 128>}]} {
    %c0 = arith.constant 0 : index
    %c0_0 = arith.constant 0 : index
    %0 = vector.load %arg1[%c0, %c0_0] : memref<512x128xbf16, #tpu.memory_space<vmem>>, vector<512x128xbf16>
    %c0_1 = arith.constant 0 : index
    %c0_2 = arith.constant 0 : index
    %1 = vector.load %arg2[%c0_1, %c0_2] : memref<128x128xbf16, #tpu.memory_space<vmem>>, vector<128x128xbf16>
    %cst = arith.constant dense<0.000000e+00> : vector<512x128xf32>
    %2 = tpu.matmul %0, %1, %cst {dimension_numbers = #tpu.dot_dimension_numbers<[1], [0], [0], [1], [0, 0, 1, 1], [], []>} : vector<512x128xbf16>, vector<128x128xbf16>, vector<512x128xf32> -> vector<512x128xf32>
    %c0_3 = arith.constant 0 : index
    %c0_4 = arith.constant 0 : index
    %3 = vector.load %arg3[%c0_3, %c0_4] : memref<1x128xf32, #tpu.memory_space<vmem>>, vector<1x128xf32>
    %4 = vector.broadcast %3 : vector<1x128xf32> to vector<512x128xf32>
    %5 = arith.mulf %2, %4 : vector<512x128xf32>
    %c0_5 = arith.constant 0 : index
    %c0_6 = arith.constant 0 : index
    %6 = vector.load %arg4[%c0_5, %c0_6] : memref<1x128xf32, #tpu.memory_space<vmem>>, vector<1x128xf32>
    %7 = vector.broadcast %6 : vector<1x128xf32> to vector<512x128xf32>
    %8 = arith.addf %5, %7 : vector<512x128xf32>
    %c0_7 = arith.constant 0 : index
    %c0_8 = arith.constant 0 : index
    %9 = vector.load %arg5[%c0_7, %c0_8] : memref<512x128xf32, #tpu.memory_space<vmem>>, vector<512x128xf32>
    %10 = arith.addf %8, %9 : vector<512x128xf32>
    %cst_9 = arith.constant 0.000000e+00 : f32
    %11 = vector.broadcast %cst_9 : f32 to vector<512x128xf32>
    %12 = arith.maximumf %10, %11 : vector<512x128xf32>
    %c0_10 = arith.constant 0 : index
    %c0_11 = arith.constant 0 : index
    %13 = vector.load %arg6[%c0_10, %c0_11] : memref<512x128xf32, #tpu.memory_space<vmem>>, vector<512x128xf32>
    tpu.vector_store %arg6[%c0_10, %c0_11], %12 {strides = array<i32>} : memref<512x128xf32, #tpu.memory_space<vmem>>, vector<512x128xf32>,
    return
  }
  func.func @transform_0(%arg0: i32) -> (i32, i32) {
    %c0_i32 = arith.constant 0 : i32
    %c0_i32_0 = arith.constant 0 : i32
    return %arg0, %c0_i32 : i32, i32
  }
  func.func @transform_1(%arg0: i32) -> (i32, i32) {
    %c0_i32 = arith.constant 0 : i32
    %c0_i32_0 = arith.constant 0 : i32
    %c0_i32_1 = arith.constant 0 : i32
    return %c0_i32, %c0_i32_0 : i32, i32
  }
  func.func @transform_2(%arg0: i32) -> (i32, i32) {
    %c0_i32 = arith.constant 0 : i32
    %c0_i32_0 = arith.constant 0 : i32
    %c0_i32_1 = arith.constant 0 : i32
    return %c0_i32, %c0_i32_0 : i32, i32
  }
  func.func @transform_3(%arg0: i32) -> (i32, i32) {
    %c0_i32 = arith.constant 0 : i32
    %c0_i32_0 = arith.constant 0 : i32
    %c0_i32_1 = arith.constant 0 : i32
    return %c0_i32, %c0_i32_0 : i32, i32
  }
  func.func @transform_4(%arg0: i32) -> (i32, i32) {
    %c0_i32 = arith.constant 0 : i32
    %c0_i32_0 = arith.constant 0 : i32
    return %arg0, %c0_i32 : i32, i32
  }
  func.func @transform_5(%arg0: i32) -> (i32, i32) {
    %c0_i32 = arith.constant 0 : i32
    %c0_i32_0 = arith.constant 0 : i32
    return %arg0, %c0_i32 : i32, i32
  }
}

</mosaic_0001>

<llo_original>
// kernel: _lambda_.4
$region0: #{_lambda_.4}
  #allocation0 [shape = 'u32[]', space=smem, size = 0x4, offset = 0x4, fixed_abs, tag = 'smem constant byte address 0x4 - core index']
  #allocation1 [shape = 'u32[144,128]{1,0:T(1,128)}', space=vmem, size = 0x12000, scoped, tag = 'internal scratch']
  %s0 = inlined_call_operand.vmem [shape: bf16[2048,128], index: 0, kind: input, shape index: {}]
  %s1 = inlined_call_operand.hbm [shape: bf16[128,128], index: 1, kind: input, shape index: {}]
  %s2 = inlined_call_operand.hbm [shape: f32[1,128], index: 2, kind: input, shape index: {}]
  %s3 = inlined_call_operand.hbm [shape: f32[1,128], index: 3, kind: input, shape index: {}]
  %s4 = inlined_call_operand.vmem [shape: bf16[2048,128], index: 4, kind: output, shape index: {}]
  %s5 = sld [smem:[#allocation0]]
  $region61: #{_lambda_.4} parent=0
    _
  %s7 = ssub.s32 1, %s5
  %s8 = scalar_select 0, %s7, %s5
  $region1: #{_lambda_.4} parent=0
    #allocation2 [shape = 'u8[32768]{0}', space=vmem, size = 0x8000, scoped, tag = 'input window, operand 1, single buffered']
    #allocation3 [shape = 's32[2]{0}', space=sflag, size = 0x8, scoped, tag = 'scoped memory for _lambda_.4']
    #allocation4 [shape = 'u8[512]{0}', space=vmem, size = 0x400, scoped, tag = 'input window, operand 2, single buffered']
    #allocation5 [shape = 's32[1]{0}', space=sflag, size = 0x4, scoped, tag = 'scoped memory for _lambda_.4']
    #allocation6 [shape = 'u8[512]{0}', space=vmem, size = 0x400, scoped, tag = 'input window, operand 3, single buffered']
    %9 = vsyncpa [#allocation3], 0
    %10 = vsyncpa [#allocation5], 0
    loop: start=0, step=1, limit=6
    $region2: #{_lambda_.4} parent=1 // loop_pre_header
      _
    $region3: #{_lambda_.4} parent=1 // loop_header
      %s12 = sphi 0, %s16
      %p13 = scmp.ge.s32.totalorder %s12, 6
      %s22 = sphi 0, %s24
      %s25 = sphi 0, %s22
      %s26 = sphi 0, %s25
      %s42 = sphi 0, %s26
      %s46 = sphi 0, %s46
      %s48 = sphi 0, %s46
      %s49 = sphi 0, %s48
      %s63 = sphi 0, %s49
      %s67 = sphi 0, %s67
      %s69 = sphi 0, %s67
      %s70 = sphi 0, %s69
      %s84 = sphi 0, %s70
      %s88 = sphi 0, %s88
      %s90 = sphi 0, %s88
      %s91 = sphi 0, %s90
      %s105 = sphi 0, %s91
      %s111 = sphi 0, %s113
      %s114 = sphi 0, %s111
      %s115 = sphi 0, %s114
      %s131 = sphi 0, %s115
    $region4: #{_lambda_.4} parent=1 // loop_header_branch
      %15 = sbr.rel (%p13) target = $region8
    $region5: #{_lambda_.4} parent=1 // loop_body
      %s17 = ssub.s32 %s12, 1
      %s18 = ssub.s32 %s12, 2
      %s19 = sadd.s32 %s12, 1
      %s20 = ssub.s32 %s12, %s19
      %p21 = scmp.eq.s32.totalorder %s20, 0
      %s23 = sadd.s32 %s22, 1
      %s24 = scalar_select %p21, %s22, %s23
      %p27 = pneg %p21
      %p28 = scmp.eq.s32.totalorder %s12, 3
      %p29 = por %p27, %p28
      %p30 = scmp.ne.s32.totalorder %s22, %s25
      %p31 = scmp.eq.s32.totalorder %s12, 0
      %p32 = por %p30, %p31
      %p33 = scmp.ne.s32.totalorder %s22, %s25
      %p34 = scmp.eq.s32.totalorder %s17, 3
      %p35 = por %p33, %p34
      %p36 = scmp.ne.s32.totalorder %s25, %s26
      %p37 = scmp.eq.s32.totalorder %s17, 0
      %p38 = por %p36, %p37
      %p39 = scmp.ne.s32.totalorder %s25, %s26
      %p40 = scmp.eq.s32.totalorder %s18, 3
      %p41 = por %p39, %p40
      %p43 = scmp.ne.s32.totalorder %s26, %s42
      %p44 = scmp.eq.s32.totalorder %s18, 0
      %p45 = por %p43, %p44
      %s47 = sadd.s32 %s46, 1
      %p50 = scmp.eq.s32.totalorder %s12, 3
      %p51 = scmp.ne.s32.totalorder %s46, %s48
      %p52 = scmp.eq.s32.totalorder %s12, 0
      %p53 = por %p51, %p52
      %p54 = scmp.ne.s32.totalorder %s46, %s48
      %p55 = scmp.eq.s32.totalorder %s17, 3
      %p56 = por %p54, %p55
      %p57 = scmp.ne.s32.totalorder %s48, %s49
      %p58 = scmp.eq.s32.totalorder %s17, 0
      %p59 = por %p57, %p58
      %p60 = scmp.ne.s32.totalorder %s48, %s49
      %p61 = scmp.eq.s32.totalorder %s18, 3
      %p62 = por %p60, %p61
      %p64 = scmp.ne.s32.totalorder %s49, %s63
      %p65 = scmp.eq.s32.totalorder %s18, 0
      %p66 = por %p64, %p65
      %s68 = sadd.s32 %s67, 1
      %p71 = scmp.eq.s32.totalorder %s12, 3
      %p72 = scmp.ne.s32.totalorder %s67, %s69
      %p73 = scmp.eq.s32.totalorder %s12, 0
      %p74 = por %p72, %p73
      %p75 = scmp.ne.s32.totalorder %s67, %s69
      %p76 = scmp.eq.s32.totalorder %s17, 3
      %p77 = por %p75, %p76
      %p78 = scmp.ne.s32.totalorder %s69, %s70
      %p79 = scmp.eq.s32.totalorder %s17, 0
      %p80 = por %p78, %p79
      %p81 = scmp.ne.s32.totalorder %s69, %s70
      %p82 = scmp.eq.s32.totalorder %s18, 3
      %p83 = por %p81, %p82
      %p85 = scmp.ne.s32.totalorder %s70, %s84
      %p86 = scmp.eq.s32.totalorder %s18, 0
      %p87 = por %p85, %p86
      %s89 = sadd.s32 %s88, 1
      %p92 = scmp.eq.s32.totalorder %s12, 3
      %p93 = scmp.ne.s32.totalorder %s88, %s90
      %p94 = scmp.eq.s32.totalorder %s12, 0
      %p95 = por %p93, %p94
      %p96 = scmp.ne.s32.totalorder %s88, %s90
      %p97 = scmp.eq.s32.totalorder %s17, 3
      %p98 = por %p96, %p97
      %p99 = scmp.ne.s32.totalorder %s90, %s91
      %p100 = scmp.eq.s32.totalorder %s17, 0
      %p101 = por %p99, %p100
      %p102 = scmp.ne.s32.totalorder %s90, %s91
      %p103 = scmp.eq.s32.totalorder %s18, 3
      %p104 = por %p102, %p103
      %p106 = scmp.ne.s32.totalorder %s91, %s105
      %p107 = scmp.eq.s32.totalorder %s18, 0
      %p108 = por %p106, %p107
      %s109 = ssub.s32 %s12, %s19
      %p110 = scmp.eq.s32.totalorder %s109, 0
      %s112 = sadd.s32 %s111, 1
      %s113 = scalar_select %p110, %s111, %s112
      %p116 = pneg %p110
      %p117 = scmp.eq.s32.totalorder %s12, 3
      %p118 = por %p116, %p117
      %p119 = scmp.ne.s32.totalorder %s111, %s114
      %p120 = scmp.eq.s32.totalorder %s12, 0
      %p121 = por %p119, %p120
      %p122 = scmp.ne.s32.totalorder %s111, %s114
      %p123 = scmp.eq.s32.totalorder %s17, 3
      %p124 = por %p122, %p123
      %p125 = scmp.ne.s32.totalorder %s114, %s115
      %p126 = scmp.eq.s32.totalorder %s17, 0
      %p127 = por %p125, %p126
      %p128 = scmp.ne.s32.totalorder %s114, %s115
      %p129 = scmp.eq.s32.totalorder %s18, 3
      %p130 = por %p128, %p129
      %p132 = scmp.ne.s32.totalorder %s115, %s131
      %p133 = scmp.eq.s32.totalorder %s18, 0
      %p134 = por %p132, %p133
      %p135 = scmp.le.s32.totalorder 1, %s12
      %p136 = scmp.lt.s32.totalorder %s12, 5
      %p137 = pnand %p135, %p136
      %p138 = pneg %p137
      // Predicated region
      $region9: #{_lambda_.4} parent=5 // pred_check
        _
      $region10: #{_lambda_.4} parent=5 // pred_check_branch
        %140 = sbr.rel (%p137) target = $region12
      $region11: #{_lambda_.4} parent=5 // pred_region
        %s141 = ssub.s32 %s12, 1
        // Predicated region
        $region13: #{_lambda_.4} parent=11 // pred_check
          %p142 = pneg %p59
        $region14: #{_lambda_.4} parent=11 // pred_check_branch
          %144 = sbr.rel (%p142) target = $region16
        $region15: #{_lambda_.4} parent=11 // pred_region
          %s146 = ssub.s32 1024, 1024
          %147 = vsyncadd [#allocation3], %s146
          %s148 = sshll.u32 [#allocation2], 4
          %s149 = int_to_ptr.vmem [resolvable:$true] %s148
          %154 = dma.hbm_to_vmem [thread:$0]  %s1, 1024, %s149, [#allocation3], 64, 64, 4
        $region16: #{_lambda_.4} parent=11 // pred_fallthru
          _
        // Predicated region
        $region17: #{_lambda_.4} parent=11 // pred_check
          %p155 = pneg %p80
        $region18: #{_lambda_.4} parent=11 // pred_check_branch
          %157 = sbr.rel (%p155) target = $region20
        $region19: #{_lambda_.4} parent=11 // pred_region
          %s159 = ssub.s32 16, 16
          %160 = vsyncadd [#allocation5], %s159
          %s162 = sshll.u32 [#allocation4], 4
          %s163 = int_to_ptr.vmem [resolvable:$true] %s162
          %165 = dma.hbm_to_vmem [thread:$0]  %s2, 16, %s163, [#allocation5]
        $region20: #{_lambda_.4} parent=11 // pred_fallthru
          _
        // Predicated region
        $region21: #{_lambda_.4} parent=11 // pred_check
          %p166 = pneg %p101
        $region22: #{_lambda_.4} parent=11 // pred_check_branch
          %168 = sbr.rel (%p166) target = $region24
        $region23: #{_lambda_.4} parent=11 // pred_region
          %s170 = ssub.s32 16, 16
          %171 = vsyncadd [#allocation5], %s170
          %s173 = sshll.u32 [#allocation6], 4
          %s174 = int_to_ptr.vmem [resolvable:$true] %s173
          %176 = dma.hbm_to_vmem [thread:$0]  %s3, 16, %s174, [#allocation5]
        $region24: #{_lambda_.4} parent=11 // pred_fallthru
          _
      $region12: #{_lambda_.4} parent=5 // pred_fallthru
        _
      %p177 = scmp.lt.s32.totalorder %s12, 4
      // Predicated region
      $region25: #{_lambda_.4} parent=5 // pred_check
        %p178 = pneg %p177
      $region26: #{_lambda_.4} parent=5 // pred_check_branch
        %180 = sbr.rel (%p178) target = $region28
      $region27: #{_lambda_.4} parent=5 // pred_region
        // Predicated region
        $region29: #{_lambda_.4} parent=27 // pred_check
          %p181 = pneg %p32
        $region30: #{_lambda_.4} parent=27 // pred_check_branch
          %183 = sbr.rel (%p181) target = $region32
        $region31: #{_lambda_.4} parent=27 // pred_region
          %s184 = smul.u32 64, %s12
          %p185 = scmp.lt.s32.totalorder %s184, 255
          %s186 = scalar_select %p185, %s184, 255
          %s187 = smul.addr %s186, 4
          %s188 = scalar_lea.vmem %s0, %s187
          %s189 = smul.u32 64, %s12
        $region32: #{_lambda_.4} parent=27 // pred_fallthru
          _
      $region28: #{_lambda_.4} parent=5 // pred_fallthru
        _
      %p190 = scmp.le.s32.totalorder 1, %s12
      %p191 = scmp.lt.s32.totalorder %s12, 5
      %p192 = pnand %p190, %p191
      %p193 = pneg %p192
      // Predicated region
      $region33: #{_lambda_.4} parent=5 // pred_check
        _
      $region34: #{_lambda_.4} parent=5 // pred_check_branch
        %195 = sbr.rel (%p192) target = $region36
      $region35: #{_lambda_.4} parent=5 // pred_region
        %s196 = ssub.s32 %s12, 1
        // Predicated region
        $region37: #{_lambda_.4} parent=35 // pred_check
          %p197 = pneg %p59
        $region38: #{_lambda_.4} parent=35 // pred_check_branch
          %199 = sbr.rel (%p197) target = $region40
        $region39: #{_lambda_.4} parent=35 // pred_region
          %200 = dma.done [#allocation3], 1024
        $region40: #{_lambda_.4} parent=35 // pred_fallthru
          _
        // Predicated region
        $region41: #{_lambda_.4} parent=35 // pred_check
          %p201 = pneg %p80
        $region42: #{_lambda_.4} parent=35 // pred_check_branch
          %203 = sbr.rel (%p201) target = $region44
        $region43: #{_lambda_.4} parent=35 // pred_region
          %204 = dma.done [#allocation5], 16
        $region44: #{_lambda_.4} parent=35 // pred_fallthru
          _
        // Predicated region
        $region45: #{_lambda_.4} parent=35 // pred_check
          %p205 = pneg %p101
        $region46: #{_lambda_.4} parent=35 // pred_check_branch
          %207 = sbr.rel (%p205) target = $region48
        $region47: #{_lambda_.4} parent=35 // pred_region
          %208 = dma.done [#allocation5], 16
        $region48: #{_lambda_.4} parent=35 // pred_fallthru
          _
        %s209 = smul.u32 64, %s17
        %p210 = scmp.lt.s32.totalorder %s209, 255
        %s211 = scalar_select %p210, %s209, 255
        %s212 = smul.addr %s211, 4
        %s213 = scalar_lea.vmem %s0, %s212
        %p214 = pneg %p38
        %p215 = pneg %p35
        %p216 = pneg %p59
        %p217 = pneg %p56
        %p218 = pneg %p80
        %p219 = pneg %p77
        %p220 = pneg %p101
        %p221 = pneg %p98
        %p222 = pneg %p127
        %p223 = pneg %p124
        %s224 = smul.u32 64, %s17
        %p225 = scmp.lt.s32.totalorder %s224, 255
        %s226 = scalar_select %p225, %s224, 255
        %s227 = smul.addr %s226, 4
        %s228 = scalar_lea.vmem %s4, %s227
        %s229 = smul.u32 64, %s17
        %p230 = scmp.lt.s32.totalorder %s229, 255
        %s231 = scalar_select %p230, %s229, 255
        %s232 = smul.addr %s231, 4
        %s233 = scalar_lea.vmem %s0, %s232
        %s234 = smul.u32 64, %s17
        %s235 = smul.u32 64, %s17
        %p236 = scmp.lt.s32.totalorder %s235, 255
        %s237 = scalar_select %p236, %s235, 255
        %s238 = smul.addr %s237, 4
        %s239 = scalar_lea.vmem %s4, %s238
        %s240 = smul.u32 64, %s17
        %v242 = vld [vmem:[%s233] sm:$0xf]
        %v243 = vld [vmem:[%s233 + $0x4] sm:$0xf]
        %v244 = vld [vmem:[%s233 + $0x8] sm:$0xf]
        %v245 = vld [vmem:[%s233 + $0xc] sm:$0xf]
        %v246 = vld [vmem:[%s233 + $0x10] sm:$0xf]
        %v247 = vld [vmem:[%s233 + $0x14] sm:$0xf]
        %v248 = vld [vmem:[%s233 + $0x18] sm:$0xf]
        %v249 = vld [vmem:[%s233 + $0x1c] sm:$0xf]
        %v250 = vld [vmem:[%s233 + $0x20] sm:$0xf]
        %v251 = vld [vmem:[%s233 + $0x24] sm:$0xf]
        %v252 = vld [vmem:[%s233 + $0x28] sm:$0xf]
        %v253 = vld [vmem:[%s233 + $0x2c] sm:$0xf]
        %v254 = vld [vmem:[%s233 + $0x30] sm:$0xf]
        %v255 = vld [vmem:[%s233 + $0x34] sm:$0xf]
        %v256 = vld [vmem:[%s233 + $0x38] sm:$0xf]
        %v257 = vld [vmem:[%s233 + $0x3c] sm:$0xf]
        %v258 = vld [vmem:[%s233 + $0x40] sm:$0xf]
        %v259 = vld [vmem:[%s233 + $0x44] sm:$0xf]
        %v260 = vld [vmem:[%s233 + $0x48] sm:$0xf]
        %v261 = vld [vmem:[%s233 + $0x4c] sm:$0xf]
        %v262 = vld [vmem:[%s233 + $0x50] sm:$0xf]
        %v263 = vld [vmem:[%s233 + $0x54] sm:$0xf]
        %v264 = vld [vmem:[%s233 + $0x58] sm:$0xf]
        %v265 = vld [vmem:[%s233 + $0x5c] sm:$0xf]
        %v266 = vld [vmem:[%s233 + $0x60] sm:$0xf]
        %v267 = vld [vmem:[%s233 + $0x64] sm:$0xf]
        %v268 = vld [vmem:[%s233 + $0x68] sm:$0xf]
        %v269 = vld [vmem:[%s233 + $0x6c] sm:$0xf]
        %v270 = vld [vmem:[%s233 + $0x70] sm:$0xf]
        %v271 = vld [vmem:[%s233 + $0x74] sm:$0xf]
        %v272 = vld [vmem:[%s233 + $0x78] sm:$0xf]
        %v273 = vld [vmem:[%s233 + $0x7c] sm:$0xf]
        %v274 = vld [vmem:[%s233 + $0x80] sm:$0xf]
        %v275 = vld [vmem:[%s233 + $0x84] sm:$0xf]
        %v276 = vld [vmem:[%s233 + $0x88] sm:$0xf]
        %v277 = vld [vmem:[%s233 + $0x8c] sm:$0xf]
        %v278 = vld [vmem:[%s233 + $0x90] sm:$0xf]
        %v279 = vld [vmem:[%s233 + $0x94] sm:$0xf]
        %v280 = vld [vmem:[%s233 + $0x98] sm:$0xf]
        %v281 = vld [vmem:[%s233 + $0x9c] sm:$0xf]
        %v282 = vld [vmem:[%s233 + $0xa0] sm:$0xf]
        %v283 = vld [vmem:[%s233 + $0xa4] sm:$0xf]
        %v284 = vld [vmem:[%s233 + $0xa8] sm:$0xf]
        %v285 = vld [vmem:[%s233 + $0xac] sm:$0xf]
        %v286 = vld [vmem:[%s233 + $0xb0] sm:$0xf]
        %v287 = vld [vmem:[%s233 + $0xb4] sm:$0xf]
        %v288 = vld [vmem:[%s233 + $0xb8] sm:$0xf]
        %v289 = vld [vmem:[%s233 + $0xbc] sm:$0xf]
        %v290 = vld [vmem:[%s233 + $0xc0] sm:$0xf]
        %v291 = vld [vmem:[%s233 + $0xc4] sm:$0xf]
        %v292 = vld [vmem:[%s233 + $0xc8] sm:$0xf]
        %v293 = vld [vmem:[%s233 + $0xcc] sm:$0xf]
        %v294 = vld [vmem:[%s233 + $0xd0] sm:$0xf]
        %v295 = vld [vmem:[%s233 + $0xd4] sm:$0xf]
        %v296 = vld [vmem:[%s233 + $0xd8] sm:$0xf]
        %v297 = vld [vmem:[%s233 + $0xdc] sm:$0xf]
        %v298 = vld [vmem:[%s233 + $0xe0] sm:$0xf]
        %v299 = vld [vmem:[%s233 + $0xe4] sm:$0xf]
        %v300 = vld [vmem:[%s233 + $0xe8] sm:$0xf]
        %v301 = vld [vmem:[%s233 + $0xec] sm:$0xf]
        %v302 = vld [vmem:[%s233 + $0xf0] sm:$0xf]
        %v303 = vld [vmem:[%s233 + $0xf4] sm:$0xf]
        %v304 = vld [vmem:[%s233 + $0xf8] sm:$0xf]
        %v305 = vld [vmem:[%s233 + $0xfc] sm:$0xf]
        %v306 = vld [vmem:[#allocation2] sm:$0xf]
        %v307 = vld [vmem:[#allocation2 + $0x4] sm:$0xf]
        %v308 = vld [vmem:[#allocation2 + $0x8] sm:$0xf]
        %v309 = vld [vmem:[#allocation2 + $0xc] sm:$0xf]
        %v310 = vld [vmem:[#allocation2 + $0x10] sm:$0xf]
        %v311 = vld [vmem:[#allocation2 + $0x14] sm:$0xf]
        %v312 = vld [vmem:[#allocation2 + $0x18] sm:$0xf]
        %v313 = vld [vmem:[#allocation2 + $0x1c] sm:$0xf]
        %v314 = vld [vmem:[#allocation2 + $0x20] sm:$0xf]
        %v315 = vld [vmem:[#allocation2 + $0x24] sm:$0xf]
        %v316 = vld [vmem:[#allocation2 + $0x28] sm:$0xf]
        %v317 = vld [vmem:[#allocation2 + $0x2c] sm:$0xf]
        %v318 = vld [vmem:[#allocation2 + $0x30] sm:$0xf]
        %v319 = vld [vmem:[#allocation2 + $0x34] sm:$0xf]
        %v320 = vld [vmem:[#allocation2 + $0x38] sm:$0xf]
        %v321 = vld [vmem:[#allocation2 + $0x3c] sm:$0xf]
        %v386 = vunpack.c.l.b16 %v242
        %v387 = vunpack.c.l.b16 %v243
        %v388 = vunpack.c.l.b16 %v244
        %v389 = vunpack.c.l.b16 %v245
        %v390 = vunpack.c.l.b16 %v246
        %v391 = vunpack.c.l.b16 %v247
        %v392 = vunpack.c.l.b16 %v248
        %v393 = vunpack.c.l.b16 %v249
        %v394 = vunpack.c.l.b16 %v250
        %v395 = vunpack.c.l.b16 %v251
        %v396 = vunpack.c.l.b16 %v252
        %v397 = vunpack.c.l.b16 %v253
        %v398 = vunpack.c.l.b16 %v254
        %v399 = vunpack.c.l.b16 %v255
        %v400 = vunpack.c.l.b16 %v256
        %v401 = vunpack.c.l.b16 %v257
        %v402 = vunpack.c.l.b16 %v258
        %v403 = vunpack.c.l.b16 %v259
        %v404 = vunpack.c.l.b16 %v260
        %v405 = vunpack.c.l.b16 %v261
        %v406 = vunpack.c.l.b16 %v262
        %v407 = vunpack.c.l.b16 %v263
        %v408 = vunpack.c.l.b16 %v264
        %v409 = vunpack.c.l.b16 %v265
        %v410 = vunpack.c.l.b16 %v266
        %v411 = vunpack.c.l.b16 %v267
        %v412 = vunpack.c.l.b16 %v268
        %v413 = vunpack.c.l.b16 %v269
        %v414 = vunpack.c.l.b16 %v270
        %v415 = vunpack.c.l.b16 %v271
        %v416 = vunpack.c.l.b16 %v272
        %v417 = vunpack.c.l.b16 %v273
        %v418 = vunpack.c.l.b16 %v274
        %v419 = vunpack.c.l.b16 %v275
        %v420 = vunpack.c.l.b16 %v276
        %v421 = vunpack.c.l.b16 %v277
        %v422 = vunpack.c.l.b16 %v278
        %v423 = vunpack.c.l.b16 %v279
        %v424 = vunpack.c.l.b16 %v280
        %v425 = vunpack.c.l.b16 %v281
        %v426 = vunpack.c.l.b16 %v282
        %v427 = vunpack.c.l.b16 %v283
        %v428 = vunpack.c.l.b16 %v284
        %v429 = vunpack.c.l.b16 %v285
        %v430 = vunpack.c.l.b16 %v286
        %v431 = vunpack.c.l.b16 %v287
        %v432 = vunpack.c.l.b16 %v288
        %v433 = vunpack.c.l.b16 %v289
        %v434 = vunpack.c.l.b16 %v290
        %v435 = vunpack.c.l.b16 %v291
        %v436 = vunpack.c.l.b16 %v292
        %v437 = vunpack.c.l.b16 %v293
        %v438 = vunpack.c.l.b16 %v294
        %v439 = vunpack.c.l.b16 %v295
        %v440 = vunpack.c.l.b16 %v296
        %v441 = vunpack.c.l.b16 %v297
        %v442 = vunpack.c.l.b16 %v298
        %v443 = vunpack.c.l.b16 %v299
        %v444 = vunpack.c.l.b16 %v300
        %v445 = vunpack.c.l.b16 %v301
        %v446 = vunpack.c.l.b16 %v302
        %v447 = vunpack.c.l.b16 %v303
        %v448 = vunpack.c.l.b16 %v304
        %v449 = vunpack.c.l.b16 %v305
        %v450 = vpack.c.b16 %v387, %v386
        %v451 = vpack.c.b16 %v389, %v388
        %v452 = vpack.c.b16 %v391, %v390
        %v453 = vpack.c.b16 %v393, %v392
        %v454 = vpack.c.b16 %v395, %v394
        %v455 = vpack.c.b16 %v397, %v396
        %v456 = vpack.c.b16 %v399, %v398
        %v457 = vpack.c.b16 %v401, %v400
        %v458 = vpack.c.b16 %v403, %v402
        %v459 = vpack.c.b16 %v405, %v404
        %v460 = vpack.c.b16 %v407, %v406
        %v461 = vpack.c.b16 %v409, %v408
        %v462 = vpack.c.b16 %v411, %v410
        %v463 = vpack.c.b16 %v413, %v412
        %v464 = vpack.c.b16 %v415, %v414
        %v465 = vpack.c.b16 %v417, %v416
        %v466 = vpack.c.b16 %v419, %v418
        %v467 = vpack.c.b16 %v421, %v420
        %v468 = vpack.c.b16 %v423, %v422
        %v469 = vpack.c.b16 %v425, %v424
        %v470 = vpack.c.b16 %v427, %v426
        %v471 = vpack.c.b16 %v429, %v428
        %v472 = vpack.c.b16 %v431, %v430
        %v473 = vpack.c.b16 %v433, %v432
        %v474 = vpack.c.b16 %v435, %v434
        %v475 = vpack.c.b16 %v437, %v436
        %v476 = vpack.c.b16 %v439, %v438
        %v477 = vpack.c.b16 %v441, %v440
        %v478 = vpack.c.b16 %v443, %v442
        %v479 = vpack.c.b16 %v445, %v444
        %v480 = vpack.c.b16 %v447, %v446
        %v481 = vpack.c.b16 %v449, %v448
        %v530 = vunpack.c.l.b16 %v306
        %v531 = vunpack.c.l.b16 %v307
        %v532 = vunpack.c.l.b16 %v308
        %v533 = vunpack.c.l.b16 %v309
        %v534 = vunpack.c.l.b16 %v310
        %v535 = vunpack.c.l.b16 %v311
        %v536 = vunpack.c.l.b16 %v312
        %v537 = vunpack.c.l.b16 %v313
        %v538 = vunpack.c.l.b16 %v314
        %v539 = vunpack.c.l.b16 %v315
        %v540 = vunpack.c.l.b16 %v316
        %v541 = vunpack.c.l.b16 %v317
        %v542 = vunpack.c.l.b16 %v318
        %v543 = vunpack.c.l.b16 %v319
        %v544 = vunpack.c.l.b16 %v320
        %v545 = vunpack.c.l.b16 %v321
        %v546 = vpack.c.b16 %v531, %v530
        %v547 = vpack.c.b16 %v533, %v532
        %v548 = vpack.c.b16 %v535, %v534
        %v549 = vpack.c.b16 %v537, %v536
        %v550 = vpack.c.b16 %v539, %v538
        %v551 = vpack.c.b16 %v541, %v540
        %v552 = vpack.c.b16 %v543, %v542
        %v553 = vpack.c.b16 %v545, %v544
        %562 = vmatprep.subr.bf16.mxu0 0
        %563 = vmatpush1.bf16.msra.mxu0 %v553
        %564 = vmatprep.subr.bf16.mxu0 0
        %565 = vmatpush1.bf16.msra.mxu0 %v552
        %566 = vmatprep.subr.bf16.mxu0 0
        %567 = vmatpush1.bf16.msra.mxu0 %v551
        %568 = vmatprep.subr.bf16.mxu0 0
        %569 = vmatpush1.bf16.msra.mxu0 %v550
        %570 = vmatprep.subr.bf16.mxu0 0
        %571 = vmatpush1.bf16.msra.mxu0 %v549
        %572 = vmatprep.subr.bf16.mxu0 0
        %573 = vmatpush1.bf16.msra.mxu0 %v548
        %574 = vmatprep.subr.bf16.mxu0 0
        %575 = vmatpush1.bf16.msra.mxu0 %v547
        %576 = vmatprep.subr.bf16.mxu0 0
        %577 = vmatpush1.bf16.msra.mxu0 %v546
        %578 = vmatprep.subr.bf16.mxu0 0
        %579 = vmatpush2.bf16.msra.mxu0 0
        %580 = vmatprep.subr.bf16.mxu0 0
        %581 = vmatpush2.bf16.msra.mxu0 0
        %582 = vmatprep.subr.bf16.mxu0 0
        %583 = vmatpush2.bf16.msra.mxu0 0
        %584 = vmatprep.subr.bf16.mxu0 0
        %585 = vmatpush2.bf16.msra.mxu0 0
        %586 = vmatprep.subr.bf16.mxu0 0
        %587 = vmatpush2.bf16.msra.mxu0 0
        %588 = vmatprep.subr.bf16.mxu0 0
        %589 = vmatpush2.bf16.msra.mxu0 0
        %590 = vmatprep.subr.bf16.mxu0 0
        %591 = vmatpush2.bf16.msra.mxu0 0
        %592 = vmatprep.subr.bf16.mxu0 0
        %593 = vmatpush2.bf16.msra.mxu0 0
        %594 = vmatprep.mubr.bf16.mxu0 0
        %595 = vmatmul.mubr.bf16.gmra.mxu0 %v450
        %v596 = vpop.f32.mrf.mxu0
        %v597 = vadd.f32 0.0, %v596
        %v598 = vpop.f32.mrf.mxu0
        %v599 = vpop.f32.mrf.mxu0
        %v600 = vadd.f32 0.0, %v599
        %v601 = vpop.f32.mrf.mxu0
        %602 = vmatprep.mubr.bf16.mxu0 0
        %603 = vmatmul.mubr.bf16.gmra.mxu0 %v451
        %v604 = vpop.f32.mrf.mxu0
        %v605 = vadd.f32 0.0, %v604
        %v606 = vpop.f32.mrf.mxu0
        %v607 = vpop.f32.mrf.mxu0
        %v608 = vadd.f32 0.0, %v607
        %v609 = vpop.f32.mrf.mxu0
        %610 = vmatprep.mubr.bf16.mxu0 0
        %611 = vmatmul.mubr.bf16.gmra.mxu0 %v452
        %v612 = vpop.f32.mrf.mxu0
        %v613 = vadd.f32 0.0, %v612
        %v614 = vpop.f32.mrf.mxu0
        %v615 = vpop.f32.mrf.mxu0
        %v616 = vadd.f32 0.0, %v615
        %v617 = vpop.f32.mrf.mxu0
        %618 = vmatprep.mubr.bf16.mxu0 0
        %619 = vmatmul.mubr.bf16.gmra.mxu0 %v453
        %v620 = vpop.f32.mrf.mxu0
        %v621 = vadd.f32 0.0, %v620
        %v622 = vpop.f32.mrf.mxu0
        %v623 = vpop.f32.mrf.mxu0
        %v624 = vadd.f32 0.0, %v623
        %v625 = vpop.f32.mrf.mxu0
        %626 = vmatprep.mubr.bf16.mxu0 0
        %627 = vmatmul.mubr.bf16.gmra.mxu0 %v454
        %v628 = vpop.f32.mrf.mxu0
        %v629 = vadd.f32 0.0, %v628
        %v630 = vpop.f32.mrf.mxu0
        %v631 = vpop.f32.mrf.mxu0
        %v632 = vadd.f32 0.0, %v631
        %v633 = vpop.f32.mrf.mxu0
        %634 = vmatprep.mubr.bf16.mxu0 0
        %635 = vmatmul.mubr.bf16.gmra.mxu0 %v455
        %v636 = vpop.f32.mrf.mxu0
        %v637 = vadd.f32 0.0, %v636
        %v638 = vpop.f32.mrf.mxu0
        %v639 = vpop.f32.mrf.mxu0
        %v640 = vadd.f32 0.0, %v639
        %v641 = vpop.f32.mrf.mxu0
        %642 = vmatprep.mubr.bf16.mxu0 0
        %643 = vmatmul.mubr.bf16.gmra.mxu0 %v456
        %v644 = vpop.f32.mrf.mxu0
        %v645 = vadd.f32 0.0, %v644
        %v646 = vpop.f32.mrf.mxu0
        %v647 = vpop.f32.mrf.mxu0
        %v648 = vadd.f32 0.0, %v647
        %v649 = vpop.f32.mrf.mxu0
        %650 = vmatprep.mubr.bf16.mxu0 0
        %651 = vmatmul.mubr.bf16.gmra.mxu0 %v457
        %v652 = vpop.f32.mrf.mxu0
        %v653 = vadd.f32 0.0, %v652
        %v654 = vpop.f32.mrf.mxu0
        %v655 = vpop.f32.mrf.mxu0
        %v656 = vadd.f32 0.0, %v655
        %v657 = vpop.f32.mrf.mxu0
        %658 = vmatprep.mubr.bf16.mxu0 0
        %659 = vmatmul.mubr.bf16.gmra.mxu0 %v458
        %v660 = vpop.f32.mrf.mxu0
        %v661 = vadd.f32 0.0, %v660
        %v662 = vpop.f32.mrf.mxu0
        %v663 = vpop.f32.mrf.mxu0
        %v664 = vadd.f32 0.0, %v663
        %v665 = vpop.f32.mrf.mxu0
        %666 = vmatprep.mubr.bf16.mxu0 0
        %667 = vmatmul.mubr.bf16.gmra.mxu0 %v459
        %v668 = vpop.f32.mrf.mxu0
        %v669 = vadd.f32 0.0, %v668
        %v670 = vpop.f32.mrf.mxu0
        %v671 = vpop.f32.mrf.mxu0
        %v672 = vadd.f32 0.0, %v671
        %v673 = vpop.f32.mrf.mxu0
        %674 = vmatprep.mubr.bf16.mxu0 0
        %675 = vmatmul.mubr.bf16.gmra.mxu0 %v460
        %v676 = vpop.f32.mrf.mxu0
        %v677 = vadd.f32 0.0, %v676
        %v678 = vpop.f32.mrf.mxu0
        %v679 = vpop.f32.mrf.mxu0
        %v680 = vadd.f32 0.0, %v679
        %v681 = vpop.f32.mrf.mxu0
        %682 = vmatprep.mubr.bf16.mxu0 0
        %683 = vmatmul.mubr.bf16.gmra.mxu0 %v461
        %v684 = vpop.f32.mrf.mxu0
        %v685 = vadd.f32 0.0, %v684
        %v686 = vpop.f32.mrf.mxu0
        %v687 = vpop.f32.mrf.mxu0
        %v688 = vadd.f32 0.0, %v687
        %v689 = vpop.f32.mrf.mxu0
        %690 = vmatprep.mubr.bf16.mxu0 0
        %691 = vmatmul.mubr.bf16.gmra.mxu0 %v462
        %v692 = vpop.f32.mrf.mxu0
        %v693 = vadd.f32 0.0, %v692
        %v694 = vpop.f32.mrf.mxu0
        %v695 = vpop.f32.mrf.mxu0
        %v696 = vadd.f32 0.0, %v695
        %v697 = vpop.f32.mrf.mxu0
        %698 = vmatprep.mubr.bf16.mxu0 0
        %699 = vmatmul.mubr.bf16.gmra.mxu0 %v463
        %v700 = vpop.f32.mrf.mxu0
        %v701 = vadd.f32 0.0, %v700
        %v702 = vpop.f32.mrf.mxu0
        %v703 = vpop.f32.mrf.mxu0
        %v704 = vadd.f32 0.0, %v703
        %v705 = vpop.f32.mrf.mxu0
        %706 = vmatprep.mubr.bf16.mxu0 0
        %707 = vmatmul.mubr.bf16.gmra.mxu0 %v464
        %v708 = vpop.f32.mrf.mxu0
        %v709 = vadd.f32 0.0, %v708
        %v710 = vpop.f32.mrf.mxu0
        %v711 = vpop.f32.mrf.mxu0
        %v712 = vadd.f32 0.0, %v711
        %v713 = vpop.f32.mrf.mxu0
        %714 = vmatprep.mubr.bf16.mxu0 0
        %715 = vmatmul.mubr.bf16.gmra.mxu0 %v465
        %v716 = vpop.f32.mrf.mxu0
        %v717 = vadd.f32 0.0, %v716
        %v718 = vpop.f32.mrf.mxu0
        %v719 = vpop.f32.mrf.mxu0
        %v720 = vadd.f32 0.0, %v719
        %v721 = vpop.f32.mrf.mxu0
        %722 = vmatprep.mubr.bf16.mxu0 0
        %723 = vmatmul.mubr.bf16.gmra.mxu0 %v466
        %v724 = vpop.f32.mrf.mxu0
        %v725 = vadd.f32 0.0, %v724
        %v726 = vpop.f32.mrf.mxu0
        %v727 = vpop.f32.mrf.mxu0
        %v728 = vadd.f32 0.0, %v727
        %v729 = vpop.f32.mrf.mxu0
        %730 = vmatprep.mubr.bf16.mxu0 0
        %731 = vmatmul.mubr.bf16.gmra.mxu0 %v467
        %v732 = vpop.f32.mrf.mxu0
        %v733 = vadd.f32 0.0, %v732
        %v734 = vpop.f32.mrf.mxu0
        %v735 = vpop.f32.mrf.mxu0
        %v736 = vadd.f32 0.0, %v735
        %v737 = vpop.f32.mrf.mxu0
        %738 = vmatprep.mubr.bf16.mxu0 0
        %739 = vmatmul.mubr.bf16.gmra.mxu0 %v468
        %v740 = vpop.f32.mrf.mxu0
        %v741 = vadd.f32 0.0, %v740
        %v742 = vpop.f32.mrf.mxu0
        %v743 = vpop.f32.mrf.mxu0
        %v744 = vadd.f32 0.0, %v743
        %v745 = vpop.f32.mrf.mxu0
        %746 = vmatprep.mubr.bf16.mxu0 0
        %747 = vmatmul.mubr.bf16.gmra.mxu0 %v469
        %v748 = vpop.f32.mrf.mxu0
        %v749 = vadd.f32 0.0, %v748
        %v750 = vpop.f32.mrf.mxu0
        %v751 = vpop.f32.mrf.mxu0
        %v752 = vadd.f32 0.0, %v751
        %v753 = vpop.f32.mrf.mxu0
        %754 = vmatprep.mubr.bf16.mxu0 0
        %755 = vmatmul.mubr.bf16.gmra.mxu0 %v470
        %v756 = vpop.f32.mrf.mxu0
        %v757 = vadd.f32 0.0, %v756
        %v758 = vpop.f32.mrf.mxu0
        %v759 = vpop.f32.mrf.mxu0
        %v760 = vadd.f32 0.0, %v759
        %v761 = vpop.f32.mrf.mxu0
        %762 = vmatprep.mubr.bf16.mxu0 0
        %763 = vmatmul.mubr.bf16.gmra.mxu0 %v471
        %v764 = vpop.f32.mrf.mxu0
        %v765 = vadd.f32 0.0, %v764
        %v766 = vpop.f32.mrf.mxu0
        %v767 = vpop.f32.mrf.mxu0
        %v768 = vadd.f32 0.0, %v767
        %v769 = vpop.f32.mrf.mxu0
        %770 = vmatprep.mubr.bf16.mxu0 0
        %771 = vmatmul.mubr.bf16.gmra.mxu0 %v472
        %v772 = vpop.f32.mrf.mxu0
        %v773 = vadd.f32 0.0, %v772
        %v774 = vpop.f32.mrf.mxu0
        %v775 = vpop.f32.mrf.mxu0
        %v776 = vadd.f32 0.0, %v775
        %v777 = vpop.f32.mrf.mxu0
        %778 = vmatprep.mubr.bf16.mxu0 0
        %779 = vmatmul.mubr.bf16.gmra.mxu0 %v473
        %v780 = vpop.f32.mrf.mxu0
        %v781 = vadd.f32 0.0, %v780
        %v782 = vpop.f32.mrf.mxu0
        %v783 = vpop.f32.mrf.mxu0
        %v784 = vadd.f32 0.0, %v783
        %v785 = vpop.f32.mrf.mxu0
        %786 = vmatprep.mubr.bf16.mxu0 0
        %787 = vmatmul.mubr.bf16.gmra.mxu0 %v474
        %v788 = vpop.f32.mrf.mxu0
        %v789 = vadd.f32 0.0, %v788
        %v790 = vpop.f32.mrf.mxu0
        %v791 = vpop.f32.mrf.mxu0
        %v792 = vadd.f32 0.0, %v791
        %v793 = vpop.f32.mrf.mxu0
        %794 = vmatprep.mubr.bf16.mxu0 0
        %795 = vmatmul.mubr.bf16.gmra.mxu0 %v475
        %v796 = vpop.f32.mrf.mxu0
        %v797 = vadd.f32 0.0, %v796
        %v798 = vpop.f32.mrf.mxu0
        %v799 = vpop.f32.mrf.mxu0
        %v800 = vadd.f32 0.0, %v799
        %v801 = vpop.f32.mrf.mxu0
        %802 = vmatprep.mubr.bf16.mxu0 0
        %803 = vmatmul.mubr.bf16.gmra.mxu0 %v476
        %v804 = vpop.f32.mrf.mxu0
        %v805 = vadd.f32 0.0, %v804
        %v806 = vpop.f32.mrf.mxu0
        %v807 = vpop.f32.mrf.mxu0
        %v808 = vadd.f32 0.0, %v807
        %v809 = vpop.f32.mrf.mxu0
        %810 = vmatprep.mubr.bf16.mxu0 0
        %811 = vmatmul.mubr.bf16.gmra.mxu0 %v477
        %v812 = vpop.f32.mrf.mxu0
        %v813 = vadd.f32 0.0, %v812
        %v814 = vpop.f32.mrf.mxu0
        %v815 = vpop.f32.mrf.mxu0
        %v816 = vadd.f32 0.0, %v815
        %v817 = vpop.f32.mrf.mxu0
        %818 = vmatprep.mubr.bf16.mxu0 0
        %819 = vmatmul.mubr.bf16.gmra.mxu0 %v478
        %v820 = vpop.f32.mrf.mxu0
        %v821 = vadd.f32 0.0, %v820
        %v822 = vpop.f32.mrf.mxu0
        %v823 = vpop.f32.mrf.mxu0
        %v824 = vadd.f32 0.0, %v823
        %v825 = vpop.f32.mrf.mxu0
        %826 = vmatprep.mubr.bf16.mxu0 0
        %827 = vmatmul.mubr.bf16.gmra.mxu0 %v479
        %v828 = vpop.f32.mrf.mxu0
        %v829 = vadd.f32 0.0, %v828
        %v830 = vpop.f32.mrf.mxu0
        %v831 = vpop.f32.mrf.mxu0
        %v832 = vadd.f32 0.0, %v831
        %v833 = vpop.f32.mrf.mxu0
        %834 = vmatprep.mubr.bf16.mxu0 0
        %835 = vmatmul.mubr.bf16.gmra.mxu0 %v480
        %v836 = vpop.f32.mrf.mxu0
        %v837 = vadd.f32 0.0, %v836
        %v838 = vpop.f32.mrf.mxu0
        %v839 = vpop.f32.mrf.mxu0
        %v840 = vadd.f32 0.0, %v839
        %v841 = vpop.f32.mrf.mxu0
        %842 = vmatprep.mubr.bf16.mxu0 0
        %843 = vmatmul.mubr.bf16.gmra.mxu0 %v481
        %v844 = vpop.f32.mrf.mxu0
        %v845 = vadd.f32 0.0, %v844
        %v846 = vpop.f32.mrf.mxu0
        %v847 = vpop.f32.mrf.mxu0
        %v848 = vadd.f32 0.0, %v847
        %v849 = vpop.f32.mrf.mxu0
        %850 = vdwg.mxu0
        %v851 = vld [vmem:[#allocation4] sm:$0x1]
        %v853 = vlaneseq
        %v854 = vshrl.u32 %v853, 7
        %v855 = vsub.s32 0, %v854
        %v856 = vrot.slane %v851, %v855
        %v858 = vmul.f32 %v597, %v856
        %v859 = vmul.f32 %v600, %v856
        %v860 = vmul.f32 %v605, %v856
        %v861 = vmul.f32 %v608, %v856
        %v862 = vmul.f32 %v613, %v856
        %v863 = vmul.f32 %v616, %v856
        %v864 = vmul.f32 %v621, %v856
        %v865 = vmul.f32 %v624, %v856
        %v866 = vmul.f32 %v629, %v856
        %v867 = vmul.f32 %v632, %v856
        %v868 = vmul.f32 %v637, %v856
        %v869 = vmul.f32 %v640, %v856
        %v870 = vmul.f32 %v645, %v856
        %v871 = vmul.f32 %v648, %v856
        %v872 = vmul.f32 %v653, %v856
        %v873 = vmul.f32 %v656, %v856
        %v874 = vmul.f32 %v661, %v856
        %v875 = vmul.f32 %v664, %v856
        %v876 = vmul.f32 %v669, %v856
        %v877 = vmul.f32 %v672, %v856
        %v878 = vmul.f32 %v677, %v856
        %v879 = vmul.f32 %v680, %v856
        %v880 = vmul.f32 %v685, %v856
        %v881 = vmul.f32 %v688, %v856
        %v882 = vmul.f32 %v693, %v856
        %v883 = vmul.f32 %v696, %v856
        %v884 = vmul.f32 %v701, %v856
        %v885 = vmul.f32 %v704, %v856
        %v886 = vmul.f32 %v709, %v856
        %v887 = vmul.f32 %v712, %v856
        %v888 = vmul.f32 %v717, %v856
        %v889 = vmul.f32 %v720, %v856
        %v890 = vmul.f32 %v725, %v856
        %v891 = vmul.f32 %v728, %v856
        %v892 = vmul.f32 %v733, %v856
        %v893 = vmul.f32 %v736, %v856
        %v894 = vmul.f32 %v741, %v856
        %v895 = vmul.f32 %v744, %v856
        %v896 = vmul.f32 %v749, %v856
        %v897 = vmul.f32 %v752, %v856
        %v898 = vmul.f32 %v757, %v856
        %v899 = vmul.f32 %v760, %v856
        %v900 = vmul.f32 %v765, %v856
        %v901 = vmul.f32 %v768, %v856
        %v902 = vmul.f32 %v773, %v856
        %v903 = vmul.f32 %v776, %v856
        %v904 = vmul.f32 %v781, %v856
        %v905 = vmul.f32 %v784, %v856
        %v906 = vmul.f32 %v789, %v856
        %v907 = vmul.f32 %v792, %v856
        %v908 = vmul.f32 %v797, %v856
        %v909 = vmul.f32 %v800, %v856
        %v910 = vmul.f32 %v805, %v856
        %v911 = vmul.f32 %v808, %v856
        %v912 = vmul.f32 %v813, %v856
        %v913 = vmul.f32 %v816, %v856
        %v914 = vmul.f32 %v821, %v856
        %v915 = vmul.f32 %v824, %v856
        %v916 = vmul.f32 %v829, %v856
        %v917 = vmul.f32 %v832, %v856
        %v918 = vmul.f32 %v837, %v856
        %v919 = vmul.f32 %v840, %v856
        %v920 = vmul.f32 %v845, %v856
        %v921 = vmul.f32 %v848, %v856
        %v922 = vld [vmem:[#allocation6] sm:$0x1]
        %v924 = vlaneseq
        %v925 = vshrl.u32 %v924, 7
        %v926 = vsub.s32 0, %v925
        %v927 = vrot.slane %v922, %v926
        %v929 = vadd.f32 %v858, %v927
        %v930 = vadd.f32 %v859, %v927
        %v931 = vadd.f32 %v860, %v927
        %v932 = vadd.f32 %v861, %v927
        %v933 = vadd.f32 %v862, %v927
        %v934 = vadd.f32 %v863, %v927
        %v935 = vadd.f32 %v864, %v927
        %v936 = vadd.f32 %v865, %v927
        %v937 = vadd.f32 %v866, %v927
        %v938 = vadd.f32 %v867, %v927
        %v939 = vadd.f32 %v868, %v927
        %v940 = vadd.f32 %v869, %v927
        %v941 = vadd.f32 %v870, %v927
        %v942 = vadd.f32 %v871, %v927
        %v943 = vadd.f32 %v872, %v927
        %v944 = vadd.f32 %v873, %v927
        %v945 = vadd.f32 %v874, %v927
        %v946 = vadd.f32 %v875, %v927
        %v947 = vadd.f32 %v876, %v927
        %v948 = vadd.f32 %v877, %v927
        %v949 = vadd.f32 %v878, %v927
        %v950 = vadd.f32 %v879, %v927
        %v951 = vadd.f32 %v880, %v927
        %v952 = vadd.f32 %v881, %v927
        %v953 = vadd.f32 %v882, %v927
        %v954 = vadd.f32 %v883, %v927
        %v955 = vadd.f32 %v884, %v927
        %v956 = vadd.f32 %v885, %v927
        %v957 = vadd.f32 %v886, %v927
        %v958 = vadd.f32 %v887, %v927
        %v959 = vadd.f32 %v888, %v927
        %v960 = vadd.f32 %v889, %v927
        %v961 = vadd.f32 %v890, %v927
        %v962 = vadd.f32 %v891, %v927
        %v963 = vadd.f32 %v892, %v927
        %v964 = vadd.f32 %v893, %v927
        %v965 = vadd.f32 %v894, %v927
        %v966 = vadd.f32 %v895, %v927
        %v967 = vadd.f32 %v896, %v927
        %v968 = vadd.f32 %v897, %v927
        %v969 = vadd.f32 %v898, %v927
        %v970 = vadd.f32 %v899, %v927
        %v971 = vadd.f32 %v900, %v927
        %v972 = vadd.f32 %v901, %v927
        %v973 = vadd.f32 %v902, %v927
        %v974 = vadd.f32 %v903, %v927
        %v975 = vadd.f32 %v904, %v927
        %v976 = vadd.f32 %v905, %v927
        %v977 = vadd.f32 %v906, %v927
        %v978 = vadd.f32 %v907, %v927
        %v979 = vadd.f32 %v908, %v927
        %v980 = vadd.f32 %v909, %v927
        %v981 = vadd.f32 %v910, %v927
        %v982 = vadd.f32 %v911, %v927
        %v983 = vadd.f32 %v912, %v927
        %v984 = vadd.f32 %v913, %v927
        %v985 = vadd.f32 %v914, %v927
        %v986 = vadd.f32 %v915, %v927
        %v987 = vadd.f32 %v916, %v927
        %v988 = vadd.f32 %v917, %v927
        %v989 = vadd.f32 %v918, %v927
        %v990 = vadd.f32 %v919, %v927
        %v991 = vadd.f32 %v920, %v927
        %v992 = vadd.f32 %v921, %v927
        %v993 = vpack.c.bf16 %v930, %v929
        %v994 = vpack.c.bf16 %v932, %v931
        %v995 = vpack.c.bf16 %v934, %v933
        %v996 = vpack.c.bf16 %v936, %v935
        %v997 = vpack.c.bf16 %v938, %v937
        %v998 = vpack.c.bf16 %v940, %v939
        %v999 = vpack.c.bf16 %v942, %v941
        %v1000 = vpack.c.bf16 %v944, %v943
        %v1001 = vpack.c.bf16 %v946, %v945
        %v1002 = vpack.c.bf16 %v948, %v947
        %v1003 = vpack.c.bf16 %v950, %v949
        %v1004 = vpack.c.bf16 %v952, %v951
        %v1005 = vpack.c.bf16 %v954, %v953
        %v1006 = vpack.c.bf16 %v956, %v955
        %v1007 = vpack.c.bf16 %v958, %v957
        %v1008 = vpack.c.bf16 %v960, %v959
        %v1009 = vpack.c.bf16 %v962, %v961
        %v1010 = vpack.c.bf16 %v964, %v963
        %v1011 = vpack.c.bf16 %v966, %v965
        %v1012 = vpack.c.bf16 %v968, %v967
        %v1013 = vpack.c.bf16 %v970, %v969
        %v1014 = vpack.c.bf16 %v972, %v971
        %v1015 = vpack.c.bf16 %v974, %v973
        %v1016 = vpack.c.bf16 %v976, %v975
        %v1017 = vpack.c.bf16 %v978, %v977
        %v1018 = vpack.c.bf16 %v980, %v979
        %v1019 = vpack.c.bf16 %v982, %v981
        %v1020 = vpack.c.bf16 %v984, %v983
        %v1021 = vpack.c.bf16 %v986, %v985
        %v1022 = vpack.c.bf16 %v988, %v987
        %v1023 = vpack.c.bf16 %v990, %v989
        %v1024 = vpack.c.bf16 %v992, %v991
        %v1057 = vunpack.c.l.b16 %v993
        %v1058 = vunpack.c.h.b16 %v993
        %v1059 = vunpack.c.l.b16 %v994
        %v1060 = vunpack.c.h.b16 %v994
        %v1061 = vunpack.c.l.b16 %v995
        %v1062 = vunpack.c.h.b16 %v995
        %v1063 = vunpack.c.l.b16 %v996
        %v1064 = vunpack.c.h.b16 %v996
        %v1065 = vunpack.c.l.b16 %v997
        %v1066 = vunpack.c.h.b16 %v997
        %v1067 = vunpack.c.l.b16 %v998
        %v1068 = vunpack.c.h.b16 %v998
        %v1069 = vunpack.c.l.b16 %v999
        %v1070 = vunpack.c.h.b16 %v999
        %v1071 = vunpack.c.l.b16 %v1000
        %v1072 = vunpack.c.h.b16 %v1000
        %v1073 = vunpack.c.l.b16 %v1001
        %v1074 = vunpack.c.h.b16 %v1001
        %v1075 = vunpack.c.l.b16 %v1002
        %v1076 = vunpack.c.h.b16 %v1002
        %v1077 = vunpack.c.l.b16 %v1003
        %v1078 = vunpack.c.h.b16 %v1003
        %v1079 = vunpack.c.l.b16 %v1004
        %v1080 = vunpack.c.h.b16 %v1004
        %v1081 = vunpack.c.l.b16 %v1005
        %v1082 = vunpack.c.h.b16 %v1005
        %v1083 = vunpack.c.l.b16 %v1006
        %v1084 = vunpack.c.h.b16 %v1006
        %v1085 = vunpack.c.l.b16 %v1007
        %v1086 = vunpack.c.h.b16 %v1007
        %v1087 = vunpack.c.l.b16 %v1008
        %v1088 = vunpack.c.h.b16 %v1008
        %v1089 = vunpack.c.l.b16 %v1009
        %v1090 = vunpack.c.h.b16 %v1009
        %v1091 = vunpack.c.l.b16 %v1010
        %v1092 = vunpack.c.h.b16 %v1010
        %v1093 = vunpack.c.l.b16 %v1011
        %v1094 = vunpack.c.h.b16 %v1011
        %v1095 = vunpack.c.l.b16 %v1012
        %v1096 = vunpack.c.h.b16 %v1012
        %v1097 = vunpack.c.l.b16 %v1013
        %v1098 = vunpack.c.h.b16 %v1013
        %v1099 = vunpack.c.l.b16 %v1014
        %v1100 = vunpack.c.h.b16 %v1014
        %v1101 = vunpack.c.l.b16 %v1015
        %v1102 = vunpack.c.h.b16 %v1015
        %v1103 = vunpack.c.l.b16 %v1016
        %v1104 = vunpack.c.h.b16 %v1016
        %v1105 = vunpack.c.l.b16 %v1017
        %v1106 = vunpack.c.h.b16 %v1017
        %v1107 = vunpack.c.l.b16 %v1018
        %v1108 = vunpack.c.h.b16 %v1018
        %v1109 = vunpack.c.l.b16 %v1019
        %v1110 = vunpack.c.h.b16 %v1019
        %v1111 = vunpack.c.l.b16 %v1020
        %v1112 = vunpack.c.h.b16 %v1020
        %v1113 = vunpack.c.l.b16 %v1021
        %v1114 = vunpack.c.h.b16 %v1021
        %v1115 = vunpack.c.l.b16 %v1022
        %v1116 = vunpack.c.h.b16 %v1022
        %v1117 = vunpack.c.l.b16 %v1023
        %v1118 = vunpack.c.h.b16 %v1023
        %v1119 = vunpack.c.l.b16 %v1024
        %v1120 = vunpack.c.h.b16 %v1024
        %v1121 = vpack.c.b16 %v1057, %v1057
        %v1122 = vpack.c.b16 %v1058, %v1058
        %v1123 = vpack.c.b16 %v1059, %v1059
        %v1124 = vpack.c.b16 %v1060, %v1060
        %v1125 = vpack.c.b16 %v1061, %v1061
        %v1126 = vpack.c.b16 %v1062, %v1062
        %v1127 = vpack.c.b16 %v1063, %v1063
        %v1128 = vpack.c.b16 %v1064, %v1064
        %v1129 = vpack.c.b16 %v1065, %v1065
        %v1130 = vpack.c.b16 %v1066, %v1066
        %v1131 = vpack.c.b16 %v1067, %v1067
        %v1132 = vpack.c.b16 %v1068, %v1068
        %v1133 = vpack.c.b16 %v1069, %v1069
        %v1134 = vpack.c.b16 %v1070, %v1070
        %v1135 = vpack.c.b16 %v1071, %v1071
        %v1136 = vpack.c.b16 %v1072, %v1072
        %v1137 = vpack.c.b16 %v1073, %v1073
        %v1138 = vpack.c.b16 %v1074, %v1074
        %v1139 = vpack.c.b16 %v1075, %v1075
        %v1140 = vpack.c.b16 %v1076, %v1076
        %v1141 = vpack.c.b16 %v1077, %v1077
        %v1142 = vpack.c.b16 %v1078, %v1078
        %v1143 = vpack.c.b16 %v1079, %v1079
        %v1144 = vpack.c.b16 %v1080, %v1080
        %v1145 = vpack.c.b16 %v1081, %v1081
        %v1146 = vpack.c.b16 %v1082, %v1082
        %v1147 = vpack.c.b16 %v1083, %v1083
        %v1148 = vpack.c.b16 %v1084, %v1084
        %v1149 = vpack.c.b16 %v1085, %v1085
        %v1150 = vpack.c.b16 %v1086, %v1086
        %v1151 = vpack.c.b16 %v1087, %v1087
        %v1152 = vpack.c.b16 %v1088, %v1088
        %v1153 = vpack.c.b16 %v1089, %v1089
        %v1154 = vpack.c.b16 %v1090, %v1090
        %v1155 = vpack.c.b16 %v1091, %v1091
        %v1156 = vpack.c.b16 %v1092, %v1092
        %v1157 = vpack.c.b16 %v1093, %v1093
        %v1158 = vpack.c.b16 %v1094, %v1094
        %v1159 = vpack.c.b16 %v1095, %v1095
        %v1160 = vpack.c.b16 %v1096, %v1096
        %v1161 = vpack.c.b16 %v1097, %v1097
        %v1162 = vpack.c.b16 %v1098, %v1098
        %v1163 = vpack.c.b16 %v1099, %v1099
        %v1164 = vpack.c.b16 %v1100, %v1100
        %v1165 = vpack.c.b16 %v1101, %v1101
        %v1166 = vpack.c.b16 %v1102, %v1102
        %v1167 = vpack.c.b16 %v1103, %v1103
        %v1168 = vpack.c.b16 %v1104, %v1104
        %v1169 = vpack.c.b16 %v1105, %v1105
        %v1170 = vpack.c.b16 %v1106, %v1106
        %v1171 = vpack.c.b16 %v1107, %v1107
        %v1172 = vpack.c.b16 %v1108, %v1108
        %v1173 = vpack.c.b16 %v1109, %v1109
        %v1174 = vpack.c.b16 %v1110, %v1110
        %v1175 = vpack.c.b16 %v1111, %v1111
        %v1176 = vpack.c.b16 %v1112, %v1112
        %v1177 = vpack.c.b16 %v1113, %v1113
        %v1178 = vpack.c.b16 %v1114, %v1114
        %v1179 = vpack.c.b16 %v1115, %v1115
        %v1180 = vpack.c.b16 %v1116, %v1116
        %v1181 = vpack.c.b16 %v1117, %v1117
        %v1182 = vpack.c.b16 %v1118, %v1118
        %v1183 = vpack.c.b16 %v1119, %v1119
        %v1184 = vpack.c.b16 %v1120, %v1120
        %1249 = vst [vmem:[%s239] sm:$0xf] %v1121
        %1250 = vst [vmem:[%s239 + $0x4] sm:$0xf] %v1122
        %1251 = vst [vmem:[%s239 + $0x8] sm:$0xf] %v1123
        %1252 = vst [vmem:[%s239 + $0xc] sm:$0xf] %v1124
        %1253 = vst [vmem:[%s239 + $0x10] sm:$0xf] %v1125
        %1254 = vst [vmem:[%s239 + $0x14] sm:$0xf] %v1126
        %1255 = vst [vmem:[%s239 + $0x18] sm:$0xf] %v1127
        %1256 = vst [vmem:[%s239 + $0x1c] sm:$0xf] %v1128
        %1257 = vst [vmem:[%s239 + $0x20] sm:$0xf] %v1129
        %1258 = vst [vmem:[%s239 + $0x24] sm:$0xf] %v1130
        %1259 = vst [vmem:[%s239 + $0x28] sm:$0xf] %v1131
        %1260 = vst [vmem:[%s239 + $0x2c] sm:$0xf] %v1132
        %1261 = vst [vmem:[%s239 + $0x30] sm:$0xf] %v1133
        %1262 = vst [vmem:[%s239 + $0x34] sm:$0xf] %v1134
        %1263 = vst [vmem:[%s239 + $0x38] sm:$0xf] %v1135
        %1264 = vst [vmem:[%s239 + $0x3c] sm:$0xf] %v1136
        %1265 = vst [vmem:[%s239 + $0x40] sm:$0xf] %v1137
        %1266 = vst [vmem:[%s239 + $0x44] sm:$0xf] %v1138
        %1267 = vst [vmem:[%s239 + $0x48] sm:$0xf] %v1139
        %1268 = vst [vmem:[%s239 + $0x4c] sm:$0xf] %v1140
        %1269 = vst [vmem:[%s239 + $0x50] sm:$0xf] %v1141
        %1270 = vst [vmem:[%s239 + $0x54] sm:$0xf] %v1142
        %1271 = vst [vmem:[%s239 + $0x58] sm:$0xf] %v1143
        %1272 = vst [vmem:[%s239 + $0x5c] sm:$0xf] %v1144
        %1273 = vst [vmem:[%s239 + $0x60] sm:$0xf] %v1145
        %1274 = vst [vmem:[%s239 + $0x64] sm:$0xf] %v1146
        %1275 = vst [vmem:[%s239 + $0x68] sm:$0xf] %v1147
        %1276 = vst [vmem:[%s239 + $0x6c] sm:$0xf] %v1148
        %1277 = vst [vmem:[%s239 + $0x70] sm:$0xf] %v1149
        %1278 = vst [vmem:[%s239 + $0x74] sm:$0xf] %v1150
        %1279 = vst [vmem:[%s239 + $0x78] sm:$0xf] %v1151
        %1280 = vst [vmem:[%s239 + $0x7c] sm:$0xf] %v1152
        %1281 = vst [vmem:[%s239 + $0x80] sm:$0xf] %v1153
        %1282 = vst [vmem:[%s239 + $0x84] sm:$0xf] %v1154
        %1283 = vst [vmem:[%s239 + $0x88] sm:$0xf] %v1155
        %1284 = vst [vmem:[%s239 + $0x8c] sm:$0xf] %v1156
        %1285 = vst [vmem:[%s239 + $0x90] sm:$0xf] %v1157
        %1286 = vst [vmem:[%s239 + $0x94] sm:$0xf] %v1158
        %1287 = vst [vmem:[%s239 + $0x98] sm:$0xf] %v1159
        %1288 = vst [vmem:[%s239 + $0x9c] sm:$0xf] %v1160
        %1289 = vst [vmem:[%s239 + $0xa0] sm:$0xf] %v1161
        %1290 = vst [vmem:[%s239 + $0xa4] sm:$0xf] %v1162
        %1291 = vst [vmem:[%s239 + $0xa8] sm:$0xf] %v1163
        %1292 = vst [vmem:[%s239 + $0xac] sm:$0xf] %v1164
        %1293 = vst [vmem:[%s239 + $0xb0] sm:$0xf] %v1165
        %1294 = vst [vmem:[%s239 + $0xb4] sm:$0xf] %v1166
        %1295 = vst [vmem:[%s239 + $0xb8] sm:$0xf] %v1167
        %1296 = vst [vmem:[%s239 + $0xbc] sm:$0xf] %v1168
        %1297 = vst [vmem:[%s239 + $0xc0] sm:$0xf] %v1169
        %1298 = vst [vmem:[%s239 + $0xc4] sm:$0xf] %v1170
        %1299 = vst [vmem:[%s239 + $0xc8] sm:$0xf] %v1171
        %1300 = vst [vmem:[%s239 + $0xcc] sm:$0xf] %v1172
        %1301 = vst [vmem:[%s239 + $0xd0] sm:$0xf] %v1173
        %1302 = vst [vmem:[%s239 + $0xd4] sm:$0xf] %v1174
        %1303 = vst [vmem:[%s239 + $0xd8] sm:$0xf] %v1175
        %1304 = vst [vmem:[%s239 + $0xdc] sm:$0xf] %v1176
        %1305 = vst [vmem:[%s239 + $0xe0] sm:$0xf] %v1177
        %1306 = vst [vmem:[%s239 + $0xe4] sm:$0xf] %v1178
        %1307 = vst [vmem:[%s239 + $0xe8] sm:$0xf] %v1179
        %1308 = vst [vmem:[%s239 + $0xec] sm:$0xf] %v1180
        %1309 = vst [vmem:[%s239 + $0xf0] sm:$0xf] %v1181
        %1310 = vst [vmem:[%s239 + $0xf4] sm:$0xf] %v1182
        %1311 = vst [vmem:[%s239 + $0xf8] sm:$0xf] %v1183
        %1312 = vst [vmem:[%s239 + $0xfc] sm:$0xf] %v1184
        %s1313 = smul.u32 64, %s17
        %p1314 = scmp.lt.s32.totalorder %s1313, 255
        %s1315 = scalar_select %p1314, %s1313, 255
        %s1316 = smul.addr %s1315, 4
        %s1317 = scalar_lea.vmem %s4, %s1316
        // Predicated region
        $region49: #{_lambda_.4} parent=35 // pred_check
          %p1318 = pneg %p124
        $region50: #{_lambda_.4} parent=35 // pred_check_branch
          %1320 = sbr.rel (%p1318) target = $region52
        $region51: #{_lambda_.4} parent=35 // pred_region
          %s1321 = smul.u32 64, %s17
        $region52: #{_lambda_.4} parent=35 // pred_fallthru
          _
      $region36: #{_lambda_.4} parent=5 // pred_fallthru
        _
      %p1322 = scmp.le.s32.totalorder 2, %s12
      // Predicated region
      $region53: #{_lambda_.4} parent=5 // pred_check
        %p1323 = pneg %p1322
      $region54: #{_lambda_.4} parent=5 // pred_check_branch
        %1325 = sbr.rel (%p1323) target = $region56
      $region55: #{_lambda_.4} parent=5 // pred_region
        %s1326 = ssub.s32 %s12, 2
        // Predicated region
        $region57: #{_lambda_.4} parent=55 // pred_check
          %p1327 = pneg %p130
        $region58: #{_lambda_.4} parent=55 // pred_check_branch
          %1329 = sbr.rel (%p1327) target = $region60
        $region59: #{_lambda_.4} parent=55 // pred_region
          %s1330 = smul.u32 64, %s18
          %p1331 = scmp.lt.s32.totalorder %s1330, 255
          %s1332 = scalar_select %p1331, %s1330, 255
          %s1333 = smul.addr %s1332, 4
          %s1334 = scalar_lea.vmem %s4, %s1333
        $region60: #{_lambda_.4} parent=55 // pred_fallthru
          _
      $region56: #{_lambda_.4} parent=5 // pred_fallthru
        _
    $region6: #{_lambda_.4} parent=1 // loop_footer
      %s16 = sadd.s32 1, %s12
    $region7: #{_lambda_.4} parent=1 // loop_footer_branch
      %11 = sbr.rel target = $region3
    $region8: #{_lambda_.4} parent=1 // loop_exit
      _
    %1335 = vsyncpa [#allocation3], 1
    %s1336 = scalar_lea.sflag [#allocation3], 1
    %1337 = vsyncpa %s1336, 1
    %1338 = vsyncpa [#allocation5], 1

// kernel: _lambda_.6
$region0: #{_lambda_.6}
  #allocation0 [shape = 'u32[]', space=smem, size = 0x4, offset = 0x4, fixed_abs, tag = 'smem constant byte address 0x4 - core index']
  #allocation1 [shape = 'u32[144,128]{1,0:T(1,128)}', space=vmem, size = 0x12000, scoped, tag = 'internal scratch']
  %s0 = inlined_call_operand.vmem [shape: bf16[2048,128], index: 0, kind: input, shape index: {}]
  %s1 = inlined_call_operand.vmem [shape: bf16[128,128], index: 1, kind: input, shape index: {}]
  %s2 = inlined_call_operand.vmem [shape: f32[1,128], index: 2, kind: input, shape index: {}]
  %s3 = inlined_call_operand.vmem [shape: f32[1,128], index: 3, kind: input, shape index: {}]
  %s4 = inlined_call_operand.vmem [shape: f32[2048,128], index: 4, kind: output, shape index: {}]
  %s5 = sld [smem:[#allocation0]]
  $region49: #{_lambda_.6} parent=0
    _
  %s7 = ssub.s32 1, %s5
  %s8 = scalar_select 0, %s7, %s5
  loop: start=0, step=1, limit=6
  $region2: #{_lambda_.6} parent=0 // loop_pre_header
    _
  $region3: #{_lambda_.6} parent=0 // loop_header
    %s10 = sphi 0, %s14
    %p11 = scmp.ge.s32.totalorder %s10, 6
    %s20 = sphi 0, %s22
    %s23 = sphi 0, %s20
    %s24 = sphi 0, %s23
    %s40 = sphi 0, %s24
    %s44 = sphi 0, %s44
    %s46 = sphi 0, %s44
    %s47 = sphi 0, %s46
    %s61 = sphi 0, %s47
    %s65 = sphi 0, %s65
    %s67 = sphi 0, %s65
    %s68 = sphi 0, %s67
    %s82 = sphi 0, %s68
    %s86 = sphi 0, %s86
    %s88 = sphi 0, %s86
    %s89 = sphi 0, %s88
    %s103 = sphi 0, %s89
    %s109 = sphi 0, %s111
    %s112 = sphi 0, %s109
    %s113 = sphi 0, %s112
    %s129 = sphi 0, %s113
  $region4: #{_lambda_.6} parent=0 // loop_header_branch
    %13 = sbr.rel (%p11) target = $region8
  $region5: #{_lambda_.6} parent=0 // loop_body
    %s15 = ssub.s32 %s10, 1
    %s16 = ssub.s32 %s10, 2
    %s17 = sadd.s32 %s10, 1
    %s18 = ssub.s32 %s10, %s17
    %p19 = scmp.eq.s32.totalorder %s18, 0
    %s21 = sadd.s32 %s20, 1
    %s22 = scalar_select %p19, %s20, %s21
    %p25 = pneg %p19
    %p26 = scmp.eq.s32.totalorder %s10, 3
    %p27 = por %p25, %p26
    %p28 = scmp.ne.s32.totalorder %s20, %s23
    %p29 = scmp.eq.s32.totalorder %s10, 0
    %p30 = por %p28, %p29
    %p31 = scmp.ne.s32.totalorder %s20, %s23
    %p32 = scmp.eq.s32.totalorder %s15, 3
    %p33 = por %p31, %p32
    %p34 = scmp.ne.s32.totalorder %s23, %s24
    %p35 = scmp.eq.s32.totalorder %s15, 0
    %p36 = por %p34, %p35
    %p37 = scmp.ne.s32.totalorder %s23, %s24
    %p38 = scmp.eq.s32.totalorder %s16, 3
    %p39 = por %p37, %p38
    %p41 = scmp.ne.s32.totalorder %s24, %s40
    %p42 = scmp.eq.s32.totalorder %s16, 0
    %p43 = por %p41, %p42
    %s45 = sadd.s32 %s44, 1
    %p48 = scmp.eq.s32.totalorder %s10, 3
    %p49 = scmp.ne.s32.totalorder %s44, %s46
    %p50 = scmp.eq.s32.totalorder %s10, 0
    %p51 = por %p49, %p50
    %p52 = scmp.ne.s32.totalorder %s44, %s46
    %p53 = scmp.eq.s32.totalorder %s15, 3
    %p54 = por %p52, %p53
    %p55 = scmp.ne.s32.totalorder %s46, %s47
    %p56 = scmp.eq.s32.totalorder %s15, 0
    %p57 = por %p55, %p56
    %p58 = scmp.ne.s32.totalorder %s46, %s47
    %p59 = scmp.eq.s32.totalorder %s16, 3
    %p60 = por %p58, %p59
    %p62 = scmp.ne.s32.totalorder %s47, %s61
    %p63 = scmp.eq.s32.totalorder %s16, 0
    %p64 = por %p62, %p63
    %s66 = sadd.s32 %s65, 1
    %p69 = scmp.eq.s32.totalorder %s10, 3
    %p70 = scmp.ne.s32.totalorder %s65, %s67
    %p71 = scmp.eq.s32.totalorder %s10, 0
    %p72 = por %p70, %p71
    %p73 = scmp.ne.s32.totalorder %s65, %s67
    %p74 = scmp.eq.s32.totalorder %s15, 3
    %p75 = por %p73, %p74
    %p76 = scmp.ne.s32.totalorder %s67, %s68
    %p77 = scmp.eq.s32.totalorder %s15, 0
    %p78 = por %p76, %p77
    %p79 = scmp.ne.s32.totalorder %s67, %s68
    %p80 = scmp.eq.s32.totalorder %s16, 3
    %p81 = por %p79, %p80
    %p83 = scmp.ne.s32.totalorder %s68, %s82
    %p84 = scmp.eq.s32.totalorder %s16, 0
    %p85 = por %p83, %p84
    %s87 = sadd.s32 %s86, 1
    %p90 = scmp.eq.s32.totalorder %s10, 3
    %p91 = scmp.ne.s32.totalorder %s86, %s88
    %p92 = scmp.eq.s32.totalorder %s10, 0
    %p93 = por %p91, %p92
    %p94 = scmp.ne.s32.totalorder %s86, %s88
    %p95 = scmp.eq.s32.totalorder %s15, 3
    %p96 = por %p94, %p95
    %p97 = scmp.ne.s32.totalorder %s88, %s89
    %p98 = scmp.eq.s32.totalorder %s15, 0
    %p99 = por %p97, %p98
    %p100 = scmp.ne.s32.totalorder %s88, %s89
    %p101 = scmp.eq.s32.totalorder %s16, 3
    %p102 = por %p100, %p101
    %p104 = scmp.ne.s32.totalorder %s89, %s103
    %p105 = scmp.eq.s32.totalorder %s16, 0
    %p106 = por %p104, %p105
    %s107 = ssub.s32 %s10, %s17
    %p108 = scmp.eq.s32.totalorder %s107, 0
    %s110 = sadd.s32 %s109, 1
    %s111 = scalar_select %p108, %s109, %s110
    %p114 = pneg %p108
    %p115 = scmp.eq.s32.totalorder %s10, 3
    %p116 = por %p114, %p115
    %p117 = scmp.ne.s32.totalorder %s109, %s112
    %p118 = scmp.eq.s32.totalorder %s10, 0
    %p119 = por %p117, %p118
    %p120 = scmp.ne.s32.totalorder %s109, %s112
    %p121 = scmp.eq.s32.totalorder %s15, 3
    %p122 = por %p120, %p121
    %p123 = scmp.ne.s32.totalorder %s112, %s113
    %p124 = scmp.eq.s32.totalorder %s15, 0
    %p125 = por %p123, %p124
    %p126 = scmp.ne.s32.totalorder %s112, %s113
    %p127 = scmp.eq.s32.totalorder %s16, 3
    %p128 = por %p126, %p127
    %p130 = scmp.ne.s32.totalorder %s113, %s129
    %p131 = scmp.eq.s32.totalorder %s16, 0
    %p132 = por %p130, %p131
    %p133 = scmp.le.s32.totalorder 1, %s10
    %p134 = scmp.lt.s32.totalorder %s10, 5
    %p135 = pnand %p133, %p134
    %p136 = pneg %p135
    // Predicated region
    $region9: #{_lambda_.6} parent=5 // pred_check
      _
    $region10: #{_lambda_.6} parent=5 // pred_check_branch
      %138 = sbr.rel (%p135) target = $region12
    $region11: #{_lambda_.6} parent=5 // pred_region
      %s139 = ssub.s32 %s10, 1
      // Predicated region
      $region13: #{_lambda_.6} parent=11 // pred_check
        %p140 = pneg %p57
      $region14: #{_lambda_.6} parent=11 // pred_check_branch
        %142 = sbr.rel (%p140) target = $region16
      $region15: #{_lambda_.6} parent=11 // pred_region
        _
      $region16: #{_lambda_.6} parent=11 // pred_fallthru
        _
      // Predicated region
      $region17: #{_lambda_.6} parent=11 // pred_check
        %p143 = pneg %p78
      $region18: #{_lambda_.6} parent=11 // pred_check_branch
        %145 = sbr.rel (%p143) target = $region20
      $region19: #{_lambda_.6} parent=11 // pred_region
        _
      $region20: #{_lambda_.6} parent=11 // pred_fallthru
        _
      // Predicated region
      $region21: #{_lambda_.6} parent=11 // pred_check
        %p146 = pneg %p99
      $region22: #{_lambda_.6} parent=11 // pred_check_branch
        %148 = sbr.rel (%p146) target = $region24
      $region23: #{_lambda_.6} parent=11 // pred_region
        _
      $region24: #{_lambda_.6} parent=11 // pred_fallthru
        _
    $region12: #{_lambda_.6} parent=5 // pred_fallthru
      _
    %p149 = scmp.lt.s32.totalorder %s10, 4
    // Predicated region
    $region25: #{_lambda_.6} parent=5 // pred_check
      %p150 = pneg %p149
    $region26: #{_lambda_.6} parent=5 // pred_check_branch
      %152 = sbr.rel (%p150) target = $region28
    $region27: #{_lambda_.6} parent=5 // pred_region
      // Predicated region
      $region29: #{_lambda_.6} parent=27 // pred_check
        %p153 = pneg %p30
      $region30: #{_lambda_.6} parent=27 // pred_check_branch
        %155 = sbr.rel (%p153) target = $region32
      $region31: #{_lambda_.6} parent=27 // pred_region
        %s156 = smul.u32 64, %s10
        %p157 = scmp.lt.s32.totalorder %s156, 255
        %s158 = scalar_select %p157, %s156, 255
        %s159 = smul.addr %s158, 4
        %s160 = scalar_lea.vmem %s0, %s159
        %s161 = smul.u32 64, %s10
      $region32: #{_lambda_.6} parent=27 // pred_fallthru
        _
    $region28: #{_lambda_.6} parent=5 // pred_fallthru
      _
    %p162 = scmp.le.s32.totalorder 1, %s10
    %p163 = scmp.lt.s32.totalorder %s10, 5
    %p164 = pnand %p162, %p163
    %p165 = pneg %p164
    // Predicated region
    $region33: #{_lambda_.6} parent=5 // pred_check
      _
    $region34: #{_lambda_.6} parent=5 // pred_check_branch
      %167 = sbr.rel (%p164) target = $region36
    $region35: #{_lambda_.6} parent=5 // pred_region
      %s168 = ssub.s32 %s10, 1
      %s169 = smul.u32 64, %s15
      %p170 = scmp.lt.s32.totalorder %s169, 255
      %s171 = scalar_select %p170, %s169, 255
      %s172 = smul.addr %s171, 4
      %s173 = scalar_lea.vmem %s0, %s172
      %p174 = pneg %p36
      %p175 = pneg %p33
      %p176 = pneg %p57
      %p177 = pneg %p54
      %p178 = pneg %p78
      %p179 = pneg %p75
      %p180 = pneg %p99
      %p181 = pneg %p96
      %p182 = pneg %p125
      %p183 = pneg %p122
      %s184 = smul.u32 64, %s15
      %p185 = scmp.lt.s32.totalorder %s184, 255
      %s186 = scalar_select %p185, %s184, 255
      %s187 = smul.addr %s186, 8
      %s188 = scalar_lea.vmem %s4, %s187
      %s189 = smul.u32 64, %s15
      %p190 = scmp.lt.s32.totalorder %s189, 255
      %s191 = scalar_select %p190, %s189, 255
      %s192 = smul.addr %s191, 4
      %s193 = scalar_lea.vmem %s0, %s192
      %s194 = smul.u32 64, %s15
      %s195 = smul.u32 64, %s15
      %p196 = scmp.lt.s32.totalorder %s195, 255
      %s197 = scalar_select %p196, %s195, 255
      %s198 = smul.addr %s197, 8
      %s199 = scalar_lea.vmem %s4, %s198
      %s200 = smul.u32 64, %s15
      %v202 = vld [vmem:[%s193] sm:$0xf]
      %v203 = vld [vmem:[%s193 + $0x4] sm:$0xf]
      %v204 = vld [vmem:[%s193 + $0x8] sm:$0xf]
      %v205 = vld [vmem:[%s193 + $0xc] sm:$0xf]
      %v206 = vld [vmem:[%s193 + $0x10] sm:$0xf]
      %v207 = vld [vmem:[%s193 + $0x14] sm:$0xf]
      %v208 = vld [vmem:[%s193 + $0x18] sm:$0xf]
      %v209 = vld [vmem:[%s193 + $0x1c] sm:$0xf]
      %v210 = vld [vmem:[%s193 + $0x20] sm:$0xf]
      %v211 = vld [vmem:[%s193 + $0x24] sm:$0xf]
      %v212 = vld [vmem:[%s193 + $0x28] sm:$0xf]
      %v213 = vld [vmem:[%s193 + $0x2c] sm:$0xf]
      %v214 = vld [vmem:[%s193 + $0x30] sm:$0xf]
      %v215 = vld [vmem:[%s193 + $0x34] sm:$0xf]
      %v216 = vld [vmem:[%s193 + $0x38] sm:$0xf]
      %v217 = vld [vmem:[%s193 + $0x3c] sm:$0xf]
      %v218 = vld [vmem:[%s193 + $0x40] sm:$0xf]
      %v219 = vld [vmem:[%s193 + $0x44] sm:$0xf]
      %v220 = vld [vmem:[%s193 + $0x48] sm:$0xf]
      %v221 = vld [vmem:[%s193 + $0x4c] sm:$0xf]
      %v222 = vld [vmem:[%s193 + $0x50] sm:$0xf]
      %v223 = vld [vmem:[%s193 + $0x54] sm:$0xf]
      %v224 = vld [vmem:[%s193 + $0x58] sm:$0xf]
      %v225 = vld [vmem:[%s193 + $0x5c] sm:$0xf]
      %v226 = vld [vmem:[%s193 + $0x60] sm:$0xf]
      %v227 = vld [vmem:[%s193 + $0x64] sm:$0xf]
      %v228 = vld [vmem:[%s193 + $0x68] sm:$0xf]
      %v229 = vld [vmem:[%s193 + $0x6c] sm:$0xf]
      %v230 = vld [vmem:[%s193 + $0x70] sm:$0xf]
      %v231 = vld [vmem:[%s193 + $0x74] sm:$0xf]
      %v232 = vld [vmem:[%s193 + $0x78] sm:$0xf]
      %v233 = vld [vmem:[%s193 + $0x7c] sm:$0xf]
      %v234 = vld [vmem:[%s193 + $0x80] sm:$0xf]
      %v235 = vld [vmem:[%s193 + $0x84] sm:$0xf]
      %v236 = vld [vmem:[%s193 + $0x88] sm:$0xf]
      %v237 = vld [vmem:[%s193 + $0x8c] sm:$0xf]
      %v238 = vld [vmem:[%s193 + $0x90] sm:$0xf]
      %v239 = vld [vmem:[%s193 + $0x94] sm:$0xf]
      %v240 = vld [vmem:[%s193 + $0x98] sm:$0xf]
      %v241 = vld [vmem:[%s193 + $0x9c] sm:$0xf]
      %v242 = vld [vmem:[%s193 + $0xa0] sm:$0xf]
      %v243 = vld [vmem:[%s193 + $0xa4] sm:$0xf]
      %v244 = vld [vmem:[%s193 + $0xa8] sm:$0xf]
      %v245 = vld [vmem:[%s193 + $0xac] sm:$0xf]
      %v246 = vld [vmem:[%s193 + $0xb0] sm:$0xf]
      %v247 = vld [vmem:[%s193 + $0xb4] sm:$0xf]
      %v248 = vld [vmem:[%s193 + $0xb8] sm:$0xf]
      %v249 = vld [vmem:[%s193 + $0xbc] sm:$0xf]
      %v250 = vld [vmem:[%s193 + $0xc0] sm:$0xf]
      %v251 = vld [vmem:[%s193 + $0xc4] sm:$0xf]
      %v252 = vld [vmem:[%s193 + $0xc8] sm:$0xf]
      %v253 = vld [vmem:[%s193 + $0xcc] sm:$0xf]
      %v254 = vld [vmem:[%s193 + $0xd0] sm:$0xf]
      %v255 = vld [vmem:[%s193 + $0xd4] sm:$0xf]
      %v256 = vld [vmem:[%s193 + $0xd8] sm:$0xf]
      %v257 = vld [vmem:[%s193 + $0xdc] sm:$0xf]
      %v258 = vld [vmem:[%s193 + $0xe0] sm:$0xf]
      %v259 = vld [vmem:[%s193 + $0xe4] sm:$0xf]
      %v260 = vld [vmem:[%s193 + $0xe8] sm:$0xf]
      %v261 = vld [vmem:[%s193 + $0xec] sm:$0xf]
      %v262 = vld [vmem:[%s193 + $0xf0] sm:$0xf]
      %v263 = vld [vmem:[%s193 + $0xf4] sm:$0xf]
      %v264 = vld [vmem:[%s193 + $0xf8] sm:$0xf]
      %v265 = vld [vmem:[%s193 + $0xfc] sm:$0xf]
      %v266 = vld [vmem:[%s1] sm:$0xf]
      %v267 = vld [vmem:[%s1 + $0x4] sm:$0xf]
      %v268 = vld [vmem:[%s1 + $0x8] sm:$0xf]
      %v269 = vld [vmem:[%s1 + $0xc] sm:$0xf]
      %v270 = vld [vmem:[%s1 + $0x10] sm:$0xf]
      %v271 = vld [vmem:[%s1 + $0x14] sm:$0xf]
      %v272 = vld [vmem:[%s1 + $0x18] sm:$0xf]
      %v273 = vld [vmem:[%s1 + $0x1c] sm:$0xf]
      %v274 = vld [vmem:[%s1 + $0x20] sm:$0xf]
      %v275 = vld [vmem:[%s1 + $0x24] sm:$0xf]
      %v276 = vld [vmem:[%s1 + $0x28] sm:$0xf]
      %v277 = vld [vmem:[%s1 + $0x2c] sm:$0xf]
      %v278 = vld [vmem:[%s1 + $0x30] sm:$0xf]
      %v279 = vld [vmem:[%s1 + $0x34] sm:$0xf]
      %v280 = vld [vmem:[%s1 + $0x38] sm:$0xf]
      %v281 = vld [vmem:[%s1 + $0x3c] sm:$0xf]
      %v346 = vunpack.c.l.b16 %v202
      %v347 = vunpack.c.l.b16 %v203
      %v348 = vunpack.c.l.b16 %v204
      %v349 = vunpack.c.l.b16 %v205
      %v350 = vunpack.c.l.b16 %v206
      %v351 = vunpack.c.l.b16 %v207
      %v352 = vunpack.c.l.b16 %v208
      %v353 = vunpack.c.l.b16 %v209
      %v354 = vunpack.c.l.b16 %v210
      %v355 = vunpack.c.l.b16 %v211
      %v356 = vunpack.c.l.b16 %v212
      %v357 = vunpack.c.l.b16 %v213
      %v358 = vunpack.c.l.b16 %v214
      %v359 = vunpack.c.l.b16 %v215
      %v360 = vunpack.c.l.b16 %v216
      %v361 = vunpack.c.l.b16 %v217
      %v362 = vunpack.c.l.b16 %v218
      %v363 = vunpack.c.l.b16 %v219
      %v364 = vunpack.c.l.b16 %v220
      %v365 = vunpack.c.l.b16 %v221
      %v366 = vunpack.c.l.b16 %v222
      %v367 = vunpack.c.l.b16 %v223
      %v368 = vunpack.c.l.b16 %v224
      %v369 = vunpack.c.l.b16 %v225
      %v370 = vunpack.c.l.b16 %v226
      %v371 = vunpack.c.l.b16 %v227
      %v372 = vunpack.c.l.b16 %v228
      %v373 = vunpack.c.l.b16 %v229
      %v374 = vunpack.c.l.b16 %v230
      %v375 = vunpack.c.l.b16 %v231
      %v376 = vunpack.c.l.b16 %v232
      %v377 = vunpack.c.l.b16 %v233
      %v378 = vunpack.c.l.b16 %v234
      %v379 = vunpack.c.l.b16 %v235
      %v380 = vunpack.c.l.b16 %v236
      %v381 = vunpack.c.l.b16 %v237
      %v382 = vunpack.c.l.b16 %v238
      %v383 = vunpack.c.l.b16 %v239
      %v384 = vunpack.c.l.b16 %v240
      %v385 = vunpack.c.l.b16 %v241
      %v386 = vunpack.c.l.b16 %v242
      %v387 = vunpack.c.l.b16 %v243
      %v388 = vunpack.c.l.b16 %v244
      %v389 = vunpack.c.l.b16 %v245
      %v390 = vunpack.c.l.b16 %v246
      %v391 = vunpack.c.l.b16 %v247
      %v392 = vunpack.c.l.b16 %v248
      %v393 = vunpack.c.l.b16 %v249
      %v394 = vunpack.c.l.b16 %v250
      %v395 = vunpack.c.l.b16 %v251
      %v396 = vunpack.c.l.b16 %v252
      %v397 = vunpack.c.l.b16 %v253
      %v398 = vunpack.c.l.b16 %v254
      %v399 = vunpack.c.l.b16 %v255
      %v400 = vunpack.c.l.b16 %v256
      %v401 = vunpack.c.l.b16 %v257
      %v402 = vunpack.c.l.b16 %v258
      %v403 = vunpack.c.l.b16 %v259
      %v404 = vunpack.c.l.b16 %v260
      %v405 = vunpack.c.l.b16 %v261
      %v406 = vunpack.c.l.b16 %v262
      %v407 = vunpack.c.l.b16 %v263
      %v408 = vunpack.c.l.b16 %v264
      %v409 = vunpack.c.l.b16 %v265
      %v410 = vpack.c.b16 %v347, %v346
      %v411 = vpack.c.b16 %v349, %v348
      %v412 = vpack.c.b16 %v351, %v350
      %v413 = vpack.c.b16 %v353, %v352
      %v414 = vpack.c.b16 %v355, %v354
      %v415 = vpack.c.b16 %v357, %v356
      %v416 = vpack.c.b16 %v359, %v358
      %v417 = vpack.c.b16 %v361, %v360
      %v418 = vpack.c.b16 %v363, %v362
      %v419 = vpack.c.b16 %v365, %v364
      %v420 = vpack.c.b16 %v367, %v366
      %v421 = vpack.c.b16 %v369, %v368
      %v422 = vpack.c.b16 %v371, %v370
      %v423 = vpack.c.b16 %v373, %v372
      %v424 = vpack.c.b16 %v375, %v374
      %v425 = vpack.c.b16 %v377, %v376
      %v426 = vpack.c.b16 %v379, %v378
      %v427 = vpack.c.b16 %v381, %v380
      %v428 = vpack.c.b16 %v383, %v382
      %v429 = vpack.c.b16 %v385, %v384
      %v430 = vpack.c.b16 %v387, %v386
      %v431 = vpack.c.b16 %v389, %v388
      %v432 = vpack.c.b16 %v391, %v390
      %v433 = vpack.c.b16 %v393, %v392
      %v434 = vpack.c.b16 %v395, %v394
      %v435 = vpack.c.b16 %v397, %v396
      %v436 = vpack.c.b16 %v399, %v398
      %v437 = vpack.c.b16 %v401, %v400
      %v438 = vpack.c.b16 %v403, %v402
      %v439 = vpack.c.b16 %v405, %v404
      %v440 = vpack.c.b16 %v407, %v406
      %v441 = vpack.c.b16 %v409, %v408
      %v490 = vunpack.c.l.b16 %v266
      %v491 = vunpack.c.l.b16 %v267
      %v492 = vunpack.c.l.b16 %v268
      %v493 = vunpack.c.l.b16 %v269
      %v494 = vunpack.c.l.b16 %v270
      %v495 = vunpack.c.l.b16 %v271
      %v496 = vunpack.c.l.b16 %v272
      %v497 = vunpack.c.l.b16 %v273
      %v498 = vunpack.c.l.b16 %v274
      %v499 = vunpack.c.l.b16 %v275
      %v500 = vunpack.c.l.b16 %v276
      %v501 = vunpack.c.l.b16 %v277
      %v502 = vunpack.c.l.b16 %v278
      %v503 = vunpack.c.l.b16 %v279
      %v504 = vunpack.c.l.b16 %v280
      %v505 = vunpack.c.l.b16 %v281
      %v506 = vpack.c.b16 %v491, %v490
      %v507 = vpack.c.b16 %v493, %v492
      %v508 = vpack.c.b16 %v495, %v494
      %v509 = vpack.c.b16 %v497, %v496
      %v510 = vpack.c.b16 %v499, %v498
      %v511 = vpack.c.b16 %v501, %v500
      %v512 = vpack.c.b16 %v503, %v502
      %v513 = vpack.c.b16 %v505, %v504
      %522 = vmatprep.subr.bf16.mxu0 0
      %523 = vmatpush1.bf16.msra.mxu0 %v513
      %524 = vmatprep.subr.bf16.mxu0 0
      %525 = vmatpush1.bf16.msra.mxu0 %v512
      %526 = vmatprep.subr.bf16.mxu0 0
      %527 = vmatpush1.bf16.msra.mxu0 %v511
      %528 = vmatprep.subr.bf16.mxu0 0
      %529 = vmatpush1.bf16.msra.mxu0 %v510
      %530 = vmatprep.subr.bf16.mxu0 0
      %531 = vmatpush1.bf16.msra.mxu0 %v509
      %532 = vmatprep.subr.bf16.mxu0 0
      %533 = vmatpush1.bf16.msra.mxu0 %v508
      %534 = vmatprep.subr.bf16.mxu0 0
      %535 = vmatpush1.bf16.msra.mxu0 %v507
      %536 = vmatprep.subr.bf16.mxu0 0
      %537 = vmatpush1.bf16.msra.mxu0 %v506
      %538 = vmatprep.subr.bf16.mxu0 0
      %539 = vmatpush2.bf16.msra.mxu0 0
      %540 = vmatprep.subr.bf16.mxu0 0
      %541 = vmatpush2.bf16.msra.mxu0 0
      %542 = vmatprep.subr.bf16.mxu0 0
      %543 = vmatpush2.bf16.msra.mxu0 0
      %544 = vmatprep.subr.bf16.mxu0 0
      %545 = vmatpush2.bf16.msra.mxu0 0
      %546 = vmatprep.subr.bf16.mxu0 0
      %547 = vmatpush2.bf16.msra.mxu0 0
      %548 = vmatprep.subr.bf16.mxu0 0
      %549 = vmatpush2.bf16.msra.mxu0 0
      %550 = vmatprep.subr.bf16.mxu0 0
      %551 = vmatpush2.bf16.msra.mxu0 0
      %552 = vmatprep.subr.bf16.mxu0 0
      %553 = vmatpush2.bf16.msra.mxu0 0
      %554 = vmatprep.mubr.bf16.mxu0 0
      %555 = vmatmul.mubr.bf16.gmra.mxu0 %v410
      %v556 = vpop.f32.mrf.mxu0
      %v557 = vadd.f32 0.0, %v556
      %v558 = vpop.f32.mrf.mxu0
      %v559 = vpop.f32.mrf.mxu0
      %v560 = vadd.f32 0.0, %v559
      %v561 = vpop.f32.mrf.mxu0
      %562 = vmatprep.mubr.bf16.mxu0 0
      %563 = vmatmul.mubr.bf16.gmra.mxu0 %v411
      %v564 = vpop.f32.mrf.mxu0
      %v565 = vadd.f32 0.0, %v564
      %v566 = vpop.f32.mrf.mxu0
      %v567 = vpop.f32.mrf.mxu0
      %v568 = vadd.f32 0.0, %v567
      %v569 = vpop.f32.mrf.mxu0
      %570 = vmatprep.mubr.bf16.mxu0 0
      %571 = vmatmul.mubr.bf16.gmra.mxu0 %v412
      %v572 = vpop.f32.mrf.mxu0
      %v573 = vadd.f32 0.0, %v572
      %v574 = vpop.f32.mrf.mxu0
      %v575 = vpop.f32.mrf.mxu0
      %v576 = vadd.f32 0.0, %v575
      %v577 = vpop.f32.mrf.mxu0
      %578 = vmatprep.mubr.bf16.mxu0 0
      %579 = vmatmul.mubr.bf16.gmra.mxu0 %v413
      %v580 = vpop.f32.mrf.mxu0
      %v581 = vadd.f32 0.0, %v580
      %v582 = vpop.f32.mrf.mxu0
      %v583 = vpop.f32.mrf.mxu0
      %v584 = vadd.f32 0.0, %v583
      %v585 = vpop.f32.mrf.mxu0
      %586 = vmatprep.mubr.bf16.mxu0 0
      %587 = vmatmul.mubr.bf16.gmra.mxu0 %v414
      %v588 = vpop.f32.mrf.mxu0
      %v589 = vadd.f32 0.0, %v588
      %v590 = vpop.f32.mrf.mxu0
      %v591 = vpop.f32.mrf.mxu0
      %v592 = vadd.f32 0.0, %v591
      %v593 = vpop.f32.mrf.mxu0
      %594 = vmatprep.mubr.bf16.mxu0 0
      %595 = vmatmul.mubr.bf16.gmra.mxu0 %v415
      %v596 = vpop.f32.mrf.mxu0
      %v597 = vadd.f32 0.0, %v596
      %v598 = vpop.f32.mrf.mxu0
      %v599 = vpop.f32.mrf.mxu0
      %v600 = vadd.f32 0.0, %v599
      %v601 = vpop.f32.mrf.mxu0
      %602 = vmatprep.mubr.bf16.mxu0 0
      %603 = vmatmul.mubr.bf16.gmra.mxu0 %v416
      %v604 = vpop.f32.mrf.mxu0
      %v605 = vadd.f32 0.0, %v604
      %v606 = vpop.f32.mrf.mxu0
      %v607 = vpop.f32.mrf.mxu0
      %v608 = vadd.f32 0.0, %v607
      %v609 = vpop.f32.mrf.mxu0
      %610 = vmatprep.mubr.bf16.mxu0 0
      %611 = vmatmul.mubr.bf16.gmra.mxu0 %v417
      %v612 = vpop.f32.mrf.mxu0
      %v613 = vadd.f32 0.0, %v612
      %v614 = vpop.f32.mrf.mxu0
      %v615 = vpop.f32.mrf.mxu0
      %v616 = vadd.f32 0.0, %v615
      %v617 = vpop.f32.mrf.mxu0
      %618 = vmatprep.mubr.bf16.mxu0 0
      %619 = vmatmul.mubr.bf16.gmra.mxu0 %v418
      %v620 = vpop.f32.mrf.mxu0
      %v621 = vadd.f32 0.0, %v620
      %v622 = vpop.f32.mrf.mxu0
      %v623 = vpop.f32.mrf.mxu0
      %v624 = vadd.f32 0.0, %v623
      %v625 = vpop.f32.mrf.mxu0
      %626 = vmatprep.mubr.bf16.mxu0 0
      %627 = vmatmul.mubr.bf16.gmra.mxu0 %v419
      %v628 = vpop.f32.mrf.mxu0
      %v629 = vadd.f32 0.0, %v628
      %v630 = vpop.f32.mrf.mxu0
      %v631 = vpop.f32.mrf.mxu0
      %v632 = vadd.f32 0.0, %v631
      %v633 = vpop.f32.mrf.mxu0
      %634 = vmatprep.mubr.bf16.mxu0 0
      %635 = vmatmul.mubr.bf16.gmra.mxu0 %v420
      %v636 = vpop.f32.mrf.mxu0
      %v637 = vadd.f32 0.0, %v636
      %v638 = vpop.f32.mrf.mxu0
      %v639 = vpop.f32.mrf.mxu0
      %v640 = vadd.f32 0.0, %v639
      %v641 = vpop.f32.mrf.mxu0
      %642 = vmatprep.mubr.bf16.mxu0 0
      %643 = vmatmul.mubr.bf16.gmra.mxu0 %v421
      %v644 = vpop.f32.mrf.mxu0
      %v645 = vadd.f32 0.0, %v644
      %v646 = vpop.f32.mrf.mxu0
      %v647 = vpop.f32.mrf.mxu0
      %v648 = vadd.f32 0.0, %v647
      %v649 = vpop.f32.mrf.mxu0
      %650 = vmatprep.mubr.bf16.mxu0 0
      %651 = vmatmul.mubr.bf16.gmra.mxu0 %v422
      %v652 = vpop.f32.mrf.mxu0
      %v653 = vadd.f32 0.0, %v652
      %v654 = vpop.f32.mrf.mxu0
      %v655 = vpop.f32.mrf.mxu0
      %v656 = vadd.f32 0.0, %v655
      %v657 = vpop.f32.mrf.mxu0
      %658 = vmatprep.mubr.bf16.mxu0 0
      %659 = vmatmul.mubr.bf16.gmra.mxu0 %v423
      %v660 = vpop.f32.mrf.mxu0
      %v661 = vadd.f32 0.0, %v660
      %v662 = vpop.f32.mrf.mxu0
      %v663 = vpop.f32.mrf.mxu0
      %v664 = vadd.f32 0.0, %v663
      %v665 = vpop.f32.mrf.mxu0
      %666 = vmatprep.mubr.bf16.mxu0 0
      %667 = vmatmul.mubr.bf16.gmra.mxu0 %v424
      %v668 = vpop.f32.mrf.mxu0
      %v669 = vadd.f32 0.0, %v668
      %v670 = vpop.f32.mrf.mxu0
      %v671 = vpop.f32.mrf.mxu0
      %v672 = vadd.f32 0.0, %v671
      %v673 = vpop.f32.mrf.mxu0
      %674 = vmatprep.mubr.bf16.mxu0 0
      %675 = vmatmul.mubr.bf16.gmra.mxu0 %v425
      %v676 = vpop.f32.mrf.mxu0
      %v677 = vadd.f32 0.0, %v676
      %v678 = vpop.f32.mrf.mxu0
      %v679 = vpop.f32.mrf.mxu0
      %v680 = vadd.f32 0.0, %v679
      %v681 = vpop.f32.mrf.mxu0
      %682 = vmatprep.mubr.bf16.mxu0 0
      %683 = vmatmul.mubr.bf16.gmra.mxu0 %v426
      %v684 = vpop.f32.mrf.mxu0
      %v685 = vadd.f32 0.0, %v684
      %v686 = vpop.f32.mrf.mxu0
      %v687 = vpop.f32.mrf.mxu0
      %v688 = vadd.f32 0.0, %v687
      %v689 = vpop.f32.mrf.mxu0
      %690 = vmatprep.mubr.bf16.mxu0 0
      %691 = vmatmul.mubr.bf16.gmra.mxu0 %v427
      %v692 = vpop.f32.mrf.mxu0
      %v693 = vadd.f32 0.0, %v692
      %v694 = vpop.f32.mrf.mxu0
      %v695 = vpop.f32.mrf.mxu0
      %v696 = vadd.f32 0.0, %v695
      %v697 = vpop.f32.mrf.mxu0
      %698 = vmatprep.mubr.bf16.mxu0 0
      %699 = vmatmul.mubr.bf16.gmra.mxu0 %v428
      %v700 = vpop.f32.mrf.mxu0
      %v701 = vadd.f32 0.0, %v700
      %v702 = vpop.f32.mrf.mxu0
      %v703 = vpop.f32.mrf.mxu0
      %v704 = vadd.f32 0.0, %v703
      %v705 = vpop.f32.mrf.mxu0
      %706 = vmatprep.mubr.bf16.mxu0 0
      %707 = vmatmul.mubr.bf16.gmra.mxu0 %v429
      %v708 = vpop.f32.mrf.mxu0
      %v709 = vadd.f32 0.0, %v708
      %v710 = vpop.f32.mrf.mxu0
      %v711 = vpop.f32.mrf.mxu0
      %v712 = vadd.f32 0.0, %v711
      %v713 = vpop.f32.mrf.mxu0
      %714 = vmatprep.mubr.bf16.mxu0 0
      %715 = vmatmul.mubr.bf16.gmra.mxu0 %v430
      %v716 = vpop.f32.mrf.mxu0
      %v717 = vadd.f32 0.0, %v716
      %v718 = vpop.f32.mrf.mxu0
      %v719 = vpop.f32.mrf.mxu0
      %v720 = vadd.f32 0.0, %v719
      %v721 = vpop.f32.mrf.mxu0
      %722 = vmatprep.mubr.bf16.mxu0 0
      %723 = vmatmul.mubr.bf16.gmra.mxu0 %v431
      %v724 = vpop.f32.mrf.mxu0
      %v725 = vadd.f32 0.0, %v724
      %v726 = vpop.f32.mrf.mxu0
      %v727 = vpop.f32.mrf.mxu0
      %v728 = vadd.f32 0.0, %v727
      %v729 = vpop.f32.mrf.mxu0
      %730 = vmatprep.mubr.bf16.mxu0 0
      %731 = vmatmul.mubr.bf16.gmra.mxu0 %v432
      %v732 = vpop.f32.mrf.mxu0
      %v733 = vadd.f32 0.0, %v732
      %v734 = vpop.f32.mrf.mxu0
      %v735 = vpop.f32.mrf.mxu0
      %v736 = vadd.f32 0.0, %v735
      %v737 = vpop.f32.mrf.mxu0
      %738 = vmatprep.mubr.bf16.mxu0 0
      %739 = vmatmul.mubr.bf16.gmra.mxu0 %v433
      %v740 = vpop.f32.mrf.mxu0
      %v741 = vadd.f32 0.0, %v740
      %v742 = vpop.f32.mrf.mxu0
      %v743 = vpop.f32.mrf.mxu0
      %v744 = vadd.f32 0.0, %v743
      %v745 = vpop.f32.mrf.mxu0
      %746 = vmatprep.mubr.bf16.mxu0 0
      %747 = vmatmul.mubr.bf16.gmra.mxu0 %v434
      %v748 = vpop.f32.mrf.mxu0
      %v749 = vadd.f32 0.0, %v748
      %v750 = vpop.f32.mrf.mxu0
      %v751 = vpop.f32.mrf.mxu0
      %v752 = vadd.f32 0.0, %v751
      %v753 = vpop.f32.mrf.mxu0
      %754 = vmatprep.mubr.bf16.mxu0 0
      %755 = vmatmul.mubr.bf16.gmra.mxu0 %v435
      %v756 = vpop.f32.mrf.mxu0
      %v757 = vadd.f32 0.0, %v756
      %v758 = vpop.f32.mrf.mxu0
      %v759 = vpop.f32.mrf.mxu0
      %v760 = vadd.f32 0.0, %v759
      %v761 = vpop.f32.mrf.mxu0
      %762 = vmatprep.mubr.bf16.mxu0 0
      %763 = vmatmul.mubr.bf16.gmra.mxu0 %v436
      %v764 = vpop.f32.mrf.mxu0
      %v765 = vadd.f32 0.0, %v764
      %v766 = vpop.f32.mrf.mxu0
      %v767 = vpop.f32.mrf.mxu0
      %v768 = vadd.f32 0.0, %v767
      %v769 = vpop.f32.mrf.mxu0
      %770 = vmatprep.mubr.bf16.mxu0 0
      %771 = vmatmul.mubr.bf16.gmra.mxu0 %v437
      %v772 = vpop.f32.mrf.mxu0
      %v773 = vadd.f32 0.0, %v772
      %v774 = vpop.f32.mrf.mxu0
      %v775 = vpop.f32.mrf.mxu0
      %v776 = vadd.f32 0.0, %v775
      %v777 = vpop.f32.mrf.mxu0
      %778 = vmatprep.mubr.bf16.mxu0 0
      %779 = vmatmul.mubr.bf16.gmra.mxu0 %v438
      %v780 = vpop.f32.mrf.mxu0
      %v781 = vadd.f32 0.0, %v780
      %v782 = vpop.f32.mrf.mxu0
      %v783 = vpop.f32.mrf.mxu0
      %v784 = vadd.f32 0.0, %v783
      %v785 = vpop.f32.mrf.mxu0
      %786 = vmatprep.mubr.bf16.mxu0 0
      %787 = vmatmul.mubr.bf16.gmra.mxu0 %v439
      %v788 = vpop.f32.mrf.mxu0
      %v789 = vadd.f32 0.0, %v788
      %v790 = vpop.f32.mrf.mxu0
      %v791 = vpop.f32.mrf.mxu0
      %v792 = vadd.f32 0.0, %v791
      %v793 = vpop.f32.mrf.mxu0
      %794 = vmatprep.mubr.bf16.mxu0 0
      %795 = vmatmul.mubr.bf16.gmra.mxu0 %v440
      %v796 = vpop.f32.mrf.mxu0
      %v797 = vadd.f32 0.0, %v796
      %v798 = vpop.f32.mrf.mxu0
      %v799 = vpop.f32.mrf.mxu0
      %v800 = vadd.f32 0.0, %v799
      %v801 = vpop.f32.mrf.mxu0
      %802 = vmatprep.mubr.bf16.mxu0 0
      %803 = vmatmul.mubr.bf16.gmra.mxu0 %v441
      %v804 = vpop.f32.mrf.mxu0
      %v805 = vadd.f32 0.0, %v804
      %v806 = vpop.f32.mrf.mxu0
      %v807 = vpop.f32.mrf.mxu0
      %v808 = vadd.f32 0.0, %v807
      %v809 = vpop.f32.mrf.mxu0
      %810 = vdwg.mxu0
      %v811 = vld [vmem:[%s2] sm:$0x1]
      %v813 = vlaneseq
      %v814 = vshrl.u32 %v813, 7
      %v815 = vsub.s32 0, %v814
      %v816 = vrot.slane %v811, %v815
      %v818 = vmul.f32 %v557, %v816
      %v819 = vmul.f32 %v560, %v816
      %v820 = vmul.f32 %v565, %v816
      %v821 = vmul.f32 %v568, %v816
      %v822 = vmul.f32 %v573, %v816
      %v823 = vmul.f32 %v576, %v816
      %v824 = vmul.f32 %v581, %v816
      %v825 = vmul.f32 %v584, %v816
      %v826 = vmul.f32 %v589, %v816
      %v827 = vmul.f32 %v592, %v816
      %v828 = vmul.f32 %v597, %v816
      %v829 = vmul.f32 %v600, %v816
      %v830 = vmul.f32 %v605, %v816
      %v831 = vmul.f32 %v608, %v816
      %v832 = vmul.f32 %v613, %v816
      %v833 = vmul.f32 %v616, %v816
      %v834 = vmul.f32 %v621, %v816
      %v835 = vmul.f32 %v624, %v816
      %v836 = vmul.f32 %v629, %v816
      %v837 = vmul.f32 %v632, %v816
      %v838 = vmul.f32 %v637, %v816
      %v839 = vmul.f32 %v640, %v816
      %v840 = vmul.f32 %v645, %v816
      %v841 = vmul.f32 %v648, %v816
      %v842 = vmul.f32 %v653, %v816
      %v843 = vmul.f32 %v656, %v816
      %v844 = vmul.f32 %v661, %v816
      %v845 = vmul.f32 %v664, %v816
      %v846 = vmul.f32 %v669, %v816
      %v847 = vmul.f32 %v672, %v816
      %v848 = vmul.f32 %v677, %v816
      %v849 = vmul.f32 %v680, %v816
      %v850 = vmul.f32 %v685, %v816
      %v851 = vmul.f32 %v688, %v816
      %v852 = vmul.f32 %v693, %v816
      %v853 = vmul.f32 %v696, %v816
      %v854 = vmul.f32 %v701, %v816
      %v855 = vmul.f32 %v704, %v816
      %v856 = vmul.f32 %v709, %v816
      %v857 = vmul.f32 %v712, %v816
      %v858 = vmul.f32 %v717, %v816
      %v859 = vmul.f32 %v720, %v816
      %v860 = vmul.f32 %v725, %v816
      %v861 = vmul.f32 %v728, %v816
      %v862 = vmul.f32 %v733, %v816
      %v863 = vmul.f32 %v736, %v816
      %v864 = vmul.f32 %v741, %v816
      %v865 = vmul.f32 %v744, %v816
      %v866 = vmul.f32 %v749, %v816
      %v867 = vmul.f32 %v752, %v816
      %v868 = vmul.f32 %v757, %v816
      %v869 = vmul.f32 %v760, %v816
      %v870 = vmul.f32 %v765, %v816
      %v871 = vmul.f32 %v768, %v816
      %v872 = vmul.f32 %v773, %v816
      %v873 = vmul.f32 %v776, %v816
      %v874 = vmul.f32 %v781, %v816
      %v875 = vmul.f32 %v784, %v816
      %v876 = vmul.f32 %v789, %v816
      %v877 = vmul.f32 %v792, %v816
      %v878 = vmul.f32 %v797, %v816
      %v879 = vmul.f32 %v800, %v816
      %v880 = vmul.f32 %v805, %v816
      %v881 = vmul.f32 %v808, %v816
      %v882 = vld [vmem:[%s3] sm:$0x1]
      %v884 = vlaneseq
      %v885 = vshrl.u32 %v884, 7
      %v886 = vsub.s32 0, %v885
      %v887 = vrot.slane %v882, %v886
      %v889 = vadd.f32 %v818, %v887
      %v890 = vadd.f32 %v819, %v887
      %v891 = vadd.f32 %v820, %v887
      %v892 = vadd.f32 %v821, %v887
      %v893 = vadd.f32 %v822, %v887
      %v894 = vadd.f32 %v823, %v887
      %v895 = vadd.f32 %v824, %v887
      %v896 = vadd.f32 %v825, %v887
      %v897 = vadd.f32 %v826, %v887
      %v898 = vadd.f32 %v827, %v887
      %v899 = vadd.f32 %v828, %v887
      %v900 = vadd.f32 %v829, %v887
      %v901 = vadd.f32 %v830, %v887
      %v902 = vadd.f32 %v831, %v887
      %v903 = vadd.f32 %v832, %v887
      %v904 = vadd.f32 %v833, %v887
      %v905 = vadd.f32 %v834, %v887
      %v906 = vadd.f32 %v835, %v887
      %v907 = vadd.f32 %v836, %v887
      %v908 = vadd.f32 %v837, %v887
      %v909 = vadd.f32 %v838, %v887
      %v910 = vadd.f32 %v839, %v887
      %v911 = vadd.f32 %v840, %v887
      %v912 = vadd.f32 %v841, %v887
      %v913 = vadd.f32 %v842, %v887
      %v914 = vadd.f32 %v843, %v887
      %v915 = vadd.f32 %v844, %v887
      %v916 = vadd.f32 %v845, %v887
      %v917 = vadd.f32 %v846, %v887
      %v918 = vadd.f32 %v847, %v887
      %v919 = vadd.f32 %v848, %v887
      %v920 = vadd.f32 %v849, %v887
      %v921 = vadd.f32 %v850, %v887
      %v922 = vadd.f32 %v851, %v887
      %v923 = vadd.f32 %v852, %v887
      %v924 = vadd.f32 %v853, %v887
      %v925 = vadd.f32 %v854, %v887
      %v926 = vadd.f32 %v855, %v887
      %v927 = vadd.f32 %v856, %v887
      %v928 = vadd.f32 %v857, %v887
      %v929 = vadd.f32 %v858, %v887
      %v930 = vadd.f32 %v859, %v887
      %v931 = vadd.f32 %v860, %v887
      %v932 = vadd.f32 %v861, %v887
      %v933 = vadd.f32 %v862, %v887
      %v934 = vadd.f32 %v863, %v887
      %v935 = vadd.f32 %v864, %v887
      %v936 = vadd.f32 %v865, %v887
      %v937 = vadd.f32 %v866, %v887
      %v938 = vadd.f32 %v867, %v887
      %v939 = vadd.f32 %v868, %v887
      %v940 = vadd.f32 %v869, %v887
      %v941 = vadd.f32 %v870, %v887
      %v942 = vadd.f32 %v871, %v887
      %v943 = vadd.f32 %v872, %v887
      %v944 = vadd.f32 %v873, %v887
      %v945 = vadd.f32 %v874, %v887
      %v946 = vadd.f32 %v875, %v887
      %v947 = vadd.f32 %v876, %v887
      %v948 = vadd.f32 %v877, %v887
      %v949 = vadd.f32 %v878, %v887
      %v950 = vadd.f32 %v879, %v887
      %v951 = vadd.f32 %v880, %v887
      %v952 = vadd.f32 %v881, %v887
      %953 = vst [vmem:[%s199] sm:$0xff] %v889
      %954 = vst [vmem:[%s199 + $0x8] sm:$0xff] %v890
      %955 = vst [vmem:[%s199 + $0x10] sm:$0xff] %v891
      %956 = vst [vmem:[%s199 + $0x18] sm:$0xff] %v892
      %957 = vst [vmem:[%s199 + $0x20] sm:$0xff] %v893
      %958 = vst [vmem:[%s199 + $0x28] sm:$0xff] %v894
      %959 = vst [vmem:[%s199 + $0x30] sm:$0xff] %v895
      %960 = vst [vmem:[%s199 + $0x38] sm:$0xff] %v896
      %961 = vst [vmem:[%s199 + $0x40] sm:$0xff] %v897
      %962 = vst [vmem:[%s199 + $0x48] sm:$0xff] %v898
      %963 = vst [vmem:[%s199 + $0x50] sm:$0xff] %v899
      %964 = vst [vmem:[%s199 + $0x58] sm:$0xff] %v900
      %965 = vst [vmem:[%s199 + $0x60] sm:$0xff] %v901
      %966 = vst [vmem:[%s199 + $0x68] sm:$0xff] %v902
      %967 = vst [vmem:[%s199 + $0x70] sm:$0xff] %v903
      %968 = vst [vmem:[%s199 + $0x78] sm:$0xff] %v904
      %969 = vst [vmem:[%s199 + $0x80] sm:$0xff] %v905
      %970 = vst [vmem:[%s199 + $0x88] sm:$0xff] %v906
      %971 = vst [vmem:[%s199 + $0x90] sm:$0xff] %v907
      %972 = vst [vmem:[%s199 + $0x98] sm:$0xff] %v908
      %973 = vst [vmem:[%s199 + $0xa0] sm:$0xff] %v909
      %974 = vst [vmem:[%s199 + $0xa8] sm:$0xff] %v910
      %975 = vst [vmem:[%s199 + $0xb0] sm:$0xff] %v911
      %976 = vst [vmem:[%s199 + $0xb8] sm:$0xff] %v912
      %977 = vst [vmem:[%s199 + $0xc0] sm:$0xff] %v913
      %978 = vst [vmem:[%s199 + $0xc8] sm:$0xff] %v914
      %979 = vst [vmem:[%s199 + $0xd0] sm:$0xff] %v915
      %980 = vst [vmem:[%s199 + $0xd8] sm:$0xff] %v916
      %981 = vst [vmem:[%s199 + $0xe0] sm:$0xff] %v917
      %982 = vst [vmem:[%s199 + $0xe8] sm:$0xff] %v918
      %983 = vst [vmem:[%s199 + $0xf0] sm:$0xff] %v919
      %984 = vst [vmem:[%s199 + $0xf8] sm:$0xff] %v920
      %985 = vst [vmem:[%s199 + $0x100] sm:$0xff] %v921
      %986 = vst [vmem:[%s199 + $0x108] sm:$0xff] %v922
      %987 = vst [vmem:[%s199 + $0x110] sm:$0xff] %v923
      %988 = vst [vmem:[%s199 + $0x118] sm:$0xff] %v924
      %989 = vst [vmem:[%s199 + $0x120] sm:$0xff] %v925
      %990 = vst [vmem:[%s199 + $0x128] sm:$0xff] %v926
      %991 = vst [vmem:[%s199 + $0x130] sm:$0xff] %v927
      %992 = vst [vmem:[%s199 + $0x138] sm:$0xff] %v928
      %993 = vst [vmem:[%s199 + $0x140] sm:$0xff] %v929
      %994 = vst [vmem:[%s199 + $0x148] sm:$0xff] %v930
      %995 = vst [vmem:[%s199 + $0x150] sm:$0xff] %v931
      %996 = vst [vmem:[%s199 + $0x158] sm:$0xff] %v932
      %997 = vst [vmem:[%s199 + $0x160] sm:$0xff] %v933
      %998 = vst [vmem:[%s199 + $0x168] sm:$0xff] %v934
      %999 = vst [vmem:[%s199 + $0x170] sm:$0xff] %v935
      %1000 = vst [vmem:[%s199 + $0x178] sm:$0xff] %v936
      %1001 = vst [vmem:[%s199 + $0x180] sm:$0xff] %v937
      %1002 = vst [vmem:[%s199 + $0x188] sm:$0xff] %v938
      %1003 = vst [vmem:[%s199 + $0x190] sm:$0xff] %v939
      %1004 = vst [vmem:[%s199 + $0x198] sm:$0xff] %v940
      %1005 = vst [vmem:[%s199 + $0x1a0] sm:$0xff] %v941
      %1006 = vst [vmem:[%s199 + $0x1a8] sm:$0xff] %v942
      %1007 = vst [vmem:[%s199 + $0x1b0] sm:$0xff] %v943
      %1008 = vst [vmem:[%s199 + $0x1b8] sm:$0xff] %v944
      %1009 = vst [vmem:[%s199 + $0x1c0] sm:$0xff] %v945
      %1010 = vst [vmem:[%s199 + $0x1c8] sm:$0xff] %v946
      %1011 = vst [vmem:[%s199 + $0x1d0] sm:$0xff] %v947
      %1012 = vst [vmem:[%s199 + $0x1d8] sm:$0xff] %v948
      %1013 = vst [vmem:[%s199 + $0x1e0] sm:$0xff] %v949
      %1014 = vst [vmem:[%s199 + $0x1e8] sm:$0xff] %v950
      %1015 = vst [vmem:[%s199 + $0x1f0] sm:$0xff] %v951
      %1016 = vst [vmem:[%s199 + $0x1f8] sm:$0xff] %v952
      %s1017 = smul.u32 64, %s15
      %p1018 = scmp.lt.s32.totalorder %s1017, 255
      %s1019 = scalar_select %p1018, %s1017, 255
      %s1020 = smul.addr %s1019, 8
      %s1021 = scalar_lea.vmem %s4, %s1020
      // Predicated region
      $region37: #{_lambda_.6} parent=35 // pred_check
        %p1022 = pneg %p122
      $region38: #{_lambda_.6} parent=35 // pred_check_branch
        %1024 = sbr.rel (%p1022) target = $region40
      $region39: #{_lambda_.6} parent=35 // pred_region
        %s1025 = smul.u32 64, %s15
      $region40: #{_lambda_.6} parent=35 // pred_fallthru
        _
    $region36: #{_lambda_.6} parent=5 // pred_fallthru
      _
    %p1026 = scmp.le.s32.totalorder 2, %s10
    // Predicated region
    $region41: #{_lambda_.6} parent=5 // pred_check
      %p1027 = pneg %p1026
    $region42: #{_lambda_.6} parent=5 // pred_check_branch
      %1029 = sbr.rel (%p1027) target = $region44
    $region43: #{_lambda_.6} parent=5 // pred_region
      %s1030 = ssub.s32 %s10, 2
      // Predicated region
      $region45: #{_lambda_.6} parent=43 // pred_check
        %p1031 = pneg %p128
      $region46: #{_lambda_.6} parent=43 // pred_check_branch
        %1033 = sbr.rel (%p1031) target = $region48
      $region47: #{_lambda_.6} parent=43 // pred_region
        %s1034 = smul.u32 64, %s16
        %p1035 = scmp.lt.s32.totalorder %s1034, 255
        %s1036 = scalar_select %p1035, %s1034, 255
        %s1037 = smul.addr %s1036, 8
        %s1038 = scalar_lea.vmem %s4, %s1037
      $region48: #{_lambda_.6} parent=43 // pred_fallthru
        _
    $region44: #{_lambda_.6} parent=5 // pred_fallthru
      _
  $region6: #{_lambda_.6} parent=0 // loop_footer
    %s14 = sadd.s32 1, %s10
  $region7: #{_lambda_.6} parent=0 // loop_footer_branch
    %9 = sbr.rel target = $region3
  $region8: #{_lambda_.6} parent=0 // loop_exit
    _

// kernel: _lambda_.7
$region0: #{_lambda_.7}
  #allocation0 [shape = 'u32[]', space=smem, size = 0x4, offset = 0x4, fixed_abs, tag = 'smem constant byte address 0x4 - core index']
  #allocation1 [shape = 'u32[144,128]{1,0:T(1,128)}', space=vmem, size = 0x12000, scoped, tag = 'internal scratch']
  %s0 = inlined_call_operand.vmem [shape: bf16[2048,128], index: 0, kind: input, shape index: {}]
  %s1 = inlined_call_operand.vmem [shape: bf16[128,128], index: 1, kind: input, shape index: {}]
  %s2 = inlined_call_operand.vmem [shape: f32[1,128], index: 2, kind: input, shape index: {}]
  %s3 = inlined_call_operand.vmem [shape: f32[1,128], index: 3, kind: input, shape index: {}]
  %s4 = inlined_call_operand.vmem [shape: f32[2048,128], index: 4, kind: input, shape index: {}]
  %s5 = inlined_call_operand.vmem [shape: f32[2048,128], index: 5, kind: output, shape index: {}]
  %s6 = sld [smem:[#allocation0]]
  $region53: #{_lambda_.7} parent=0
    _
  %s8 = ssub.s32 1, %s6
  %s9 = scalar_select 0, %s8, %s6
  loop: start=0, step=1, limit=6
  $region2: #{_lambda_.7} parent=0 // loop_pre_header
    _
  $region3: #{_lambda_.7} parent=0 // loop_header
    %s11 = sphi 0, %s15
    %p12 = scmp.ge.s32.totalorder %s11, 6
    %s21 = sphi 0, %s23
    %s24 = sphi 0, %s21
    %s25 = sphi 0, %s24
    %s41 = sphi 0, %s25
    %s45 = sphi 0, %s45
    %s47 = sphi 0, %s45
    %s48 = sphi 0, %s47
    %s62 = sphi 0, %s48
    %s66 = sphi 0, %s66
    %s68 = sphi 0, %s66
    %s69 = sphi 0, %s68
    %s83 = sphi 0, %s69
    %s87 = sphi 0, %s87
    %s89 = sphi 0, %s87
    %s90 = sphi 0, %s89
    %s104 = sphi 0, %s90
    %s110 = sphi 0, %s112
    %s113 = sphi 0, %s110
    %s114 = sphi 0, %s113
    %s130 = sphi 0, %s114
    %s136 = sphi 0, %s138
    %s139 = sphi 0, %s136
    %s140 = sphi 0, %s139
    %s156 = sphi 0, %s140
  $region4: #{_lambda_.7} parent=0 // loop_header_branch
    %14 = sbr.rel (%p12) target = $region8
  $region5: #{_lambda_.7} parent=0 // loop_body
    %s16 = ssub.s32 %s11, 1
    %s17 = ssub.s32 %s11, 2
    %s18 = sadd.s32 %s11, 1
    %s19 = ssub.s32 %s11, %s18
    %p20 = scmp.eq.s32.totalorder %s19, 0
    %s22 = sadd.s32 %s21, 1
    %s23 = scalar_select %p20, %s21, %s22
    %p26 = pneg %p20
    %p27 = scmp.eq.s32.totalorder %s11, 3
    %p28 = por %p26, %p27
    %p29 = scmp.ne.s32.totalorder %s21, %s24
    %p30 = scmp.eq.s32.totalorder %s11, 0
    %p31 = por %p29, %p30
    %p32 = scmp.ne.s32.totalorder %s21, %s24
    %p33 = scmp.eq.s32.totalorder %s16, 3
    %p34 = por %p32, %p33
    %p35 = scmp.ne.s32.totalorder %s24, %s25
    %p36 = scmp.eq.s32.totalorder %s16, 0
    %p37 = por %p35, %p36
    %p38 = scmp.ne.s32.totalorder %s24, %s25
    %p39 = scmp.eq.s32.totalorder %s17, 3
    %p40 = por %p38, %p39
    %p42 = scmp.ne.s32.totalorder %s25, %s41
    %p43 = scmp.eq.s32.totalorder %s17, 0
    %p44 = por %p42, %p43
    %s46 = sadd.s32 %s45, 1
    %p49 = scmp.eq.s32.totalorder %s11, 3
    %p50 = scmp.ne.s32.totalorder %s45, %s47
    %p51 = scmp.eq.s32.totalorder %s11, 0
    %p52 = por %p50, %p51
    %p53 = scmp.ne.s32.totalorder %s45, %s47
    %p54 = scmp.eq.s32.totalorder %s16, 3
    %p55 = por %p53, %p54
    %p56 = scmp.ne.s32.totalorder %s47, %s48
    %p57 = scmp.eq.s32.totalorder %s16, 0
    %p58 = por %p56, %p57
    %p59 = scmp.ne.s32.totalorder %s47, %s48
    %p60 = scmp.eq.s32.totalorder %s17, 3
    %p61 = por %p59, %p60
    %p63 = scmp.ne.s32.totalorder %s48, %s62
    %p64 = scmp.eq.s32.totalorder %s17, 0
    %p65 = por %p63, %p64
    %s67 = sadd.s32 %s66, 1
    %p70 = scmp.eq.s32.totalorder %s11, 3
    %p71 = scmp.ne.s32.totalorder %s66, %s68
    %p72 = scmp.eq.s32.totalorder %s11, 0
    %p73 = por %p71, %p72
    %p74 = scmp.ne.s32.totalorder %s66, %s68
    %p75 = scmp.eq.s32.totalorder %s16, 3
    %p76 = por %p74, %p75
    %p77 = scmp.ne.s32.totalorder %s68, %s69
    %p78 = scmp.eq.s32.totalorder %s16, 0
    %p79 = por %p77, %p78
    %p80 = scmp.ne.s32.totalorder %s68, %s69
    %p81 = scmp.eq.s32.totalorder %s17, 3
    %p82 = por %p80, %p81
    %p84 = scmp.ne.s32.totalorder %s69, %s83
    %p85 = scmp.eq.s32.totalorder %s17, 0
    %p86 = por %p84, %p85
    %s88 = sadd.s32 %s87, 1
    %p91 = scmp.eq.s32.totalorder %s11, 3
    %p92 = scmp.ne.s32.totalorder %s87, %s89
    %p93 = scmp.eq.s32.totalorder %s11, 0
    %p94 = por %p92, %p93
    %p95 = scmp.ne.s32.totalorder %s87, %s89
    %p96 = scmp.eq.s32.totalorder %s16, 3
    %p97 = por %p95, %p96
    %p98 = scmp.ne.s32.totalorder %s89, %s90
    %p99 = scmp.eq.s32.totalorder %s16, 0
    %p100 = por %p98, %p99
    %p101 = scmp.ne.s32.totalorder %s89, %s90
    %p102 = scmp.eq.s32.totalorder %s17, 3
    %p103 = por %p101, %p102
    %p105 = scmp.ne.s32.totalorder %s90, %s104
    %p106 = scmp.eq.s32.totalorder %s17, 0
    %p107 = por %p105, %p106
    %s108 = ssub.s32 %s11, %s18
    %p109 = scmp.eq.s32.totalorder %s108, 0
    %s111 = sadd.s32 %s110, 1
    %s112 = scalar_select %p109, %s110, %s111
    %p115 = pneg %p109
    %p116 = scmp.eq.s32.totalorder %s11, 3
    %p117 = por %p115, %p116
    %p118 = scmp.ne.s32.totalorder %s110, %s113
    %p119 = scmp.eq.s32.totalorder %s11, 0
    %p120 = por %p118, %p119
    %p121 = scmp.ne.s32.totalorder %s110, %s113
    %p122 = scmp.eq.s32.totalorder %s16, 3
    %p123 = por %p121, %p122
    %p124 = scmp.ne.s32.totalorder %s113, %s114
    %p125 = scmp.eq.s32.totalorder %s16, 0
    %p126 = por %p124, %p125
    %p127 = scmp.ne.s32.totalorder %s113, %s114
    %p128 = scmp.eq.s32.totalorder %s17, 3
    %p129 = por %p127, %p128
    %p131 = scmp.ne.s32.totalorder %s114, %s130
    %p132 = scmp.eq.s32.totalorder %s17, 0
    %p133 = por %p131, %p132
    %s134 = ssub.s32 %s11, %s18
    %p135 = scmp.eq.s32.totalorder %s134, 0
    %s137 = sadd.s32 %s136, 1
    %s138 = scalar_select %p135, %s136, %s137
    %p141 = pneg %p135
    %p142 = scmp.eq.s32.totalorder %s11, 3
    %p143 = por %p141, %p142
    %p144 = scmp.ne.s32.totalorder %s136, %s139
    %p145 = scmp.eq.s32.totalorder %s11, 0
    %p146 = por %p144, %p145
    %p147 = scmp.ne.s32.totalorder %s136, %s139
    %p148 = scmp.eq.s32.totalorder %s16, 3
    %p149 = por %p147, %p148
    %p150 = scmp.ne.s32.totalorder %s139, %s140
    %p151 = scmp.eq.s32.totalorder %s16, 0
    %p152 = por %p150, %p151
    %p153 = scmp.ne.s32.totalorder %s139, %s140
    %p154 = scmp.eq.s32.totalorder %s17, 3
    %p155 = por %p153, %p154
    %p157 = scmp.ne.s32.totalorder %s140, %s156
    %p158 = scmp.eq.s32.totalorder %s17, 0
    %p159 = por %p157, %p158
    %p160 = scmp.le.s32.totalorder 1, %s11
    %p161 = scmp.lt.s32.totalorder %s11, 5
    %p162 = pnand %p160, %p161
    %p163 = pneg %p162
    // Predicated region
    $region9: #{_lambda_.7} parent=5 // pred_check
      _
    $region10: #{_lambda_.7} parent=5 // pred_check_branch
      %165 = sbr.rel (%p162) target = $region12
    $region11: #{_lambda_.7} parent=5 // pred_region
      %s166 = ssub.s32 %s11, 1
      // Predicated region
      $region13: #{_lambda_.7} parent=11 // pred_check
        %p167 = pneg %p58
      $region14: #{_lambda_.7} parent=11 // pred_check_branch
        %169 = sbr.rel (%p167) target = $region16
      $region15: #{_lambda_.7} parent=11 // pred_region
        _
      $region16: #{_lambda_.7} parent=11 // pred_fallthru
        _
      // Predicated region
      $region17: #{_lambda_.7} parent=11 // pred_check
        %p170 = pneg %p79
      $region18: #{_lambda_.7} parent=11 // pred_check_branch
        %172 = sbr.rel (%p170) target = $region20
      $region19: #{_lambda_.7} parent=11 // pred_region
        _
      $region20: #{_lambda_.7} parent=11 // pred_fallthru
        _
      // Predicated region
      $region21: #{_lambda_.7} parent=11 // pred_check
        %p173 = pneg %p100
      $region22: #{_lambda_.7} parent=11 // pred_check_branch
        %175 = sbr.rel (%p173) target = $region24
      $region23: #{_lambda_.7} parent=11 // pred_region
        _
      $region24: #{_lambda_.7} parent=11 // pred_fallthru
        _
    $region12: #{_lambda_.7} parent=5 // pred_fallthru
      _
    %p176 = scmp.lt.s32.totalorder %s11, 4
    // Predicated region
    $region25: #{_lambda_.7} parent=5 // pred_check
      %p177 = pneg %p176
    $region26: #{_lambda_.7} parent=5 // pred_check_branch
      %179 = sbr.rel (%p177) target = $region28
    $region27: #{_lambda_.7} parent=5 // pred_region
      // Predicated region
      $region29: #{_lambda_.7} parent=27 // pred_check
        %p180 = pneg %p31
      $region30: #{_lambda_.7} parent=27 // pred_check_branch
        %182 = sbr.rel (%p180) target = $region32
      $region31: #{_lambda_.7} parent=27 // pred_region
        %s183 = smul.u32 64, %s11
        %p184 = scmp.lt.s32.totalorder %s183, 255
        %s185 = scalar_select %p184, %s183, 255
        %s186 = smul.addr %s185, 4
        %s187 = scalar_lea.vmem %s0, %s186
        %s188 = smul.u32 64, %s11
      $region32: #{_lambda_.7} parent=27 // pred_fallthru
        _
      // Predicated region
      $region33: #{_lambda_.7} parent=27 // pred_check
        %p189 = pneg %p120
      $region34: #{_lambda_.7} parent=27 // pred_check_branch
        %191 = sbr.rel (%p189) target = $region36
      $region35: #{_lambda_.7} parent=27 // pred_region
        %s192 = smul.u32 64, %s11
        %p193 = scmp.lt.s32.totalorder %s192, 255
        %s194 = scalar_select %p193, %s192, 255
        %s195 = smul.addr %s194, 8
        %s196 = scalar_lea.vmem %s4, %s195
        %s197 = smul.u32 64, %s11
      $region36: #{_lambda_.7} parent=27 // pred_fallthru
        _
    $region28: #{_lambda_.7} parent=5 // pred_fallthru
      _
    %p198 = scmp.le.s32.totalorder 1, %s11
    %p199 = scmp.lt.s32.totalorder %s11, 5
    %p200 = pnand %p198, %p199
    %p201 = pneg %p200
    // Predicated region
    $region37: #{_lambda_.7} parent=5 // pred_check
      _
    $region38: #{_lambda_.7} parent=5 // pred_check_branch
      %203 = sbr.rel (%p200) target = $region40
    $region39: #{_lambda_.7} parent=5 // pred_region
      %s204 = ssub.s32 %s11, 1
      %s205 = smul.u32 64, %s16
      %p206 = scmp.lt.s32.totalorder %s205, 255
      %s207 = scalar_select %p206, %s205, 255
      %s208 = smul.addr %s207, 4
      %s209 = scalar_lea.vmem %s0, %s208
      %p210 = pneg %p37
      %p211 = pneg %p34
      %p212 = pneg %p58
      %p213 = pneg %p55
      %p214 = pneg %p79
      %p215 = pneg %p76
      %p216 = pneg %p100
      %p217 = pneg %p97
      %s218 = smul.u32 64, %s16
      %p219 = scmp.lt.s32.totalorder %s218, 255
      %s220 = scalar_select %p219, %s218, 255
      %s221 = smul.addr %s220, 8
      %s222 = scalar_lea.vmem %s4, %s221
      %p223 = pneg %p126
      %p224 = pneg %p123
      %p225 = pneg %p152
      %p226 = pneg %p149
      %s227 = smul.u32 64, %s16
      %p228 = scmp.lt.s32.totalorder %s227, 255
      %s229 = scalar_select %p228, %s227, 255
      %s230 = smul.addr %s229, 8
      %s231 = scalar_lea.vmem %s5, %s230
      %s232 = smul.u32 64, %s16
      %p233 = scmp.lt.s32.totalorder %s232, 255
      %s234 = scalar_select %p233, %s232, 255
      %s235 = smul.addr %s234, 4
      %s236 = scalar_lea.vmem %s0, %s235
      %s237 = smul.u32 64, %s16
      %s238 = smul.u32 64, %s16
      %p239 = scmp.lt.s32.totalorder %s238, 255
      %s240 = scalar_select %p239, %s238, 255
      %s241 = smul.addr %s240, 8
      %s242 = scalar_lea.vmem %s4, %s241
      %s243 = smul.u32 64, %s16
      %s244 = smul.u32 64, %s16
      %p245 = scmp.lt.s32.totalorder %s244, 255
      %s246 = scalar_select %p245, %s244, 255
      %s247 = smul.addr %s246, 8
      %s248 = scalar_lea.vmem %s5, %s247
      %s249 = smul.u32 64, %s16
      %v251 = vld [vmem:[%s236] sm:$0xf]
      %v252 = vld [vmem:[%s236 + $0x4] sm:$0xf]
      %v253 = vld [vmem:[%s236 + $0x8] sm:$0xf]
      %v254 = vld [vmem:[%s236 + $0xc] sm:$0xf]
      %v255 = vld [vmem:[%s236 + $0x10] sm:$0xf]
      %v256 = vld [vmem:[%s236 + $0x14] sm:$0xf]
      %v257 = vld [vmem:[%s236 + $0x18] sm:$0xf]
      %v258 = vld [vmem:[%s236 + $0x1c] sm:$0xf]
      %v259 = vld [vmem:[%s236 + $0x20] sm:$0xf]
      %v260 = vld [vmem:[%s236 + $0x24] sm:$0xf]
      %v261 = vld [vmem:[%s236 + $0x28] sm:$0xf]
      %v262 = vld [vmem:[%s236 + $0x2c] sm:$0xf]
      %v263 = vld [vmem:[%s236 + $0x30] sm:$0xf]
      %v264 = vld [vmem:[%s236 + $0x34] sm:$0xf]
      %v265 = vld [vmem:[%s236 + $0x38] sm:$0xf]
      %v266 = vld [vmem:[%s236 + $0x3c] sm:$0xf]
      %v267 = vld [vmem:[%s236 + $0x40] sm:$0xf]
      %v268 = vld [vmem:[%s236 + $0x44] sm:$0xf]
      %v269 = vld [vmem:[%s236 + $0x48] sm:$0xf]
      %v270 = vld [vmem:[%s236 + $0x4c] sm:$0xf]
      %v271 = vld [vmem:[%s236 + $0x50] sm:$0xf]
      %v272 = vld [vmem:[%s236 + $0x54] sm:$0xf]
      %v273 = vld [vmem:[%s236 + $0x58] sm:$0xf]
      %v274 = vld [vmem:[%s236 + $0x5c] sm:$0xf]
      %v275 = vld [vmem:[%s236 + $0x60] sm:$0xf]
      %v276 = vld [vmem:[%s236 + $0x64] sm:$0xf]
      %v277 = vld [vmem:[%s236 + $0x68] sm:$0xf]
      %v278 = vld [vmem:[%s236 + $0x6c] sm:$0xf]
      %v279 = vld [vmem:[%s236 + $0x70] sm:$0xf]
      %v280 = vld [vmem:[%s236 + $0x74] sm:$0xf]
      %v281 = vld [vmem:[%s236 + $0x78] sm:$0xf]
      %v282 = vld [vmem:[%s236 + $0x7c] sm:$0xf]
      %v283 = vld [vmem:[%s236 + $0x80] sm:$0xf]
      %v284 = vld [vmem:[%s236 + $0x84] sm:$0xf]
      %v285 = vld [vmem:[%s236 + $0x88] sm:$0xf]
      %v286 = vld [vmem:[%s236 + $0x8c] sm:$0xf]
      %v287 = vld [vmem:[%s236 + $0x90] sm:$0xf]
      %v288 = vld [vmem:[%s236 + $0x94] sm:$0xf]
      %v289 = vld [vmem:[%s236 + $0x98] sm:$0xf]
      %v290 = vld [vmem:[%s236 + $0x9c] sm:$0xf]
      %v291 = vld [vmem:[%s236 + $0xa0] sm:$0xf]
      %v292 = vld [vmem:[%s236 + $0xa4] sm:$0xf]
      %v293 = vld [vmem:[%s236 + $0xa8] sm:$0xf]
      %v294 = vld [vmem:[%s236 + $0xac] sm:$0xf]
      %v295 = vld [vmem:[%s236 + $0xb0] sm:$0xf]
      %v296 = vld [vmem:[%s236 + $0xb4] sm:$0xf]
      %v297 = vld [vmem:[%s236 + $0xb8] sm:$0xf]
      %v298 = vld [vmem:[%s236 + $0xbc] sm:$0xf]
      %v299 = vld [vmem:[%s236 + $0xc0] sm:$0xf]
      %v300 = vld [vmem:[%s236 + $0xc4] sm:$0xf]
      %v301 = vld [vmem:[%s236 + $0xc8] sm:$0xf]
      %v302 = vld [vmem:[%s236 + $0xcc] sm:$0xf]
      %v303 = vld [vmem:[%s236 + $0xd0] sm:$0xf]
      %v304 = vld [vmem:[%s236 + $0xd4] sm:$0xf]
      %v305 = vld [vmem:[%s236 + $0xd8] sm:$0xf]
      %v306 = vld [vmem:[%s236 + $0xdc] sm:$0xf]
      %v307 = vld [vmem:[%s236 + $0xe0] sm:$0xf]
      %v308 = vld [vmem:[%s236 + $0xe4] sm:$0xf]
      %v309 = vld [vmem:[%s236 + $0xe8] sm:$0xf]
      %v310 = vld [vmem:[%s236 + $0xec] sm:$0xf]
      %v311 = vld [vmem:[%s236 + $0xf0] sm:$0xf]
      %v312 = vld [vmem:[%s236 + $0xf4] sm:$0xf]
      %v313 = vld [vmem:[%s236 + $0xf8] sm:$0xf]
      %v314 = vld [vmem:[%s236 + $0xfc] sm:$0xf]
      %v315 = vld [vmem:[%s1] sm:$0xf]
      %v316 = vld [vmem:[%s1 + $0x4] sm:$0xf]
      %v317 = vld [vmem:[%s1 + $0x8] sm:$0xf]
      %v318 = vld [vmem:[%s1 + $0xc] sm:$0xf]
      %v319 = vld [vmem:[%s1 + $0x10] sm:$0xf]
      %v320 = vld [vmem:[%s1 + $0x14] sm:$0xf]
      %v321 = vld [vmem:[%s1 + $0x18] sm:$0xf]
      %v322 = vld [vmem:[%s1 + $0x1c] sm:$0xf]
      %v323 = vld [vmem:[%s1 + $0x20] sm:$0xf]
      %v324 = vld [vmem:[%s1 + $0x24] sm:$0xf]
      %v325 = vld [vmem:[%s1 + $0x28] sm:$0xf]
      %v326 = vld [vmem:[%s1 + $0x2c] sm:$0xf]
      %v327 = vld [vmem:[%s1 + $0x30] sm:$0xf]
      %v328 = vld [vmem:[%s1 + $0x34] sm:$0xf]
      %v329 = vld [vmem:[%s1 + $0x38] sm:$0xf]
      %v330 = vld [vmem:[%s1 + $0x3c] sm:$0xf]
      %v395 = vunpack.c.l.b16 %v251
      %v396 = vunpack.c.l.b16 %v252
      %v397 = vunpack.c.l.b16 %v253
      %v398 = vunpack.c.l.b16 %v254
      %v399 = vunpack.c.l.b16 %v255
      %v400 = vunpack.c.l.b16 %v256
      %v401 = vunpack.c.l.b16 %v257
      %v402 = vunpack.c.l.b16 %v258
      %v403 = vunpack.c.l.b16 %v259
      %v404 = vunpack.c.l.b16 %v260
      %v405 = vunpack.c.l.b16 %v261
      %v406 = vunpack.c.l.b16 %v262
      %v407 = vunpack.c.l.b16 %v263
      %v408 = vunpack.c.l.b16 %v264
      %v409 = vunpack.c.l.b16 %v265
      %v410 = vunpack.c.l.b16 %v266
      %v411 = vunpack.c.l.b16 %v267
      %v412 = vunpack.c.l.b16 %v268
      %v413 = vunpack.c.l.b16 %v269
      %v414 = vunpack.c.l.b16 %v270
      %v415 = vunpack.c.l.b16 %v271
      %v416 = vunpack.c.l.b16 %v272
      %v417 = vunpack.c.l.b16 %v273
      %v418 = vunpack.c.l.b16 %v274
      %v419 = vunpack.c.l.b16 %v275
      %v420 = vunpack.c.l.b16 %v276
      %v421 = vunpack.c.l.b16 %v277
      %v422 = vunpack.c.l.b16 %v278
      %v423 = vunpack.c.l.b16 %v279
      %v424 = vunpack.c.l.b16 %v280
      %v425 = vunpack.c.l.b16 %v281
      %v426 = vunpack.c.l.b16 %v282
      %v427 = vunpack.c.l.b16 %v283
      %v428 = vunpack.c.l.b16 %v284
      %v429 = vunpack.c.l.b16 %v285
      %v430 = vunpack.c.l.b16 %v286
      %v431 = vunpack.c.l.b16 %v287
      %v432 = vunpack.c.l.b16 %v288
      %v433 = vunpack.c.l.b16 %v289
      %v434 = vunpack.c.l.b16 %v290
      %v435 = vunpack.c.l.b16 %v291
      %v436 = vunpack.c.l.b16 %v292
      %v437 = vunpack.c.l.b16 %v293
      %v438 = vunpack.c.l.b16 %v294
      %v439 = vunpack.c.l.b16 %v295
      %v440 = vunpack.c.l.b16 %v296
      %v441 = vunpack.c.l.b16 %v297
      %v442 = vunpack.c.l.b16 %v298
      %v443 = vunpack.c.l.b16 %v299
      %v444 = vunpack.c.l.b16 %v300
      %v445 = vunpack.c.l.b16 %v301
      %v446 = vunpack.c.l.b16 %v302
      %v447 = vunpack.c.l.b16 %v303
      %v448 = vunpack.c.l.b16 %v304
      %v449 = vunpack.c.l.b16 %v305
      %v450 = vunpack.c.l.b16 %v306
      %v451 = vunpack.c.l.b16 %v307
      %v452 = vunpack.c.l.b16 %v308
      %v453 = vunpack.c.l.b16 %v309
      %v454 = vunpack.c.l.b16 %v310
      %v455 = vunpack.c.l.b16 %v311
      %v456 = vunpack.c.l.b16 %v312
      %v457 = vunpack.c.l.b16 %v313
      %v458 = vunpack.c.l.b16 %v314
      %v459 = vpack.c.b16 %v396, %v395
      %v460 = vpack.c.b16 %v398, %v397
      %v461 = vpack.c.b16 %v400, %v399
      %v462 = vpack.c.b16 %v402, %v401
      %v463 = vpack.c.b16 %v404, %v403
      %v464 = vpack.c.b16 %v406, %v405
      %v465 = vpack.c.b16 %v408, %v407
      %v466 = vpack.c.b16 %v410, %v409
      %v467 = vpack.c.b16 %v412, %v411
      %v468 = vpack.c.b16 %v414, %v413
      %v469 = vpack.c.b16 %v416, %v415
      %v470 = vpack.c.b16 %v418, %v417
      %v471 = vpack.c.b16 %v420, %v419
      %v472 = vpack.c.b16 %v422, %v421
      %v473 = vpack.c.b16 %v424, %v423
      %v474 = vpack.c.b16 %v426, %v425
      %v475 = vpack.c.b16 %v428, %v427
      %v476 = vpack.c.b16 %v430, %v429
      %v477 = vpack.c.b16 %v432, %v431
      %v478 = vpack.c.b16 %v434, %v433
      %v479 = vpack.c.b16 %v436, %v435
      %v480 = vpack.c.b16 %v438, %v437
      %v481 = vpack.c.b16 %v440, %v439
      %v482 = vpack.c.b16 %v442, %v441
      %v483 = vpack.c.b16 %v444, %v443
      %v484 = vpack.c.b16 %v446, %v445
      %v485 = vpack.c.b16 %v448, %v447
      %v486 = vpack.c.b16 %v450, %v449
      %v487 = vpack.c.b16 %v452, %v451
      %v488 = vpack.c.b16 %v454, %v453
      %v489 = vpack.c.b16 %v456, %v455
      %v490 = vpack.c.b16 %v458, %v457
      %v539 = vunpack.c.l.b16 %v315
      %v540 = vunpack.c.l.b16 %v316
      %v541 = vunpack.c.l.b16 %v317
      %v542 = vunpack.c.l.b16 %v318
      %v543 = vunpack.c.l.b16 %v319
      %v544 = vunpack.c.l.b16 %v320
      %v545 = vunpack.c.l.b16 %v321
      %v546 = vunpack.c.l.b16 %v322
      %v547 = vunpack.c.l.b16 %v323
      %v548 = vunpack.c.l.b16 %v324
      %v549 = vunpack.c.l.b16 %v325
      %v550 = vunpack.c.l.b16 %v326
      %v551 = vunpack.c.l.b16 %v327
      %v552 = vunpack.c.l.b16 %v328
      %v553 = vunpack.c.l.b16 %v329
      %v554 = vunpack.c.l.b16 %v330
      %v555 = vpack.c.b16 %v540, %v539
      %v556 = vpack.c.b16 %v542, %v541
      %v557 = vpack.c.b16 %v544, %v543
      %v558 = vpack.c.b16 %v546, %v545
      %v559 = vpack.c.b16 %v548, %v547
      %v560 = vpack.c.b16 %v550, %v549
      %v561 = vpack.c.b16 %v552, %v551
      %v562 = vpack.c.b16 %v554, %v553
      %571 = vmatprep.subr.bf16.mxu0 0
      %572 = vmatpush1.bf16.msra.mxu0 %v562
      %573 = vmatprep.subr.bf16.mxu0 0
      %574 = vmatpush1.bf16.msra.mxu0 %v561
      %575 = vmatprep.subr.bf16.mxu0 0
      %576 = vmatpush1.bf16.msra.mxu0 %v560
      %577 = vmatprep.subr.bf16.mxu0 0
      %578 = vmatpush1.bf16.msra.mxu0 %v559
      %579 = vmatprep.subr.bf16.mxu0 0
      %580 = vmatpush1.bf16.msra.mxu0 %v558
      %581 = vmatprep.subr.bf16.mxu0 0
      %582 = vmatpush1.bf16.msra.mxu0 %v557
      %583 = vmatprep.subr.bf16.mxu0 0
      %584 = vmatpush1.bf16.msra.mxu0 %v556
      %585 = vmatprep.subr.bf16.mxu0 0
      %586 = vmatpush1.bf16.msra.mxu0 %v555
      %587 = vmatprep.subr.bf16.mxu0 0
      %588 = vmatpush2.bf16.msra.mxu0 0
      %589 = vmatprep.subr.bf16.mxu0 0
      %590 = vmatpush2.bf16.msra.mxu0 0
      %591 = vmatprep.subr.bf16.mxu0 0
      %592 = vmatpush2.bf16.msra.mxu0 0
      %593 = vmatprep.subr.bf16.mxu0 0
      %594 = vmatpush2.bf16.msra.mxu0 0
      %595 = vmatprep.subr.bf16.mxu0 0
      %596 = vmatpush2.bf16.msra.mxu0 0
      %597 = vmatprep.subr.bf16.mxu0 0
      %598 = vmatpush2.bf16.msra.mxu0 0
      %599 = vmatprep.subr.bf16.mxu0 0
      %600 = vmatpush2.bf16.msra.mxu0 0
      %601 = vmatprep.subr.bf16.mxu0 0
      %602 = vmatpush2.bf16.msra.mxu0 0
      %603 = vmatprep.mubr.bf16.mxu0 0
      %604 = vmatmul.mubr.bf16.gmra.mxu0 %v459
      %v605 = vpop.f32.mrf.mxu0
      %v606 = vadd.f32 0.0, %v605
      %v607 = vpop.f32.mrf.mxu0
      %v608 = vpop.f32.mrf.mxu0
      %v609 = vadd.f32 0.0, %v608
      %v610 = vpop.f32.mrf.mxu0
      %611 = vmatprep.mubr.bf16.mxu0 0
      %612 = vmatmul.mubr.bf16.gmra.mxu0 %v460
      %v613 = vpop.f32.mrf.mxu0
      %v614 = vadd.f32 0.0, %v613
      %v615 = vpop.f32.mrf.mxu0
      %v616 = vpop.f32.mrf.mxu0
      %v617 = vadd.f32 0.0, %v616
      %v618 = vpop.f32.mrf.mxu0
      %619 = vmatprep.mubr.bf16.mxu0 0
      %620 = vmatmul.mubr.bf16.gmra.mxu0 %v461
      %v621 = vpop.f32.mrf.mxu0
      %v622 = vadd.f32 0.0, %v621
      %v623 = vpop.f32.mrf.mxu0
      %v624 = vpop.f32.mrf.mxu0
      %v625 = vadd.f32 0.0, %v624
      %v626 = vpop.f32.mrf.mxu0
      %627 = vmatprep.mubr.bf16.mxu0 0
      %628 = vmatmul.mubr.bf16.gmra.mxu0 %v462
      %v629 = vpop.f32.mrf.mxu0
      %v630 = vadd.f32 0.0, %v629
      %v631 = vpop.f32.mrf.mxu0
      %v632 = vpop.f32.mrf.mxu0
      %v633 = vadd.f32 0.0, %v632
      %v634 = vpop.f32.mrf.mxu0
      %635 = vmatprep.mubr.bf16.mxu0 0
      %636 = vmatmul.mubr.bf16.gmra.mxu0 %v463
      %v637 = vpop.f32.mrf.mxu0
      %v638 = vadd.f32 0.0, %v637
      %v639 = vpop.f32.mrf.mxu0
      %v640 = vpop.f32.mrf.mxu0
      %v641 = vadd.f32 0.0, %v640
      %v642 = vpop.f32.mrf.mxu0
      %643 = vmatprep.mubr.bf16.mxu0 0
      %644 = vmatmul.mubr.bf16.gmra.mxu0 %v464
      %v645 = vpop.f32.mrf.mxu0
      %v646 = vadd.f32 0.0, %v645
      %v647 = vpop.f32.mrf.mxu0
      %v648 = vpop.f32.mrf.mxu0
      %v649 = vadd.f32 0.0, %v648
      %v650 = vpop.f32.mrf.mxu0
      %651 = vmatprep.mubr.bf16.mxu0 0
      %652 = vmatmul.mubr.bf16.gmra.mxu0 %v465
      %v653 = vpop.f32.mrf.mxu0
      %v654 = vadd.f32 0.0, %v653
      %v655 = vpop.f32.mrf.mxu0
      %v656 = vpop.f32.mrf.mxu0
      %v657 = vadd.f32 0.0, %v656
      %v658 = vpop.f32.mrf.mxu0
      %659 = vmatprep.mubr.bf16.mxu0 0
      %660 = vmatmul.mubr.bf16.gmra.mxu0 %v466
      %v661 = vpop.f32.mrf.mxu0
      %v662 = vadd.f32 0.0, %v661
      %v663 = vpop.f32.mrf.mxu0
      %v664 = vpop.f32.mrf.mxu0
      %v665 = vadd.f32 0.0, %v664
      %v666 = vpop.f32.mrf.mxu0
      %667 = vmatprep.mubr.bf16.mxu0 0
      %668 = vmatmul.mubr.bf16.gmra.mxu0 %v467
      %v669 = vpop.f32.mrf.mxu0
      %v670 = vadd.f32 0.0, %v669
      %v671 = vpop.f32.mrf.mxu0
      %v672 = vpop.f32.mrf.mxu0
      %v673 = vadd.f32 0.0, %v672
      %v674 = vpop.f32.mrf.mxu0
      %675 = vmatprep.mubr.bf16.mxu0 0
      %676 = vmatmul.mubr.bf16.gmra.mxu0 %v468
      %v677 = vpop.f32.mrf.mxu0
      %v678 = vadd.f32 0.0, %v677
      %v679 = vpop.f32.mrf.mxu0
      %v680 = vpop.f32.mrf.mxu0
      %v681 = vadd.f32 0.0, %v680
      %v682 = vpop.f32.mrf.mxu0
      %683 = vmatprep.mubr.bf16.mxu0 0
      %684 = vmatmul.mubr.bf16.gmra.mxu0 %v469
      %v685 = vpop.f32.mrf.mxu0
      %v686 = vadd.f32 0.0, %v685
      %v687 = vpop.f32.mrf.mxu0
      %v688 = vpop.f32.mrf.mxu0
      %v689 = vadd.f32 0.0, %v688
      %v690 = vpop.f32.mrf.mxu0
      %691 = vmatprep.mubr.bf16.mxu0 0
      %692 = vmatmul.mubr.bf16.gmra.mxu0 %v470
      %v693 = vpop.f32.mrf.mxu0
      %v694 = vadd.f32 0.0, %v693
      %v695 = vpop.f32.mrf.mxu0
      %v696 = vpop.f32.mrf.mxu0
      %v697 = vadd.f32 0.0, %v696
      %v698 = vpop.f32.mrf.mxu0
      %699 = vmatprep.mubr.bf16.mxu0 0
      %700 = vmatmul.mubr.bf16.gmra.mxu0 %v471
      %v701 = vpop.f32.mrf.mxu0
      %v702 = vadd.f32 0.0, %v701
      %v703 = vpop.f32.mrf.mxu0
      %v704 = vpop.f32.mrf.mxu0
      %v705 = vadd.f32 0.0, %v704
      %v706 = vpop.f32.mrf.mxu0
      %707 = vmatprep.mubr.bf16.mxu0 0
      %708 = vmatmul.mubr.bf16.gmra.mxu0 %v472
      %v709 = vpop.f32.mrf.mxu0
      %v710 = vadd.f32 0.0, %v709
      %v711 = vpop.f32.mrf.mxu0
      %v712 = vpop.f32.mrf.mxu0
      %v713 = vadd.f32 0.0, %v712
      %v714 = vpop.f32.mrf.mxu0
      %715 = vmatprep.mubr.bf16.mxu0 0
      %716 = vmatmul.mubr.bf16.gmra.mxu0 %v473
      %v717 = vpop.f32.mrf.mxu0
      %v718 = vadd.f32 0.0, %v717
      %v719 = vpop.f32.mrf.mxu0
      %v720 = vpop.f32.mrf.mxu0
      %v721 = vadd.f32 0.0, %v720
      %v722 = vpop.f32.mrf.mxu0
      %723 = vmatprep.mubr.bf16.mxu0 0
      %724 = vmatmul.mubr.bf16.gmra.mxu0 %v474
      %v725 = vpop.f32.mrf.mxu0
      %v726 = vadd.f32 0.0, %v725
      %v727 = vpop.f32.mrf.mxu0
      %v728 = vpop.f32.mrf.mxu0
      %v729 = vadd.f32 0.0, %v728
      %v730 = vpop.f32.mrf.mxu0
      %731 = vmatprep.mubr.bf16.mxu0 0
      %732 = vmatmul.mubr.bf16.gmra.mxu0 %v475
      %v733 = vpop.f32.mrf.mxu0
      %v734 = vadd.f32 0.0, %v733
      %v735 = vpop.f32.mrf.mxu0
      %v736 = vpop.f32.mrf.mxu0
      %v737 = vadd.f32 0.0, %v736
      %v738 = vpop.f32.mrf.mxu0
      %739 = vmatprep.mubr.bf16.mxu0 0
      %740 = vmatmul.mubr.bf16.gmra.mxu0 %v476
      %v741 = vpop.f32.mrf.mxu0
      %v742 = vadd.f32 0.0, %v741
      %v743 = vpop.f32.mrf.mxu0
      %v744 = vpop.f32.mrf.mxu0
      %v745 = vadd.f32 0.0, %v744
      %v746 = vpop.f32.mrf.mxu0
      %747 = vmatprep.mubr.bf16.mxu0 0
      %748 = vmatmul.mubr.bf16.gmra.mxu0 %v477
      %v749 = vpop.f32.mrf.mxu0
      %v750 = vadd.f32 0.0, %v749
      %v751 = vpop.f32.mrf.mxu0
      %v752 = vpop.f32.mrf.mxu0
      %v753 = vadd.f32 0.0, %v752
      %v754 = vpop.f32.mrf.mxu0
      %755 = vmatprep.mubr.bf16.mxu0 0
      %756 = vmatmul.mubr.bf16.gmra.mxu0 %v478
      %v757 = vpop.f32.mrf.mxu0
      %v758 = vadd.f32 0.0, %v757
      %v759 = vpop.f32.mrf.mxu0
      %v760 = vpop.f32.mrf.mxu0
      %v761 = vadd.f32 0.0, %v760
      %v762 = vpop.f32.mrf.mxu0
      %763 = vmatprep.mubr.bf16.mxu0 0
      %764 = vmatmul.mubr.bf16.gmra.mxu0 %v479
      %v765 = vpop.f32.mrf.mxu0
      %v766 = vadd.f32 0.0, %v765
      %v767 = vpop.f32.mrf.mxu0
      %v768 = vpop.f32.mrf.mxu0
      %v769 = vadd.f32 0.0, %v768
      %v770 = vpop.f32.mrf.mxu0
      %771 = vmatprep.mubr.bf16.mxu0 0
      %772 = vmatmul.mubr.bf16.gmra.mxu0 %v480
      %v773 = vpop.f32.mrf.mxu0
      %v774 = vadd.f32 0.0, %v773
      %v775 = vpop.f32.mrf.mxu0
      %v776 = vpop.f32.mrf.mxu0
      %v777 = vadd.f32 0.0, %v776
      %v778 = vpop.f32.mrf.mxu0
      %779 = vmatprep.mubr.bf16.mxu0 0
      %780 = vmatmul.mubr.bf16.gmra.mxu0 %v481
      %v781 = vpop.f32.mrf.mxu0
      %v782 = vadd.f32 0.0, %v781
      %v783 = vpop.f32.mrf.mxu0
      %v784 = vpop.f32.mrf.mxu0
      %v785 = vadd.f32 0.0, %v784
      %v786 = vpop.f32.mrf.mxu0
      %787 = vmatprep.mubr.bf16.mxu0 0
      %788 = vmatmul.mubr.bf16.gmra.mxu0 %v482
      %v789 = vpop.f32.mrf.mxu0
      %v790 = vadd.f32 0.0, %v789
      %v791 = vpop.f32.mrf.mxu0
      %v792 = vpop.f32.mrf.mxu0
      %v793 = vadd.f32 0.0, %v792
      %v794 = vpop.f32.mrf.mxu0
      %795 = vmatprep.mubr.bf16.mxu0 0
      %796 = vmatmul.mubr.bf16.gmra.mxu0 %v483
      %v797 = vpop.f32.mrf.mxu0
      %v798 = vadd.f32 0.0, %v797
      %v799 = vpop.f32.mrf.mxu0
      %v800 = vpop.f32.mrf.mxu0
      %v801 = vadd.f32 0.0, %v800
      %v802 = vpop.f32.mrf.mxu0
      %803 = vmatprep.mubr.bf16.mxu0 0
      %804 = vmatmul.mubr.bf16.gmra.mxu0 %v484
      %v805 = vpop.f32.mrf.mxu0
      %v806 = vadd.f32 0.0, %v805
      %v807 = vpop.f32.mrf.mxu0
      %v808 = vpop.f32.mrf.mxu0
      %v809 = vadd.f32 0.0, %v808
      %v810 = vpop.f32.mrf.mxu0
      %811 = vmatprep.mubr.bf16.mxu0 0
      %812 = vmatmul.mubr.bf16.gmra.mxu0 %v485
      %v813 = vpop.f32.mrf.mxu0
      %v814 = vadd.f32 0.0, %v813
      %v815 = vpop.f32.mrf.mxu0
      %v816 = vpop.f32.mrf.mxu0
      %v817 = vadd.f32 0.0, %v816
      %v818 = vpop.f32.mrf.mxu0
      %819 = vmatprep.mubr.bf16.mxu0 0
      %820 = vmatmul.mubr.bf16.gmra.mxu0 %v486
      %v821 = vpop.f32.mrf.mxu0
      %v822 = vadd.f32 0.0, %v821
      %v823 = vpop.f32.mrf.mxu0
      %v824 = vpop.f32.mrf.mxu0
      %v825 = vadd.f32 0.0, %v824
      %v826 = vpop.f32.mrf.mxu0
      %827 = vmatprep.mubr.bf16.mxu0 0
      %828 = vmatmul.mubr.bf16.gmra.mxu0 %v487
      %v829 = vpop.f32.mrf.mxu0
      %v830 = vadd.f32 0.0, %v829
      %v831 = vpop.f32.mrf.mxu0
      %v832 = vpop.f32.mrf.mxu0
      %v833 = vadd.f32 0.0, %v832
      %v834 = vpop.f32.mrf.mxu0
      %835 = vmatprep.mubr.bf16.mxu0 0
      %836 = vmatmul.mubr.bf16.gmra.mxu0 %v488
      %v837 = vpop.f32.mrf.mxu0
      %v838 = vadd.f32 0.0, %v837
      %v839 = vpop.f32.mrf.mxu0
      %v840 = vpop.f32.mrf.mxu0
      %v841 = vadd.f32 0.0, %v840
      %v842 = vpop.f32.mrf.mxu0
      %843 = vmatprep.mubr.bf16.mxu0 0
      %844 = vmatmul.mubr.bf16.gmra.mxu0 %v489
      %v845 = vpop.f32.mrf.mxu0
      %v846 = vadd.f32 0.0, %v845
      %v847 = vpop.f32.mrf.mxu0
      %v848 = vpop.f32.mrf.mxu0
      %v849 = vadd.f32 0.0, %v848
      %v850 = vpop.f32.mrf.mxu0
      %851 = vmatprep.mubr.bf16.mxu0 0
      %852 = vmatmul.mubr.bf16.gmra.mxu0 %v490
      %v853 = vpop.f32.mrf.mxu0
      %v854 = vadd.f32 0.0, %v853
      %v855 = vpop.f32.mrf.mxu0
      %v856 = vpop.f32.mrf.mxu0
      %v857 = vadd.f32 0.0, %v856
      %v858 = vpop.f32.mrf.mxu0
      %859 = vdwg.mxu0
      %v860 = vld [vmem:[%s2] sm:$0x1]
      %v862 = vlaneseq
      %v863 = vshrl.u32 %v862, 7
      %v864 = vsub.s32 0, %v863
      %v865 = vrot.slane %v860, %v864
      %v867 = vmul.f32 %v606, %v865
      %v868 = vmul.f32 %v609, %v865
      %v869 = vmul.f32 %v614, %v865
      %v870 = vmul.f32 %v617, %v865
      %v871 = vmul.f32 %v622, %v865
      %v872 = vmul.f32 %v625, %v865
      %v873 = vmul.f32 %v630, %v865
      %v874 = vmul.f32 %v633, %v865
      %v875 = vmul.f32 %v638, %v865
      %v876 = vmul.f32 %v641, %v865
      %v877 = vmul.f32 %v646, %v865
      %v878 = vmul.f32 %v649, %v865
      %v879 = vmul.f32 %v654, %v865
      %v880 = vmul.f32 %v657, %v865
      %v881 = vmul.f32 %v662, %v865
      %v882 = vmul.f32 %v665, %v865
      %v883 = vmul.f32 %v670, %v865
      %v884 = vmul.f32 %v673, %v865
      %v885 = vmul.f32 %v678, %v865
      %v886 = vmul.f32 %v681, %v865
      %v887 = vmul.f32 %v686, %v865
      %v888 = vmul.f32 %v689, %v865
      %v889 = vmul.f32 %v694, %v865
      %v890 = vmul.f32 %v697, %v865
      %v891 = vmul.f32 %v702, %v865
      %v892 = vmul.f32 %v705, %v865
      %v893 = vmul.f32 %v710, %v865
      %v894 = vmul.f32 %v713, %v865
      %v895 = vmul.f32 %v718, %v865
      %v896 = vmul.f32 %v721, %v865
      %v897 = vmul.f32 %v726, %v865
      %v898 = vmul.f32 %v729, %v865
      %v899 = vmul.f32 %v734, %v865
      %v900 = vmul.f32 %v737, %v865
      %v901 = vmul.f32 %v742, %v865
      %v902 = vmul.f32 %v745, %v865
      %v903 = vmul.f32 %v750, %v865
      %v904 = vmul.f32 %v753, %v865
      %v905 = vmul.f32 %v758, %v865
      %v906 = vmul.f32 %v761, %v865
      %v907 = vmul.f32 %v766, %v865
      %v908 = vmul.f32 %v769, %v865
      %v909 = vmul.f32 %v774, %v865
      %v910 = vmul.f32 %v777, %v865
      %v911 = vmul.f32 %v782, %v865
      %v912 = vmul.f32 %v785, %v865
      %v913 = vmul.f32 %v790, %v865
      %v914 = vmul.f32 %v793, %v865
      %v915 = vmul.f32 %v798, %v865
      %v916 = vmul.f32 %v801, %v865
      %v917 = vmul.f32 %v806, %v865
      %v918 = vmul.f32 %v809, %v865
      %v919 = vmul.f32 %v814, %v865
      %v920 = vmul.f32 %v817, %v865
      %v921 = vmul.f32 %v822, %v865
      %v922 = vmul.f32 %v825, %v865
      %v923 = vmul.f32 %v830, %v865
      %v924 = vmul.f32 %v833, %v865
      %v925 = vmul.f32 %v838, %v865
      %v926 = vmul.f32 %v841, %v865
      %v927 = vmul.f32 %v846, %v865
      %v928 = vmul.f32 %v849, %v865
      %v929 = vmul.f32 %v854, %v865
      %v930 = vmul.f32 %v857, %v865
      %v931 = vld [vmem:[%s3] sm:$0x1]
      %v933 = vlaneseq
      %v934 = vshrl.u32 %v933, 7
      %v935 = vsub.s32 0, %v934
      %v936 = vrot.slane %v931, %v935
      %v938 = vadd.f32 %v867, %v936
      %v939 = vadd.f32 %v868, %v936
      %v940 = vadd.f32 %v869, %v936
      %v941 = vadd.f32 %v870, %v936
      %v942 = vadd.f32 %v871, %v936
      %v943 = vadd.f32 %v872, %v936
      %v944 = vadd.f32 %v873, %v936
      %v945 = vadd.f32 %v874, %v936
      %v946 = vadd.f32 %v875, %v936
      %v947 = vadd.f32 %v876, %v936
      %v948 = vadd.f32 %v877, %v936
      %v949 = vadd.f32 %v878, %v936
      %v950 = vadd.f32 %v879, %v936
      %v951 = vadd.f32 %v880, %v936
      %v952 = vadd.f32 %v881, %v936
      %v953 = vadd.f32 %v882, %v936
      %v954 = vadd.f32 %v883, %v936
      %v955 = vadd.f32 %v884, %v936
      %v956 = vadd.f32 %v885, %v936
      %v957 = vadd.f32 %v886, %v936
      %v958 = vadd.f32 %v887, %v936
      %v959 = vadd.f32 %v888, %v936
      %v960 = vadd.f32 %v889, %v936
      %v961 = vadd.f32 %v890, %v936
      %v962 = vadd.f32 %v891, %v936
      %v963 = vadd.f32 %v892, %v936
      %v964 = vadd.f32 %v893, %v936
      %v965 = vadd.f32 %v894, %v936
      %v966 = vadd.f32 %v895, %v936
      %v967 = vadd.f32 %v896, %v936
      %v968 = vadd.f32 %v897, %v936
      %v969 = vadd.f32 %v898, %v936
      %v970 = vadd.f32 %v899, %v936
      %v971 = vadd.f32 %v900, %v936
      %v972 = vadd.f32 %v901, %v936
      %v973 = vadd.f32 %v902, %v936
      %v974 = vadd.f32 %v903, %v936
      %v975 = vadd.f32 %v904, %v936
      %v976 = vadd.f32 %v905, %v936
      %v977 = vadd.f32 %v906, %v936
      %v978 = vadd.f32 %v907, %v936
      %v979 = vadd.f32 %v908, %v936
      %v980 = vadd.f32 %v909, %v936
      %v981 = vadd.f32 %v910, %v936
      %v982 = vadd.f32 %v911, %v936
      %v983 = vadd.f32 %v912, %v936
      %v984 = vadd.f32 %v913, %v936
      %v985 = vadd.f32 %v914, %v936
      %v986 = vadd.f32 %v915, %v936
      %v987 = vadd.f32 %v916, %v936
      %v988 = vadd.f32 %v917, %v936
      %v989 = vadd.f32 %v918, %v936
      %v990 = vadd.f32 %v919, %v936
      %v991 = vadd.f32 %v920, %v936
      %v992 = vadd.f32 %v921, %v936
      %v993 = vadd.f32 %v922, %v936
      %v994 = vadd.f32 %v923, %v936
      %v995 = vadd.f32 %v924, %v936
      %v996 = vadd.f32 %v925, %v936
      %v997 = vadd.f32 %v926, %v936
      %v998 = vadd.f32 %v927, %v936
      %v999 = vadd.f32 %v928, %v936
      %v1000 = vadd.f32 %v929, %v936
      %v1001 = vadd.f32 %v930, %v936
      %v1002 = vld [vmem:[%s242] sm:$0xff]
      %v1003 = vld [vmem:[%s242 + $0x8] sm:$0xff]
      %v1004 = vld [vmem:[%s242 + $0x10] sm:$0xff]
      %v1005 = vld [vmem:[%s242 + $0x18] sm:$0xff]
      %v1006 = vld [vmem:[%s242 + $0x20] sm:$0xff]
      %v1007 = vld [vmem:[%s242 + $0x28] sm:$0xff]
      %v1008 = vld [vmem:[%s242 + $0x30] sm:$0xff]
      %v1009 = vld [vmem:[%s242 + $0x38] sm:$0xff]
      %v1010 = vld [vmem:[%s242 + $0x40] sm:$0xff]
      %v1011 = vld [vmem:[%s242 + $0x48] sm:$0xff]
      %v1012 = vld [vmem:[%s242 + $0x50] sm:$0xff]
      %v1013 = vld [vmem:[%s242 + $0x58] sm:$0xff]
      %v1014 = vld [vmem:[%s242 + $0x60] sm:$0xff]
      %v1015 = vld [vmem:[%s242 + $0x68] sm:$0xff]
      %v1016 = vld [vmem:[%s242 + $0x70] sm:$0xff]
      %v1017 = vld [vmem:[%s242 + $0x78] sm:$0xff]
      %v1018 = vld [vmem:[%s242 + $0x80] sm:$0xff]
      %v1019 = vld [vmem:[%s242 + $0x88] sm:$0xff]
      %v1020 = vld [vmem:[%s242 + $0x90] sm:$0xff]
      %v1021 = vld [vmem:[%s242 + $0x98] sm:$0xff]
      %v1022 = vld [vmem:[%s242 + $0xa0] sm:$0xff]
      %v1023 = vld [vmem:[%s242 + $0xa8] sm:$0xff]
      %v1024 = vld [vmem:[%s242 + $0xb0] sm:$0xff]
      %v1025 = vld [vmem:[%s242 + $0xb8] sm:$0xff]
      %v1026 = vld [vmem:[%s242 + $0xc0] sm:$0xff]
      %v1027 = vld [vmem:[%s242 + $0xc8] sm:$0xff]
      %v1028 = vld [vmem:[%s242 + $0xd0] sm:$0xff]
      %v1029 = vld [vmem:[%s242 + $0xd8] sm:$0xff]
      %v1030 = vld [vmem:[%s242 + $0xe0] sm:$0xff]
      %v1031 = vld [vmem:[%s242 + $0xe8] sm:$0xff]
      %v1032 = vld [vmem:[%s242 + $0xf0] sm:$0xff]
      %v1033 = vld [vmem:[%s242 + $0xf8] sm:$0xff]
      %v1034 = vld [vmem:[%s242 + $0x100] sm:$0xff]
      %v1035 = vld [vmem:[%s242 + $0x108] sm:$0xff]
      %v1036 = vld [vmem:[%s242 + $0x110] sm:$0xff]
      %v1037 = vld [vmem:[%s242 + $0x118] sm:$0xff]
      %v1038 = vld [vmem:[%s242 + $0x120] sm:$0xff]
      %v1039 = vld [vmem:[%s242 + $0x128] sm:$0xff]
      %v1040 = vld [vmem:[%s242 + $0x130] sm:$0xff]
      %v1041 = vld [vmem:[%s242 + $0x138] sm:$0xff]
      %v1042 = vld [vmem:[%s242 + $0x140] sm:$0xff]
      %v1043 = vld [vmem:[%s242 + $0x148] sm:$0xff]
      %v1044 = vld [vmem:[%s242 + $0x150] sm:$0xff]
      %v1045 = vld [vmem:[%s242 + $0x158] sm:$0xff]
      %v1046 = vld [vmem:[%s242 + $0x160] sm:$0xff]
      %v1047 = vld [vmem:[%s242 + $0x168] sm:$0xff]
      %v1048 = vld [vmem:[%s242 + $0x170] sm:$0xff]
      %v1049 = vld [vmem:[%s242 + $0x178] sm:$0xff]
      %v1050 = vld [vmem:[%s242 + $0x180] sm:$0xff]
      %v1051 = vld [vmem:[%s242 + $0x188] sm:$0xff]
      %v1052 = vld [vmem:[%s242 + $0x190] sm:$0xff]
      %v1053 = vld [vmem:[%s242 + $0x198] sm:$0xff]
      %v1054 = vld [vmem:[%s242 + $0x1a0] sm:$0xff]
      %v1055 = vld [vmem:[%s242 + $0x1a8] sm:$0xff]
      %v1056 = vld [vmem:[%s242 + $0x1b0] sm:$0xff]
      %v1057 = vld [vmem:[%s242 + $0x1b8] sm:$0xff]
      %v1058 = vld [vmem:[%s242 + $0x1c0] sm:$0xff]
      %v1059 = vld [vmem:[%s242 + $0x1c8] sm:$0xff]
      %v1060 = vld [vmem:[%s242 + $0x1d0] sm:$0xff]
      %v1061 = vld [vmem:[%s242 + $0x1d8] sm:$0xff]
      %v1062 = vld [vmem:[%s242 + $0x1e0] sm:$0xff]
      %v1063 = vld [vmem:[%s242 + $0x1e8] sm:$0xff]
      %v1064 = vld [vmem:[%s242 + $0x1f0] sm:$0xff]
      %v1065 = vld [vmem:[%s242 + $0x1f8] sm:$0xff]
      %v1066 = vadd.f32 %v938, %v1002
      %v1067 = vadd.f32 %v939, %v1003
      %v1068 = vadd.f32 %v940, %v1004
      %v1069 = vadd.f32 %v941, %v1005
      %v1070 = vadd.f32 %v942, %v1006
      %v1071 = vadd.f32 %v943, %v1007
      %v1072 = vadd.f32 %v944, %v1008
      %v1073 = vadd.f32 %v945, %v1009
      %v1074 = vadd.f32 %v946, %v1010
      %v1075 = vadd.f32 %v947, %v1011
      %v1076 = vadd.f32 %v948, %v1012
      %v1077 = vadd.f32 %v949, %v1013
      %v1078 = vadd.f32 %v950, %v1014
      %v1079 = vadd.f32 %v951, %v1015
      %v1080 = vadd.f32 %v952, %v1016
      %v1081 = vadd.f32 %v953, %v1017
      %v1082 = vadd.f32 %v954, %v1018
      %v1083 = vadd.f32 %v955, %v1019
      %v1084 = vadd.f32 %v956, %v1020
      %v1085 = vadd.f32 %v957, %v1021
      %v1086 = vadd.f32 %v958, %v1022
      %v1087 = vadd.f32 %v959, %v1023
      %v1088 = vadd.f32 %v960, %v1024
      %v1089 = vadd.f32 %v961, %v1025
      %v1090 = vadd.f32 %v962, %v1026
      %v1091 = vadd.f32 %v963, %v1027
      %v1092 = vadd.f32 %v964, %v1028
      %v1093 = vadd.f32 %v965, %v1029
      %v1094 = vadd.f32 %v966, %v1030
      %v1095 = vadd.f32 %v967, %v1031
      %v1096 = vadd.f32 %v968, %v1032
      %v1097 = vadd.f32 %v969, %v1033
      %v1098 = vadd.f32 %v970, %v1034
      %v1099 = vadd.f32 %v971, %v1035
      %v1100 = vadd.f32 %v972, %v1036
      %v1101 = vadd.f32 %v973, %v1037
      %v1102 = vadd.f32 %v974, %v1038
      %v1103 = vadd.f32 %v975, %v1039
      %v1104 = vadd.f32 %v976, %v1040
      %v1105 = vadd.f32 %v977, %v1041
      %v1106 = vadd.f32 %v978, %v1042
      %v1107 = vadd.f32 %v979, %v1043
      %v1108 = vadd.f32 %v980, %v1044
      %v1109 = vadd.f32 %v981, %v1045
      %v1110 = vadd.f32 %v982, %v1046
      %v1111 = vadd.f32 %v983, %v1047
      %v1112 = vadd.f32 %v984, %v1048
      %v1113 = vadd.f32 %v985, %v1049
      %v1114 = vadd.f32 %v986, %v1050
      %v1115 = vadd.f32 %v987, %v1051
      %v1116 = vadd.f32 %v988, %v1052
      %v1117 = vadd.f32 %v989, %v1053
      %v1118 = vadd.f32 %v990, %v1054
      %v1119 = vadd.f32 %v991, %v1055
      %v1120 = vadd.f32 %v992, %v1056
      %v1121 = vadd.f32 %v993, %v1057
      %v1122 = vadd.f32 %v994, %v1058
      %v1123 = vadd.f32 %v995, %v1059
      %v1124 = vadd.f32 %v996, %v1060
      %v1125 = vadd.f32 %v997, %v1061
      %v1126 = vadd.f32 %v998, %v1062
      %v1127 = vadd.f32 %v999, %v1063
      %v1128 = vadd.f32 %v1000, %v1064
      %v1129 = vadd.f32 %v1001, %v1065
      %v1130 = vmax.f32 %v1066, 0.0
      %v1131 = vmax.f32 %v1067, 0.0
      %v1132 = vmax.f32 %v1068, 0.0
      %v1133 = vmax.f32 %v1069, 0.0
      %v1134 = vmax.f32 %v1070, 0.0
      %v1135 = vmax.f32 %v1071, 0.0
      %v1136 = vmax.f32 %v1072, 0.0
      %v1137 = vmax.f32 %v1073, 0.0
      %v1138 = vmax.f32 %v1074, 0.0
      %v1139 = vmax.f32 %v1075, 0.0
      %v1140 = vmax.f32 %v1076, 0.0
      %v1141 = vmax.f32 %v1077, 0.0
      %v1142 = vmax.f32 %v1078, 0.0
      %v1143 = vmax.f32 %v1079, 0.0
      %v1144 = vmax.f32 %v1080, 0.0
      %v1145 = vmax.f32 %v1081, 0.0
      %v1146 = vmax.f32 %v1082, 0.0
      %v1147 = vmax.f32 %v1083, 0.0
      %v1148 = vmax.f32 %v1084, 0.0
      %v1149 = vmax.f32 %v1085, 0.0
      %v1150 = vmax.f32 %v1086, 0.0
      %v1151 = vmax.f32 %v1087, 0.0
      %v1152 = vmax.f32 %v1088, 0.0
      %v1153 = vmax.f32 %v1089, 0.0
      %v1154 = vmax.f32 %v1090, 0.0
      %v1155 = vmax.f32 %v1091, 0.0
      %v1156 = vmax.f32 %v1092, 0.0
      %v1157 = vmax.f32 %v1093, 0.0
      %v1158 = vmax.f32 %v1094, 0.0
      %v1159 = vmax.f32 %v1095, 0.0
      %v1160 = vmax.f32 %v1096, 0.0
      %v1161 = vmax.f32 %v1097, 0.0
      %v1162 = vmax.f32 %v1098, 0.0
      %v1163 = vmax.f32 %v1099, 0.0
      %v1164 = vmax.f32 %v1100, 0.0
      %v1165 = vmax.f32 %v1101, 0.0
      %v1166 = vmax.f32 %v1102, 0.0
      %v1167 = vmax.f32 %v1103, 0.0
      %v1168 = vmax.f32 %v1104, 0.0
      %v1169 = vmax.f32 %v1105, 0.0
      %v1170 = vmax.f32 %v1106, 0.0
      %v1171 = vmax.f32 %v1107, 0.0
      %v1172 = vmax.f32 %v1108, 0.0
      %v1173 = vmax.f32 %v1109, 0.0
      %v1174 = vmax.f32 %v1110, 0.0
      %v1175 = vmax.f32 %v1111, 0.0
      %v1176 = vmax.f32 %v1112, 0.0
      %v1177 = vmax.f32 %v1113, 0.0
      %v1178 = vmax.f32 %v1114, 0.0
      %v1179 = vmax.f32 %v1115, 0.0
      %v1180 = vmax.f32 %v1116, 0.0
      %v1181 = vmax.f32 %v1117, 0.0
      %v1182 = vmax.f32 %v1118, 0.0
      %v1183 = vmax.f32 %v1119, 0.0
      %v1184 = vmax.f32 %v1120, 0.0
      %v1185 = vmax.f32 %v1121, 0.0
      %v1186 = vmax.f32 %v1122, 0.0
      %v1187 = vmax.f32 %v1123, 0.0
      %v1188 = vmax.f32 %v1124, 0.0
      %v1189 = vmax.f32 %v1125, 0.0
      %v1190 = vmax.f32 %v1126, 0.0
      %v1191 = vmax.f32 %v1127, 0.0
      %v1192 = vmax.f32 %v1128, 0.0
      %v1193 = vmax.f32 %v1129, 0.0
      %1194 = vst [vmem:[%s248] sm:$0xff] %v1130
      %1195 = vst [vmem:[%s248 + $0x8] sm:$0xff] %v1131
      %1196 = vst [vmem:[%s248 + $0x10] sm:$0xff] %v1132
      %1197 = vst [vmem:[%s248 + $0x18] sm:$0xff] %v1133
      %1198 = vst [vmem:[%s248 + $0x20] sm:$0xff] %v1134
      %1199 = vst [vmem:[%s248 + $0x28] sm:$0xff] %v1135
      %1200 = vst [vmem:[%s248 + $0x30] sm:$0xff] %v1136
      %1201 = vst [vmem:[%s248 + $0x38] sm:$0xff] %v1137
      %1202 = vst [vmem:[%s248 + $0x40] sm:$0xff] %v1138
      %1203 = vst [vmem:[%s248 + $0x48] sm:$0xff] %v1139
      %1204 = vst [vmem:[%s248 + $0x50] sm:$0xff] %v1140
      %1205 = vst [vmem:[%s248 + $0x58] sm:$0xff] %v1141
      %1206 = vst [vmem:[%s248 + $0x60] sm:$0xff] %v1142
      %1207 = vst [vmem:[%s248 + $0x68] sm:$0xff] %v1143
      %1208 = vst [vmem:[%s248 + $0x70] sm:$0xff] %v1144
      %1209 = vst [vmem:[%s248 + $0x78] sm:$0xff] %v1145
      %1210 = vst [vmem:[%s248 + $0x80] sm:$0xff] %v1146
      %1211 = vst [vmem:[%s248 + $0x88] sm:$0xff] %v1147
      %1212 = vst [vmem:[%s248 + $0x90] sm:$0xff] %v1148
      %1213 = vst [vmem:[%s248 + $0x98] sm:$0xff] %v1149
      %1214 = vst [vmem:[%s248 + $0xa0] sm:$0xff] %v1150
      %1215 = vst [vmem:[%s248 + $0xa8] sm:$0xff] %v1151
      %1216 = vst [vmem:[%s248 + $0xb0] sm:$0xff] %v1152
      %1217 = vst [vmem:[%s248 + $0xb8] sm:$0xff] %v1153
      %1218 = vst [vmem:[%s248 + $0xc0] sm:$0xff] %v1154
      %1219 = vst [vmem:[%s248 + $0xc8] sm:$0xff] %v1155
      %1220 = vst [vmem:[%s248 + $0xd0] sm:$0xff] %v1156
      %1221 = vst [vmem:[%s248 + $0xd8] sm:$0xff] %v1157
      %1222 = vst [vmem:[%s248 + $0xe0] sm:$0xff] %v1158
      %1223 = vst [vmem:[%s248 + $0xe8] sm:$0xff] %v1159
      %1224 = vst [vmem:[%s248 + $0xf0] sm:$0xff] %v1160
      %1225 = vst [vmem:[%s248 + $0xf8] sm:$0xff] %v1161
      %1226 = vst [vmem:[%s248 + $0x100] sm:$0xff] %v1162
      %1227 = vst [vmem:[%s248 + $0x108] sm:$0xff] %v1163
      %1228 = vst [vmem:[%s248 + $0x110] sm:$0xff] %v1164
      %1229 = vst [vmem:[%s248 + $0x118] sm:$0xff] %v1165
      %1230 = vst [vmem:[%s248 + $0x120] sm:$0xff] %v1166
      %1231 = vst [vmem:[%s248 + $0x128] sm:$0xff] %v1167
      %1232 = vst [vmem:[%s248 + $0x130] sm:$0xff] %v1168
      %1233 = vst [vmem:[%s248 + $0x138] sm:$0xff] %v1169
      %1234 = vst [vmem:[%s248 + $0x140] sm:$0xff] %v1170
      %1235 = vst [vmem:[%s248 + $0x148] sm:$0xff] %v1171
      %1236 = vst [vmem:[%s248 + $0x150] sm:$0xff] %v1172
      %1237 = vst [vmem:[%s248 + $0x158] sm:$0xff] %v1173
      %1238 = vst [vmem:[%s248 + $0x160] sm:$0xff] %v1174
      %1239 = vst [vmem:[%s248 + $0x168] sm:$0xff] %v1175
      %1240 = vst [vmem:[%s248 + $0x170] sm:$0xff] %v1176
      %1241 = vst [vmem:[%s248 + $0x178] sm:$0xff] %v1177
      %1242 = vst [vmem:[%s248 + $0x180] sm:$0xff] %v1178
      %1243 = vst [vmem:[%s248 + $0x188] sm:$0xff] %v1179
      %1244 = vst [vmem:[%s248 + $0x190] sm:$0xff] %v1180
      %1245 = vst [vmem:[%s248 + $0x198] sm:$0xff] %v1181
      %1246 = vst [vmem:[%s248 + $0x1a0] sm:$0xff] %v1182
      %1247 = vst [vmem:[%s248 + $0x1a8] sm:$0xff] %v1183
      %1248 = vst [vmem:[%s248 + $0x1b0] sm:$0xff] %v1184
      %1249 = vst [vmem:[%s248 + $0x1b8] sm:$0xff] %v1185
      %1250 = vst [vmem:[%s248 + $0x1c0] sm:$0xff] %v1186
      %1251 = vst [vmem:[%s248 + $0x1c8] sm:$0xff] %v1187
      %1252 = vst [vmem:[%s248 + $0x1d0] sm:$0xff] %v1188
      %1253 = vst [vmem:[%s248 + $0x1d8] sm:$0xff] %v1189
      %1254 = vst [vmem:[%s248 + $0x1e0] sm:$0xff] %v1190
      %1255 = vst [vmem:[%s248 + $0x1e8] sm:$0xff] %v1191
      %1256 = vst [vmem:[%s248 + $0x1f0] sm:$0xff] %v1192
      %1257 = vst [vmem:[%s248 + $0x1f8] sm:$0xff] %v1193
      %s1258 = smul.u32 64, %s16
      %p1259 = scmp.lt.s32.totalorder %s1258, 255
      %s1260 = scalar_select %p1259, %s1258, 255
      %s1261 = smul.addr %s1260, 8
      %s1262 = scalar_lea.vmem %s5, %s1261
      // Predicated region
      $region41: #{_lambda_.7} parent=39 // pred_check
        %p1263 = pneg %p149
      $region42: #{_lambda_.7} parent=39 // pred_check_branch
        %1265 = sbr.rel (%p1263) target = $region44
      $region43: #{_lambda_.7} parent=39 // pred_region
        %s1266 = smul.u32 64, %s16
      $region44: #{_lambda_.7} parent=39 // pred_fallthru
        _
    $region40: #{_lambda_.7} parent=5 // pred_fallthru
      _
    %p1267 = scmp.le.s32.totalorder 2, %s11
    // Predicated region
    $region45: #{_lambda_.7} parent=5 // pred_check
      %p1268 = pneg %p1267
    $region46: #{_lambda_.7} parent=5 // pred_check_branch
      %1270 = sbr.rel (%p1268) target = $region48
    $region47: #{_lambda_.7} parent=5 // pred_region
      %s1271 = ssub.s32 %s11, 2
      // Predicated region
      $region49: #{_lambda_.7} parent=47 // pred_check
        %p1272 = pneg %p155
      $region50: #{_lambda_.7} parent=47 // pred_check_branch
        %1274 = sbr.rel (%p1272) target = $region52
      $region51: #{_lambda_.7} parent=47 // pred_region
        %s1275 = smul.u32 64, %s17
        %p1276 = scmp.lt.s32.totalorder %s1275, 255
        %s1277 = scalar_select %p1276, %s1275, 255
        %s1278 = smul.addr %s1277, 8
        %s1279 = scalar_lea.vmem %s5, %s1278
      $region52: #{_lambda_.7} parent=47 // pred_fallthru
        _
    $region48: #{_lambda_.7} parent=5 // pred_fallthru
      _
  $region6: #{_lambda_.7} parent=0 // loop_footer
    %s15 = sadd.s32 1, %s11
  $region7: #{_lambda_.7} parent=0 // loop_footer_branch
    %10 = sbr.rel target = $region3
  $region8: #{_lambda_.7} parent=0 // loop_exit
    _

// kernel: _lambda_.5
$region0: #{_lambda_.5}
  #allocation0 [shape = 'u32[]', space=smem, size = 0x4, offset = 0x4, fixed_abs, tag = 'smem constant byte address 0x4 - core index']
  #allocation1 [shape = 'u32[144,128]{1,0:T(1,128)}', space=vmem, size = 0x12000, scoped, tag = 'internal scratch']
  %s0 = inlined_call_operand.vmem [shape: bf16[2048,1152], index: 0, kind: input, shape index: {}]
  %s1 = inlined_call_operand.vmem [shape: bf16[1152,128], index: 1, kind: input, shape index: {}]
  %s2 = inlined_call_operand.vmem [shape: f32[1,128], index: 2, kind: input, shape index: {}]
  %s3 = inlined_call_operand.vmem [shape: f32[1,128], index: 3, kind: input, shape index: {}]
  %s4 = inlined_call_operand.vmem [shape: bf16[2048,128], index: 4, kind: output, shape index: {}]
  %s5 = sld [smem:[#allocation0]]
  $region49: #{_lambda_.5} parent=0
    _
  %s7 = ssub.s32 1, %s5
  %s8 = scalar_select 0, %s7, %s5
  loop: start=0, step=1, limit=6
  $region2: #{_lambda_.5} parent=0 // loop_pre_header
    _
  $region3: #{_lambda_.5} parent=0 // loop_header
    %s10 = sphi 0, %s14
    %p11 = scmp.ge.s32.totalorder %s10, 6
    %s20 = sphi 0, %s22
    %s23 = sphi 0, %s20
    %s24 = sphi 0, %s23
    %s40 = sphi 0, %s24
    %s44 = sphi 0, %s44
    %s46 = sphi 0, %s44
    %s47 = sphi 0, %s46
    %s61 = sphi 0, %s47
    %s65 = sphi 0, %s65
    %s67 = sphi 0, %s65
    %s68 = sphi 0, %s67
    %s82 = sphi 0, %s68
    %s86 = sphi 0, %s86
    %s88 = sphi 0, %s86
    %s89 = sphi 0, %s88
    %s103 = sphi 0, %s89
    %s109 = sphi 0, %s111
    %s112 = sphi 0, %s109
    %s113 = sphi 0, %s112
    %s129 = sphi 0, %s113
  $region4: #{_lambda_.5} parent=0 // loop_header_branch
    %13 = sbr.rel (%p11) target = $region8
  $region5: #{_lambda_.5} parent=0 // loop_body
    %s15 = ssub.s32 %s10, 1
    %s16 = ssub.s32 %s10, 2
    %s17 = sadd.s32 %s10, 1
    %s18 = ssub.s32 %s10, %s17
    %p19 = scmp.eq.s32.totalorder %s18, 0
    %s21 = sadd.s32 %s20, 1
    %s22 = scalar_select %p19, %s20, %s21
    %p25 = pneg %p19
    %p26 = scmp.eq.s32.totalorder %s10, 3
    %p27 = por %p25, %p26
    %p28 = scmp.ne.s32.totalorder %s20, %s23
    %p29 = scmp.eq.s32.totalorder %s10, 0
    %p30 = por %p28, %p29
    %p31 = scmp.ne.s32.totalorder %s20, %s23
    %p32 = scmp.eq.s32.totalorder %s15, 3
    %p33 = por %p31, %p32
    %p34 = scmp.ne.s32.totalorder %s23, %s24
    %p35 = scmp.eq.s32.totalorder %s15, 0
    %p36 = por %p34, %p35
    %p37 = scmp.ne.s32.totalorder %s23, %s24
    %p38 = scmp.eq.s32.totalorder %s16, 3
    %p39 = por %p37, %p38
    %p41 = scmp.ne.s32.totalorder %s24, %s40
    %p42 = scmp.eq.s32.totalorder %s16, 0
    %p43 = por %p41, %p42
    %s45 = sadd.s32 %s44, 1
    %p48 = scmp.eq.s32.totalorder %s10, 3
    %p49 = scmp.ne.s32.totalorder %s44, %s46
    %p50 = scmp.eq.s32.totalorder %s10, 0
    %p51 = por %p49, %p50
    %p52 = scmp.ne.s32.totalorder %s44, %s46
    %p53 = scmp.eq.s32.totalorder %s15, 3
    %p54 = por %p52, %p53
    %p55 = scmp.ne.s32.totalorder %s46, %s47
    %p56 = scmp.eq.s32.totalorder %s15, 0
    %p57 = por %p55, %p56
    %p58 = scmp.ne.s32.totalorder %s46, %s47
    %p59 = scmp.eq.s32.totalorder %s16, 3
    %p60 = por %p58, %p59
    %p62 = scmp.ne.s32.totalorder %s47, %s61
    %p63 = scmp.eq.s32.totalorder %s16, 0
    %p64 = por %p62, %p63
    %s66 = sadd.s32 %s65, 1
    %p69 = scmp.eq.s32.totalorder %s10, 3
    %p70 = scmp.ne.s32.totalorder %s65, %s67
    %p71 = scmp.eq.s32.totalorder %s10, 0
    %p72 = por %p70, %p71
    %p73 = scmp.ne.s32.totalorder %s65, %s67
    %p74 = scmp.eq.s32.totalorder %s15, 3
    %p75 = por %p73, %p74
    %p76 = scmp.ne.s32.totalorder %s67, %s68
    %p77 = scmp.eq.s32.totalorder %s15, 0
    %p78 = por %p76, %p77
    %p79 = scmp.ne.s32.totalorder %s67, %s68
    %p80 = scmp.eq.s32.totalorder %s16, 3
    %p81 = por %p79, %p80
    %p83 = scmp.ne.s32.totalorder %s68, %s82
    %p84 = scmp.eq.s32.totalorder %s16, 0
    %p85 = por %p83, %p84
    %s87 = sadd.s32 %s86, 1
    %p90 = scmp.eq.s32.totalorder %s10, 3
    %p91 = scmp.ne.s32.totalorder %s86, %s88
    %p92 = scmp.eq.s32.totalorder %s10, 0
    %p93 = por %p91, %p92
    %p94 = scmp.ne.s32.totalorder %s86, %s88
    %p95 = scmp.eq.s32.totalorder %s15, 3
    %p96 = por %p94, %p95
    %p97 = scmp.ne.s32.totalorder %s88, %s89
    %p98 = scmp.eq.s32.totalorder %s15, 0
    %p99 = por %p97, %p98
    %p100 = scmp.ne.s32.totalorder %s88, %s89
    %p101 = scmp.eq.s32.totalorder %s16, 3
    %p102 = por %p100, %p101
    %p104 = scmp.ne.s32.totalorder %s89, %s103
    %p105 = scmp.eq.s32.totalorder %s16, 0
    %p106 = por %p104, %p105
    %s107 = ssub.s32 %s10, %s17
    %p108 = scmp.eq.s32.totalorder %s107, 0
    %s110 = sadd.s32 %s109, 1
    %s111 = scalar_select %p108, %s109, %s110
    %p114 = pneg %p108
    %p115 = scmp.eq.s32.totalorder %s10, 3
    %p116 = por %p114, %p115
    %p117 = scmp.ne.s32.totalorder %s109, %s112
    %p118 = scmp.eq.s32.totalorder %s10, 0
    %p119 = por %p117, %p118
    %p120 = scmp.ne.s32.totalorder %s109, %s112
    %p121 = scmp.eq.s32.totalorder %s15, 3
    %p122 = por %p120, %p121
    %p123 = scmp.ne.s32.totalorder %s112, %s113
    %p124 = scmp.eq.s32.totalorder %s15, 0
    %p125 = por %p123, %p124
    %p126 = scmp.ne.s32.totalorder %s112, %s113
    %p127 = scmp.eq.s32.totalorder %s16, 3
    %p128 = por %p126, %p127
    %p130 = scmp.ne.s32.totalorder %s113, %s129
    %p131 = scmp.eq.s32.totalorder %s16, 0
    %p132 = por %p130, %p131
    %p133 = scmp.le.s32.totalorder 1, %s10
    %p134 = scmp.lt.s32.totalorder %s10, 5
    %p135 = pnand %p133, %p134
    %p136 = pneg %p135
    // Predicated region
    $region9: #{_lambda_.5} parent=5 // pred_check
      _
    $region10: #{_lambda_.5} parent=5 // pred_check_branch
      %138 = sbr.rel (%p135) target = $region12
    $region11: #{_lambda_.5} parent=5 // pred_region
      %s139 = ssub.s32 %s10, 1
      // Predicated region
      $region13: #{_lambda_.5} parent=11 // pred_check
        %p140 = pneg %p57
      $region14: #{_lambda_.5} parent=11 // pred_check_branch
        %142 = sbr.rel (%p140) target = $region16
      $region15: #{_lambda_.5} parent=11 // pred_region
        _
      $region16: #{_lambda_.5} parent=11 // pred_fallthru
        _
      // Predicated region
      $region17: #{_lambda_.5} parent=11 // pred_check
        %p143 = pneg %p78
      $region18: #{_lambda_.5} parent=11 // pred_check_branch
        %145 = sbr.rel (%p143) target = $region20
      $region19: #{_lambda_.5} parent=11 // pred_region
        _
      $region20: #{_lambda_.5} parent=11 // pred_fallthru
        _
      // Predicated region
      $region21: #{_lambda_.5} parent=11 // pred_check
        %p146 = pneg %p99
      $region22: #{_lambda_.5} parent=11 // pred_check_branch
        %148 = sbr.rel (%p146) target = $region24
      $region23: #{_lambda_.5} parent=11 // pred_region
        _
      $region24: #{_lambda_.5} parent=11 // pred_fallthru
        _
    $region12: #{_lambda_.5} parent=5 // pred_fallthru
      _
    %p149 = scmp.lt.s32.totalorder %s10, 4
    // Predicated region
    $region25: #{_lambda_.5} parent=5 // pred_check
      %p150 = pneg %p149
    $region26: #{_lambda_.5} parent=5 // pred_check_branch
      %152 = sbr.rel (%p150) target = $region28
    $region27: #{_lambda_.5} parent=5 // pred_region
      // Predicated region
      $region29: #{_lambda_.5} parent=27 // pred_check
        %p153 = pneg %p30
      $region30: #{_lambda_.5} parent=27 // pred_check_branch
        %155 = sbr.rel (%p153) target = $region32
      $region31: #{_lambda_.5} parent=27 // pred_region
        %s156 = smul.u32 64, %s10
        %p157 = scmp.lt.s32.totalorder %s156, 255
        %s158 = scalar_select %p157, %s156, 255
        %s159 = smul.addr %s158, 9
        %s160 = smul.addr %s159, 4
        %s161 = scalar_lea.vmem %s0, %s160
        %s162 = smul.u32 64, %s10
      $region32: #{_lambda_.5} parent=27 // pred_fallthru
        _
    $region28: #{_lambda_.5} parent=5 // pred_fallthru
      _
    %p163 = scmp.le.s32.totalorder 1, %s10
    %p164 = scmp.lt.s32.totalorder %s10, 5
    %p165 = pnand %p163, %p164
    %p166 = pneg %p165
    // Predicated region
    $region33: #{_lambda_.5} parent=5 // pred_check
      _
    $region34: #{_lambda_.5} parent=5 // pred_check_branch
      %168 = sbr.rel (%p165) target = $region36
    $region35: #{_lambda_.5} parent=5 // pred_region
      %s169 = ssub.s32 %s10, 1
      %s170 = smul.u32 64, %s15
      %p171 = scmp.lt.s32.totalorder %s170, 255
      %s172 = scalar_select %p171, %s170, 255
      %s173 = smul.addr %s172, 9
      %s174 = smul.addr %s173, 4
      %s175 = scalar_lea.vmem %s0, %s174
      %p176 = pneg %p36
      %p177 = pneg %p33
      %p178 = pneg %p57
      %p179 = pneg %p54
      %p180 = pneg %p78
      %p181 = pneg %p75
      %p182 = pneg %p99
      %p183 = pneg %p96
      %p184 = pneg %p125
      %p185 = pneg %p122
      %s186 = smul.u32 64, %s15
      %p187 = scmp.lt.s32.totalorder %s186, 255
      %s188 = scalar_select %p187, %s186, 255
      %s189 = smul.addr %s188, 4
      %s190 = scalar_lea.vmem %s4, %s189
      %s191 = smul.u32 64, %s15
      %p192 = scmp.lt.s32.totalorder %s191, 255
      %s193 = scalar_select %p192, %s191, 255
      %s194 = smul.addr %s193, 9
      %s195 = smul.addr %s194, 4
      %s196 = scalar_lea.vmem %s0, %s195
      %s197 = smul.u32 64, %s15
      %s198 = smul.u32 64, %s15
      %p199 = scmp.lt.s32.totalorder %s198, 255
      %s200 = scalar_select %p199, %s198, 255
      %s201 = smul.addr %s200, 4
      %s202 = scalar_lea.vmem %s4, %s201
      %s203 = smul.u32 64, %s15
      %v205 = vld [vmem:[%s196] sm:$0xff]
      %v206 = vld [vmem:[%s196 + $0x8] sm:$0xff]
      %v207 = vld [vmem:[%s196 + $0x10] sm:$0xff]
      %v208 = vld [vmem:[%s196 + $0x18] sm:$0xff]
      %v209 = vld [vmem:[%s196 + $0x20] sm:$0xf]
      %v210 = vld [vmem:[%s196 + $0x24] sm:$0xff]
      %v211 = vld [vmem:[%s196 + $0x2c] sm:$0xff]
      %v212 = vld [vmem:[%s196 + $0x34] sm:$0xff]
      %v213 = vld [vmem:[%s196 + $0x3c] sm:$0xff]
      %v214 = vld [vmem:[%s196 + $0x44] sm:$0xf]
      %v215 = vld [vmem:[%s196 + $0x48] sm:$0xff]
      %v216 = vld [vmem:[%s196 + $0x50] sm:$0xff]
      %v217 = vld [vmem:[%s196 + $0x58] sm:$0xff]
      %v218 = vld [vmem:[%s196 + $0x60] sm:$0xff]
      %v219 = vld [vmem:[%s196 + $0x68] sm:$0xf]
      %v220 = vld [vmem:[%s196 + $0x6c] sm:$0xff]
      %v221 = vld [vmem:[%s196 + $0x74] sm:$0xff]
      %v222 = vld [vmem:[%s196 + $0x7c] sm:$0xff]
      %v223 = vld [vmem:[%s196 + $0x84] sm:$0xff]
      %v224 = vld [vmem:[%s196 + $0x8c] sm:$0xf]
      %v225 = vld [vmem:[%s196 + $0x90] sm:$0xff]
      %v226 = vld [vmem:[%s196 + $0x98] sm:$0xff]
      %v227 = vld [vmem:[%s196 + $0xa0] sm:$0xff]
      %v228 = vld [vmem:[%s196 + $0xa8] sm:$0xff]
      %v229 = vld [vmem:[%s196 + $0xb0] sm:$0xf]
      %v230 = vld [vmem:[%s196 + $0xb4] sm:$0xff]
      %v231 = vld [vmem:[%s196 + $0xbc] sm:$0xff]
      %v232 = vld [vmem:[%s196 + $0xc4] sm:$0xff]
      %v233 = vld [vmem:[%s196 + $0xcc] sm:$0xff]
      %v234 = vld [vmem:[%s196 + $0xd4] sm:$0xf]
      %v235 = vld [vmem:[%s196 + $0xd8] sm:$0xff]
      %v236 = vld [vmem:[%s196 + $0xe0] sm:$0xff]
      %v237 = vld [vmem:[%s196 + $0xe8] sm:$0xff]
      %v238 = vld [vmem:[%s196 + $0xf0] sm:$0xff]
      %v239 = vld [vmem:[%s196 + $0xf8] sm:$0xf]
      %v240 = vld [vmem:[%s196 + $0xfc] sm:$0xff]
      %v241 = vld [vmem:[%s196 + $0x104] sm:$0xff]
      %v242 = vld [vmem:[%s196 + $0x10c] sm:$0xff]
      %v243 = vld [vmem:[%s196 + $0x114] sm:$0xff]
      %v244 = vld [vmem:[%s196 + $0x11c] sm:$0xf]
      %v245 = vld [vmem:[%s196 + $0x120] sm:$0xff]
      %v246 = vld [vmem:[%s196 + $0x128] sm:$0xff]
      %v247 = vld [vmem:[%s196 + $0x130] sm:$0xff]
      %v248 = vld [vmem:[%s196 + $0x138] sm:$0xff]
      %v249 = vld [vmem:[%s196 + $0x140] sm:$0xf]
      %v250 = vld [vmem:[%s196 + $0x144] sm:$0xff]
      %v251 = vld [vmem:[%s196 + $0x14c] sm:$0xff]
      %v252 = vld [vmem:[%s196 + $0x154] sm:$0xff]
      %v253 = vld [vmem:[%s196 + $0x15c] sm:$0xff]
      %v254 = vld [vmem:[%s196 + $0x164] sm:$0xf]
      %v255 = vld [vmem:[%s196 + $0x168] sm:$0xff]
      %v256 = vld [vmem:[%s196 + $0x170] sm:$0xff]
      %v257 = vld [vmem:[%s196 + $0x178] sm:$0xff]
      %v258 = vld [vmem:[%s196 + $0x180] sm:$0xff]
      %v259 = vld [vmem:[%s196 + $0x188] sm:$0xf]
      %v260 = vld [vmem:[%s196 + $0x18c] sm:$0xff]
      %v261 = vld [vmem:[%s196 + $0x194] sm:$0xff]
      %v262 = vld [vmem:[%s196 + $0x19c] sm:$0xff]
      %v263 = vld [vmem:[%s196 + $0x1a4] sm:$0xff]
      %v264 = vld [vmem:[%s196 + $0x1ac] sm:$0xf]
      %v265 = vld [vmem:[%s196 + $0x1b0] sm:$0xff]
      %v266 = vld [vmem:[%s196 + $0x1b8] sm:$0xff]
      %v267 = vld [vmem:[%s196 + $0x1c0] sm:$0xff]
      %v268 = vld [vmem:[%s196 + $0x1c8] sm:$0xff]
      %v269 = vld [vmem:[%s196 + $0x1d0] sm:$0xf]
      %v270 = vld [vmem:[%s196 + $0x1d4] sm:$0xff]
      %v271 = vld [vmem:[%s196 + $0x1dc] sm:$0xff]
      %v272 = vld [vmem:[%s196 + $0x1e4] sm:$0xff]
      %v273 = vld [vmem:[%s196 + $0x1ec] sm:$0xff]
      %v274 = vld [vmem:[%s196 + $0x1f4] sm:$0xf]
      %v275 = vld [vmem:[%s196 + $0x1f8] sm:$0xff]
      %v276 = vld [vmem:[%s196 + $0x200] sm:$0xff]
      %v277 = vld [vmem:[%s196 + $0x208] sm:$0xff]
      %v278 = vld [vmem:[%s196 + $0x210] sm:$0xff]
      %v279 = vld [vmem:[%s196 + $0x218] sm:$0xf]
      %v280 = vld [vmem:[%s196 + $0x21c] sm:$0xff]
      %v281 = vld [vmem:[%s196 + $0x224] sm:$0xff]
      %v282 = vld [vmem:[%s196 + $0x22c] sm:$0xff]
      %v283 = vld [vmem:[%s196 + $0x234] sm:$0xff]
      %v284 = vld [vmem:[%s196 + $0x23c] sm:$0xf]
      %v285 = vld [vmem:[%s196 + $0x240] sm:$0xff]
      %v286 = vld [vmem:[%s196 + $0x248] sm:$0xff]
      %v287 = vld [vmem:[%s196 + $0x250] sm:$0xff]
      %v288 = vld [vmem:[%s196 + $0x258] sm:$0xff]
      %v289 = vld [vmem:[%s196 + $0x260] sm:$0xf]
      %v290 = vld [vmem:[%s196 + $0x264] sm:$0xff]
      %v291 = vld [vmem:[%s196 + $0x26c] sm:$0xff]
      %v292 = vld [vmem:[%s196 + $0x274] sm:$0xff]
      %v293 = vld [vmem:[%s196 + $0x27c] sm:$0xff]
      %v294 = vld [vmem:[%s196 + $0x284] sm:$0xf]
      %v295 = vld [vmem:[%s196 + $0x288] sm:$0xff]
      %v296 = vld [vmem:[%s196 + $0x290] sm:$0xff]
      %v297 = vld [vmem:[%s196 + $0x298] sm:$0xff]
      %v298 = vld [vmem:[%s196 + $0x2a0] sm:$0xff]
      %v299 = vld [vmem:[%s196 + $0x2a8] sm:$0xf]
      %v300 = vld [vmem:[%s196 + $0x2ac] sm:$0xff]
      %v301 = vld [vmem:[%s196 + $0x2b4] sm:$0xff]
      %v302 = vld [vmem:[%s196 + $0x2bc] sm:$0xff]
      %v303 = vld [vmem:[%s196 + $0x2c4] sm:$0xff]
      %v304 = vld [vmem:[%s196 + $0x2cc] sm:$0xf]
      %v305 = vld [vmem:[%s196 + $0x2d0] sm:$0xff]
      %v306 = vld [vmem:[%s196 + $0x2d8] sm:$0xff]
      %v307 = vld [vmem:[%s196 + $0x2e0] sm:$0xff]
      %v308 = vld [vmem:[%s196 + $0x2e8] sm:$0xff]
      %v309 = vld [vmem:[%s196 + $0x2f0] sm:$0xf]
      %v310 = vld [vmem:[%s196 + $0x2f4] sm:$0xff]
      %v311 = vld [vmem:[%s196 + $0x2fc] sm:$0xff]
      %v312 = vld [vmem:[%s196 + $0x304] sm:$0xff]
      %v313 = vld [vmem:[%s196 + $0x30c] sm:$0xff]
      %v314 = vld [vmem:[%s196 + $0x314] sm:$0xf]
      %v315 = vld [vmem:[%s196 + $0x318] sm:$0xff]
      %v316 = vld [vmem:[%s196 + $0x320] sm:$0xff]
      %v317 = vld [vmem:[%s196 + $0x328] sm:$0xff]
      %v318 = vld [vmem:[%s196 + $0x330] sm:$0xff]
      %v319 = vld [vmem:[%s196 + $0x338] sm:$0xf]
      %v320 = vld [vmem:[%s196 + $0x33c] sm:$0xff]
      %v321 = vld [vmem:[%s196 + $0x344] sm:$0xff]
      %v322 = vld [vmem:[%s196 + $0x34c] sm:$0xff]
      %v323 = vld [vmem:[%s196 + $0x354] sm:$0xff]
      %v324 = vld [vmem:[%s196 + $0x35c] sm:$0xf]
      %v325 = vld [vmem:[%s196 + $0x360] sm:$0xff]
      %v326 = vld [vmem:[%s196 + $0x368] sm:$0xff]
      %v327 = vld [vmem:[%s196 + $0x370] sm:$0xff]
      %v328 = vld [vmem:[%s196 + $0x378] sm:$0xff]
      %v329 = vld [vmem:[%s196 + $0x380] sm:$0xf]
      %v330 = vld [vmem:[%s196 + $0x384] sm:$0xff]
      %v331 = vld [vmem:[%s196 + $0x38c] sm:$0xff]
      %v332 = vld [vmem:[%s196 + $0x394] sm:$0xff]
      %v333 = vld [vmem:[%s196 + $0x39c] sm:$0xff]
      %v334 = vld [vmem:[%s196 + $0x3a4] sm:$0xf]
      %v335 = vld [vmem:[%s196 + $0x3a8] sm:$0xff]
      %v336 = vld [vmem:[%s196 + $0x3b0] sm:$0xff]
      %v337 = vld [vmem:[%s196 + $0x3b8] sm:$0xff]
      %v338 = vld [vmem:[%s196 + $0x3c0] sm:$0xff]
      %v339 = vld [vmem:[%s196 + $0x3c8] sm:$0xf]
      %v340 = vld [vmem:[%s196 + $0x3cc] sm:$0xff]
      %v341 = vld [vmem:[%s196 + $0x3d4] sm:$0xff]
      %v342 = vld [vmem:[%s196 + $0x3dc] sm:$0xff]
      %v343 = vld [vmem:[%s196 + $0x3e4] sm:$0xff]
      %v344 = vld [vmem:[%s196 + $0x3ec] sm:$0xf]
      %v345 = vld [vmem:[%s196 + $0x3f0] sm:$0xff]
      %v346 = vld [vmem:[%s196 + $0x3f8] sm:$0xff]
      %v347 = vld [vmem:[%s196 + $0x400] sm:$0xff]
      %v348 = vld [vmem:[%s196 + $0x408] sm:$0xff]
      %v349 = vld [vmem:[%s196 + $0x410] sm:$0xf]
      %v350 = vld [vmem:[%s196 + $0x414] sm:$0xff]
      %v351 = vld [vmem:[%s196 + $0x41c] sm:$0xff]
      %v352 = vld [vmem:[%s196 + $0x424] sm:$0xff]
      %v353 = vld [vmem:[%s196 + $0x42c] sm:$0xff]
      %v354 = vld [vmem:[%s196 + $0x434] sm:$0xf]
      %v355 = vld [vmem:[%s196 + $0x438] sm:$0xff]
      %v356 = vld [vmem:[%s196 + $0x440] sm:$0xff]
      %v357 = vld [vmem:[%s196 + $0x448] sm:$0xff]
      %v358 = vld [vmem:[%s196 + $0x450] sm:$0xff]
      %v359 = vld [vmem:[%s196 + $0x458] sm:$0xf]
      %v360 = vld [vmem:[%s196 + $0x45c] sm:$0xff]
      %v361 = vld [vmem:[%s196 + $0x464] sm:$0xff]
      %v362 = vld [vmem:[%s196 + $0x46c] sm:$0xff]
      %v363 = vld [vmem:[%s196 + $0x474] sm:$0xff]
      %v364 = vld [vmem:[%s196 + $0x47c] sm:$0xf]
      %v365 = vld [vmem:[%s196 + $0x480] sm:$0xff]
      %v366 = vld [vmem:[%s196 + $0x488] sm:$0xff]
      %v367 = vld [vmem:[%s196 + $0x490] sm:$0xff]
      %v368 = vld [vmem:[%s196 + $0x498] sm:$0xff]
      %v369 = vld [vmem:[%s196 + $0x4a0] sm:$0xf]
      %v370 = vld [vmem:[%s196 + $0x4a4] sm:$0xff]
      %v371 = vld [vmem:[%s196 + $0x4ac] sm:$0xff]
      %v372 = vld [vmem:[%s196 + $0x4b4] sm:$0xff]
      %v373 = vld [vmem:[%s196 + $0x4bc] sm:$0xff]
      %v374 = vld [vmem:[%s196 + $0x4c4] sm:$0xf]
      %v375 = vld [vmem:[%s196 + $0x4c8] sm:$0xff]
      %v376 = vld [vmem:[%s196 + $0x4d0] sm:$0xff]
      %v377 = vld [vmem:[%s196 + $0x4d8] sm:$0xff]
      %v378 = vld [vmem:[%s196 + $0x4e0] sm:$0xff]
      %v379 = vld [vmem:[%s196 + $0x4e8] sm:$0xf]
      %v380 = vld [vmem:[%s196 + $0x4ec] sm:$0xff]
      %v381 = vld [vmem:[%s196 + $0x4f4] sm:$0xff]
      %v382 = vld [vmem:[%s196 + $0x4fc] sm:$0xff]
      %v383 = vld [vmem:[%s196 + $0x504] sm:$0xff]
      %v384 = vld [vmem:[%s196 + $0x50c] sm:$0xf]
      %v385 = vld [vmem:[%s196 + $0x510] sm:$0xff]
      %v386 = vld [vmem:[%s196 + $0x518] sm:$0xff]
      %v387 = vld [vmem:[%s196 + $0x520] sm:$0xff]
      %v388 = vld [vmem:[%s196 + $0x528] sm:$0xff]
      %v389 = vld [vmem:[%s196 + $0x530] sm:$0xf]
      %v390 = vld [vmem:[%s196 + $0x534] sm:$0xff]
      %v391 = vld [vmem:[%s196 + $0x53c] sm:$0xff]
      %v392 = vld [vmem:[%s196 + $0x544] sm:$0xff]
      %v393 = vld [vmem:[%s196 + $0x54c] sm:$0xff]
      %v394 = vld [vmem:[%s196 + $0x554] sm:$0xf]
      %v395 = vld [vmem:[%s196 + $0x558] sm:$0xff]
      %v396 = vld [vmem:[%s196 + $0x560] sm:$0xff]
      %v397 = vld [vmem:[%s196 + $0x568] sm:$0xff]
      %v398 = vld [vmem:[%s196 + $0x570] sm:$0xff]
      %v399 = vld [vmem:[%s196 + $0x578] sm:$0xf]
      %v400 = vld [vmem:[%s196 + $0x57c] sm:$0xff]
      %v401 = vld [vmem:[%s196 + $0x584] sm:$0xff]
      %v402 = vld [vmem:[%s196 + $0x58c] sm:$0xff]
      %v403 = vld [vmem:[%s196 + $0x594] sm:$0xff]
      %v404 = vld [vmem:[%s196 + $0x59c] sm:$0xf]
      %v405 = vld [vmem:[%s196 + $0x5a0] sm:$0xff]
      %v406 = vld [vmem:[%s196 + $0x5a8] sm:$0xff]
      %v407 = vld [vmem:[%s196 + $0x5b0] sm:$0xff]
      %v408 = vld [vmem:[%s196 + $0x5b8] sm:$0xff]
      %v409 = vld [vmem:[%s196 + $0x5c0] sm:$0xf]
      %v410 = vld [vmem:[%s196 + $0x5c4] sm:$0xff]
      %v411 = vld [vmem:[%s196 + $0x5cc] sm:$0xff]
      %v412 = vld [vmem:[%s196 + $0x5d4] sm:$0xff]
      %v413 = vld [vmem:[%s196 + $0x5dc] sm:$0xff]
      %v414 = vld [vmem:[%s196 + $0x5e4] sm:$0xf]
      %v415 = vld [vmem:[%s196 + $0x5e8] sm:$0xff]
      %v416 = vld [vmem:[%s196 + $0x5f0] sm:$0xff]
      %v417 = vld [vmem:[%s196 + $0x5f8] sm:$0xff]
      %v418 = vld [vmem:[%s196 + $0x600] sm:$0xff]
      %v419 = vld [vmem:[%s196 + $0x608] sm:$0xf]
      %v420 = vld [vmem:[%s196 + $0x60c] sm:$0xff]
      %v421 = vld [vmem:[%s196 + $0x614] sm:$0xff]
      %v422 = vld [vmem:[%s196 + $0x61c] sm:$0xff]
      %v423 = vld [vmem:[%s196 + $0x624] sm:$0xff]
      %v424 = vld [vmem:[%s196 + $0x62c] sm:$0xf]
      %v425 = vld [vmem:[%s196 + $0x630] sm:$0xff]
      %v426 = vld [vmem:[%s196 + $0x638] sm:$0xff]
      %v427 = vld [vmem:[%s196 + $0x640] sm:$0xff]
      %v428 = vld [vmem:[%s196 + $0x648] sm:$0xff]
      %v429 = vld [vmem:[%s196 + $0x650] sm:$0xf]
      %v430 = vld [vmem:[%s196 + $0x654] sm:$0xff]
      %v431 = vld [vmem:[%s196 + $0x65c] sm:$0xff]
      %v432 = vld [vmem:[%s196 + $0x664] sm:$0xff]
      %v433 = vld [vmem:[%s196 + $0x66c] sm:$0xff]
      %v434 = vld [vmem:[%s196 + $0x674] sm:$0xf]
      %v435 = vld [vmem:[%s196 + $0x678] sm:$0xff]
      %v436 = vld [vmem:[%s196 + $0x680] sm:$0xff]
      %v437 = vld [vmem:[%s196 + $0x688] sm:$0xff]
      %v438 = vld [vmem:[%s196 + $0x690] sm:$0xff]
      %v439 = vld [vmem:[%s196 + $0x698] sm:$0xf]
      %v440 = vld [vmem:[%s196 + $0x69c] sm:$0xff]
      %v441 = vld [vmem:[%s196 + $0x6a4] sm:$0xff]
      %v442 = vld [vmem:[%s196 + $0x6ac] sm:$0xff]
      %v443 = vld [vmem:[%s196 + $0x6b4] sm:$0xff]
      %v444 = vld [vmem:[%s196 + $0x6bc] sm:$0xf]
      %v445 = vld [vmem:[%s196 + $0x6c0] sm:$0xff]
      %v446 = vld [vmem:[%s196 + $0x6c8] sm:$0xff]
      %v447 = vld [vmem:[%s196 + $0x6d0] sm:$0xff]
      %v448 = vld [vmem:[%s196 + $0x6d8] sm:$0xff]
      %v449 = vld [vmem:[%s196 + $0x6e0] sm:$0xf]
      %v450 = vld [vmem:[%s196 + $0x6e4] sm:$0xff]
      %v451 = vld [vmem:[%s196 + $0x6ec] sm:$0xff]
      %v452 = vld [vmem:[%s196 + $0x6f4] sm:$0xff]
      %v453 = vld [vmem:[%s196 + $0x6fc] sm:$0xff]
      %v454 = vld [vmem:[%s196 + $0x704] sm:$0xf]
      %v455 = vld [vmem:[%s196 + $0x708] sm:$0xff]
      %v456 = vld [vmem:[%s196 + $0x710] sm:$0xff]
      %v457 = vld [vmem:[%s196 + $0x718] sm:$0xff]
      %v458 = vld [vmem:[%s196 + $0x720] sm:$0xff]
      %v459 = vld [vmem:[%s196 + $0x728] sm:$0xf]
      %v460 = vld [vmem:[%s196 + $0x72c] sm:$0xff]
      %v461 = vld [vmem:[%s196 + $0x734] sm:$0xff]
      %v462 = vld [vmem:[%s196 + $0x73c] sm:$0xff]
      %v463 = vld [vmem:[%s196 + $0x744] sm:$0xff]
      %v464 = vld [vmem:[%s196 + $0x74c] sm:$0xf]
      %v465 = vld [vmem:[%s196 + $0x750] sm:$0xff]
      %v466 = vld [vmem:[%s196 + $0x758] sm:$0xff]
      %v467 = vld [vmem:[%s196 + $0x760] sm:$0xff]
      %v468 = vld [vmem:[%s196 + $0x768] sm:$0xff]
      %v469 = vld [vmem:[%s196 + $0x770] sm:$0xf]
      %v470 = vld [vmem:[%s196 + $0x774] sm:$0xff]
      %v471 = vld [vmem:[%s196 + $0x77c] sm:$0xff]
      %v472 = vld [vmem:[%s196 + $0x784] sm:$0xff]
      %v473 = vld [vmem:[%s196 + $0x78c] sm:$0xff]
      %v474 = vld [vmem:[%s196 + $0x794] sm:$0xf]
      %v475 = vld [vmem:[%s196 + $0x798] sm:$0xff]
      %v476 = vld [vmem:[%s196 + $0x7a0] sm:$0xff]
      %v477 = vld [vmem:[%s196 + $0x7a8] sm:$0xff]
      %v478 = vld [vmem:[%s196 + $0x7b0] sm:$0xff]
      %v479 = vld [vmem:[%s196 + $0x7b8] sm:$0xf]
      %v480 = vld [vmem:[%s196 + $0x7bc] sm:$0xff]
      %v481 = vld [vmem:[%s196 + $0x7c4] sm:$0xff]
      %v482 = vld [vmem:[%s196 + $0x7cc] sm:$0xff]
      %v483 = vld [vmem:[%s196 + $0x7d4] sm:$0xff]
      %v484 = vld [vmem:[%s196 + $0x7dc] sm:$0xf]
      %v485 = vld [vmem:[%s196 + $0x7e0] sm:$0xff]
      %v486 = vld [vmem:[%s196 + $0x7e8] sm:$0xff]
      %v487 = vld [vmem:[%s196 + $0x7f0] sm:$0xff]
      %v488 = vld [vmem:[%s196 + $0x7f8] sm:$0xff]
      %v489 = vld [vmem:[%s196 + $0x800] sm:$0xf]
      %v490 = vld [vmem:[%s196 + $0x804] sm:$0xff]
      %v491 = vld [vmem:[%s196 + $0x80c] sm:$0xff]
      %v492 = vld [vmem:[%s196 + $0x814] sm:$0xff]
      %v493 = vld [vmem:[%s196 + $0x81c] sm:$0xff]
      %v494 = vld [vmem:[%s196 + $0x824] sm:$0xf]
      %v495 = vld [vmem:[%s196 + $0x828] sm:$0xff]
      %v496 = vld [vmem:[%s196 + $0x830] sm:$0xff]
      %v497 = vld [vmem:[%s196 + $0x838] sm:$0xff]
      %v498 = vld [vmem:[%s196 + $0x840] sm:$0xff]
      %v499 = vld [vmem:[%s196 + $0x848] sm:$0xf]
      %v500 = vld [vmem:[%s196 + $0x84c] sm:$0xff]
      %v501 = vld [vmem:[%s196 + $0x854] sm:$0xff]
      %v502 = vld [vmem:[%s196 + $0x85c] sm:$0xff]
      %v503 = vld [vmem:[%s196 + $0x864] sm:$0xff]
      %v504 = vld [vmem:[%s196 + $0x86c] sm:$0xf]
      %v505 = vld [vmem:[%s196 + $0x870] sm:$0xff]
      %v506 = vld [vmem:[%s196 + $0x878] sm:$0xff]
      %v507 = vld [vmem:[%s196 + $0x880] sm:$0xff]
      %v508 = vld [vmem:[%s196 + $0x888] sm:$0xff]
      %v509 = vld [vmem:[%s196 + $0x890] sm:$0xf]
      %v510 = vld [vmem:[%s196 + $0x894] sm:$0xff]
      %v511 = vld [vmem:[%s196 + $0x89c] sm:$0xff]
      %v512 = vld [vmem:[%s196 + $0x8a4] sm:$0xff]
      %v513 = vld [vmem:[%s196 + $0x8ac] sm:$0xff]
      %v514 = vld [vmem:[%s196 + $0x8b4] sm:$0xf]
      %v515 = vld [vmem:[%s196 + $0x8b8] sm:$0xff]
      %v516 = vld [vmem:[%s196 + $0x8c0] sm:$0xff]
      %v517 = vld [vmem:[%s196 + $0x8c8] sm:$0xff]
      %v518 = vld [vmem:[%s196 + $0x8d0] sm:$0xff]
      %v519 = vld [vmem:[%s196 + $0x8d8] sm:$0xf]
      %v520 = vld [vmem:[%s196 + $0x8dc] sm:$0xff]
      %v521 = vld [vmem:[%s196 + $0x8e4] sm:$0xff]
      %v522 = vld [vmem:[%s196 + $0x8ec] sm:$0xff]
      %v523 = vld [vmem:[%s196 + $0x8f4] sm:$0xff]
      %v524 = vld [vmem:[%s196 + $0x8fc] sm:$0xf]
      %v525 = vld [vmem:[%s1] sm:$0xf]
      %v526 = vld [vmem:[%s1 + $0x4] sm:$0xf]
      %v527 = vld [vmem:[%s1 + $0x8] sm:$0xf]
      %v528 = vld [vmem:[%s1 + $0xc] sm:$0xf]
      %v529 = vld [vmem:[%s1 + $0x10] sm:$0xf]
      %v530 = vld [vmem:[%s1 + $0x14] sm:$0xf]
      %v531 = vld [vmem:[%s1 + $0x18] sm:$0xf]
      %v532 = vld [vmem:[%s1 + $0x1c] sm:$0xf]
      %v533 = vld [vmem:[%s1 + $0x20] sm:$0xf]
      %v534 = vld [vmem:[%s1 + $0x24] sm:$0xf]
      %v535 = vld [vmem:[%s1 + $0x28] sm:$0xf]
      %v536 = vld [vmem:[%s1 + $0x2c] sm:$0xf]
      %v537 = vld [vmem:[%s1 + $0x30] sm:$0xf]
      %v538 = vld [vmem:[%s1 + $0x34] sm:$0xf]
      %v539 = vld [vmem:[%s1 + $0x38] sm:$0xf]
      %v540 = vld [vmem:[%s1 + $0x3c] sm:$0xf]
      %v541 = vld [vmem:[%s1 + $0x40] sm:$0xf]
      %v542 = vld [vmem:[%s1 + $0x44] sm:$0xf]
      %v543 = vld [vmem:[%s1 + $0x48] sm:$0xf]
      %v544 = vld [vmem:[%s1 + $0x4c] sm:$0xf]
      %v545 = vld [vmem:[%s1 + $0x50] sm:$0xf]
      %v546 = vld [vmem:[%s1 + $0x54] sm:$0xf]
      %v547 = vld [vmem:[%s1 + $0x58] sm:$0xf]
      %v548 = vld [vmem:[%s1 + $0x5c] sm:$0xf]
      %v549 = vld [vmem:[%s1 + $0x60] sm:$0xf]
      %v550 = vld [vmem:[%s1 + $0x64] sm:$0xf]
      %v551 = vld [vmem:[%s1 + $0x68] sm:$0xf]
      %v552 = vld [vmem:[%s1 + $0x6c] sm:$0xf]
      %v553 = vld [vmem:[%s1 + $0x70] sm:$0xf]
      %v554 = vld [vmem:[%s1 + $0x74] sm:$0xf]
      %v555 = vld [vmem:[%s1 + $0x78] sm:$0xf]
      %v556 = vld [vmem:[%s1 + $0x7c] sm:$0xf]
      %v557 = vld [vmem:[%s1 + $0x80] sm:$0xf]
      %v558 = vld [vmem:[%s1 + $0x84] sm:$0xf]
      %v559 = vld [vmem:[%s1 + $0x88] sm:$0xf]
      %v560 = vld [vmem:[%s1 + $0x8c] sm:$0xf]
      %v561 = vld [vmem:[%s1 + $0x90] sm:$0xf]
      %v562 = vld [vmem:[%s1 + $0x94] sm:$0xf]
      %v563 = vld [vmem:[%s1 + $0x98] sm:$0xf]
      %v564 = vld [vmem:[%s1 + $0x9c] sm:$0xf]
      %v565 = vld [vmem:[%s1 + $0xa0] sm:$0xf]
      %v566 = vld [vmem:[%s1 + $0xa4] sm:$0xf]
      %v567 = vld [vmem:[%s1 + $0xa8] sm:$0xf]
      %v568 = vld [vmem:[%s1 + $0xac] sm:$0xf]
      %v569 = vld [vmem:[%s1 + $0xb0] sm:$0xf]
      %v570 = vld [vmem:[%s1 + $0xb4] sm:$0xf]
      %v571 = vld [vmem:[%s1 + $0xb8] sm:$0xf]
      %v572 = vld [vmem:[%s1 + $0xbc] sm:$0xf]
      %v573 = vld [vmem:[%s1 + $0xc0] sm:$0xf]
      %v574 = vld [vmem:[%s1 + $0xc4] sm:$0xf]
      %v575 = vld [vmem:[%s1 + $0xc8] sm:$0xf]
      %v576 = vld [vmem:[%s1 + $0xcc] sm:$0xf]
      %v577 = vld [vmem:[%s1 + $0xd0] sm:$0xf]
      %v578 = vld [vmem:[%s1 + $0xd4] sm:$0xf]
      %v579 = vld [vmem:[%s1 + $0xd8] sm:$0xf]
      %v580 = vld [vmem:[%s1 + $0xdc] sm:$0xf]
      %v581 = vld [vmem:[%s1 + $0xe0] sm:$0xf]
      %v582 = vld [vmem:[%s1 + $0xe4] sm:$0xf]
      %v583 = vld [vmem:[%s1 + $0xe8] sm:$0xf]
      %v584 = vld [vmem:[%s1 + $0xec] sm:$0xf]
      %v585 = vld [vmem:[%s1 + $0xf0] sm:$0xf]
      %v586 = vld [vmem:[%s1 + $0xf4] sm:$0xf]
      %v587 = vld [vmem:[%s1 + $0xf8] sm:$0xf]
      %v588 = vld [vmem:[%s1 + $0xfc] sm:$0xf]
      %v589 = vld [vmem:[%s1 + $0x100] sm:$0xf]
      %v590 = vld [vmem:[%s1 + $0x104] sm:$0xf]
      %v591 = vld [vmem:[%s1 + $0x108] sm:$0xf]
      %v592 = vld [vmem:[%s1 + $0x10c] sm:$0xf]
      %v593 = vld [vmem:[%s1 + $0x110] sm:$0xf]
      %v594 = vld [vmem:[%s1 + $0x114] sm:$0xf]
      %v595 = vld [vmem:[%s1 + $0x118] sm:$0xf]
      %v596 = vld [vmem:[%s1 + $0x11c] sm:$0xf]
      %v597 = vld [vmem:[%s1 + $0x120] sm:$0xf]
      %v598 = vld [vmem:[%s1 + $0x124] sm:$0xf]
      %v599 = vld [vmem:[%s1 + $0x128] sm:$0xf]
      %v600 = vld [vmem:[%s1 + $0x12c] sm:$0xf]
      %v601 = vld [vmem:[%s1 + $0x130] sm:$0xf]
      %v602 = vld [vmem:[%s1 + $0x134] sm:$0xf]
      %v603 = vld [vmem:[%s1 + $0x138] sm:$0xf]
      %v604 = vld [vmem:[%s1 + $0x13c] sm:$0xf]
      %v605 = vld [vmem:[%s1 + $0x140] sm:$0xf]
      %v606 = vld [vmem:[%s1 + $0x144] sm:$0xf]
      %v607 = vld [vmem:[%s1 + $0x148] sm:$0xf]
      %v608 = vld [vmem:[%s1 + $0x14c] sm:$0xf]
      %v609 = vld [vmem:[%s1 + $0x150] sm:$0xf]
      %v610 = vld [vmem:[%s1 + $0x154] sm:$0xf]
      %v611 = vld [vmem:[%s1 + $0x158] sm:$0xf]
      %v612 = vld [vmem:[%s1 + $0x15c] sm:$0xf]
      %v613 = vld [vmem:[%s1 + $0x160] sm:$0xf]
      %v614 = vld [vmem:[%s1 + $0x164] sm:$0xf]
      %v615 = vld [vmem:[%s1 + $0x168] sm:$0xf]
      %v616 = vld [vmem:[%s1 + $0x16c] sm:$0xf]
      %v617 = vld [vmem:[%s1 + $0x170] sm:$0xf]
      %v618 = vld [vmem:[%s1 + $0x174] sm:$0xf]
      %v619 = vld [vmem:[%s1 + $0x178] sm:$0xf]
      %v620 = vld [vmem:[%s1 + $0x17c] sm:$0xf]
      %v621 = vld [vmem:[%s1 + $0x180] sm:$0xf]
      %v622 = vld [vmem:[%s1 + $0x184] sm:$0xf]
      %v623 = vld [vmem:[%s1 + $0x188] sm:$0xf]
      %v624 = vld [vmem:[%s1 + $0x18c] sm:$0xf]
      %v625 = vld [vmem:[%s1 + $0x190] sm:$0xf]
      %v626 = vld [vmem:[%s1 + $0x194] sm:$0xf]
      %v627 = vld [vmem:[%s1 + $0x198] sm:$0xf]
      %v628 = vld [vmem:[%s1 + $0x19c] sm:$0xf]
      %v629 = vld [vmem:[%s1 + $0x1a0] sm:$0xf]
      %v630 = vld [vmem:[%s1 + $0x1a4] sm:$0xf]
      %v631 = vld [vmem:[%s1 + $0x1a8] sm:$0xf]
      %v632 = vld [vmem:[%s1 + $0x1ac] sm:$0xf]
      %v633 = vld [vmem:[%s1 + $0x1b0] sm:$0xf]
      %v634 = vld [vmem:[%s1 + $0x1b4] sm:$0xf]
      %v635 = vld [vmem:[%s1 + $0x1b8] sm:$0xf]
      %v636 = vld [vmem:[%s1 + $0x1bc] sm:$0xf]
      %v637 = vld [vmem:[%s1 + $0x1c0] sm:$0xf]
      %v638 = vld [vmem:[%s1 + $0x1c4] sm:$0xf]
      %v639 = vld [vmem:[%s1 + $0x1c8] sm:$0xf]
      %v640 = vld [vmem:[%s1 + $0x1cc] sm:$0xf]
      %v641 = vld [vmem:[%s1 + $0x1d0] sm:$0xf]
      %v642 = vld [vmem:[%s1 + $0x1d4] sm:$0xf]
      %v643 = vld [vmem:[%s1 + $0x1d8] sm:$0xf]
      %v644 = vld [vmem:[%s1 + $0x1dc] sm:$0xf]
      %v645 = vld [vmem:[%s1 + $0x1e0] sm:$0xf]
      %v646 = vld [vmem:[%s1 + $0x1e4] sm:$0xf]
      %v647 = vld [vmem:[%s1 + $0x1e8] sm:$0xf]
      %v648 = vld [vmem:[%s1 + $0x1ec] sm:$0xf]
      %v649 = vld [vmem:[%s1 + $0x1f0] sm:$0xf]
      %v650 = vld [vmem:[%s1 + $0x1f4] sm:$0xf]
      %v651 = vld [vmem:[%s1 + $0x1f8] sm:$0xf]
      %v652 = vld [vmem:[%s1 + $0x1fc] sm:$0xf]
      %v653 = vld [vmem:[%s1 + $0x200] sm:$0xf]
      %v654 = vld [vmem:[%s1 + $0x204] sm:$0xf]
      %v655 = vld [vmem:[%s1 + $0x208] sm:$0xf]
      %v656 = vld [vmem:[%s1 + $0x20c] sm:$0xf]
      %v657 = vld [vmem:[%s1 + $0x210] sm:$0xf]
      %v658 = vld [vmem:[%s1 + $0x214] sm:$0xf]
      %v659 = vld [vmem:[%s1 + $0x218] sm:$0xf]
      %v660 = vld [vmem:[%s1 + $0x21c] sm:$0xf]
      %v661 = vld [vmem:[%s1 + $0x220] sm:$0xf]
      %v662 = vld [vmem:[%s1 + $0x224] sm:$0xf]
      %v663 = vld [vmem:[%s1 + $0x228] sm:$0xf]
      %v664 = vld [vmem:[%s1 + $0x22c] sm:$0xf]
      %v665 = vld [vmem:[%s1 + $0x230] sm:$0xf]
      %v666 = vld [vmem:[%s1 + $0x234] sm:$0xf]
      %v667 = vld [vmem:[%s1 + $0x238] sm:$0xf]
      %v668 = vld [vmem:[%s1 + $0x23c] sm:$0xf]
      %v989 = vunpack.c.l.b16 %v205
      %v990 = vunpack.c.h.b16 %v205
      %v991 = vunpack.c.l.b16 %v206
      %v992 = vunpack.c.h.b16 %v206
      %v993 = vunpack.c.l.b16 %v207
      %v994 = vunpack.c.h.b16 %v207
      %v995 = vunpack.c.l.b16 %v208
      %v996 = vunpack.c.h.b16 %v208
      %v997 = vunpack.c.l.b16 %v209
      %v998 = vunpack.c.l.b16 %v210
      %v999 = vunpack.c.h.b16 %v210
      %v1000 = vunpack.c.l.b16 %v211
      %v1001 = vunpack.c.h.b16 %v211
      %v1002 = vunpack.c.l.b16 %v212
      %v1003 = vunpack.c.h.b16 %v212
      %v1004 = vunpack.c.l.b16 %v213
      %v1005 = vunpack.c.h.b16 %v213
      %v1006 = vunpack.c.l.b16 %v214
      %v1007 = vunpack.c.l.b16 %v215
      %v1008 = vunpack.c.h.b16 %v215
      %v1009 = vunpack.c.l.b16 %v216
      %v1010 = vunpack.c.h.b16 %v216
      %v1011 = vunpack.c.l.b16 %v217
      %v1012 = vunpack.c.h.b16 %v217
      %v1013 = vunpack.c.l.b16 %v218
      %v1014 = vunpack.c.h.b16 %v218
      %v1015 = vunpack.c.l.b16 %v219
      %v1016 = vunpack.c.l.b16 %v220
      %v1017 = vunpack.c.h.b16 %v220
      %v1018 = vunpack.c.l.b16 %v221
      %v1019 = vunpack.c.h.b16 %v221
      %v1020 = vunpack.c.l.b16 %v222
      %v1021 = vunpack.c.h.b16 %v222
      %v1022 = vunpack.c.l.b16 %v223
      %v1023 = vunpack.c.h.b16 %v223
      %v1024 = vunpack.c.l.b16 %v224
      %v1025 = vunpack.c.l.b16 %v225
      %v1026 = vunpack.c.h.b16 %v225
      %v1027 = vunpack.c.l.b16 %v226
      %v1028 = vunpack.c.h.b16 %v226
      %v1029 = vunpack.c.l.b16 %v227
      %v1030 = vunpack.c.h.b16 %v227
      %v1031 = vunpack.c.l.b16 %v228
      %v1032 = vunpack.c.h.b16 %v228
      %v1033 = vunpack.c.l.b16 %v229
      %v1034 = vunpack.c.l.b16 %v230
      %v1035 = vunpack.c.h.b16 %v230
      %v1036 = vunpack.c.l.b16 %v231
      %v1037 = vunpack.c.h.b16 %v231
      %v1038 = vunpack.c.l.b16 %v232
      %v1039 = vunpack.c.h.b16 %v232
      %v1040 = vunpack.c.l.b16 %v233
      %v1041 = vunpack.c.h.b16 %v233
      %v1042 = vunpack.c.l.b16 %v234
      %v1043 = vunpack.c.l.b16 %v235
      %v1044 = vunpack.c.h.b16 %v235
      %v1045 = vunpack.c.l.b16 %v236
      %v1046 = vunpack.c.h.b16 %v236
      %v1047 = vunpack.c.l.b16 %v237
      %v1048 = vunpack.c.h.b16 %v237
      %v1049 = vunpack.c.l.b16 %v238
      %v1050 = vunpack.c.h.b16 %v238
      %v1051 = vunpack.c.l.b16 %v239
      %v1052 = vunpack.c.l.b16 %v240
      %v1053 = vunpack.c.h.b16 %v240
      %v1054 = vunpack.c.l.b16 %v241
      %v1055 = vunpack.c.h.b16 %v241
      %v1056 = vunpack.c.l.b16 %v242
      %v1057 = vunpack.c.h.b16 %v242
      %v1058 = vunpack.c.l.b16 %v243
      %v1059 = vunpack.c.h.b16 %v243
      %v1060 = vunpack.c.l.b16 %v244
      %v1061 = vunpack.c.l.b16 %v245
      %v1062 = vunpack.c.h.b16 %v245
      %v1063 = vunpack.c.l.b16 %v246
      %v1064 = vunpack.c.h.b16 %v246
      %v1065 = vunpack.c.l.b16 %v247
      %v1066 = vunpack.c.h.b16 %v247
      %v1067 = vunpack.c.l.b16 %v248
      %v1068 = vunpack.c.h.b16 %v248
      %v1069 = vunpack.c.l.b16 %v249
      %v1070 = vunpack.c.l.b16 %v250
      %v1071 = vunpack.c.h.b16 %v250
      %v1072 = vunpack.c.l.b16 %v251
      %v1073 = vunpack.c.h.b16 %v251
      %v1074 = vunpack.c.l.b16 %v252
      %v1075 = vunpack.c.h.b16 %v252
      %v1076 = vunpack.c.l.b16 %v253
      %v1077 = vunpack.c.h.b16 %v253
      %v1078 = vunpack.c.l.b16 %v254
      %v1079 = vunpack.c.l.b16 %v255
      %v1080 = vunpack.c.h.b16 %v255
      %v1081 = vunpack.c.l.b16 %v256
      %v1082 = vunpack.c.h.b16 %v256
      %v1083 = vunpack.c.l.b16 %v257
      %v1084 = vunpack.c.h.b16 %v257
      %v1085 = vunpack.c.l.b16 %v258
      %v1086 = vunpack.c.h.b16 %v258
      %v1087 = vunpack.c.l.b16 %v259
      %v1088 = vunpack.c.l.b16 %v260
      %v1089 = vunpack.c.h.b16 %v260
      %v1090 = vunpack.c.l.b16 %v261
      %v1091 = vunpack.c.h.b16 %v261
      %v1092 = vunpack.c.l.b16 %v262
      %v1093 = vunpack.c.h.b16 %v262
      %v1094 = vunpack.c.l.b16 %v263
      %v1095 = vunpack.c.h.b16 %v263
      %v1096 = vunpack.c.l.b16 %v264
      %v1097 = vunpack.c.l.b16 %v265
      %v1098 = vunpack.c.h.b16 %v265
      %v1099 = vunpack.c.l.b16 %v266
      %v1100 = vunpack.c.h.b16 %v266
      %v1101 = vunpack.c.l.b16 %v267
      %v1102 = vunpack.c.h.b16 %v267
      %v1103 = vunpack.c.l.b16 %v268
      %v1104 = vunpack.c.h.b16 %v268
      %v1105 = vunpack.c.l.b16 %v269
      %v1106 = vunpack.c.l.b16 %v270
      %v1107 = vunpack.c.h.b16 %v270
      %v1108 = vunpack.c.l.b16 %v271
      %v1109 = vunpack.c.h.b16 %v271
      %v1110 = vunpack.c.l.b16 %v272
      %v1111 = vunpack.c.h.b16 %v272
      %v1112 = vunpack.c.l.b16 %v273
      %v1113 = vunpack.c.h.b16 %v273
      %v1114 = vunpack.c.l.b16 %v274
      %v1115 = vunpack.c.l.b16 %v275
      %v1116 = vunpack.c.h.b16 %v275
      %v1117 = vunpack.c.l.b16 %v276
      %v1118 = vunpack.c.h.b16 %v276
      %v1119 = vunpack.c.l.b16 %v277
      %v1120 = vunpack.c.h.b16 %v277
      %v1121 = vunpack.c.l.b16 %v278
      %v1122 = vunpack.c.h.b16 %v278
      %v1123 = vunpack.c.l.b16 %v279
      %v1124 = vunpack.c.l.b16 %v280
      %v1125 = vunpack.c.h.b16 %v280
      %v1126 = vunpack.c.l.b16 %v281
      %v1127 = vunpack.c.h.b16 %v281
      %v1128 = vunpack.c.l.b16 %v282
      %v1129 = vunpack.c.h.b16 %v282
      %v1130 = vunpack.c.l.b16 %v283
      %v1131 = vunpack.c.h.b16 %v283
      %v1132 = vunpack.c.l.b16 %v284
      %v1133 = vunpack.c.l.b16 %v285
      %v1134 = vunpack.c.h.b16 %v285
      %v1135 = vunpack.c.l.b16 %v286
      %v1136 = vunpack.c.h.b16 %v286
      %v1137 = vunpack.c.l.b16 %v287
      %v1138 = vunpack.c.h.b16 %v287
      %v1139 = vunpack.c.l.b16 %v288
      %v1140 = vunpack.c.h.b16 %v288
      %v1141 = vunpack.c.l.b16 %v289
      %v1142 = vunpack.c.l.b16 %v290
      %v1143 = vunpack.c.h.b16 %v290
      %v1144 = vunpack.c.l.b16 %v291
      %v1145 = vunpack.c.h.b16 %v291
      %v1146 = vunpack.c.l.b16 %v292
      %v1147 = vunpack.c.h.b16 %v292
      %v1148 = vunpack.c.l.b16 %v293
      %v1149 = vunpack.c.h.b16 %v293
      %v1150 = vunpack.c.l.b16 %v294
      %v1151 = vunpack.c.l.b16 %v295
      %v1152 = vunpack.c.h.b16 %v295
      %v1153 = vunpack.c.l.b16 %v296
      %v1154 = vunpack.c.h.b16 %v296
      %v1155 = vunpack.c.l.b16 %v297
      %v1156 = vunpack.c.h.b16 %v297
      %v1157 = vunpack.c.l.b16 %v298
      %v1158 = vunpack.c.h.b16 %v298
      %v1159 = vunpack.c.l.b16 %v299
      %v1160 = vunpack.c.l.b16 %v300
      %v1161 = vunpack.c.h.b16 %v300
      %v1162 = vunpack.c.l.b16 %v301
      %v1163 = vunpack.c.h.b16 %v301
      %v1164 = vunpack.c.l.b16 %v302
      %v1165 = vunpack.c.h.b16 %v302
      %v1166 = vunpack.c.l.b16 %v303
      %v1167 = vunpack.c.h.b16 %v303
      %v1168 = vunpack.c.l.b16 %v304
      %v1169 = vunpack.c.l.b16 %v305
      %v1170 = vunpack.c.h.b16 %v305
      %v1171 = vunpack.c.l.b16 %v306
      %v1172 = vunpack.c.h.b16 %v306
      %v1173 = vunpack.c.l.b16 %v307
      %v1174 = vunpack.c.h.b16 %v307
      %v1175 = vunpack.c.l.b16 %v308
      %v1176 = vunpack.c.h.b16 %v308
      %v1177 = vunpack.c.l.b16 %v309
      %v1178 = vunpack.c.l.b16 %v310
      %v1179 = vunpack.c.h.b16 %v310
      %v1180 = vunpack.c.l.b16 %v311
      %v1181 = vunpack.c.h.b16 %v311
      %v1182 = vunpack.c.l.b16 %v312
      %v1183 = vunpack.c.h.b16 %v312
      %v1184 = vunpack.c.l.b16 %v313
      %v1185 = vunpack.c.h.b16 %v313
      %v1186 = vunpack.c.l.b16 %v314
      %v1187 = vunpack.c.l.b16 %v315
      %v1188 = vunpack.c.h.b16 %v315
      %v1189 = vunpack.c.l.b16 %v316
      %v1190 = vunpack.c.h.b16 %v316
      %v1191 = vunpack.c.l.b16 %v317
      %v1192 = vunpack.c.h.b16 %v317
      %v1193 = vunpack.c.l.b16 %v318
      %v1194 = vunpack.c.h.b16 %v318
      %v1195 = vunpack.c.l.b16 %v319
      %v1196 = vunpack.c.l.b16 %v320
      %v1197 = vunpack.c.h.b16 %v320
      %v1198 = vunpack.c.l.b16 %v321
      %v1199 = vunpack.c.h.b16 %v321
      %v1200 = vunpack.c.l.b16 %v322
      %v1201 = vunpack.c.h.b16 %v322
      %v1202 = vunpack.c.l.b16 %v323
      %v1203 = vunpack.c.h.b16 %v323
      %v1204 = vunpack.c.l.b16 %v324
      %v1205 = vunpack.c.l.b16 %v325
      %v1206 = vunpack.c.h.b16 %v325
      %v1207 = vunpack.c.l.b16 %v326
      %v1208 = vunpack.c.h.b16 %v326
      %v1209 = vunpack.c.l.b16 %v327
      %v1210 = vunpack.c.h.b16 %v327
      %v1211 = vunpack.c.l.b16 %v328
      %v1212 = vunpack.c.h.b16 %v328
      %v1213 = vunpack.c.l.b16 %v329
      %v1214 = vunpack.c.l.b16 %v330
      %v1215 = vunpack.c.h.b16 %v330
      %v1216 = vunpack.c.l.b16 %v331
      %v1217 = vunpack.c.h.b16 %v331
      %v1218 = vunpack.c.l.b16 %v332
      %v1219 = vunpack.c.h.b16 %v332
      %v1220 = vunpack.c.l.b16 %v333
      %v1221 = vunpack.c.h.b16 %v333
      %v1222 = vunpack.c.l.b16 %v334
      %v1223 = vunpack.c.l.b16 %v335
      %v1224 = vunpack.c.h.b16 %v335
      %v1225 = vunpack.c.l.b16 %v336
      %v1226 = vunpack.c.h.b16 %v336
      %v1227 = vunpack.c.l.b16 %v337
      %v1228 = vunpack.c.h.b16 %v337
      %v1229 = vunpack.c.l.b16 %v338
      %v1230 = vunpack.c.h.b16 %v338
      %v1231 = vunpack.c.l.b16 %v339
      %v1232 = vunpack.c.l.b16 %v340
      %v1233 = vunpack.c.h.b16 %v340
      %v1234 = vunpack.c.l.b16 %v341
      %v1235 = vunpack.c.h.b16 %v341
      %v1236 = vunpack.c.l.b16 %v342
      %v1237 = vunpack.c.h.b16 %v342
      %v1238 = vunpack.c.l.b16 %v343
      %v1239 = vunpack.c.h.b16 %v343
      %v1240 = vunpack.c.l.b16 %v344
      %v1241 = vunpack.c.l.b16 %v345
      %v1242 = vunpack.c.h.b16 %v345
      %v1243 = vunpack.c.l.b16 %v346
      %v1244 = vunpack.c.h.b16 %v346
      %v1245 = vunpack.c.l.b16 %v347
      %v1246 = vunpack.c.h.b16 %v347
      %v1247 = vunpack.c.l.b16 %v348
      %v1248 = vunpack.c.h.b16 %v348
      %v1249 = vunpack.c.l.b16 %v349
      %v1250 = vunpack.c.l.b16 %v350
      %v1251 = vunpack.c.h.b16 %v350
      %v1252 = vunpack.c.l.b16 %v351
      %v1253 = vunpack.c.h.b16 %v351
      %v1254 = vunpack.c.l.b16 %v352
      %v1255 = vunpack.c.h.b16 %v352
      %v1256 = vunpack.c.l.b16 %v353
      %v1257 = vunpack.c.h.b16 %v353
      %v1258 = vunpack.c.l.b16 %v354
      %v1259 = vunpack.c.l.b16 %v355
      %v1260 = vunpack.c.h.b16 %v355
      %v1261 = vunpack.c.l.b16 %v356
      %v1262 = vunpack.c.h.b16 %v356
      %v1263 = vunpack.c.l.b16 %v357
      %v1264 = vunpack.c.h.b16 %v357
      %v1265 = vunpack.c.l.b16 %v358
      %v1266 = vunpack.c.h.b16 %v358
      %v1267 = vunpack.c.l.b16 %v359
      %v1268 = vunpack.c.l.b16 %v360
      %v1269 = vunpack.c.h.b16 %v360
      %v1270 = vunpack.c.l.b16 %v361
      %v1271 = vunpack.c.h.b16 %v361
      %v1272 = vunpack.c.l.b16 %v362
      %v1273 = vunpack.c.h.b16 %v362
      %v1274 = vunpack.c.l.b16 %v363
      %v1275 = vunpack.c.h.b16 %v363
      %v1276 = vunpack.c.l.b16 %v364
      %v1277 = vunpack.c.l.b16 %v365
      %v1278 = vunpack.c.h.b16 %v365
      %v1279 = vunpack.c.l.b16 %v366
      %v1280 = vunpack.c.h.b16 %v366
      %v1281 = vunpack.c.l.b16 %v367
      %v1282 = vunpack.c.h.b16 %v367
      %v1283 = vunpack.c.l.b16 %v368
      %v1284 = vunpack.c.h.b16 %v368
      %v1285 = vunpack.c.l.b16 %v369
      %v1286 = vunpack.c.l.b16 %v370
      %v1287 = vunpack.c.h.b16 %v370
      %v1288 = vunpack.c.l.b16 %v371
      %v1289 = vunpack.c.h.b16 %v371
      %v1290 = vunpack.c.l.b16 %v372
      %v1291 = vunpack.c.h.b16 %v372
      %v1292 = vunpack.c.l.b16 %v373
      %v1293 = vunpack.c.h.b16 %v373
      %v1294 = vunpack.c.l.b16 %v374
      %v1295 = vunpack.c.l.b16 %v375
      %v1296 = vunpack.c.h.b16 %v375
      %v1297 = vunpack.c.l.b16 %v376
      %v1298 = vunpack.c.h.b16 %v376
      %v1299 = vunpack.c.l.b16 %v377
      %v1300 = vunpack.c.h.b16 %v377
      %v1301 = vunpack.c.l.b16 %v378
      %v1302 = vunpack.c.h.b16 %v378
      %v1303 = vunpack.c.l.b16 %v379
      %v1304 = vunpack.c.l.b16 %v380
      %v1305 = vunpack.c.h.b16 %v380
      %v1306 = vunpack.c.l.b16 %v381
      %v1307 = vunpack.c.h.b16 %v381
      %v1308 = vunpack.c.l.b16 %v382
      %v1309 = vunpack.c.h.b16 %v382
      %v1310 = vunpack.c.l.b16 %v383
      %v1311 = vunpack.c.h.b16 %v383
      %v1312 = vunpack.c.l.b16 %v384
      %v1313 = vunpack.c.l.b16 %v385
      %v1314 = vunpack.c.h.b16 %v385
      %v1315 = vunpack.c.l.b16 %v386
      %v1316 = vunpack.c.h.b16 %v386
      %v1317 = vunpack.c.l.b16 %v387
      %v1318 = vunpack.c.h.b16 %v387
      %v1319 = vunpack.c.l.b16 %v388
      %v1320 = vunpack.c.h.b16 %v388
      %v1321 = vunpack.c.l.b16 %v389
      %v1322 = vunpack.c.l.b16 %v390
      %v1323 = vunpack.c.h.b16 %v390
      %v1324 = vunpack.c.l.b16 %v391
      %v1325 = vunpack.c.h.b16 %v391
      %v1326 = vunpack.c.l.b16 %v392
      %v1327 = vunpack.c.h.b16 %v392
      %v1328 = vunpack.c.l.b16 %v393
      %v1329 = vunpack.c.h.b16 %v393
      %v1330 = vunpack.c.l.b16 %v394
      %v1331 = vunpack.c.l.b16 %v395
      %v1332 = vunpack.c.h.b16 %v395
      %v1333 = vunpack.c.l.b16 %v396
      %v1334 = vunpack.c.h.b16 %v396
      %v1335 = vunpack.c.l.b16 %v397
      %v1336 = vunpack.c.h.b16 %v397
      %v1337 = vunpack.c.l.b16 %v398
      %v1338 = vunpack.c.h.b16 %v398
      %v1339 = vunpack.c.l.b16 %v399
      %v1340 = vunpack.c.l.b16 %v400
      %v1341 = vunpack.c.h.b16 %v400
      %v1342 = vunpack.c.l.b16 %v401
      %v1343 = vunpack.c.h.b16 %v401
      %v1344 = vunpack.c.l.b16 %v402
      %v1345 = vunpack.c.h.b16 %v402
      %v1346 = vunpack.c.l.b16 %v403
      %v1347 = vunpack.c.h.b16 %v403
      %v1348 = vunpack.c.l.b16 %v404
      %v1349 = vunpack.c.l.b16 %v405
      %v1350 = vunpack.c.h.b16 %v405
      %v1351 = vunpack.c.l.b16 %v406
      %v1352 = vunpack.c.h.b16 %v406
      %v1353 = vunpack.c.l.b16 %v407
      %v1354 = vunpack.c.h.b16 %v407
      %v1355 = vunpack.c.l.b16 %v408
      %v1356 = vunpack.c.h.b16 %v408
      %v1357 = vunpack.c.l.b16 %v409
      %v1358 = vunpack.c.l.b16 %v410
      %v1359 = vunpack.c.h.b16 %v410
      %v1360 = vunpack.c.l.b16 %v411
      %v1361 = vunpack.c.h.b16 %v411
      %v1362 = vunpack.c.l.b16 %v412
      %v1363 = vunpack.c.h.b16 %v412
      %v1364 = vunpack.c.l.b16 %v413
      %v1365 = vunpack.c.h.b16 %v413
      %v1366 = vunpack.c.l.b16 %v414
      %v1367 = vunpack.c.l.b16 %v415
      %v1368 = vunpack.c.h.b16 %v415
      %v1369 = vunpack.c.l.b16 %v416
      %v1370 = vunpack.c.h.b16 %v416
      %v1371 = vunpack.c.l.b16 %v417
      %v1372 = vunpack.c.h.b16 %v417
      %v1373 = vunpack.c.l.b16 %v418
      %v1374 = vunpack.c.h.b16 %v418
      %v1375 = vunpack.c.l.b16 %v419
      %v1376 = vunpack.c.l.b16 %v420
      %v1377 = vunpack.c.h.b16 %v420
      %v1378 = vunpack.c.l.b16 %v421
      %v1379 = vunpack.c.h.b16 %v421
      %v1380 = vunpack.c.l.b16 %v422
      %v1381 = vunpack.c.h.b16 %v422
      %v1382 = vunpack.c.l.b16 %v423
      %v1383 = vunpack.c.h.b16 %v423
      %v1384 = vunpack.c.l.b16 %v424
      %v1385 = vunpack.c.l.b16 %v425
      %v1386 = vunpack.c.h.b16 %v425
      %v1387 = vunpack.c.l.b16 %v426
      %v1388 = vunpack.c.h.b16 %v426
      %v1389 = vunpack.c.l.b16 %v427
      %v1390 = vunpack.c.h.b16 %v427
      %v1391 = vunpack.c.l.b16 %v428
      %v1392 = vunpack.c.h.b16 %v428
      %v1393 = vunpack.c.l.b16 %v429
      %v1394 = vunpack.c.l.b16 %v430
      %v1395 = vunpack.c.h.b16 %v430
      %v1396 = vunpack.c.l.b16 %v431
      %v1397 = vunpack.c.h.b16 %v431
      %v1398 = vunpack.c.l.b16 %v432
      %v1399 = vunpack.c.h.b16 %v432
      %v1400 = vunpack.c.l.b16 %v433
      %v1401 = vunpack.c.h.b16 %v433
      %v1402 = vunpack.c.l.b16 %v434
      %v1403 = vunpack.c.l.b16 %v435
      %v1404 = vunpack.c.h.b16 %v435
      %v1405 = vunpack.c.l.b16 %v436
      %v1406 = vunpack.c.h.b16 %v436
      %v1407 = vunpack.c.l.b16 %v437
      %v1408 = vunpack.c.h.b16 %v437
      %v1409 = vunpack.c.l.b16 %v438
      %v1410 = vunpack.c.h.b16 %v438
      %v1411 = vunpack.c.l.b16 %v439
      %v1412 = vunpack.c.l.b16 %v440
      %v1413 = vunpack.c.h.b16 %v440
      %v1414 = vunpack.c.l.b16 %v441
      %v1415 = vunpack.c.h.b16 %v441
      %v1416 = vunpack.c.l.b16 %v442
      %v1417 = vunpack.c.h.b16 %v442
      %v1418 = vunpack.c.l.b16 %v443
      %v1419 = vunpack.c.h.b16 %v443
      %v1420 = vunpack.c.l.b16 %v444
      %v1421 = vunpack.c.l.b16 %v445
      %v1422 = vunpack.c.h.b16 %v445
      %v1423 = vunpack.c.l.b16 %v446
      %v1424 = vunpack.c.h.b16 %v446
      %v1425 = vunpack.c.l.b16 %v447
      %v1426 = vunpack.c.h.b16 %v447
      %v1427 = vunpack.c.l.b16 %v448
      %v1428 = vunpack.c.h.b16 %v448
      %v1429 = vunpack.c.l.b16 %v449
      %v1430 = vunpack.c.l.b16 %v450
      %v1431 = vunpack.c.h.b16 %v450
      %v1432 = vunpack.c.l.b16 %v451
      %v1433 = vunpack.c.h.b16 %v451
      %v1434 = vunpack.c.l.b16 %v452
      %v1435 = vunpack.c.h.b16 %v452
      %v1436 = vunpack.c.l.b16 %v453
      %v1437 = vunpack.c.h.b16 %v453
      %v1438 = vunpack.c.l.b16 %v454
      %v1439 = vunpack.c.l.b16 %v455
      %v1440 = vunpack.c.h.b16 %v455
      %v1441 = vunpack.c.l.b16 %v456
      %v1442 = vunpack.c.h.b16 %v456
      %v1443 = vunpack.c.l.b16 %v457
      %v1444 = vunpack.c.h.b16 %v457
      %v1445 = vunpack.c.l.b16 %v458
      %v1446 = vunpack.c.h.b16 %v458
      %v1447 = vunpack.c.l.b16 %v459
      %v1448 = vunpack.c.l.b16 %v460
      %v1449 = vunpack.c.h.b16 %v460
      %v1450 = vunpack.c.l.b16 %v461
      %v1451 = vunpack.c.h.b16 %v461
      %v1452 = vunpack.c.l.b16 %v462
      %v1453 = vunpack.c.h.b16 %v462
      %v1454 = vunpack.c.l.b16 %v463
      %v1455 = vunpack.c.h.b16 %v463
      %v1456 = vunpack.c.l.b16 %v464
      %v1457 = vunpack.c.l.b16 %v465
      %v1458 = vunpack.c.h.b16 %v465
      %v1459 = vunpack.c.l.b16 %v466
      %v1460 = vunpack.c.h.b16 %v466
      %v1461 = vunpack.c.l.b16 %v467
      %v1462 = vunpack.c.h.b16 %v467
      %v1463 = vunpack.c.l.b16 %v468
      %v1464 = vunpack.c.h.b16 %v468
      %v1465 = vunpack.c.l.b16 %v469
      %v1466 = vunpack.c.l.b16 %v470
      %v1467 = vunpack.c.h.b16 %v470
      %v1468 = vunpack.c.l.b16 %v471
      %v1469 = vunpack.c.h.b16 %v471
      %v1470 = vunpack.c.l.b16 %v472
      %v1471 = vunpack.c.h.b16 %v472
      %v1472 = vunpack.c.l.b16 %v473
      %v1473 = vunpack.c.h.b16 %v473
      %v1474 = vunpack.c.l.b16 %v474
      %v1475 = vunpack.c.l.b16 %v475
      %v1476 = vunpack.c.h.b16 %v475
      %v1477 = vunpack.c.l.b16 %v476
      %v1478 = vunpack.c.h.b16 %v476
      %v1479 = vunpack.c.l.b16 %v477
      %v1480 = vunpack.c.h.b16 %v477
      %v1481 = vunpack.c.l.b16 %v478
      %v1482 = vunpack.c.h.b16 %v478
      %v1483 = vunpack.c.l.b16 %v479
      %v1484 = vunpack.c.l.b16 %v480
      %v1485 = vunpack.c.h.b16 %v480
      %v1486 = vunpack.c.l.b16 %v481
      %v1487 = vunpack.c.h.b16 %v481
      %v1488 = vunpack.c.l.b16 %v482
      %v1489 = vunpack.c.h.b16 %v482
      %v1490 = vunpack.c.l.b16 %v483
      %v1491 = vunpack.c.h.b16 %v483
      %v1492 = vunpack.c.l.b16 %v484
      %v1493 = vunpack.c.l.b16 %v485
      %v1494 = vunpack.c.h.b16 %v485
      %v1495 = vunpack.c.l.b16 %v486
      %v1496 = vunpack.c.h.b16 %v486
      %v1497 = vunpack.c.l.b16 %v487
      %v1498 = vunpack.c.h.b16 %v487
      %v1499 = vunpack.c.l.b16 %v488
      %v1500 = vunpack.c.h.b16 %v488
      %v1501 = vunpack.c.l.b16 %v489
      %v1502 = vunpack.c.l.b16 %v490
      %v1503 = vunpack.c.h.b16 %v490
      %v1504 = vunpack.c.l.b16 %v491
      %v1505 = vunpack.c.h.b16 %v491
      %v1506 = vunpack.c.l.b16 %v492
      %v1507 = vunpack.c.h.b16 %v492
      %v1508 = vunpack.c.l.b16 %v493
      %v1509 = vunpack.c.h.b16 %v493
      %v1510 = vunpack.c.l.b16 %v494
      %v1511 = vunpack.c.l.b16 %v495
      %v1512 = vunpack.c.h.b16 %v495
      %v1513 = vunpack.c.l.b16 %v496
      %v1514 = vunpack.c.h.b16 %v496
      %v1515 = vunpack.c.l.b16 %v497
      %v1516 = vunpack.c.h.b16 %v497
      %v1517 = vunpack.c.l.b16 %v498
      %v1518 = vunpack.c.h.b16 %v498
      %v1519 = vunpack.c.l.b16 %v499
      %v1520 = vunpack.c.l.b16 %v500
      %v1521 = vunpack.c.h.b16 %v500
      %v1522 = vunpack.c.l.b16 %v501
      %v1523 = vunpack.c.h.b16 %v501
      %v1524 = vunpack.c.l.b16 %v502
      %v1525 = vunpack.c.h.b16 %v502
      %v1526 = vunpack.c.l.b16 %v503
      %v1527 = vunpack.c.h.b16 %v503
      %v1528 = vunpack.c.l.b16 %v504
      %v1529 = vunpack.c.l.b16 %v505
      %v1530 = vunpack.c.h.b16 %v505
      %v1531 = vunpack.c.l.b16 %v506
      %v1532 = vunpack.c.h.b16 %v506
      %v1533 = vunpack.c.l.b16 %v507
      %v1534 = vunpack.c.h.b16 %v507
      %v1535 = vunpack.c.l.b16 %v508
      %v1536 = vunpack.c.h.b16 %v508
      %v1537 = vunpack.c.l.b16 %v509
      %v1538 = vunpack.c.l.b16 %v510
      %v1539 = vunpack.c.h.b16 %v510
      %v1540 = vunpack.c.l.b16 %v511
      %v1541 = vunpack.c.h.b16 %v511
      %v1542 = vunpack.c.l.b16 %v512
      %v1543 = vunpack.c.h.b16 %v512
      %v1544 = vunpack.c.l.b16 %v513
      %v1545 = vunpack.c.h.b16 %v513
      %v1546 = vunpack.c.l.b16 %v514
      %v1547 = vunpack.c.l.b16 %v515
      %v1548 = vunpack.c.h.b16 %v515
      %v1549 = vunpack.c.l.b16 %v516
      %v1550 = vunpack.c.h.b16 %v516
      %v1551 = vunpack.c.l.b16 %v517
      %v1552 = vunpack.c.h.b16 %v517
      %v1553 = vunpack.c.l.b16 %v518
      %v1554 = vunpack.c.h.b16 %v518
      %v1555 = vunpack.c.l.b16 %v519
      %v1556 = vunpack.c.l.b16 %v520
      %v1557 = vunpack.c.h.b16 %v520
      %v1558 = vunpack.c.l.b16 %v521
      %v1559 = vunpack.c.h.b16 %v521
      %v1560 = vunpack.c.l.b16 %v522
      %v1561 = vunpack.c.h.b16 %v522
      %v1562 = vunpack.c.l.b16 %v523
      %v1563 = vunpack.c.h.b16 %v523
      %v1564 = vunpack.c.l.b16 %v524
      %v1565 = vpack.c.b16 %v998, %v989
      %v1566 = vpack.c.b16 %v999, %v990
      %v1567 = vpack.c.b16 %v1000, %v991
      %v1568 = vpack.c.b16 %v1001, %v992
      %v1569 = vpack.c.b16 %v1002, %v993
      %v1570 = vpack.c.b16 %v1003, %v994
      %v1571 = vpack.c.b16 %v1004, %v995
      %v1572 = vpack.c.b16 %v1005, %v996
      %v1573 = vpack.c.b16 %v1006, %v997
      %v1574 = vpack.c.b16 %v1016, %v1007
      %v1575 = vpack.c.b16 %v1017, %v1008
      %v1576 = vpack.c.b16 %v1018, %v1009
      %v1577 = vpack.c.b16 %v1019, %v1010
      %v1578 = vpack.c.b16 %v1020, %v1011
      %v1579 = vpack.c.b16 %v1021, %v1012
      %v1580 = vpack.c.b16 %v1022, %v1013
      %v1581 = vpack.c.b16 %v1023, %v1014
      %v1582 = vpack.c.b16 %v1024, %v1015
      %v1583 = vpack.c.b16 %v1034, %v1025
      %v1584 = vpack.c.b16 %v1035, %v1026
      %v1585 = vpack.c.b16 %v1036, %v1027
      %v1586 = vpack.c.b16 %v1037, %v1028
      %v1587 = vpack.c.b16 %v1038, %v1029
      %v1588 = vpack.c.b16 %v1039, %v1030
      %v1589 = vpack.c.b16 %v1040, %v1031
      %v1590 = vpack.c.b16 %v1041, %v1032
      %v1591 = vpack.c.b16 %v1042, %v1033
      %v1592 = vpack.c.b16 %v1052, %v1043
      %v1593 = vpack.c.b16 %v1053, %v1044
      %v1594 = vpack.c.b16 %v1054, %v1045
      %v1595 = vpack.c.b16 %v1055, %v1046
      %v1596 = vpack.c.b16 %v1056, %v1047
      %v1597 = vpack.c.b16 %v1057, %v1048
      %v1598 = vpack.c.b16 %v1058, %v1049
      %v1599 = vpack.c.b16 %v1059, %v1050
      %v1600 = vpack.c.b16 %v1060, %v1051
      %v1601 = vpack.c.b16 %v1070, %v1061
      %v1602 = vpack.c.b16 %v1071, %v1062
      %v1603 = vpack.c.b16 %v1072, %v1063
      %v1604 = vpack.c.b16 %v1073, %v1064
      %v1605 = vpack.c.b16 %v1074, %v1065
      %v1606 = vpack.c.b16 %v1075, %v1066
      %v1607 = vpack.c.b16 %v1076, %v1067
      %v1608 = vpack.c.b16 %v1077, %v1068
      %v1609 = vpack.c.b16 %v1078, %v1069
      %v1610 = vpack.c.b16 %v1088, %v1079
      %v1611 = vpack.c.b16 %v1089, %v1080
      %v1612 = vpack.c.b16 %v1090, %v1081
      %v1613 = vpack.c.b16 %v1091, %v1082
      %v1614 = vpack.c.b16 %v1092, %v1083
      %v1615 = vpack.c.b16 %v1093, %v1084
      %v1616 = vpack.c.b16 %v1094, %v1085
      %v1617 = vpack.c.b16 %v1095, %v1086
      %v1618 = vpack.c.b16 %v1096, %v1087
      %v1619 = vpack.c.b16 %v1106, %v1097
      %v1620 = vpack.c.b16 %v1107, %v1098
      %v1621 = vpack.c.b16 %v1108, %v1099
      %v1622 = vpack.c.b16 %v1109, %v1100
      %v1623 = vpack.c.b16 %v1110, %v1101
      %v1624 = vpack.c.b16 %v1111, %v1102
      %v1625 = vpack.c.b16 %v1112, %v1103
      %v1626 = vpack.c.b16 %v1113, %v1104
      %v1627 = vpack.c.b16 %v1114, %v1105
      %v1628 = vpack.c.b16 %v1124, %v1115
      %v1629 = vpack.c.b16 %v1125, %v1116
      %v1630 = vpack.c.b16 %v1126, %v1117
      %v1631 = vpack.c.b16 %v1127, %v1118
      %v1632 = vpack.c.b16 %v1128, %v1119
      %v1633 = vpack.c.b16 %v1129, %v1120
      %v1634 = vpack.c.b16 %v1130, %v1121
      %v1635 = vpack.c.b16 %v1131, %v1122
      %v1636 = vpack.c.b16 %v1132, %v1123
      %v1637 = vpack.c.b16 %v1142, %v1133
      %v1638 = vpack.c.b16 %v1143, %v1134
      %v1639 = vpack.c.b16 %v1144, %v1135
      %v1640 = vpack.c.b16 %v1145, %v1136
      %v1641 = vpack.c.b16 %v1146, %v1137
      %v1642 = vpack.c.b16 %v1147, %v1138
      %v1643 = vpack.c.b16 %v1148, %v1139
      %v1644 = vpack.c.b16 %v1149, %v1140
      %v1645 = vpack.c.b16 %v1150, %v1141
      %v1646 = vpack.c.b16 %v1160, %v1151
      %v1647 = vpack.c.b16 %v1161, %v1152
      %v1648 = vpack.c.b16 %v1162, %v1153
      %v1649 = vpack.c.b16 %v1163, %v1154
      %v1650 = vpack.c.b16 %v1164, %v1155
      %v1651 = vpack.c.b16 %v1165, %v1156
      %v1652 = vpack.c.b16 %v1166, %v1157
      %v1653 = vpack.c.b16 %v1167, %v1158
      %v1654 = vpack.c.b16 %v1168, %v1159
      %v1655 = vpack.c.b16 %v1178, %v1169
      %v1656 = vpack.c.b16 %v1179, %v1170
      %v1657 = vpack.c.b16 %v1180, %v1171
      %v1658 = vpack.c.b16 %v1181, %v1172
      %v1659 = vpack.c.b16 %v1182, %v1173
      %v1660 = vpack.c.b16 %v1183, %v1174
      %v1661 = vpack.c.b16 %v1184, %v1175
      %v1662 = vpack.c.b16 %v1185, %v1176
      %v1663 = vpack.c.b16 %v1186, %v1177
      %v1664 = vpack.c.b16 %v1196, %v1187
      %v1665 = vpack.c.b16 %v1197, %v1188
      %v1666 = vpack.c.b16 %v1198, %v1189
      %v1667 = vpack.c.b16 %v1199, %v1190
      %v1668 = vpack.c.b16 %v1200, %v1191
      %v1669 = vpack.c.b16 %v1201, %v1192
      %v1670 = vpack.c.b16 %v1202, %v1193
      %v1671 = vpack.c.b16 %v1203, %v1194
      %v1672 = vpack.c.b16 %v1204, %v1195
      %v1673 = vpack.c.b16 %v1214, %v1205
      %v1674 = vpack.c.b16 %v1215, %v1206
      %v1675 = vpack.c.b16 %v1216, %v1207
      %v1676 = vpack.c.b16 %v1217, %v1208
      %v1677 = vpack.c.b16 %v1218, %v1209
      %v1678 = vpack.c.b16 %v1219, %v1210
      %v1679 = vpack.c.b16 %v1220, %v1211
      %v1680 = vpack.c.b16 %v1221, %v1212
      %v1681 = vpack.c.b16 %v1222, %v1213
      %v1682 = vpack.c.b16 %v1232, %v1223
      %v1683 = vpack.c.b16 %v1233, %v1224
      %v1684 = vpack.c.b16 %v1234, %v1225
      %v1685 = vpack.c.b16 %v1235, %v1226
      %v1686 = vpack.c.b16 %v1236, %v1227
      %v1687 = vpack.c.b16 %v1237, %v1228
      %v1688 = vpack.c.b16 %v1238, %v1229
      %v1689 = vpack.c.b16 %v1239, %v1230
      %v1690 = vpack.c.b16 %v1240, %v1231
      %v1691 = vpack.c.b16 %v1250, %v1241
      %v1692 = vpack.c.b16 %v1251, %v1242
      %v1693 = vpack.c.b16 %v1252, %v1243
      %v1694 = vpack.c.b16 %v1253, %v1244
      %v1695 = vpack.c.b16 %v1254, %v1245
      %v1696 = vpack.c.b16 %v1255, %v1246
      %v1697 = vpack.c.b16 %v1256, %v1247
      %v1698 = vpack.c.b16 %v1257, %v1248
      %v1699 = vpack.c.b16 %v1258, %v1249
      %v1700 = vpack.c.b16 %v1268, %v1259
      %v1701 = vpack.c.b16 %v1269, %v1260
      %v1702 = vpack.c.b16 %v1270, %v1261
      %v1703 = vpack.c.b16 %v1271, %v1262
      %v1704 = vpack.c.b16 %v1272, %v1263
      %v1705 = vpack.c.b16 %v1273, %v1264
      %v1706 = vpack.c.b16 %v1274, %v1265
      %v1707 = vpack.c.b16 %v1275, %v1266
      %v1708 = vpack.c.b16 %v1276, %v1267
      %v1709 = vpack.c.b16 %v1286, %v1277
      %v1710 = vpack.c.b16 %v1287, %v1278
      %v1711 = vpack.c.b16 %v1288, %v1279
      %v1712 = vpack.c.b16 %v1289, %v1280
      %v1713 = vpack.c.b16 %v1290, %v1281
      %v1714 = vpack.c.b16 %v1291, %v1282
      %v1715 = vpack.c.b16 %v1292, %v1283
      %v1716 = vpack.c.b16 %v1293, %v1284
      %v1717 = vpack.c.b16 %v1294, %v1285
      %v1718 = vpack.c.b16 %v1304, %v1295
      %v1719 = vpack.c.b16 %v1305, %v1296
      %v1720 = vpack.c.b16 %v1306, %v1297
      %v1721 = vpack.c.b16 %v1307, %v1298
      %v1722 = vpack.c.b16 %v1308, %v1299
      %v1723 = vpack.c.b16 %v1309, %v1300
      %v1724 = vpack.c.b16 %v1310, %v1301
      %v1725 = vpack.c.b16 %v1311, %v1302
      %v1726 = vpack.c.b16 %v1312, %v1303
      %v1727 = vpack.c.b16 %v1322, %v1313
      %v1728 = vpack.c.b16 %v1323, %v1314
      %v1729 = vpack.c.b16 %v1324, %v1315
      %v1730 = vpack.c.b16 %v1325, %v1316
      %v1731 = vpack.c.b16 %v1326, %v1317
      %v1732 = vpack.c.b16 %v1327, %v1318
      %v1733 = vpack.c.b16 %v1328, %v1319
      %v1734 = vpack.c.b16 %v1329, %v1320
      %v1735 = vpack.c.b16 %v1330, %v1321
      %v1736 = vpack.c.b16 %v1340, %v1331
      %v1737 = vpack.c.b16 %v1341, %v1332
      %v1738 = vpack.c.b16 %v1342, %v1333
      %v1739 = vpack.c.b16 %v1343, %v1334
      %v1740 = vpack.c.b16 %v1344, %v1335
      %v1741 = vpack.c.b16 %v1345, %v1336
      %v1742 = vpack.c.b16 %v1346, %v1337
      %v1743 = vpack.c.b16 %v1347, %v1338
      %v1744 = vpack.c.b16 %v1348, %v1339
      %v1745 = vpack.c.b16 %v1358, %v1349
      %v1746 = vpack.c.b16 %v1359, %v1350
      %v1747 = vpack.c.b16 %v1360, %v1351
      %v1748 = vpack.c.b16 %v1361, %v1352
      %v1749 = vpack.c.b16 %v1362, %v1353
      %v1750 = vpack.c.b16 %v1363, %v1354
      %v1751 = vpack.c.b16 %v1364, %v1355
      %v1752 = vpack.c.b16 %v1365, %v1356
      %v1753 = vpack.c.b16 %v1366, %v1357
      %v1754 = vpack.c.b16 %v1376, %v1367
      %v1755 = vpack.c.b16 %v1377, %v1368
      %v1756 = vpack.c.b16 %v1378, %v1369
      %v1757 = vpack.c.b16 %v1379, %v1370
      %v1758 = vpack.c.b16 %v1380, %v1371
      %v1759 = vpack.c.b16 %v1381, %v1372
      %v1760 = vpack.c.b16 %v1382, %v1373
      %v1761 = vpack.c.b16 %v1383, %v1374
      %v1762 = vpack.c.b16 %v1384, %v1375
      %v1763 = vpack.c.b16 %v1394, %v1385
      %v1764 = vpack.c.b16 %v1395, %v1386
      %v1765 = vpack.c.b16 %v1396, %v1387
      %v1766 = vpack.c.b16 %v1397, %v1388
      %v1767 = vpack.c.b16 %v1398, %v1389
      %v1768 = vpack.c.b16 %v1399, %v1390
      %v1769 = vpack.c.b16 %v1400, %v1391
      %v1770 = vpack.c.b16 %v1401, %v1392
      %v1771 = vpack.c.b16 %v1402, %v1393
      %v1772 = vpack.c.b16 %v1412, %v1403
      %v1773 = vpack.c.b16 %v1413, %v1404
      %v1774 = vpack.c.b16 %v1414, %v1405
      %v1775 = vpack.c.b16 %v1415, %v1406
      %v1776 = vpack.c.b16 %v1416, %v1407
      %v1777 = vpack.c.b16 %v1417, %v1408
      %v1778 = vpack.c.b16 %v1418, %v1409
      %v1779 = vpack.c.b16 %v1419, %v1410
      %v1780 = vpack.c.b16 %v1420, %v1411
      %v1781 = vpack.c.b16 %v1430, %v1421
      %v1782 = vpack.c.b16 %v1431, %v1422
      %v1783 = vpack.c.b16 %v1432, %v1423
      %v1784 = vpack.c.b16 %v1433, %v1424
      %v1785 = vpack.c.b16 %v1434, %v1425
      %v1786 = vpack.c.b16 %v1435, %v1426
      %v1787 = vpack.c.b16 %v1436, %v1427
      %v1788 = vpack.c.b16 %v1437, %v1428
      %v1789 = vpack.c.b16 %v1438, %v1429
      %v1790 = vpack.c.b16 %v1448, %v1439
      %v1791 = vpack.c.b16 %v1449, %v1440
      %v1792 = vpack.c.b16 %v1450, %v1441
      %v1793 = vpack.c.b16 %v1451, %v1442
      %v1794 = vpack.c.b16 %v1452, %v1443
      %v1795 = vpack.c.b16 %v1453, %v1444
      %v1796 = vpack.c.b16 %v1454, %v1445
      %v1797 = vpack.c.b16 %v1455, %v1446
      %v1798 = vpack.c.b16 %v1456, %v1447
      %v1799 = vpack.c.b16 %v1466, %v1457
      %v1800 = vpack.c.b16 %v1467, %v1458
      %v1801 = vpack.c.b16 %v1468, %v1459
      %v1802 = vpack.c.b16 %v1469, %v1460
      %v1803 = vpack.c.b16 %v1470, %v1461
      %v1804 = vpack.c.b16 %v1471, %v1462
      %v1805 = vpack.c.b16 %v1472, %v1463
      %v1806 = vpack.c.b16 %v1473, %v1464
      %v1807 = vpack.c.b16 %v1474, %v1465
      %v1808 = vpack.c.b16 %v1484, %v1475
      %v1809 = vpack.c.b16 %v1485, %v1476
      %v1810 = vpack.c.b16 %v1486, %v1477
      %v1811 = vpack.c.b16 %v1487, %v1478
      %v1812 = vpack.c.b16 %v1488, %v1479
      %v1813 = vpack.c.b16 %v1489, %v1480
      %v1814 = vpack.c.b16 %v1490, %v1481
      %v1815 = vpack.c.b16 %v1491, %v1482
      %v1816 = vpack.c.b16 %v1492, %v1483
      %v1817 = vpack.c.b16 %v1502, %v1493
      %v1818 = vpack.c.b16 %v1503, %v1494
      %v1819 = vpack.c.b16 %v1504, %v1495
      %v1820 = vpack.c.b16 %v1505, %v1496
      %v1821 = vpack.c.b16 %v1506, %v1497
      %v1822 = vpack.c.b16 %v1507, %v1498
      %v1823 = vpack.c.b16 %v1508, %v1499
      %v1824 = vpack.c.b16 %v1509, %v1500
      %v1825 = vpack.c.b16 %v1510, %v1501
      %v1826 = vpack.c.b16 %v1520, %v1511
      %v1827 = vpack.c.b16 %v1521, %v1512
      %v1828 = vpack.c.b16 %v1522, %v1513
      %v1829 = vpack.c.b16 %v1523, %v1514
      %v1830 = vpack.c.b16 %v1524, %v1515
      %v1831 = vpack.c.b16 %v1525, %v1516
      %v1832 = vpack.c.b16 %v1526, %v1517
      %v1833 = vpack.c.b16 %v1527, %v1518
      %v1834 = vpack.c.b16 %v1528, %v1519
      %v1835 = vpack.c.b16 %v1538, %v1529
      %v1836 = vpack.c.b16 %v1539, %v1530
      %v1837 = vpack.c.b16 %v1540, %v1531
      %v1838 = vpack.c.b16 %v1541, %v1532
      %v1839 = vpack.c.b16 %v1542, %v1533
      %v1840 = vpack.c.b16 %v1543, %v1534
      %v1841 = vpack.c.b16 %v1544, %v1535
      %v1842 = vpack.c.b16 %v1545, %v1536
      %v1843 = vpack.c.b16 %v1546, %v1537
      %v1844 = vpack.c.b16 %v1556, %v1547
      %v1845 = vpack.c.b16 %v1557, %v1548
      %v1846 = vpack.c.b16 %v1558, %v1549
      %v1847 = vpack.c.b16 %v1559, %v1550
      %v1848 = vpack.c.b16 %v1560, %v1551
      %v1849 = vpack.c.b16 %v1561, %v1552
      %v1850 = vpack.c.b16 %v1562, %v1553
      %v1851 = vpack.c.b16 %v1563, %v1554
      %v1852 = vpack.c.b16 %v1564, %v1555
      %v2285 = vunpack.c.l.b16 %v525
      %v2286 = vunpack.c.l.b16 %v526
      %v2287 = vunpack.c.l.b16 %v527
      %v2288 = vunpack.c.l.b16 %v528
      %v2289 = vunpack.c.l.b16 %v529
      %v2290 = vunpack.c.l.b16 %v530
      %v2291 = vunpack.c.l.b16 %v531
      %v2292 = vunpack.c.l.b16 %v532
      %v2293 = vunpack.c.l.b16 %v533
      %v2294 = vunpack.c.l.b16 %v534
      %v2295 = vunpack.c.l.b16 %v535
      %v2296 = vunpack.c.l.b16 %v536
      %v2297 = vunpack.c.l.b16 %v537
      %v2298 = vunpack.c.l.b16 %v538
      %v2299 = vunpack.c.l.b16 %v539
      %v2300 = vunpack.c.l.b16 %v540
      %v2301 = vunpack.c.l.b16 %v541
      %v2302 = vunpack.c.l.b16 %v542
      %v2303 = vunpack.c.l.b16 %v543
      %v2304 = vunpack.c.l.b16 %v544
      %v2305 = vunpack.c.l.b16 %v545
      %v2306 = vunpack.c.l.b16 %v546
      %v2307 = vunpack.c.l.b16 %v547
      %v2308 = vunpack.c.l.b16 %v548
      %v2309 = vunpack.c.l.b16 %v549
      %v2310 = vunpack.c.l.b16 %v550
      %v2311 = vunpack.c.l.b16 %v551
      %v2312 = vunpack.c.l.b16 %v552
      %v2313 = vunpack.c.l.b16 %v553
      %v2314 = vunpack.c.l.b16 %v554
      %v2315 = vunpack.c.l.b16 %v555
      %v2316 = vunpack.c.l.b16 %v556
      %v2317 = vunpack.c.l.b16 %v557
      %v2318 = vunpack.c.l.b16 %v558
      %v2319 = vunpack.c.l.b16 %v559
      %v2320 = vunpack.c.l.b16 %v560
      %v2321 = vunpack.c.l.b16 %v561
      %v2322 = vunpack.c.l.b16 %v562
      %v2323 = vunpack.c.l.b16 %v563
      %v2324 = vunpack.c.l.b16 %v564
      %v2325 = vunpack.c.l.b16 %v565
      %v2326 = vunpack.c.l.b16 %v566
      %v2327 = vunpack.c.l.b16 %v567
      %v2328 = vunpack.c.l.b16 %v568
      %v2329 = vunpack.c.l.b16 %v569
      %v2330 = vunpack.c.l.b16 %v570
      %v2331 = vunpack.c.l.b16 %v571
      %v2332 = vunpack.c.l.b16 %v572
      %v2333 = vunpack.c.l.b16 %v573
      %v2334 = vunpack.c.l.b16 %v574
      %v2335 = vunpack.c.l.b16 %v575
      %v2336 = vunpack.c.l.b16 %v576
      %v2337 = vunpack.c.l.b16 %v577
      %v2338 = vunpack.c.l.b16 %v578
      %v2339 = vunpack.c.l.b16 %v579
      %v2340 = vunpack.c.l.b16 %v580
      %v2341 = vunpack.c.l.b16 %v581
      %v2342 = vunpack.c.l.b16 %v582
      %v2343 = vunpack.c.l.b16 %v583
      %v2344 = vunpack.c.l.b16 %v584
      %v2345 = vunpack.c.l.b16 %v585
      %v2346 = vunpack.c.l.b16 %v586
      %v2347 = vunpack.c.l.b16 %v587
      %v2348 = vunpack.c.l.b16 %v588
      %v2349 = vunpack.c.l.b16 %v589
      %v2350 = vunpack.c.l.b16 %v590
      %v2351 = vunpack.c.l.b16 %v591
      %v2352 = vunpack.c.l.b16 %v592
      %v2353 = vunpack.c.l.b16 %v593
      %v2354 = vunpack.c.l.b16 %v594
      %v2355 = vunpack.c.l.b16 %v595
      %v2356 = vunpack.c.l.b16 %v596
      %v2357 = vunpack.c.l.b16 %v597
      %v2358 = vunpack.c.l.b16 %v598
      %v2359 = vunpack.c.l.b16 %v599
      %v2360 = vunpack.c.l.b16 %v600
      %v2361 = vunpack.c.l.b16 %v601
      %v2362 = vunpack.c.l.b16 %v602
      %v2363 = vunpack.c.l.b16 %v603
      %v2364 = vunpack.c.l.b16 %v604
      %v2365 = vunpack.c.l.b16 %v605
      %v2366 = vunpack.c.l.b16 %v606
      %v2367 = vunpack.c.l.b16 %v607
      %v2368 = vunpack.c.l.b16 %v608
      %v2369 = vunpack.c.l.b16 %v609
      %v2370 = vunpack.c.l.b16 %v610
      %v2371 = vunpack.c.l.b16 %v611
      %v2372 = vunpack.c.l.b16 %v612
      %v2373 = vunpack.c.l.b16 %v613
      %v2374 = vunpack.c.l.b16 %v614
      %v2375 = vunpack.c.l.b16 %v615
      %v2376 = vunpack.c.l.b16 %v616
      %v2377 = vunpack.c.l.b16 %v617
      %v2378 = vunpack.c.l.b16 %v618
      %v2379 = vunpack.c.l.b16 %v619
      %v2380 = vunpack.c.l.b16 %v620
      %v2381 = vunpack.c.l.b16 %v621
      %v2382 = vunpack.c.l.b16 %v622
      %v2383 = vunpack.c.l.b16 %v623
      %v2384 = vunpack.c.l.b16 %v624
      %v2385 = vunpack.c.l.b16 %v625
      %v2386 = vunpack.c.l.b16 %v626
      %v2387 = vunpack.c.l.b16 %v627
      %v2388 = vunpack.c.l.b16 %v628
      %v2389 = vunpack.c.l.b16 %v629
      %v2390 = vunpack.c.l.b16 %v630
      %v2391 = vunpack.c.l.b16 %v631
      %v2392 = vunpack.c.l.b16 %v632
      %v2393 = vunpack.c.l.b16 %v633
      %v2394 = vunpack.c.l.b16 %v634
      %v2395 = vunpack.c.l.b16 %v635
      %v2396 = vunpack.c.l.b16 %v636
      %v2397 = vunpack.c.l.b16 %v637
      %v2398 = vunpack.c.l.b16 %v638
      %v2399 = vunpack.c.l.b16 %v639
      %v2400 = vunpack.c.l.b16 %v640
      %v2401 = vunpack.c.l.b16 %v641
      %v2402 = vunpack.c.l.b16 %v642
      %v2403 = vunpack.c.l.b16 %v643
      %v2404 = vunpack.c.l.b16 %v644
      %v2405 = vunpack.c.l.b16 %v645
      %v2406 = vunpack.c.l.b16 %v646
      %v2407 = vunpack.c.l.b16 %v647
      %v2408 = vunpack.c.l.b16 %v648
      %v2409 = vunpack.c.l.b16 %v649
      %v2410 = vunpack.c.l.b16 %v650
      %v2411 = vunpack.c.l.b16 %v651
      %v2412 = vunpack.c.l.b16 %v652
      %v2413 = vunpack.c.l.b16 %v653
      %v2414 = vunpack.c.l.b16 %v654
      %v2415 = vunpack.c.l.b16 %v655
      %v2416 = vunpack.c.l.b16 %v656
      %v2417 = vunpack.c.l.b16 %v657
      %v2418 = vunpack.c.l.b16 %v658
      %v2419 = vunpack.c.l.b16 %v659
      %v2420 = vunpack.c.l.b16 %v660
      %v2421 = vunpack.c.l.b16 %v661
      %v2422 = vunpack.c.l.b16 %v662
      %v2423 = vunpack.c.l.b16 %v663
      %v2424 = vunpack.c.l.b16 %v664
      %v2425 = vunpack.c.l.b16 %v665
      %v2426 = vunpack.c.l.b16 %v666
      %v2427 = vunpack.c.l.b16 %v667
      %v2428 = vunpack.c.l.b16 %v668
      %v2429 = vpack.c.b16 %v2286, %v2285
      %v2430 = vpack.c.b16 %v2288, %v2287
      %v2431 = vpack.c.b16 %v2290, %v2289
      %v2432 = vpack.c.b16 %v2292, %v2291
      %v2433 = vpack.c.b16 %v2294, %v2293
      %v2434 = vpack.c.b16 %v2296, %v2295
      %v2435 = vpack.c.b16 %v2298, %v2297
      %v2436 = vpack.c.b16 %v2300, %v2299
      %v2437 = vpack.c.b16 %v2302, %v2301
      %v2438 = vpack.c.b16 %v2304, %v2303
      %v2439 = vpack.c.b16 %v2306, %v2305
      %v2440 = vpack.c.b16 %v2308, %v2307
      %v2441 = vpack.c.b16 %v2310, %v2309
      %v2442 = vpack.c.b16 %v2312, %v2311
      %v2443 = vpack.c.b16 %v2314, %v2313
      %v2444 = vpack.c.b16 %v2316, %v2315
      %v2445 = vpack.c.b16 %v2318, %v2317
      %v2446 = vpack.c.b16 %v2320, %v2319
      %v2447 = vpack.c.b16 %v2322, %v2321
      %v2448 = vpack.c.b16 %v2324, %v2323
      %v2449 = vpack.c.b16 %v2326, %v2325
      %v2450 = vpack.c.b16 %v2328, %v2327
      %v2451 = vpack.c.b16 %v2330, %v2329
      %v2452 = vpack.c.b16 %v2332, %v2331
      %v2453 = vpack.c.b16 %v2334, %v2333
      %v2454 = vpack.c.b16 %v2336, %v2335
      %v2455 = vpack.c.b16 %v2338, %v2337
      %v2456 = vpack.c.b16 %v2340, %v2339
      %v2457 = vpack.c.b16 %v2342, %v2341
      %v2458 = vpack.c.b16 %v2344, %v2343
      %v2459 = vpack.c.b16 %v2346, %v2345
      %v2460 = vpack.c.b16 %v2348, %v2347
      %v2461 = vpack.c.b16 %v2350, %v2349
      %v2462 = vpack.c.b16 %v2352, %v2351
      %v2463 = vpack.c.b16 %v2354, %v2353
      %v2464 = vpack.c.b16 %v2356, %v2355
      %v2465 = vpack.c.b16 %v2358, %v2357
      %v2466 = vpack.c.b16 %v2360, %v2359
      %v2467 = vpack.c.b16 %v2362, %v2361
      %v2468 = vpack.c.b16 %v2364, %v2363
      %v2469 = vpack.c.b16 %v2366, %v2365
      %v2470 = vpack.c.b16 %v2368, %v2367
      %v2471 = vpack.c.b16 %v2370, %v2369
      %v2472 = vpack.c.b16 %v2372, %v2371
      %v2473 = vpack.c.b16 %v2374, %v2373
      %v2474 = vpack.c.b16 %v2376, %v2375
      %v2475 = vpack.c.b16 %v2378, %v2377
      %v2476 = vpack.c.b16 %v2380, %v2379
      %v2477 = vpack.c.b16 %v2382, %v2381
      %v2478 = vpack.c.b16 %v2384, %v2383
      %v2479 = vpack.c.b16 %v2386, %v2385
      %v2480 = vpack.c.b16 %v2388, %v2387
      %v2481 = vpack.c.b16 %v2390, %v2389
      %v2482 = vpack.c.b16 %v2392, %v2391
      %v2483 = vpack.c.b16 %v2394, %v2393
      %v2484 = vpack.c.b16 %v2396, %v2395
      %v2485 = vpack.c.b16 %v2398, %v2397
      %v2486 = vpack.c.b16 %v2400, %v2399
      %v2487 = vpack.c.b16 %v2402, %v2401
      %v2488 = vpack.c.b16 %v2404, %v2403
      %v2489 = vpack.c.b16 %v2406, %v2405
      %v2490 = vpack.c.b16 %v2408, %v2407
      %v2491 = vpack.c.b16 %v2410, %v2409
      %v2492 = vpack.c.b16 %v2412, %v2411
      %v2493 = vpack.c.b16 %v2414, %v2413
      %v2494 = vpack.c.b16 %v2416, %v2415
      %v2495 = vpack.c.b16 %v2418, %v2417
      %v2496 = vpack.c.b16 %v2420, %v2419
      %v2497 = vpack.c.b16 %v2422, %v2421
      %v2498 = vpack.c.b16 %v2424, %v2423
      %v2499 = vpack.c.b16 %v2426, %v2425
      %v2500 = vpack.c.b16 %v2428, %v2427
      %2573 = vmatprep.subr.bf16.mxu0 0
      %2574 = vmatpush1.bf16.msra.mxu0 %v2436
      %2575 = vmatprep.subr.bf16.mxu0 0
      %2576 = vmatpush1.bf16.msra.mxu0 %v2435
      %2577 = vmatprep.subr.bf16.mxu0 0
      %2578 = vmatpush1.bf16.msra.mxu0 %v2434
      %2579 = vmatprep.subr.bf16.mxu0 0
      %2580 = vmatpush1.bf16.msra.mxu0 %v2433
      %2581 = vmatprep.subr.bf16.mxu0 0
      %2582 = vmatpush1.bf16.msra.mxu0 %v2432
      %2583 = vmatprep.subr.bf16.mxu0 0
      %2584 = vmatpush1.bf16.msra.mxu0 %v2431
      %2585 = vmatprep.subr.bf16.mxu0 0
      %2586 = vmatpush1.bf16.msra.mxu0 %v2430
      %2587 = vmatprep.subr.bf16.mxu0 0
      %2588 = vmatpush1.bf16.msra.mxu0 %v2429
      %2589 = vmatprep.subr.bf16.mxu0 0
      %2590 = vmatpush2.bf16.msra.mxu0 %v2444
      %2591 = vmatprep.subr.bf16.mxu0 0
      %2592 = vmatpush2.bf16.msra.mxu0 %v2443
      %2593 = vmatprep.subr.bf16.mxu0 0
      %2594 = vmatpush2.bf16.msra.mxu0 %v2442
      %2595 = vmatprep.subr.bf16.mxu0 0
      %2596 = vmatpush2.bf16.msra.mxu0 %v2441
      %2597 = vmatprep.subr.bf16.mxu0 0
      %2598 = vmatpush2.bf16.msra.mxu0 %v2440
      %2599 = vmatprep.subr.bf16.mxu0 0
      %2600 = vmatpush2.bf16.msra.mxu0 %v2439
      %2601 = vmatprep.subr.bf16.mxu0 0
      %2602 = vmatpush2.bf16.msra.mxu0 %v2438
      %2603 = vmatprep.subr.bf16.mxu0 0
      %2604 = vmatpush2.bf16.msra.mxu0 %v2437
      %2605 = vmatprep.mubr.bf16.mxu0 %v1566
      %2606 = vmatmul.mubr.bf16.gmra.mxu0 %v1565
      %v2607 = vpop.f32.mrf.mxu0
      %v2608 = vadd.f32 0.0, %v2607
      %v2609 = vpop.f32.mrf.mxu0
      %v2610 = vpop.f32.mrf.mxu0
      %v2611 = vadd.f32 0.0, %v2610
      %v2612 = vpop.f32.mrf.mxu0
      %2613 = vmatprep.mubr.bf16.mxu0 %v1575
      %2614 = vmatmul.mubr.bf16.gmra.mxu0 %v1574
      %v2615 = vpop.f32.mrf.mxu0
      %v2616 = vadd.f32 0.0, %v2615
      %v2617 = vpop.f32.mrf.mxu0
      %v2618 = vpop.f32.mrf.mxu0
      %v2619 = vadd.f32 0.0, %v2618
      %v2620 = vpop.f32.mrf.mxu0
      %2621 = vmatprep.mubr.bf16.mxu0 %v1584
      %2622 = vmatmul.mubr.bf16.gmra.mxu0 %v1583
      %v2623 = vpop.f32.mrf.mxu0
      %v2624 = vadd.f32 0.0, %v2623
      %v2625 = vpop.f32.mrf.mxu0
      %v2626 = vpop.f32.mrf.mxu0
      %v2627 = vadd.f32 0.0, %v2626
      %v2628 = vpop.f32.mrf.mxu0
      %2629 = vmatprep.mubr.bf16.mxu0 %v1593
      %2630 = vmatmul.mubr.bf16.gmra.mxu0 %v1592
      %v2631 = vpop.f32.mrf.mxu0
      %v2632 = vadd.f32 0.0, %v2631
      %v2633 = vpop.f32.mrf.mxu0
      %v2634 = vpop.f32.mrf.mxu0
      %v2635 = vadd.f32 0.0, %v2634
      %v2636 = vpop.f32.mrf.mxu0
      %2637 = vmatprep.mubr.bf16.mxu0 %v1602
      %2638 = vmatmul.mubr.bf16.gmra.mxu0 %v1601
      %v2639 = vpop.f32.mrf.mxu0
      %v2640 = vadd.f32 0.0, %v2639
      %v2641 = vpop.f32.mrf.mxu0
      %v2642 = vpop.f32.mrf.mxu0
      %v2643 = vadd.f32 0.0, %v2642
      %v2644 = vpop.f32.mrf.mxu0
      %2645 = vmatprep.mubr.bf16.mxu0 %v1611
      %2646 = vmatmul.mubr.bf16.gmra.mxu0 %v1610
      %v2647 = vpop.f32.mrf.mxu0
      %v2648 = vadd.f32 0.0, %v2647
      %v2649 = vpop.f32.mrf.mxu0
      %v2650 = vpop.f32.mrf.mxu0
      %v2651 = vadd.f32 0.0, %v2650
      %v2652 = vpop.f32.mrf.mxu0
      %2653 = vmatprep.mubr.bf16.mxu0 %v1620
      %2654 = vmatmul.mubr.bf16.gmra.mxu0 %v1619
      %v2655 = vpop.f32.mrf.mxu0
      %v2656 = vadd.f32 0.0, %v2655
      %v2657 = vpop.f32.mrf.mxu0
      %v2658 = vpop.f32.mrf.mxu0
      %v2659 = vadd.f32 0.0, %v2658
      %v2660 = vpop.f32.mrf.mxu0
      %2661 = vmatprep.mubr.bf16.mxu0 %v1629
      %2662 = vmatmul.mubr.bf16.gmra.mxu0 %v1628
      %v2663 = vpop.f32.mrf.mxu0
      %v2664 = vadd.f32 0.0, %v2663
      %v2665 = vpop.f32.mrf.mxu0
      %v2666 = vpop.f32.mrf.mxu0
      %v2667 = vadd.f32 0.0, %v2666
      %v2668 = vpop.f32.mrf.mxu0
      %2669 = vmatprep.mubr.bf16.mxu0 %v1638
      %2670 = vmatmul.mubr.bf16.gmra.mxu0 %v1637
      %v2671 = vpop.f32.mrf.mxu0
      %v2672 = vadd.f32 0.0, %v2671
      %v2673 = vpop.f32.mrf.mxu0
      %v2674 = vpop.f32.mrf.mxu0
      %v2675 = vadd.f32 0.0, %v2674
      %v2676 = vpop.f32.mrf.mxu0
      %2677 = vmatprep.mubr.bf16.mxu0 %v1647
      %2678 = vmatmul.mubr.bf16.gmra.mxu0 %v1646
      %v2679 = vpop.f32.mrf.mxu0
      %v2680 = vadd.f32 0.0, %v2679
      %v2681 = vpop.f32.mrf.mxu0
      %v2682 = vpop.f32.mrf.mxu0
      %v2683 = vadd.f32 0.0, %v2682
      %v2684 = vpop.f32.mrf.mxu0
      %2685 = vmatprep.mubr.bf16.mxu0 %v1656
      %2686 = vmatmul.mubr.bf16.gmra.mxu0 %v1655
      %v2687 = vpop.f32.mrf.mxu0
      %v2688 = vadd.f32 0.0, %v2687
      %v2689 = vpop.f32.mrf.mxu0
      %v2690 = vpop.f32.mrf.mxu0
      %v2691 = vadd.f32 0.0, %v2690
      %v2692 = vpop.f32.mrf.mxu0
      %2693 = vmatprep.mubr.bf16.mxu0 %v1665
      %2694 = vmatmul.mubr.bf16.gmra.mxu0 %v1664
      %v2695 = vpop.f32.mrf.mxu0
      %v2696 = vadd.f32 0.0, %v2695
      %v2697 = vpop.f32.mrf.mxu0
      %v2698 = vpop.f32.mrf.mxu0
      %v2699 = vadd.f32 0.0, %v2698
      %v2700 = vpop.f32.mrf.mxu0
      %2701 = vmatprep.mubr.bf16.mxu0 %v1674
      %2702 = vmatmul.mubr.bf16.gmra.mxu0 %v1673
      %v2703 = vpop.f32.mrf.mxu0
      %v2704 = vadd.f32 0.0, %v2703
      %v2705 = vpop.f32.mrf.mxu0
      %v2706 = vpop.f32.mrf.mxu0
      %v2707 = vadd.f32 0.0, %v2706
      %v2708 = vpop.f32.mrf.mxu0
      %2709 = vmatprep.mubr.bf16.mxu0 %v1683
      %2710 = vmatmul.mubr.bf16.gmra.mxu0 %v1682
      %v2711 = vpop.f32.mrf.mxu0
      %v2712 = vadd.f32 0.0, %v2711
      %v2713 = vpop.f32.mrf.mxu0
      %v2714 = vpop.f32.mrf.mxu0
      %v2715 = vadd.f32 0.0, %v2714
      %v2716 = vpop.f32.mrf.mxu0
      %2717 = vmatprep.mubr.bf16.mxu0 %v1692
      %2718 = vmatmul.mubr.bf16.gmra.mxu0 %v1691
      %v2719 = vpop.f32.mrf.mxu0
      %v2720 = vadd.f32 0.0, %v2719
      %v2721 = vpop.f32.mrf.mxu0
      %v2722 = vpop.f32.mrf.mxu0
      %v2723 = vadd.f32 0.0, %v2722
      %v2724 = vpop.f32.mrf.mxu0
      %2725 = vmatprep.mubr.bf16.mxu0 %v1701
      %2726 = vmatmul.mubr.bf16.gmra.mxu0 %v1700
      %v2727 = vpop.f32.mrf.mxu0
      %v2728 = vadd.f32 0.0, %v2727
      %v2729 = vpop.f32.mrf.mxu0
      %v2730 = vpop.f32.mrf.mxu0
      %v2731 = vadd.f32 0.0, %v2730
      %v2732 = vpop.f32.mrf.mxu0
      %2733 = vmatprep.mubr.bf16.mxu0 %v1710
      %2734 = vmatmul.mubr.bf16.gmra.mxu0 %v1709
      %v2735 = vpop.f32.mrf.mxu0
      %v2736 = vadd.f32 0.0, %v2735
      %v2737 = vpop.f32.mrf.mxu0
      %v2738 = vpop.f32.mrf.mxu0
      %v2739 = vadd.f32 0.0, %v2738
      %v2740 = vpop.f32.mrf.mxu0
      %2741 = vmatprep.mubr.bf16.mxu0 %v1719
      %2742 = vmatmul.mubr.bf16.gmra.mxu0 %v1718
      %v2743 = vpop.f32.mrf.mxu0
      %v2744 = vadd.f32 0.0, %v2743
      %v2745 = vpop.f32.mrf.mxu0
      %v2746 = vpop.f32.mrf.mxu0
      %v2747 = vadd.f32 0.0, %v2746
      %v2748 = vpop.f32.mrf.mxu0
      %2749 = vmatprep.mubr.bf16.mxu0 %v1728
      %2750 = vmatmul.mubr.bf16.gmra.mxu0 %v1727
      %v2751 = vpop.f32.mrf.mxu0
      %v2752 = vadd.f32 0.0, %v2751
      %v2753 = vpop.f32.mrf.mxu0
      %v2754 = vpop.f32.mrf.mxu0
      %v2755 = vadd.f32 0.0, %v2754
      %v2756 = vpop.f32.mrf.mxu0
      %2757 = vmatprep.mubr.bf16.mxu0 %v1737
      %2758 = vmatmul.mubr.bf16.gmra.mxu0 %v1736
      %v2759 = vpop.f32.mrf.mxu0
      %v2760 = vadd.f32 0.0, %v2759
      %v2761 = vpop.f32.mrf.mxu0
      %v2762 = vpop.f32.mrf.mxu0
      %v2763 = vadd.f32 0.0, %v2762
      %v2764 = vpop.f32.mrf.mxu0
      %2765 = vmatprep.mubr.bf16.mxu0 %v1746
      %2766 = vmatmul.mubr.bf16.gmra.mxu0 %v1745
      %v2767 = vpop.f32.mrf.mxu0
      %v2768 = vadd.f32 0.0, %v2767
      %v2769 = vpop.f32.mrf.mxu0
      %v2770 = vpop.f32.mrf.mxu0
      %v2771 = vadd.f32 0.0, %v2770
      %v2772 = vpop.f32.mrf.mxu0
      %2773 = vmatprep.mubr.bf16.mxu0 %v1755
      %2774 = vmatmul.mubr.bf16.gmra.mxu0 %v1754
      %v2775 = vpop.f32.mrf.mxu0
      %v2776 = vadd.f32 0.0, %v2775
      %v2777 = vpop.f32.mrf.mxu0
      %v2778 = vpop.f32.mrf.mxu0
      %v2779 = vadd.f32 0.0, %v2778
      %v2780 = vpop.f32.mrf.mxu0
      %2781 = vmatprep.mubr.bf16.mxu0 %v1764
      %2782 = vmatmul.mubr.bf16.gmra.mxu0 %v1763
      %v2783 = vpop.f32.mrf.mxu0
      %v2784 = vadd.f32 0.0, %v2783
      %v2785 = vpop.f32.mrf.mxu0
      %v2786 = vpop.f32.mrf.mxu0
      %v2787 = vadd.f32 0.0, %v2786
      %v2788 = vpop.f32.mrf.mxu0
      %2789 = vmatprep.mubr.bf16.mxu0 %v1773
      %2790 = vmatmul.mubr.bf16.gmra.mxu0 %v1772
      %v2791 = vpop.f32.mrf.mxu0
      %v2792 = vadd.f32 0.0, %v2791
      %v2793 = vpop.f32.mrf.mxu0
      %v2794 = vpop.f32.mrf.mxu0
      %v2795 = vadd.f32 0.0, %v2794
      %v2796 = vpop.f32.mrf.mxu0
      %2797 = vmatprep.mubr.bf16.mxu0 %v1782
      %2798 = vmatmul.mubr.bf16.gmra.mxu0 %v1781
      %v2799 = vpop.f32.mrf.mxu0
      %v2800 = vadd.f32 0.0, %v2799
      %v2801 = vpop.f32.mrf.mxu0
      %v2802 = vpop.f32.mrf.mxu0
      %v2803 = vadd.f32 0.0, %v2802
      %v2804 = vpop.f32.mrf.mxu0
      %2805 = vmatprep.mubr.bf16.mxu0 %v1791
      %2806 = vmatmul.mubr.bf16.gmra.mxu0 %v1790
      %v2807 = vpop.f32.mrf.mxu0
      %v2808 = vadd.f32 0.0, %v2807
      %v2809 = vpop.f32.mrf.mxu0
      %v2810 = vpop.f32.mrf.mxu0
      %v2811 = vadd.f32 0.0, %v2810
      %v2812 = vpop.f32.mrf.mxu0
      %2813 = vmatprep.mubr.bf16.mxu0 %v1800
      %2814 = vmatmul.mubr.bf16.gmra.mxu0 %v1799
      %v2815 = vpop.f32.mrf.mxu0
      %v2816 = vadd.f32 0.0, %v2815
      %v2817 = vpop.f32.mrf.mxu0
      %v2818 = vpop.f32.mrf.mxu0
      %v2819 = vadd.f32 0.0, %v2818
      %v2820 = vpop.f32.mrf.mxu0
      %2821 = vmatprep.mubr.bf16.mxu0 %v1809
      %2822 = vmatmul.mubr.bf16.gmra.mxu0 %v1808
      %v2823 = vpop.f32.mrf.mxu0
      %v2824 = vadd.f32 0.0, %v2823
      %v2825 = vpop.f32.mrf.mxu0
      %v2826 = vpop.f32.mrf.mxu0
      %v2827 = vadd.f32 0.0, %v2826
      %v2828 = vpop.f32.mrf.mxu0
      %2829 = vmatprep.mubr.bf16.mxu0 %v1818
      %2830 = vmatmul.mubr.bf16.gmra.mxu0 %v1817
      %v2831 = vpop.f32.mrf.mxu0
      %v2832 = vadd.f32 0.0, %v2831
      %v2833 = vpop.f32.mrf.mxu0
      %v2834 = vpop.f32.mrf.mxu0
      %v2835 = vadd.f32 0.0, %v2834
      %v2836 = vpop.f32.mrf.mxu0
      %2837 = vmatprep.mubr.bf16.mxu0 %v1827
      %2838 = vmatmul.mubr.bf16.gmra.mxu0 %v1826
      %v2839 = vpop.f32.mrf.mxu0
      %v2840 = vadd.f32 0.0, %v2839
      %v2841 = vpop.f32.mrf.mxu0
      %v2842 = vpop.f32.mrf.mxu0
      %v2843 = vadd.f32 0.0, %v2842
      %v2844 = vpop.f32.mrf.mxu0
      %2845 = vmatprep.mubr.bf16.mxu0 %v1836
      %2846 = vmatmul.mubr.bf16.gmra.mxu0 %v1835
      %v2847 = vpop.f32.mrf.mxu0
      %v2848 = vadd.f32 0.0, %v2847
      %v2849 = vpop.f32.mrf.mxu0
      %v2850 = vpop.f32.mrf.mxu0
      %v2851 = vadd.f32 0.0, %v2850
      %v2852 = vpop.f32.mrf.mxu0
      %2853 = vmatprep.mubr.bf16.mxu0 %v1845
      %2854 = vmatmul.mubr.bf16.gmra.mxu0 %v1844
      %v2855 = vpop.f32.mrf.mxu0
      %v2856 = vadd.f32 0.0, %v2855
      %v2857 = vpop.f32.mrf.mxu0
      %v2858 = vpop.f32.mrf.mxu0
      %v2859 = vadd.f32 0.0, %v2858
      %v2860 = vpop.f32.mrf.mxu0
      %2861 = vdwg.mxu0
      %2862 = vmatprep.subr.bf16.mxu0 0
      %2863 = vmatpush1.bf16.msra.mxu0 %v2452
      %2864 = vmatprep.subr.bf16.mxu0 0
      %2865 = vmatpush1.bf16.msra.mxu0 %v2451
      %2866 = vmatprep.subr.bf16.mxu0 0
      %2867 = vmatpush1.bf16.msra.mxu0 %v2450
      %2868 = vmatprep.subr.bf16.mxu0 0
      %2869 = vmatpush1.bf16.msra.mxu0 %v2449
      %2870 = vmatprep.subr.bf16.mxu0 0
      %2871 = vmatpush1.bf16.msra.mxu0 %v2448
      %2872 = vmatprep.subr.bf16.mxu0 0
      %2873 = vmatpush1.bf16.msra.mxu0 %v2447
      %2874 = vmatprep.subr.bf16.mxu0 0
      %2875 = vmatpush1.bf16.msra.mxu0 %v2446
      %2876 = vmatprep.subr.bf16.mxu0 0
      %2877 = vmatpush1.bf16.msra.mxu0 %v2445
      %2878 = vmatprep.subr.bf16.mxu0 0
      %2879 = vmatpush2.bf16.msra.mxu0 %v2460
      %2880 = vmatprep.subr.bf16.mxu0 0
      %2881 = vmatpush2.bf16.msra.mxu0 %v2459
      %2882 = vmatprep.subr.bf16.mxu0 0
      %2883 = vmatpush2.bf16.msra.mxu0 %v2458
      %2884 = vmatprep.subr.bf16.mxu0 0
      %2885 = vmatpush2.bf16.msra.mxu0 %v2457
      %2886 = vmatprep.subr.bf16.mxu0 0
      %2887 = vmatpush2.bf16.msra.mxu0 %v2456
      %2888 = vmatprep.subr.bf16.mxu0 0
      %2889 = vmatpush2.bf16.msra.mxu0 %v2455
      %2890 = vmatprep.subr.bf16.mxu0 0
      %2891 = vmatpush2.bf16.msra.mxu0 %v2454
      %2892 = vmatprep.subr.bf16.mxu0 0
      %2893 = vmatpush2.bf16.msra.mxu0 %v2453
      %2894 = vmatprep.mubr.bf16.mxu0 %v1568
      %2895 = vmatmul.mubr.bf16.gmra.mxu0 %v1567
      %v2896 = vpop.f32.mrf.mxu0
      %v2897 = vadd.f32 %v2608, %v2896
      %v2898 = vpop.f32.mrf.mxu0
      %v2899 = vpop.f32.mrf.mxu0
      %v2900 = vadd.f32 %v2611, %v2899
      %v2901 = vpop.f32.mrf.mxu0
      %2902 = vmatprep.mubr.bf16.mxu0 %v1577
      %2903 = vmatmul.mubr.bf16.gmra.mxu0 %v1576
      %v2904 = vpop.f32.mrf.mxu0
      %v2905 = vadd.f32 %v2616, %v2904
      %v2906 = vpop.f32.mrf.mxu0
      %v2907 = vpop.f32.mrf.mxu0
      %v2908 = vadd.f32 %v2619, %v2907
      %v2909 = vpop.f32.mrf.mxu0
      %2910 = vmatprep.mubr.bf16.mxu0 %v1586
      %2911 = vmatmul.mubr.bf16.gmra.mxu0 %v1585
      %v2912 = vpop.f32.mrf.mxu0
      %v2913 = vadd.f32 %v2624, %v2912
      %v2914 = vpop.f32.mrf.mxu0
      %v2915 = vpop.f32.mrf.mxu0
      %v2916 = vadd.f32 %v2627, %v2915
      %v2917 = vpop.f32.mrf.mxu0
      %2918 = vmatprep.mubr.bf16.mxu0 %v1595
      %2919 = vmatmul.mubr.bf16.gmra.mxu0 %v1594
      %v2920 = vpop.f32.mrf.mxu0
      %v2921 = vadd.f32 %v2632, %v2920
      %v2922 = vpop.f32.mrf.mxu0
      %v2923 = vpop.f32.mrf.mxu0
      %v2924 = vadd.f32 %v2635, %v2923
      %v2925 = vpop.f32.mrf.mxu0
      %2926 = vmatprep.mubr.bf16.mxu0 %v1604
      %2927 = vmatmul.mubr.bf16.gmra.mxu0 %v1603
      %v2928 = vpop.f32.mrf.mxu0
      %v2929 = vadd.f32 %v2640, %v2928
      %v2930 = vpop.f32.mrf.mxu0
      %v2931 = vpop.f32.mrf.mxu0
      %v2932 = vadd.f32 %v2643, %v2931
      %v2933 = vpop.f32.mrf.mxu0
      %2934 = vmatprep.mubr.bf16.mxu0 %v1613
      %2935 = vmatmul.mubr.bf16.gmra.mxu0 %v1612
      %v2936 = vpop.f32.mrf.mxu0
      %v2937 = vadd.f32 %v2648, %v2936
      %v2938 = vpop.f32.mrf.mxu0
      %v2939 = vpop.f32.mrf.mxu0
      %v2940 = vadd.f32 %v2651, %v2939
      %v2941 = vpop.f32.mrf.mxu0
      %2942 = vmatprep.mubr.bf16.mxu0 %v1622
      %2943 = vmatmul.mubr.bf16.gmra.mxu0 %v1621
      %v2944 = vpop.f32.mrf.mxu0
      %v2945 = vadd.f32 %v2656, %v2944
      %v2946 = vpop.f32.mrf.mxu0
      %v2947 = vpop.f32.mrf.mxu0
      %v2948 = vadd.f32 %v2659, %v2947
      %v2949 = vpop.f32.mrf.mxu0
      %2950 = vmatprep.mubr.bf16.mxu0 %v1631
      %2951 = vmatmul.mubr.bf16.gmra.mxu0 %v1630
      %v2952 = vpop.f32.mrf.mxu0
      %v2953 = vadd.f32 %v2664, %v2952
      %v2954 = vpop.f32.mrf.mxu0
      %v2955 = vpop.f32.mrf.mxu0
      %v2956 = vadd.f32 %v2667, %v2955
      %v2957 = vpop.f32.mrf.mxu0
      %2958 = vmatprep.mubr.bf16.mxu0 %v1640
      %2959 = vmatmul.mubr.bf16.gmra.mxu0 %v1639
      %v2960 = vpop.f32.mrf.mxu0
      %v2961 = vadd.f32 %v2672, %v2960
      %v2962 = vpop.f32.mrf.mxu0
      %v2963 = vpop.f32.mrf.mxu0
      %v2964 = vadd.f32 %v2675, %v2963
      %v2965 = vpop.f32.mrf.mxu0
      %2966 = vmatprep.mubr.bf16.mxu0 %v1649
      %2967 = vmatmul.mubr.bf16.gmra.mxu0 %v1648
      %v2968 = vpop.f32.mrf.mxu0
      %v2969 = vadd.f32 %v2680, %v2968
      %v2970 = vpop.f32.mrf.mxu0
      %v2971 = vpop.f32.mrf.mxu0
      %v2972 = vadd.f32 %v2683, %v2971
      %v2973 = vpop.f32.mrf.mxu0
      %2974 = vmatprep.mubr.bf16.mxu0 %v1658
      %2975 = vmatmul.mubr.bf16.gmra.mxu0 %v1657
      %v2976 = vpop.f32.mrf.mxu0
      %v2977 = vadd.f32 %v2688, %v2976
      %v2978 = vpop.f32.mrf.mxu0
      %v2979 = vpop.f32.mrf.mxu0
      %v2980 = vadd.f32 %v2691, %v2979
      %v2981 = vpop.f32.mrf.mxu0
      %2982 = vmatprep.mubr.bf16.mxu0 %v1667
      %2983 = vmatmul.mubr.bf16.gmra.mxu0 %v1666
      %v2984 = vpop.f32.mrf.mxu0
      %v2985 = vadd.f32 %v2696, %v2984
      %v2986 = vpop.f32.mrf.mxu0
      %v2987 = vpop.f32.mrf.mxu0
      %v2988 = vadd.f32 %v2699, %v2987
      %v2989 = vpop.f32.mrf.mxu0
      %2990 = vmatprep.mubr.bf16.mxu0 %v1676
      %2991 = vmatmul.mubr.bf16.gmra.mxu0 %v1675
      %v2992 = vpop.f32.mrf.mxu0
      %v2993 = vadd.f32 %v2704, %v2992
      %v2994 = vpop.f32.mrf.mxu0
      %v2995 = vpop.f32.mrf.mxu0
      %v2996 = vadd.f32 %v2707, %v2995
      %v2997 = vpop.f32.mrf.mxu0
      %2998 = vmatprep.mubr.bf16.mxu0 %v1685
      %2999 = vmatmul.mubr.bf16.gmra.mxu0 %v1684
      %v3000 = vpop.f32.mrf.mxu0
      %v3001 = vadd.f32 %v2712, %v3000
      %v3002 = vpop.f32.mrf.mxu0
      %v3003 = vpop.f32.mrf.mxu0
      %v3004 = vadd.f32 %v2715, %v3003
      %v3005 = vpop.f32.mrf.mxu0
      %3006 = vmatprep.mubr.bf16.mxu0 %v1694
      %3007 = vmatmul.mubr.bf16.gmra.mxu0 %v1693
      %v3008 = vpop.f32.mrf.mxu0
      %v3009 = vadd.f32 %v2720, %v3008
      %v3010 = vpop.f32.mrf.mxu0
      %v3011 = vpop.f32.mrf.mxu0
      %v3012 = vadd.f32 %v2723, %v3011
      %v3013 = vpop.f32.mrf.mxu0
      %3014 = vmatprep.mubr.bf16.mxu0 %v1703
      %3015 = vmatmul.mubr.bf16.gmra.mxu0 %v1702
      %v3016 = vpop.f32.mrf.mxu0
      %v3017 = vadd.f32 %v2728, %v3016
      %v3018 = vpop.f32.mrf.mxu0
      %v3019 = vpop.f32.mrf.mxu0
      %v3020 = vadd.f32 %v2731, %v3019
      %v3021 = vpop.f32.mrf.mxu0
      %3022 = vmatprep.mubr.bf16.mxu0 %v1712
      %3023 = vmatmul.mubr.bf16.gmra.mxu0 %v1711
      %v3024 = vpop.f32.mrf.mxu0
      %v3025 = vadd.f32 %v2736, %v3024
      %v3026 = vpop.f32.mrf.mxu0
      %v3027 = vpop.f32.mrf.mxu0
      %v3028 = vadd.f32 %v2739, %v3027
      %v3029 = vpop.f32.mrf.mxu0
      %3030 = vmatprep.mubr.bf16.mxu0 %v1721
      %3031 = vmatmul.mubr.bf16.gmra.mxu0 %v1720
      %v3032 = vpop.f32.mrf.mxu0
      %v3033 = vadd.f32 %v2744, %v3032
      %v3034 = vpop.f32.mrf.mxu0
      %v3035 = vpop.f32.mrf.mxu0
      %v3036 = vadd.f32 %v2747, %v3035
      %v3037 = vpop.f32.mrf.mxu0
      %3038 = vmatprep.mubr.bf16.mxu0 %v1730
      %3039 = vmatmul.mubr.bf16.gmra.mxu0 %v1729
      %v3040 = vpop.f32.mrf.mxu0
      %v3041 = vadd.f32 %v2752, %v3040
      %v3042 = vpop.f32.mrf.mxu0
      %v3043 = vpop.f32.mrf.mxu0
      %v3044 = vadd.f32 %v2755, %v3043
      %v3045 = vpop.f32.mrf.mxu0
      %3046 = vmatprep.mubr.bf16.mxu0 %v1739
      %3047 = vmatmul.mubr.bf16.gmra.mxu0 %v1738
      %v3048 = vpop.f32.mrf.mxu0
      %v3049 = vadd.f32 %v2760, %v3048
      %v3050 = vpop.f32.mrf.mxu0
      %v3051 = vpop.f32.mrf.mxu0
      %v3052 = vadd.f32 %v2763, %v3051
      %v3053 = vpop.f32.mrf.mxu0
      %3054 = vmatprep.mubr.bf16.mxu0 %v1748
      %3055 = vmatmul.mubr.bf16.gmra.mxu0 %v1747
      %v3056 = vpop.f32.mrf.mxu0
      %v3057 = vadd.f32 %v2768, %v3056
      %v3058 = vpop.f32.mrf.mxu0
      %v3059 = vpop.f32.mrf.mxu0
      %v3060 = vadd.f32 %v2771, %v3059
      %v3061 = vpop.f32.mrf.mxu0
      %3062 = vmatprep.mubr.bf16.mxu0 %v1757
      %3063 = vmatmul.mubr.bf16.gmra.mxu0 %v1756
      %v3064 = vpop.f32.mrf.mxu0
      %v3065 = vadd.f32 %v2776, %v3064
      %v3066 = vpop.f32.mrf.mxu0
      %v3067 = vpop.f32.mrf.mxu0
      %v3068 = vadd.f32 %v2779, %v3067
      %v3069 = vpop.f32.mrf.mxu0
      %3070 = vmatprep.mubr.bf16.mxu0 %v1766
      %3071 = vmatmul.mubr.bf16.gmra.mxu0 %v1765
      %v3072 = vpop.f32.mrf.mxu0
      %v3073 = vadd.f32 %v2784, %v3072
      %v3074 = vpop.f32.mrf.mxu0
      %v3075 = vpop.f32.mrf.mxu0
      %v3076 = vadd.f32 %v2787, %v3075
      %v3077 = vpop.f32.mrf.mxu0
      %3078 = vmatprep.mubr.bf16.mxu0 %v1775
      %3079 = vmatmul.mubr.bf16.gmra.mxu0 %v1774
      %v3080 = vpop.f32.mrf.mxu0
      %v3081 = vadd.f32 %v2792, %v3080
      %v3082 = vpop.f32.mrf.mxu0
      %v3083 = vpop.f32.mrf.mxu0
      %v3084 = vadd.f32 %v2795, %v3083
      %v3085 = vpop.f32.mrf.mxu0
      %3086 = vmatprep.mubr.bf16.mxu0 %v1784
      %3087 = vmatmul.mubr.bf16.gmra.mxu0 %v1783
      %v3088 = vpop.f32.mrf.mxu0
      %v3089 = vadd.f32 %v2800, %v3088
      %v3090 = vpop.f32.mrf.mxu0
      %v3091 = vpop.f32.mrf.mxu0
      %v3092 = vadd.f32 %v2803, %v3091
      %v3093 = vpop.f32.mrf.mxu0
      %3094 = vmatprep.mubr.bf16.mxu0 %v1793
      %3095 = vmatmul.mubr.bf16.gmra.mxu0 %v1792
      %v3096 = vpop.f32.mrf.mxu0
      %v3097 = vadd.f32 %v2808, %v3096
      %v3098 = vpop.f32.mrf.mxu0
      %v3099 = vpop.f32.mrf.mxu0
      %v3100 = vadd.f32 %v2811, %v3099
      %v3101 = vpop.f32.mrf.mxu0
      %3102 = vmatprep.mubr.bf16.mxu0 %v1802
      %3103 = vmatmul.mubr.bf16.gmra.mxu0 %v1801
      %v3104 = vpop.f32.mrf.mxu0
      %v3105 = vadd.f32 %v2816, %v3104
      %v3106 = vpop.f32.mrf.mxu0
      %v3107 = vpop.f32.mrf.mxu0
      %v3108 = vadd.f32 %v2819, %v3107
      %v3109 = vpop.f32.mrf.mxu0
      %3110 = vmatprep.mubr.bf16.mxu0 %v1811
      %3111 = vmatmul.mubr.bf16.gmra.mxu0 %v1810
      %v3112 = vpop.f32.mrf.mxu0
      %v3113 = vadd.f32 %v2824, %v3112
      %v3114 = vpop.f32.mrf.mxu0
      %v3115 = vpop.f32.mrf.mxu0
      %v3116 = vadd.f32 %v2827, %v3115
      %v3117 = vpop.f32.mrf.mxu0
      %3118 = vmatprep.mubr.bf16.mxu0 %v1820
      %3119 = vmatmul.mubr.bf16.gmra.mxu0 %v1819
      %v3120 = vpop.f32.mrf.mxu0
      %v3121 = vadd.f32 %v2832, %v3120
      %v3122 = vpop.f32.mrf.mxu0
      %v3123 = vpop.f32.mrf.mxu0
      %v3124 = vadd.f32 %v2835, %v3123
      %v3125 = vpop.f32.mrf.mxu0
      %3126 = vmatprep.mubr.bf16.mxu0 %v1829
      %3127 = vmatmul.mubr.bf16.gmra.mxu0 %v1828
      %v3128 = vpop.f32.mrf.mxu0
      %v3129 = vadd.f32 %v2840, %v3128
      %v3130 = vpop.f32.mrf.mxu0
      %v3131 = vpop.f32.mrf.mxu0
      %v3132 = vadd.f32 %v2843, %v3131
      %v3133 = vpop.f32.mrf.mxu0
      %3134 = vmatprep.mubr.bf16.mxu0 %v1838
      %3135 = vmatmul.mubr.bf16.gmra.mxu0 %v1837
      %v3136 = vpop.f32.mrf.mxu0
      %v3137 = vadd.f32 %v2848, %v3136
      %v3138 = vpop.f32.mrf.mxu0
      %v3139 = vpop.f32.mrf.mxu0
      %v3140 = vadd.f32 %v2851, %v3139
      %v3141 = vpop.f32.mrf.mxu0
      %3142 = vmatprep.mubr.bf16.mxu0 %v1847
      %3143 = vmatmul.mubr.bf16.gmra.mxu0 %v1846
      %v3144 = vpop.f32.mrf.mxu0
      %v3145 = vadd.f32 %v2856, %v3144
      %v3146 = vpop.f32.mrf.mxu0
      %v3147 = vpop.f32.mrf.mxu0
      %v3148 = vadd.f32 %v2859, %v3147
      %v3149 = vpop.f32.mrf.mxu0
      %3150 = vdwg.mxu0
      %3151 = vmatprep.subr.bf16.mxu0 0
      %3152 = vmatpush1.bf16.msra.mxu0 %v2468
      %3153 = vmatprep.subr.bf16.mxu0 0
      %3154 = vmatpush1.bf16.msra.mxu0 %v2467
      %3155 = vmatprep.subr.bf16.mxu0 0
      %3156 = vmatpush1.bf16.msra.mxu0 %v2466
      %3157 = vmatprep.subr.bf16.mxu0 0
      %3158 = vmatpush1.bf16.msra.mxu0 %v2465
      %3159 = vmatprep.subr.bf16.mxu0 0
      %3160 = vmatpush1.bf16.msra.mxu0 %v2464
      %3161 = vmatprep.subr.bf16.mxu0 0
      %3162 = vmatpush1.bf16.msra.mxu0 %v2463
      %3163 = vmatprep.subr.bf16.mxu0 0
      %3164 = vmatpush1.bf16.msra.mxu0 %v2462
      %3165 = vmatprep.subr.bf16.mxu0 0
      %3166 = vmatpush1.bf16.msra.mxu0 %v2461
      %3167 = vmatprep.subr.bf16.mxu0 0
      %3168 = vmatpush2.bf16.msra.mxu0 %v2476
      %3169 = vmatprep.subr.bf16.mxu0 0
      %3170 = vmatpush2.bf16.msra.mxu0 %v2475
      %3171 = vmatprep.subr.bf16.mxu0 0
      %3172 = vmatpush2.bf16.msra.mxu0 %v2474
      %3173 = vmatprep.subr.bf16.mxu0 0
      %3174 = vmatpush2.bf16.msra.mxu0 %v2473
      %3175 = vmatprep.subr.bf16.mxu0 0
      %3176 = vmatpush2.bf16.msra.mxu0 %v2472
      %3177 = vmatprep.subr.bf16.mxu0 0
      %3178 = vmatpush2.bf16.msra.mxu0 %v2471
      %3179 = vmatprep.subr.bf16.mxu0 0
      %3180 = vmatpush2.bf16.msra.mxu0 %v2470
      %3181 = vmatprep.subr.bf16.mxu0 0
      %3182 = vmatpush2.bf16.msra.mxu0 %v2469
      %3183 = vmatprep.mubr.bf16.mxu0 %v1570
      %3184 = vmatmul.mubr.bf16.gmra.mxu0 %v1569
      %v3185 = vpop.f32.mrf.mxu0
      %v3186 = vadd.f32 %v2897, %v3185
      %v3187 = vpop.f32.mrf.mxu0
      %v3188 = vpop.f32.mrf.mxu0
      %v3189 = vadd.f32 %v2900, %v3188
      %v3190 = vpop.f32.mrf.mxu0
      %3191 = vmatprep.mubr.bf16.mxu0 %v1579
      %3192 = vmatmul.mubr.bf16.gmra.mxu0 %v1578
      %v3193 = vpop.f32.mrf.mxu0
      %v3194 = vadd.f32 %v2905, %v3193
      %v3195 = vpop.f32.mrf.mxu0
      %v3196 = vpop.f32.mrf.mxu0
      %v3197 = vadd.f32 %v2908, %v3196
      %v3198 = vpop.f32.mrf.mxu0
      %3199 = vmatprep.mubr.bf16.mxu0 %v1588
      %3200 = vmatmul.mubr.bf16.gmra.mxu0 %v1587
      %v3201 = vpop.f32.mrf.mxu0
      %v3202 = vadd.f32 %v2913, %v3201
      %v3203 = vpop.f32.mrf.mxu0
      %v3204 = vpop.f32.mrf.mxu0
      %v3205 = vadd.f32 %v2916, %v3204
      %v3206 = vpop.f32.mrf.mxu0
      %3207 = vmatprep.mubr.bf16.mxu0 %v1597
      %3208 = vmatmul.mubr.bf16.gmra.mxu0 %v1596
      %v3209 = vpop.f32.mrf.mxu0
      %v3210 = vadd.f32 %v2921, %v3209
      %v3211 = vpop.f32.mrf.mxu0
      %v3212 = vpop.f32.mrf.mxu0
      %v3213 = vadd.f32 %v2924, %v3212
      %v3214 = vpop.f32.mrf.mxu0
      %3215 = vmatprep.mubr.bf16.mxu0 %v1606
      %3216 = vmatmul.mubr.bf16.gmra.mxu0 %v1605
      %v3217 = vpop.f32.mrf.mxu0
      %v3218 = vadd.f32 %v2929, %v3217
      %v3219 = vpop.f32.mrf.mxu0
      %v3220 = vpop.f32.mrf.mxu0
      %v3221 = vadd.f32 %v2932, %v3220
      %v3222 = vpop.f32.mrf.mxu0
      %3223 = vmatprep.mubr.bf16.mxu0 %v1615
      %3224 = vmatmul.mubr.bf16.gmra.mxu0 %v1614
      %v3225 = vpop.f32.mrf.mxu0
      %v3226 = vadd.f32 %v2937, %v3225
      %v3227 = vpop.f32.mrf.mxu0
      %v3228 = vpop.f32.mrf.mxu0
      %v3229 = vadd.f32 %v2940, %v3228
      %v3230 = vpop.f32.mrf.mxu0
      %3231 = vmatprep.mubr.bf16.mxu0 %v1624
      %3232 = vmatmul.mubr.bf16.gmra.mxu0 %v1623
      %v3233 = vpop.f32.mrf.mxu0
      %v3234 = vadd.f32 %v2945, %v3233
      %v3235 = vpop.f32.mrf.mxu0
      %v3236 = vpop.f32.mrf.mxu0
      %v3237 = vadd.f32 %v2948, %v3236
      %v3238 = vpop.f32.mrf.mxu0
      %3239 = vmatprep.mubr.bf16.mxu0 %v1633
      %3240 = vmatmul.mubr.bf16.gmra.mxu0 %v1632
      %v3241 = vpop.f32.mrf.mxu0
      %v3242 = vadd.f32 %v2953, %v3241
      %v3243 = vpop.f32.mrf.mxu0
      %v3244 = vpop.f32.mrf.mxu0
      %v3245 = vadd.f32 %v2956, %v3244
      %v3246 = vpop.f32.mrf.mxu0
      %3247 = vmatprep.mubr.bf16.mxu0 %v1642
      %3248 = vmatmul.mubr.bf16.gmra.mxu0 %v1641
      %v3249 = vpop.f32.mrf.mxu0
      %v3250 = vadd.f32 %v2961, %v3249
      %v3251 = vpop.f32.mrf.mxu0
      %v3252 = vpop.f32.mrf.mxu0
      %v3253 = vadd.f32 %v2964, %v3252
      %v3254 = vpop.f32.mrf.mxu0
      %3255 = vmatprep.mubr.bf16.mxu0 %v1651
      %3256 = vmatmul.mubr.bf16.gmra.mxu0 %v1650
      %v3257 = vpop.f32.mrf.mxu0
      %v3258 = vadd.f32 %v2969, %v3257
      %v3259 = vpop.f32.mrf.mxu0
      %v3260 = vpop.f32.mrf.mxu0
      %v3261 = vadd.f32 %v2972, %v3260
      %v3262 = vpop.f32.mrf.mxu0
      %3263 = vmatprep.mubr.bf16.mxu0 %v1660
      %3264 = vmatmul.mubr.bf16.gmra.mxu0 %v1659
      %v3265 = vpop.f32.mrf.mxu0
      %v3266 = vadd.f32 %v2977, %v3265
      %v3267 = vpop.f32.mrf.mxu0
      %v3268 = vpop.f32.mrf.mxu0
      %v3269 = vadd.f32 %v2980, %v3268
      %v3270 = vpop.f32.mrf.mxu0
      %3271 = vmatprep.mubr.bf16.mxu0 %v1669
      %3272 = vmatmul.mubr.bf16.gmra.mxu0 %v1668
      %v3273 = vpop.f32.mrf.mxu0
      %v3274 = vadd.f32 %v2985, %v3273
      %v3275 = vpop.f32.mrf.mxu0
      %v3276 = vpop.f32.mrf.mxu0
      %v3277 = vadd.f32 %v2988, %v3276
      %v3278 = vpop.f32.mrf.mxu0
      %3279 = vmatprep.mubr.bf16.mxu0 %v1678
      %3280 = vmatmul.mubr.bf16.gmra.mxu0 %v1677
      %v3281 = vpop.f32.mrf.mxu0
      %v3282 = vadd.f32 %v2993, %v3281
      %v3283 = vpop.f32.mrf.mxu0
      %v3284 = vpop.f32.mrf.mxu0
      %v3285 = vadd.f32 %v2996, %v3284
      %v3286 = vpop.f32.mrf.mxu0
      %3287 = vmatprep.mubr.bf16.mxu0 %v1687
      %3288 = vmatmul.mubr.bf16.gmra.mxu0 %v1686
      %v3289 = vpop.f32.mrf.mxu0
      %v3290 = vadd.f32 %v3001, %v3289
      %v3291 = vpop.f32.mrf.mxu0
      %v3292 = vpop.f32.mrf.mxu0
      %v3293 = vadd.f32 %v3004, %v3292
      %v3294 = vpop.f32.mrf.mxu0
      %3295 = vmatprep.mubr.bf16.mxu0 %v1696
      %3296 = vmatmul.mubr.bf16.gmra.mxu0 %v1695
      %v3297 = vpop.f32.mrf.mxu0
      %v3298 = vadd.f32 %v3009, %v3297
      %v3299 = vpop.f32.mrf.mxu0
      %v3300 = vpop.f32.mrf.mxu0
      %v3301 = vadd.f32 %v3012, %v3300
      %v3302 = vpop.f32.mrf.mxu0
      %3303 = vmatprep.mubr.bf16.mxu0 %v1705
      %3304 = vmatmul.mubr.bf16.gmra.mxu0 %v1704
      %v3305 = vpop.f32.mrf.mxu0
      %v3306 = vadd.f32 %v3017, %v3305
      %v3307 = vpop.f32.mrf.mxu0
      %v3308 = vpop.f32.mrf.mxu0
      %v3309 = vadd.f32 %v3020, %v3308
      %v3310 = vpop.f32.mrf.mxu0
      %3311 = vmatprep.mubr.bf16.mxu0 %v1714
      %3312 = vmatmul.mubr.bf16.gmra.mxu0 %v1713
      %v3313 = vpop.f32.mrf.mxu0
      %v3314 = vadd.f32 %v3025, %v3313
      %v3315 = vpop.f32.mrf.mxu0
      %v3316 = vpop.f32.mrf.mxu0
      %v3317 = vadd.f32 %v3028, %v3316
      %v3318 = vpop.f32.mrf.mxu0
      %3319 = vmatprep.mubr.bf16.mxu0 %v1723
      %3320 = vmatmul.mubr.bf16.gmra.mxu0 %v1722
      %v3321 = vpop.f32.mrf.mxu0
      %v3322 = vadd.f32 %v3033, %v3321
      %v3323 = vpop.f32.mrf.mxu0
      %v3324 = vpop.f32.mrf.mxu0
      %v3325 = vadd.f32 %v3036, %v3324
      %v3326 = vpop.f32.mrf.mxu0
      %3327 = vmatprep.mubr.bf16.mxu0 %v1732
      %3328 = vmatmul.mubr.bf16.gmra.mxu0 %v1731
      %v3329 = vpop.f32.mrf.mxu0
      %v3330 = vadd.f32 %v3041, %v3329
      %v3331 = vpop.f32.mrf.mxu0
      %v3332 = vpop.f32.mrf.mxu0
      %v3333 = vadd.f32 %v3044, %v3332
      %v3334 = vpop.f32.mrf.mxu0
      %3335 = vmatprep.mubr.bf16.mxu0 %v1741
      %3336 = vmatmul.mubr.bf16.gmra.mxu0 %v1740
      %v3337 = vpop.f32.mrf.mxu0
      %v3338 = vadd.f32 %v3049, %v3337
      %v3339 = vpop.f32.mrf.mxu0
      %v3340 = vpop.f32.mrf.mxu0
      %v3341 = vadd.f32 %v3052, %v3340
      %v3342 = vpop.f32.mrf.mxu0
      %3343 = vmatprep.mubr.bf16.mxu0 %v1750
      %3344 = vmatmul.mubr.bf16.gmra.mxu0 %v1749
      %v3345 = vpop.f32.mrf.mxu0
      %v3346 = vadd.f32 %v3057, %v3345
      %v3347 = vpop.f32.mrf.mxu0
      %v3348 = vpop.f32.mrf.mxu0
      %v3349 = vadd.f32 %v3060, %v3348
      %v3350 = vpop.f32.mrf.mxu0
      %3351 = vmatprep.mubr.bf16.mxu0 %v1759
      %3352 = vmatmul.mubr.bf16.gmra.mxu0 %v1758
      %v3353 = vpop.f32.mrf.mxu0
      %v3354 = vadd.f32 %v3065, %v3353
      %v3355 = vpop.f32.mrf.mxu0
      %v3356 = vpop.f32.mrf.mxu0
      %v3357 = vadd.f32 %v3068, %v3356
      %v3358 = vpop.f32.mrf.mxu0
      %3359 = vmatprep.mubr.bf16.mxu0 %v1768
      %3360 = vmatmul.mubr.bf16.gmra.mxu0 %v1767
      %v3361 = vpop.f32.mrf.mxu0
      %v3362 = vadd.f32 %v3073, %v3361
      %v3363 = vpop.f32.mrf.mxu0
      %v3364 = vpop.f32.mrf.mxu0
      %v3365 = vadd.f32 %v3076, %v3364
      %v3366 = vpop.f32.mrf.mxu0
      %3367 = vmatprep.mubr.bf16.mxu0 %v1777
      %3368 = vmatmul.mubr.bf16.gmra.mxu0 %v1776
      %v3369 = vpop.f32.mrf.mxu0
      %v3370 = vadd.f32 %v3081, %v3369
      %v3371 = vpop.f32.mrf.mxu0
      %v3372 = vpop.f32.mrf.mxu0
      %v3373 = vadd.f32 %v3084, %v3372
      %v3374 = vpop.f32.mrf.mxu0
      %3375 = vmatprep.mubr.bf16.mxu0 %v1786
      %3376 = vmatmul.mubr.bf16.gmra.mxu0 %v1785
      %v3377 = vpop.f32.mrf.mxu0
      %v3378 = vadd.f32 %v3089, %v3377
      %v3379 = vpop.f32.mrf.mxu0
      %v3380 = vpop.f32.mrf.mxu0
      %v3381 = vadd.f32 %v3092, %v3380
      %v3382 = vpop.f32.mrf.mxu0
      %3383 = vmatprep.mubr.bf16.mxu0 %v1795
      %3384 = vmatmul.mubr.bf16.gmra.mxu0 %v1794
      %v3385 = vpop.f32.mrf.mxu0
      %v3386 = vadd.f32 %v3097, %v3385
      %v3387 = vpop.f32.mrf.mxu0
      %v3388 = vpop.f32.mrf.mxu0
      %v3389 = vadd.f32 %v3100, %v3388
      %v3390 = vpop.f32.mrf.mxu0
      %3391 = vmatprep.mubr.bf16.mxu0 %v1804
      %3392 = vmatmul.mubr.bf16.gmra.mxu0 %v1803
      %v3393 = vpop.f32.mrf.mxu0
      %v3394 = vadd.f32 %v3105, %v3393
      %v3395 = vpop.f32.mrf.mxu0
      %v3396 = vpop.f32.mrf.mxu0
      %v3397 = vadd.f32 %v3108, %v3396
      %v3398 = vpop.f32.mrf.mxu0
      %3399 = vmatprep.mubr.bf16.mxu0 %v1813
      %3400 = vmatmul.mubr.bf16.gmra.mxu0 %v1812
      %v3401 = vpop.f32.mrf.mxu0
      %v3402 = vadd.f32 %v3113, %v3401
      %v3403 = vpop.f32.mrf.mxu0
      %v3404 = vpop.f32.mrf.mxu0
      %v3405 = vadd.f32 %v3116, %v3404
      %v3406 = vpop.f32.mrf.mxu0
      %3407 = vmatprep.mubr.bf16.mxu0 %v1822
      %3408 = vmatmul.mubr.bf16.gmra.mxu0 %v1821
      %v3409 = vpop.f32.mrf.mxu0
      %v3410 = vadd.f32 %v3121, %v3409
      %v3411 = vpop.f32.mrf.mxu0
      %v3412 = vpop.f32.mrf.mxu0
      %v3413 = vadd.f32 %v3124, %v3412
      %v3414 = vpop.f32.mrf.mxu0
      %3415 = vmatprep.mubr.bf16.mxu0 %v1831
      %3416 = vmatmul.mubr.bf16.gmra.mxu0 %v1830
      %v3417 = vpop.f32.mrf.mxu0
      %v3418 = vadd.f32 %v3129, %v3417
      %v3419 = vpop.f32.mrf.mxu0
      %v3420 = vpop.f32.mrf.mxu0
      %v3421 = vadd.f32 %v3132, %v3420
      %v3422 = vpop.f32.mrf.mxu0
      %3423 = vmatprep.mubr.bf16.mxu0 %v1840
      %3424 = vmatmul.mubr.bf16.gmra.mxu0 %v1839
      %v3425 = vpop.f32.mrf.mxu0
      %v3426 = vadd.f32 %v3137, %v3425
      %v3427 = vpop.f32.mrf.mxu0
      %v3428 = vpop.f32.mrf.mxu0
      %v3429 = vadd.f32 %v3140, %v3428
      %v3430 = vpop.f32.mrf.mxu0
      %3431 = vmatprep.mubr.bf16.mxu0 %v1849
      %3432 = vmatmul.mubr.bf16.gmra.mxu0 %v1848
      %v3433 = vpop.f32.mrf.mxu0
      %v3434 = vadd.f32 %v3145, %v3433
      %v3435 = vpop.f32.mrf.mxu0
      %v3436 = vpop.f32.mrf.mxu0
      %v3437 = vadd.f32 %v3148, %v3436
      %v3438 = vpop.f32.mrf.mxu0
      %3439 = vdwg.mxu0
      %3440 = vmatprep.subr.bf16.mxu0 0
      %3441 = vmatpush1.bf16.msra.mxu0 %v2484
      %3442 = vmatprep.subr.bf16.mxu0 0
      %3443 = vmatpush1.bf16.msra.mxu0 %v2483
      %3444 = vmatprep.subr.bf16.mxu0 0
      %3445 = vmatpush1.bf16.msra.mxu0 %v2482
      %3446 = vmatprep.subr.bf16.mxu0 0
      %3447 = vmatpush1.bf16.msra.mxu0 %v2481
      %3448 = vmatprep.subr.bf16.mxu0 0
      %3449 = vmatpush1.bf16.msra.mxu0 %v2480
      %3450 = vmatprep.subr.bf16.mxu0 0
      %3451 = vmatpush1.bf16.msra.mxu0 %v2479
      %3452 = vmatprep.subr.bf16.mxu0 0
      %3453 = vmatpush1.bf16.msra.mxu0 %v2478
      %3454 = vmatprep.subr.bf16.mxu0 0
      %3455 = vmatpush1.bf16.msra.mxu0 %v2477
      %3456 = vmatprep.subr.bf16.mxu0 0
      %3457 = vmatpush2.bf16.msra.mxu0 %v2492
      %3458 = vmatprep.subr.bf16.mxu0 0
      %3459 = vmatpush2.bf16.msra.mxu0 %v2491
      %3460 = vmatprep.subr.bf16.mxu0 0
      %3461 = vmatpush2.bf16.msra.mxu0 %v2490
      %3462 = vmatprep.subr.bf16.mxu0 0
      %3463 = vmatpush2.bf16.msra.mxu0 %v2489
      %3464 = vmatprep.subr.bf16.mxu0 0
      %3465 = vmatpush2.bf16.msra.mxu0 %v2488
      %3466 = vmatprep.subr.bf16.mxu0 0
      %3467 = vmatpush2.bf16.msra.mxu0 %v2487
      %3468 = vmatprep.subr.bf16.mxu0 0
      %3469 = vmatpush2.bf16.msra.mxu0 %v2486
      %3470 = vmatprep.subr.bf16.mxu0 0
      %3471 = vmatpush2.bf16.msra.mxu0 %v2485
      %3472 = vmatprep.mubr.bf16.mxu0 %v1572
      %3473 = vmatmul.mubr.bf16.gmra.mxu0 %v1571
      %v3474 = vpop.f32.mrf.mxu0
      %v3475 = vadd.f32 %v3186, %v3474
      %v3476 = vpop.f32.mrf.mxu0
      %v3477 = vpop.f32.mrf.mxu0
      %v3478 = vadd.f32 %v3189, %v3477
      %v3479 = vpop.f32.mrf.mxu0
      %3480 = vmatprep.mubr.bf16.mxu0 %v1581
      %3481 = vmatmul.mubr.bf16.gmra.mxu0 %v1580
      %v3482 = vpop.f32.mrf.mxu0
      %v3483 = vadd.f32 %v3194, %v3482
      %v3484 = vpop.f32.mrf.mxu0
      %v3485 = vpop.f32.mrf.mxu0
      %v3486 = vadd.f32 %v3197, %v3485
      %v3487 = vpop.f32.mrf.mxu0
      %3488 = vmatprep.mubr.bf16.mxu0 %v1590
      %3489 = vmatmul.mubr.bf16.gmra.mxu0 %v1589
      %v3490 = vpop.f32.mrf.mxu0
      %v3491 = vadd.f32 %v3202, %v3490
      %v3492 = vpop.f32.mrf.mxu0
      %v3493 = vpop.f32.mrf.mxu0
      %v3494 = vadd.f32 %v3205, %v3493
      %v3495 = vpop.f32.mrf.mxu0
      %3496 = vmatprep.mubr.bf16.mxu0 %v1599
      %3497 = vmatmul.mubr.bf16.gmra.mxu0 %v1598
      %v3498 = vpop.f32.mrf.mxu0
      %v3499 = vadd.f32 %v3210, %v3498
      %v3500 = vpop.f32.mrf.mxu0
      %v3501 = vpop.f32.mrf.mxu0
      %v3502 = vadd.f32 %v3213, %v3501
      %v3503 = vpop.f32.mrf.mxu0
      %3504 = vmatprep.mubr.bf16.mxu0 %v1608
      %3505 = vmatmul.mubr.bf16.gmra.mxu0 %v1607
      %v3506 = vpop.f32.mrf.mxu0
      %v3507 = vadd.f32 %v3218, %v3506
      %v3508 = vpop.f32.mrf.mxu0
      %v3509 = vpop.f32.mrf.mxu0
      %v3510 = vadd.f32 %v3221, %v3509
      %v3511 = vpop.f32.mrf.mxu0
      %3512 = vmatprep.mubr.bf16.mxu0 %v1617
      %3513 = vmatmul.mubr.bf16.gmra.mxu0 %v1616
      %v3514 = vpop.f32.mrf.mxu0
      %v3515 = vadd.f32 %v3226, %v3514
      %v3516 = vpop.f32.mrf.mxu0
      %v3517 = vpop.f32.mrf.mxu0
      %v3518 = vadd.f32 %v3229, %v3517
      %v3519 = vpop.f32.mrf.mxu0
      %3520 = vmatprep.mubr.bf16.mxu0 %v1626
      %3521 = vmatmul.mubr.bf16.gmra.mxu0 %v1625
      %v3522 = vpop.f32.mrf.mxu0
      %v3523 = vadd.f32 %v3234, %v3522
      %v3524 = vpop.f32.mrf.mxu0
      %v3525 = vpop.f32.mrf.mxu0
      %v3526 = vadd.f32 %v3237, %v3525
      %v3527 = vpop.f32.mrf.mxu0
      %3528 = vmatprep.mubr.bf16.mxu0 %v1635
      %3529 = vmatmul.mubr.bf16.gmra.mxu0 %v1634
      %v3530 = vpop.f32.mrf.mxu0
      %v3531 = vadd.f32 %v3242, %v3530
      %v3532 = vpop.f32.mrf.mxu0
      %v3533 = vpop.f32.mrf.mxu0
      %v3534 = vadd.f32 %v3245, %v3533
      %v3535 = vpop.f32.mrf.mxu0
      %3536 = vmatprep.mubr.bf16.mxu0 %v1644
      %3537 = vmatmul.mubr.bf16.gmra.mxu0 %v1643
      %v3538 = vpop.f32.mrf.mxu0
      %v3539 = vadd.f32 %v3250, %v3538
      %v3540 = vpop.f32.mrf.mxu0
      %v3541 = vpop.f32.mrf.mxu0
      %v3542 = vadd.f32 %v3253, %v3541
      %v3543 = vpop.f32.mrf.mxu0
      %3544 = vmatprep.mubr.bf16.mxu0 %v1653
      %3545 = vmatmul.mubr.bf16.gmra.mxu0 %v1652
      %v3546 = vpop.f32.mrf.mxu0
      %v3547 = vadd.f32 %v3258, %v3546
      %v3548 = vpop.f32.mrf.mxu0
      %v3549 = vpop.f32.mrf.mxu0
      %v3550 = vadd.f32 %v3261, %v3549
      %v3551 = vpop.f32.mrf.mxu0
      %3552 = vmatprep.mubr.bf16.mxu0 %v1662
      %3553 = vmatmul.mubr.bf16.gmra.mxu0 %v1661
      %v3554 = vpop.f32.mrf.mxu0
      %v3555 = vadd.f32 %v3266, %v3554
      %v3556 = vpop.f32.mrf.mxu0
      %v3557 = vpop.f32.mrf.mxu0
      %v3558 = vadd.f32 %v3269, %v3557
      %v3559 = vpop.f32.mrf.mxu0
      %3560 = vmatprep.mubr.bf16.mxu0 %v1671
      %3561 = vmatmul.mubr.bf16.gmra.mxu0 %v1670
      %v3562 = vpop.f32.mrf.mxu0
      %v3563 = vadd.f32 %v3274, %v3562
      %v3564 = vpop.f32.mrf.mxu0
      %v3565 = vpop.f32.mrf.mxu0
      %v3566 = vadd.f32 %v3277, %v3565
      %v3567 = vpop.f32.mrf.mxu0
      %3568 = vmatprep.mubr.bf16.mxu0 %v1680
      %3569 = vmatmul.mubr.bf16.gmra.mxu0 %v1679
      %v3570 = vpop.f32.mrf.mxu0
      %v3571 = vadd.f32 %v3282, %v3570
      %v3572 = vpop.f32.mrf.mxu0
      %v3573 = vpop.f32.mrf.mxu0
      %v3574 = vadd.f32 %v3285, %v3573
      %v3575 = vpop.f32.mrf.mxu0
      %3576 = vmatprep.mubr.bf16.mxu0 %v1689
      %3577 = vmatmul.mubr.bf16.gmra.mxu0 %v1688
      %v3578 = vpop.f32.mrf.mxu0
      %v3579 = vadd.f32 %v3290, %v3578
      %v3580 = vpop.f32.mrf.mxu0
      %v3581 = vpop.f32.mrf.mxu0
      %v3582 = vadd.f32 %v3293, %v3581
      %v3583 = vpop.f32.mrf.mxu0
      %3584 = vmatprep.mubr.bf16.mxu0 %v1698
      %3585 = vmatmul.mubr.bf16.gmra.mxu0 %v1697
      %v3586 = vpop.f32.mrf.mxu0
      %v3587 = vadd.f32 %v3298, %v3586
      %v3588 = vpop.f32.mrf.mxu0
      %v3589 = vpop.f32.mrf.mxu0
      %v3590 = vadd.f32 %v3301, %v3589
      %v3591 = vpop.f32.mrf.mxu0
      %3592 = vmatprep.mubr.bf16.mxu0 %v1707
      %3593 = vmatmul.mubr.bf16.gmra.mxu0 %v1706
      %v3594 = vpop.f32.mrf.mxu0
      %v3595 = vadd.f32 %v3306, %v3594
      %v3596 = vpop.f32.mrf.mxu0
      %v3597 = vpop.f32.mrf.mxu0
      %v3598 = vadd.f32 %v3309, %v3597
      %v3599 = vpop.f32.mrf.mxu0
      %3600 = vmatprep.mubr.bf16.mxu0 %v1716
      %3601 = vmatmul.mubr.bf16.gmra.mxu0 %v1715
      %v3602 = vpop.f32.mrf.mxu0
      %v3603 = vadd.f32 %v3314, %v3602
      %v3604 = vpop.f32.mrf.mxu0
      %v3605 = vpop.f32.mrf.mxu0
      %v3606 = vadd.f32 %v3317, %v3605
      %v3607 = vpop.f32.mrf.mxu0
      %3608 = vmatprep.mubr.bf16.mxu0 %v1725
      %3609 = vmatmul.mubr.bf16.gmra.mxu0 %v1724
      %v3610 = vpop.f32.mrf.mxu0
      %v3611 = vadd.f32 %v3322, %v3610
      %v3612 = vpop.f32.mrf.mxu0
      %v3613 = vpop.f32.mrf.mxu0
      %v3614 = vadd.f32 %v3325, %v3613
      %v3615 = vpop.f32.mrf.mxu0
      %3616 = vmatprep.mubr.bf16.mxu0 %v1734
      %3617 = vmatmul.mubr.bf16.gmra.mxu0 %v1733
      %v3618 = vpop.f32.mrf.mxu0
      %v3619 = vadd.f32 %v3330, %v3618
      %v3620 = vpop.f32.mrf.mxu0
      %v3621 = vpop.f32.mrf.mxu0
      %v3622 = vadd.f32 %v3333, %v3621
      %v3623 = vpop.f32.mrf.mxu0
      %3624 = vmatprep.mubr.bf16.mxu0 %v1743
      %3625 = vmatmul.mubr.bf16.gmra.mxu0 %v1742
      %v3626 = vpop.f32.mrf.mxu0
      %v3627 = vadd.f32 %v3338, %v3626
      %v3628 = vpop.f32.mrf.mxu0
      %v3629 = vpop.f32.mrf.mxu0
      %v3630 = vadd.f32 %v3341, %v3629
      %v3631 = vpop.f32.mrf.mxu0
      %3632 = vmatprep.mubr.bf16.mxu0 %v1752
      %3633 = vmatmul.mubr.bf16.gmra.mxu0 %v1751
      %v3634 = vpop.f32.mrf.mxu0
      %v3635 = vadd.f32 %v3346, %v3634
      %v3636 = vpop.f32.mrf.mxu0
      %v3637 = vpop.f32.mrf.mxu0
      %v3638 = vadd.f32 %v3349, %v3637
      %v3639 = vpop.f32.mrf.mxu0
      %3640 = vmatprep.mubr.bf16.mxu0 %v1761
      %3641 = vmatmul.mubr.bf16.gmra.mxu0 %v1760
      %v3642 = vpop.f32.mrf.mxu0
      %v3643 = vadd.f32 %v3354, %v3642
      %v3644 = vpop.f32.mrf.mxu0
      %v3645 = vpop.f32.mrf.mxu0
      %v3646 = vadd.f32 %v3357, %v3645
      %v3647 = vpop.f32.mrf.mxu0
      %3648 = vmatprep.mubr.bf16.mxu0 %v1770
      %3649 = vmatmul.mubr.bf16.gmra.mxu0 %v1769
      %v3650 = vpop.f32.mrf.mxu0
      %v3651 = vadd.f32 %v3362, %v3650
      %v3652 = vpop.f32.mrf.mxu0
      %v3653 = vpop.f32.mrf.mxu0
      %v3654 = vadd.f32 %v3365, %v3653
      %v3655 = vpop.f32.mrf.mxu0
      %3656 = vmatprep.mubr.bf16.mxu0 %v1779
      %3657 = vmatmul.mubr.bf16.gmra.mxu0 %v1778
      %v3658 = vpop.f32.mrf.mxu0
      %v3659 = vadd.f32 %v3370, %v3658
      %v3660 = vpop.f32.mrf.mxu0
      %v3661 = vpop.f32.mrf.mxu0
      %v3662 = vadd.f32 %v3373, %v3661
      %v3663 = vpop.f32.mrf.mxu0
      %3664 = vmatprep.mubr.bf16.mxu0 %v1788
      %3665 = vmatmul.mubr.bf16.gmra.mxu0 %v1787
      %v3666 = vpop.f32.mrf.mxu0
      %v3667 = vadd.f32 %v3378, %v3666
      %v3668 = vpop.f32.mrf.mxu0
      %v3669 = vpop.f32.mrf.mxu0
      %v3670 = vadd.f32 %v3381, %v3669
      %v3671 = vpop.f32.mrf.mxu0
      %3672 = vmatprep.mubr.bf16.mxu0 %v1797
      %3673 = vmatmul.mubr.bf16.gmra.mxu0 %v1796
      %v3674 = vpop.f32.mrf.mxu0
      %v3675 = vadd.f32 %v3386, %v3674
      %v3676 = vpop.f32.mrf.mxu0
      %v3677 = vpop.f32.mrf.mxu0
      %v3678 = vadd.f32 %v3389, %v3677
      %v3679 = vpop.f32.mrf.mxu0
      %3680 = vmatprep.mubr.bf16.mxu0 %v1806
      %3681 = vmatmul.mubr.bf16.gmra.mxu0 %v1805
      %v3682 = vpop.f32.mrf.mxu0
      %v3683 = vadd.f32 %v3394, %v3682
      %v3684 = vpop.f32.mrf.mxu0
      %v3685 = vpop.f32.mrf.mxu0
      %v3686 = vadd.f32 %v3397, %v3685
      %v3687 = vpop.f32.mrf.mxu0
      %3688 = vmatprep.mubr.bf16.mxu0 %v1815
      %3689 = vmatmul.mubr.bf16.gmra.mxu0 %v1814
      %v3690 = vpop.f32.mrf.mxu0
      %v3691 = vadd.f32 %v3402, %v3690
      %v3692 = vpop.f32.mrf.mxu0
      %v3693 = vpop.f32.mrf.mxu0
      %v3694 = vadd.f32 %v3405, %v3693
      %v3695 = vpop.f32.mrf.mxu0
      %3696 = vmatprep.mubr.bf16.mxu0 %v1824
      %3697 = vmatmul.mubr.bf16.gmra.mxu0 %v1823
      %v3698 = vpop.f32.mrf.mxu0
      %v3699 = vadd.f32 %v3410, %v3698
      %v3700 = vpop.f32.mrf.mxu0
      %v3701 = vpop.f32.mrf.mxu0
      %v3702 = vadd.f32 %v3413, %v3701
      %v3703 = vpop.f32.mrf.mxu0
      %3704 = vmatprep.mubr.bf16.mxu0 %v1833
      %3705 = vmatmul.mubr.bf16.gmra.mxu0 %v1832
      %v3706 = vpop.f32.mrf.mxu0
      %v3707 = vadd.f32 %v3418, %v3706
      %v3708 = vpop.f32.mrf.mxu0
      %v3709 = vpop.f32.mrf.mxu0
      %v3710 = vadd.f32 %v3421, %v3709
      %v3711 = vpop.f32.mrf.mxu0
      %3712 = vmatprep.mubr.bf16.mxu0 %v1842
      %3713 = vmatmul.mubr.bf16.gmra.mxu0 %v1841
      %v3714 = vpop.f32.mrf.mxu0
      %v3715 = vadd.f32 %v3426, %v3714
      %v3716 = vpop.f32.mrf.mxu0
      %v3717 = vpop.f32.mrf.mxu0
      %v3718 = vadd.f32 %v3429, %v3717
      %v3719 = vpop.f32.mrf.mxu0
      %3720 = vmatprep.mubr.bf16.mxu0 %v1851
      %3721 = vmatmul.mubr.bf16.gmra.mxu0 %v1850
      %v3722 = vpop.f32.mrf.mxu0
      %v3723 = vadd.f32 %v3434, %v3722
      %v3724 = vpop.f32.mrf.mxu0
      %v3725 = vpop.f32.mrf.mxu0
      %v3726 = vadd.f32 %v3437, %v3725
      %v3727 = vpop.f32.mrf.mxu0
      %3728 = vdwg.mxu0
      %3729 = vmatprep.subr.bf16.mxu0 0
      %3730 = vmatpush1.bf16.msra.mxu0 %v2500
      %3731 = vmatprep.subr.bf16.mxu0 0
      %3732 = vmatpush1.bf16.msra.mxu0 %v2499
      %3733 = vmatprep.subr.bf16.mxu0 0
      %3734 = vmatpush1.bf16.msra.mxu0 %v2498
      %3735 = vmatprep.subr.bf16.mxu0 0
      %3736 = vmatpush1.bf16.msra.mxu0 %v2497
      %3737 = vmatprep.subr.bf16.mxu0 0
      %3738 = vmatpush1.bf16.msra.mxu0 %v2496
      %3739 = vmatprep.subr.bf16.mxu0 0
      %3740 = vmatpush1.bf16.msra.mxu0 %v2495
      %3741 = vmatprep.subr.bf16.mxu0 0
      %3742 = vmatpush1.bf16.msra.mxu0 %v2494
      %3743 = vmatprep.subr.bf16.mxu0 0
      %3744 = vmatpush1.bf16.msra.mxu0 %v2493
      %3745 = vmatprep.subr.bf16.mxu0 0
      %3746 = vmatpush2.bf16.msra.mxu0 0
      %3747 = vmatprep.subr.bf16.mxu0 0
      %3748 = vmatpush2.bf16.msra.mxu0 0
      %3749 = vmatprep.subr.bf16.mxu0 0
      %3750 = vmatpush2.bf16.msra.mxu0 0
      %3751 = vmatprep.subr.bf16.mxu0 0
      %3752 = vmatpush2.bf16.msra.mxu0 0
      %3753 = vmatprep.subr.bf16.mxu0 0
      %3754 = vmatpush2.bf16.msra.mxu0 0
      %3755 = vmatprep.subr.bf16.mxu0 0
      %3756 = vmatpush2.bf16.msra.mxu0 0
      %3757 = vmatprep.subr.bf16.mxu0 0
      %3758 = vmatpush2.bf16.msra.mxu0 0
      %3759 = vmatprep.subr.bf16.mxu0 0
      %3760 = vmatpush2.bf16.msra.mxu0 0
      %3761 = vmatprep.mubr.bf16.mxu0 0
      %3762 = vmatmul.mubr.bf16.gmra.mxu0 %v1573
      %v3763 = vpop.f32.mrf.mxu0
      %v3764 = vadd.f32 %v3475, %v3763
      %v3765 = vpop.f32.mrf.mxu0
      %v3766 = vpop.f32.mrf.mxu0
      %v3767 = vadd.f32 %v3478, %v3766
      %v3768 = vpop.f32.mrf.mxu0
      %3769 = vmatprep.mubr.bf16.mxu0 0
      %3770 = vmatmul.mubr.bf16.gmra.mxu0 %v1582
      %v3771 = vpop.f32.mrf.mxu0
      %v3772 = vadd.f32 %v3483, %v3771
      %v3773 = vpop.f32.mrf.mxu0
      %v3774 = vpop.f32.mrf.mxu0
      %v3775 = vadd.f32 %v3486, %v3774
      %v3776 = vpop.f32.mrf.mxu0
      %3777 = vmatprep.mubr.bf16.mxu0 0
      %3778 = vmatmul.mubr.bf16.gmra.mxu0 %v1591
      %v3779 = vpop.f32.mrf.mxu0
      %v3780 = vadd.f32 %v3491, %v3779
      %v3781 = vpop.f32.mrf.mxu0
      %v3782 = vpop.f32.mrf.mxu0
      %v3783 = vadd.f32 %v3494, %v3782
      %v3784 = vpop.f32.mrf.mxu0
      %3785 = vmatprep.mubr.bf16.mxu0 0
      %3786 = vmatmul.mubr.bf16.gmra.mxu0 %v1600
      %v3787 = vpop.f32.mrf.mxu0
      %v3788 = vadd.f32 %v3499, %v3787
      %v3789 = vpop.f32.mrf.mxu0
      %v3790 = vpop.f32.mrf.mxu0
      %v3791 = vadd.f32 %v3502, %v3790
      %v3792 = vpop.f32.mrf.mxu0
      %3793 = vmatprep.mubr.bf16.mxu0 0
      %3794 = vmatmul.mubr.bf16.gmra.mxu0 %v1609
      %v3795 = vpop.f32.mrf.mxu0
      %v3796 = vadd.f32 %v3507, %v3795
      %v3797 = vpop.f32.mrf.mxu0
      %v3798 = vpop.f32.mrf.mxu0
      %v3799 = vadd.f32 %v3510, %v3798
      %v3800 = vpop.f32.mrf.mxu0
      %3801 = vmatprep.mubr.bf16.mxu0 0
      %3802 = vmatmul.mubr.bf16.gmra.mxu0 %v1618
      %v3803 = vpop.f32.mrf.mxu0
      %v3804 = vadd.f32 %v3515, %v3803
      %v3805 = vpop.f32.mrf.mxu0
      %v3806 = vpop.f32.mrf.mxu0
      %v3807 = vadd.f32 %v3518, %v3806
      %v3808 = vpop.f32.mrf.mxu0
      %3809 = vmatprep.mubr.bf16.mxu0 0
      %3810 = vmatmul.mubr.bf16.gmra.mxu0 %v1627
      %v3811 = vpop.f32.mrf.mxu0
      %v3812 = vadd.f32 %v3523, %v3811
      %v3813 = vpop.f32.mrf.mxu0
      %v3814 = vpop.f32.mrf.mxu0
      %v3815 = vadd.f32 %v3526, %v3814
      %v3816 = vpop.f32.mrf.mxu0
      %3817 = vmatprep.mubr.bf16.mxu0 0
      %3818 = vmatmul.mubr.bf16.gmra.mxu0 %v1636
      %v3819 = vpop.f32.mrf.mxu0
      %v3820 = vadd.f32 %v3531, %v3819
      %v3821 = vpop.f32.mrf.mxu0
      %v3822 = vpop.f32.mrf.mxu0
      %v3823 = vadd.f32 %v3534, %v3822
      %v3824 = vpop.f32.mrf.mxu0
      %3825 = vmatprep.mubr.bf16.mxu0 0
      %3826 = vmatmul.mubr.bf16.gmra.mxu0 %v1645
      %v3827 = vpop.f32.mrf.mxu0
      %v3828 = vadd.f32 %v3539, %v3827
      %v3829 = vpop.f32.mrf.mxu0
      %v3830 = vpop.f32.mrf.mxu0
      %v3831 = vadd.f32 %v3542, %v3830
      %v3832 = vpop.f32.mrf.mxu0
      %3833 = vmatprep.mubr.bf16.mxu0 0
      %3834 = vmatmul.mubr.bf16.gmra.mxu0 %v1654
      %v3835 = vpop.f32.mrf.mxu0
      %v3836 = vadd.f32 %v3547, %v3835
      %v3837 = vpop.f32.mrf.mxu0
      %v3838 = vpop.f32.mrf.mxu0
      %v3839 = vadd.f32 %v3550, %v3838
      %v3840 = vpop.f32.mrf.mxu0
      %3841 = vmatprep.mubr.bf16.mxu0 0
      %3842 = vmatmul.mubr.bf16.gmra.mxu0 %v1663
      %v3843 = vpop.f32.mrf.mxu0
      %v3844 = vadd.f32 %v3555, %v3843
      %v3845 = vpop.f32.mrf.mxu0
      %v3846 = vpop.f32.mrf.mxu0
      %v3847 = vadd.f32 %v3558, %v3846
      %v3848 = vpop.f32.mrf.mxu0
      %3849 = vmatprep.mubr.bf16.mxu0 0
      %3850 = vmatmul.mubr.bf16.gmra.mxu0 %v1672
      %v3851 = vpop.f32.mrf.mxu0
      %v3852 = vadd.f32 %v3563, %v3851
      %v3853 = vpop.f32.mrf.mxu0
      %v3854 = vpop.f32.mrf.mxu0
      %v3855 = vadd.f32 %v3566, %v3854
      %v3856 = vpop.f32.mrf.mxu0
      %3857 = vmatprep.mubr.bf16.mxu0 0
      %3858 = vmatmul.mubr.bf16.gmra.mxu0 %v1681
      %v3859 = vpop.f32.mrf.mxu0
      %v3860 = vadd.f32 %v3571, %v3859
      %v3861 = vpop.f32.mrf.mxu0
      %v3862 = vpop.f32.mrf.mxu0
      %v3863 = vadd.f32 %v3574, %v3862
      %v3864 = vpop.f32.mrf.mxu0
      %3865 = vmatprep.mubr.bf16.mxu0 0
      %3866 = vmatmul.mubr.bf16.gmra.mxu0 %v1690
      %v3867 = vpop.f32.mrf.mxu0
      %v3868 = vadd.f32 %v3579, %v3867
      %v3869 = vpop.f32.mrf.mxu0
      %v3870 = vpop.f32.mrf.mxu0
      %v3871 = vadd.f32 %v3582, %v3870
      %v3872 = vpop.f32.mrf.mxu0
      %3873 = vmatprep.mubr.bf16.mxu0 0
      %3874 = vmatmul.mubr.bf16.gmra.mxu0 %v1699
      %v3875 = vpop.f32.mrf.mxu0
      %v3876 = vadd.f32 %v3587, %v3875
      %v3877 = vpop.f32.mrf.mxu0
      %v3878 = vpop.f32.mrf.mxu0
      %v3879 = vadd.f32 %v3590, %v3878
      %v3880 = vpop.f32.mrf.mxu0
      %3881 = vmatprep.mubr.bf16.mxu0 0
      %3882 = vmatmul.mubr.bf16.gmra.mxu0 %v1708
      %v3883 = vpop.f32.mrf.mxu0
      %v3884 = vadd.f32 %v3595, %v3883
      %v3885 = vpop.f32.mrf.mxu0
      %v3886 = vpop.f32.mrf.mxu0
      %v3887 = vadd.f32 %v3598, %v3886
      %v3888 = vpop.f32.mrf.mxu0
      %3889 = vmatprep.mubr.bf16.mxu0 0
      %3890 = vmatmul.mubr.bf16.gmra.mxu0 %v1717
      %v3891 = vpop.f32.mrf.mxu0
      %v3892 = vadd.f32 %v3603, %v3891
      %v3893 = vpop.f32.mrf.mxu0
      %v3894 = vpop.f32.mrf.mxu0
      %v3895 = vadd.f32 %v3606, %v3894
      %v3896 = vpop.f32.mrf.mxu0
      %3897 = vmatprep.mubr.bf16.mxu0 0
      %3898 = vmatmul.mubr.bf16.gmra.mxu0 %v1726
      %v3899 = vpop.f32.mrf.mxu0
      %v3900 = vadd.f32 %v3611, %v3899
      %v3901 = vpop.f32.mrf.mxu0
      %v3902 = vpop.f32.mrf.mxu0
      %v3903 = vadd.f32 %v3614, %v3902
      %v3904 = vpop.f32.mrf.mxu0
      %3905 = vmatprep.mubr.bf16.mxu0 0
      %3906 = vmatmul.mubr.bf16.gmra.mxu0 %v1735
      %v3907 = vpop.f32.mrf.mxu0
      %v3908 = vadd.f32 %v3619, %v3907
      %v3909 = vpop.f32.mrf.mxu0
      %v3910 = vpop.f32.mrf.mxu0
      %v3911 = vadd.f32 %v3622, %v3910
      %v3912 = vpop.f32.mrf.mxu0
      %3913 = vmatprep.mubr.bf16.mxu0 0
      %3914 = vmatmul.mubr.bf16.gmra.mxu0 %v1744
      %v3915 = vpop.f32.mrf.mxu0
      %v3916 = vadd.f32 %v3627, %v3915
      %v3917 = vpop.f32.mrf.mxu0
      %v3918 = vpop.f32.mrf.mxu0
      %v3919 = vadd.f32 %v3630, %v3918
      %v3920 = vpop.f32.mrf.mxu0
      %3921 = vmatprep.mubr.bf16.mxu0 0
      %3922 = vmatmul.mubr.bf16.gmra.mxu0 %v1753
      %v3923 = vpop.f32.mrf.mxu0
      %v3924 = vadd.f32 %v3635, %v3923
      %v3925 = vpop.f32.mrf.mxu0
      %v3926 = vpop.f32.mrf.mxu0
      %v3927 = vadd.f32 %v3638, %v3926
      %v3928 = vpop.f32.mrf.mxu0
      %3929 = vmatprep.mubr.bf16.mxu0 0
      %3930 = vmatmul.mubr.bf16.gmra.mxu0 %v1762
      %v3931 = vpop.f32.mrf.mxu0
      %v3932 = vadd.f32 %v3643, %v3931
      %v3933 = vpop.f32.mrf.mxu0
      %v3934 = vpop.f32.mrf.mxu0
      %v3935 = vadd.f32 %v3646, %v3934
      %v3936 = vpop.f32.mrf.mxu0
      %3937 = vmatprep.mubr.bf16.mxu0 0
      %3938 = vmatmul.mubr.bf16.gmra.mxu0 %v1771
      %v3939 = vpop.f32.mrf.mxu0
      %v3940 = vadd.f32 %v3651, %v3939
      %v3941 = vpop.f32.mrf.mxu0
      %v3942 = vpop.f32.mrf.mxu0
      %v3943 = vadd.f32 %v3654, %v3942
      %v3944 = vpop.f32.mrf.mxu0
      %3945 = vmatprep.mubr.bf16.mxu0 0
      %3946 = vmatmul.mubr.bf16.gmra.mxu0 %v1780
      %v3947 = vpop.f32.mrf.mxu0
      %v3948 = vadd.f32 %v3659, %v3947
      %v3949 = vpop.f32.mrf.mxu0
      %v3950 = vpop.f32.mrf.mxu0
      %v3951 = vadd.f32 %v3662, %v3950
      %v3952 = vpop.f32.mrf.mxu0
      %3953 = vmatprep.mubr.bf16.mxu0 0
      %3954 = vmatmul.mubr.bf16.gmra.mxu0 %v1789
      %v3955 = vpop.f32.mrf.mxu0
      %v3956 = vadd.f32 %v3667, %v3955
      %v3957 = vpop.f32.mrf.mxu0
      %v3958 = vpop.f32.mrf.mxu0
      %v3959 = vadd.f32 %v3670, %v3958
      %v3960 = vpop.f32.mrf.mxu0
      %3961 = vmatprep.mubr.bf16.mxu0 0
      %3962 = vmatmul.mubr.bf16.gmra.mxu0 %v1798
      %v3963 = vpop.f32.mrf.mxu0
      %v3964 = vadd.f32 %v3675, %v3963
      %v3965 = vpop.f32.mrf.mxu0
      %v3966 = vpop.f32.mrf.mxu0
      %v3967 = vadd.f32 %v3678, %v3966
      %v3968 = vpop.f32.mrf.mxu0
      %3969 = vmatprep.mubr.bf16.mxu0 0
      %3970 = vmatmul.mubr.bf16.gmra.mxu0 %v1807
      %v3971 = vpop.f32.mrf.mxu0
      %v3972 = vadd.f32 %v3683, %v3971
      %v3973 = vpop.f32.mrf.mxu0
      %v3974 = vpop.f32.mrf.mxu0
      %v3975 = vadd.f32 %v3686, %v3974
      %v3976 = vpop.f32.mrf.mxu0
      %3977 = vmatprep.mubr.bf16.mxu0 0
      %3978 = vmatmul.mubr.bf16.gmra.mxu0 %v1816
      %v3979 = vpop.f32.mrf.mxu0
      %v3980 = vadd.f32 %v3691, %v3979
      %v3981 = vpop.f32.mrf.mxu0
      %v3982 = vpop.f32.mrf.mxu0
      %v3983 = vadd.f32 %v3694, %v3982
      %v3984 = vpop.f32.mrf.mxu0
      %3985 = vmatprep.mubr.bf16.mxu0 0
      %3986 = vmatmul.mubr.bf16.gmra.mxu0 %v1825
      %v3987 = vpop.f32.mrf.mxu0
      %v3988 = vadd.f32 %v3699, %v3987
      %v3989 = vpop.f32.mrf.mxu0
      %v3990 = vpop.f32.mrf.mxu0
      %v3991 = vadd.f32 %v3702, %v3990
      %v3992 = vpop.f32.mrf.mxu0
      %3993 = vmatprep.mubr.bf16.mxu0 0
      %3994 = vmatmul.mubr.bf16.gmra.mxu0 %v1834
      %v3995 = vpop.f32.mrf.mxu0
      %v3996 = vadd.f32 %v3707, %v3995
      %v3997 = vpop.f32.mrf.mxu0
      %v3998 = vpop.f32.mrf.mxu0
      %v3999 = vadd.f32 %v3710, %v3998
      %v4000 = vpop.f32.mrf.mxu0
      %4001 = vmatprep.mubr.bf16.mxu0 0
      %4002 = vmatmul.mubr.bf16.gmra.mxu0 %v1843
      %v4003 = vpop.f32.mrf.mxu0
      %v4004 = vadd.f32 %v3715, %v4003
      %v4005 = vpop.f32.mrf.mxu0
      %v4006 = vpop.f32.mrf.mxu0
      %v4007 = vadd.f32 %v3718, %v4006
      %v4008 = vpop.f32.mrf.mxu0
      %4009 = vmatprep.mubr.bf16.mxu0 0
      %4010 = vmatmul.mubr.bf16.gmra.mxu0 %v1852
      %v4011 = vpop.f32.mrf.mxu0
      %v4012 = vadd.f32 %v3723, %v4011
      %v4013 = vpop.f32.mrf.mxu0
      %v4014 = vpop.f32.mrf.mxu0
      %v4015 = vadd.f32 %v3726, %v4014
      %v4016 = vpop.f32.mrf.mxu0
      %4017 = vdwg.mxu0
      %v4018 = vld [vmem:[%s2] sm:$0x1]
      %v4020 = vlaneseq
      %v4021 = vshrl.u32 %v4020, 7
      %v4022 = vsub.s32 0, %v4021
      %v4023 = vrot.slane %v4018, %v4022
      %v4025 = vmul.f32 %v3764, %v4023
      %v4026 = vmul.f32 %v3767, %v4023
      %v4027 = vmul.f32 %v3772, %v4023
      %v4028 = vmul.f32 %v3775, %v4023
      %v4029 = vmul.f32 %v3780, %v4023
      %v4030 = vmul.f32 %v3783, %v4023
      %v4031 = vmul.f32 %v3788, %v4023
      %v4032 = vmul.f32 %v3791, %v4023
      %v4033 = vmul.f32 %v3796, %v4023
      %v4034 = vmul.f32 %v3799, %v4023
      %v4035 = vmul.f32 %v3804, %v4023
      %v4036 = vmul.f32 %v3807, %v4023
      %v4037 = vmul.f32 %v3812, %v4023
      %v4038 = vmul.f32 %v3815, %v4023
      %v4039 = vmul.f32 %v3820, %v4023
      %v4040 = vmul.f32 %v3823, %v4023
      %v4041 = vmul.f32 %v3828, %v4023
      %v4042 = vmul.f32 %v3831, %v4023
      %v4043 = vmul.f32 %v3836, %v4023
      %v4044 = vmul.f32 %v3839, %v4023
      %v4045 = vmul.f32 %v3844, %v4023
      %v4046 = vmul.f32 %v3847, %v4023
      %v4047 = vmul.f32 %v3852, %v4023
      %v4048 = vmul.f32 %v3855, %v4023
      %v4049 = vmul.f32 %v3860, %v4023
      %v4050 = vmul.f32 %v3863, %v4023
      %v4051 = vmul.f32 %v3868, %v4023
      %v4052 = vmul.f32 %v3871, %v4023
      %v4053 = vmul.f32 %v3876, %v4023
      %v4054 = vmul.f32 %v3879, %v4023
      %v4055 = vmul.f32 %v3884, %v4023
      %v4056 = vmul.f32 %v3887, %v4023
      %v4057 = vmul.f32 %v3892, %v4023
      %v4058 = vmul.f32 %v3895, %v4023
      %v4059 = vmul.f32 %v3900, %v4023
      %v4060 = vmul.f32 %v3903, %v4023
      %v4061 = vmul.f32 %v3908, %v4023
      %v4062 = vmul.f32 %v3911, %v4023
      %v4063 = vmul.f32 %v3916, %v4023
      %v4064 = vmul.f32 %v3919, %v4023
      %v4065 = vmul.f32 %v3924, %v4023
      %v4066 = vmul.f32 %v3927, %v4023
      %v4067 = vmul.f32 %v3932, %v4023
      %v4068 = vmul.f32 %v3935, %v4023
      %v4069 = vmul.f32 %v3940, %v4023
      %v4070 = vmul.f32 %v3943, %v4023
      %v4071 = vmul.f32 %v3948, %v4023
      %v4072 = vmul.f32 %v3951, %v4023
      %v4073 = vmul.f32 %v3956, %v4023
      %v4074 = vmul.f32 %v3959, %v4023
      %v4075 = vmul.f32 %v3964, %v4023
      %v4076 = vmul.f32 %v3967, %v4023
      %v4077 = vmul.f32 %v3972, %v4023
      %v4078 = vmul.f32 %v3975, %v4023
      %v4079 = vmul.f32 %v3980, %v4023
      %v4080 = vmul.f32 %v3983, %v4023
      %v4081 = vmul.f32 %v3988, %v4023
      %v4082 = vmul.f32 %v3991, %v4023
      %v4083 = vmul.f32 %v3996, %v4023
      %v4084 = vmul.f32 %v3999, %v4023
      %v4085 = vmul.f32 %v4004, %v4023
      %v4086 = vmul.f32 %v4007, %v4023
      %v4087 = vmul.f32 %v4012, %v4023
      %v4088 = vmul.f32 %v4015, %v4023
      %v4089 = vld [vmem:[%s3] sm:$0x1]
      %v4091 = vlaneseq
      %v4092 = vshrl.u32 %v4091, 7
      %v4093 = vsub.s32 0, %v4092
      %v4094 = vrot.slane %v4089, %v4093
      %v4096 = vadd.f32 %v4025, %v4094
      %v4097 = vadd.f32 %v4026, %v4094
      %v4098 = vadd.f32 %v4027, %v4094
      %v4099 = vadd.f32 %v4028, %v4094
      %v4100 = vadd.f32 %v4029, %v4094
      %v4101 = vadd.f32 %v4030, %v4094
      %v4102 = vadd.f32 %v4031, %v4094
      %v4103 = vadd.f32 %v4032, %v4094
      %v4104 = vadd.f32 %v4033, %v4094
      %v4105 = vadd.f32 %v4034, %v4094
      %v4106 = vadd.f32 %v4035, %v4094
      %v4107 = vadd.f32 %v4036, %v4094
      %v4108 = vadd.f32 %v4037, %v4094
      %v4109 = vadd.f32 %v4038, %v4094
      %v4110 = vadd.f32 %v4039, %v4094
      %v4111 = vadd.f32 %v4040, %v4094
      %v4112 = vadd.f32 %v4041, %v4094
      %v4113 = vadd.f32 %v4042, %v4094
      %v4114 = vadd.f32 %v4043, %v4094
      %v4115 = vadd.f32 %v4044, %v4094
      %v4116 = vadd.f32 %v4045, %v4094
      %v4117 = vadd.f32 %v4046, %v4094
      %v4118 = vadd.f32 %v4047, %v4094
      %v4119 = vadd.f32 %v4048, %v4094
      %v4120 = vadd.f32 %v4049, %v4094
      %v4121 = vadd.f32 %v4050, %v4094
      %v4122 = vadd.f32 %v4051, %v4094
      %v4123 = vadd.f32 %v4052, %v4094
      %v4124 = vadd.f32 %v4053, %v4094
      %v4125 = vadd.f32 %v4054, %v4094
      %v4126 = vadd.f32 %v4055, %v4094
      %v4127 = vadd.f32 %v4056, %v4094
      %v4128 = vadd.f32 %v4057, %v4094
      %v4129 = vadd.f32 %v4058, %v4094
      %v4130 = vadd.f32 %v4059, %v4094
      %v4131 = vadd.f32 %v4060, %v4094
      %v4132 = vadd.f32 %v4061, %v4094
      %v4133 = vadd.f32 %v4062, %v4094
      %v4134 = vadd.f32 %v4063, %v4094
      %v4135 = vadd.f32 %v4064, %v4094
      %v4136 = vadd.f32 %v4065, %v4094
      %v4137 = vadd.f32 %v4066, %v4094
      %v4138 = vadd.f32 %v4067, %v4094
      %v4139 = vadd.f32 %v4068, %v4094
      %v4140 = vadd.f32 %v4069, %v4094
      %v4141 = vadd.f32 %v4070, %v4094
      %v4142 = vadd.f32 %v4071, %v4094
      %v4143 = vadd.f32 %v4072, %v4094
      %v4144 = vadd.f32 %v4073, %v4094
      %v4145 = vadd.f32 %v4074, %v4094
      %v4146 = vadd.f32 %v4075, %v4094
      %v4147 = vadd.f32 %v4076, %v4094
      %v4148 = vadd.f32 %v4077, %v4094
      %v4149 = vadd.f32 %v4078, %v4094
      %v4150 = vadd.f32 %v4079, %v4094
      %v4151 = vadd.f32 %v4080, %v4094
      %v4152 = vadd.f32 %v4081, %v4094
      %v4153 = vadd.f32 %v4082, %v4094
      %v4154 = vadd.f32 %v4083, %v4094
      %v4155 = vadd.f32 %v4084, %v4094
      %v4156 = vadd.f32 %v4085, %v4094
      %v4157 = vadd.f32 %v4086, %v4094
      %v4158 = vadd.f32 %v4087, %v4094
      %v4159 = vadd.f32 %v4088, %v4094
      %v4160 = vpack.c.bf16 %v4097, %v4096
      %v4161 = vpack.c.bf16 %v4099, %v4098
      %v4162 = vpack.c.bf16 %v4101, %v4100
      %v4163 = vpack.c.bf16 %v4103, %v4102
      %v4164 = vpack.c.bf16 %v4105, %v4104
      %v4165 = vpack.c.bf16 %v4107, %v4106
      %v4166 = vpack.c.bf16 %v4109, %v4108
      %v4167 = vpack.c.bf16 %v4111, %v4110
      %v4168 = vpack.c.bf16 %v4113, %v4112
      %v4169 = vpack.c.bf16 %v4115, %v4114
      %v4170 = vpack.c.bf16 %v4117, %v4116
      %v4171 = vpack.c.bf16 %v4119, %v4118
      %v4172 = vpack.c.bf16 %v4121, %v4120
      %v4173 = vpack.c.bf16 %v4123, %v4122
      %v4174 = vpack.c.bf16 %v4125, %v4124
      %v4175 = vpack.c.bf16 %v4127, %v4126
      %v4176 = vpack.c.bf16 %v4129, %v4128
      %v4177 = vpack.c.bf16 %v4131, %v4130
      %v4178 = vpack.c.bf16 %v4133, %v4132
      %v4179 = vpack.c.bf16 %v4135, %v4134
      %v4180 = vpack.c.bf16 %v4137, %v4136
      %v4181 = vpack.c.bf16 %v4139, %v4138
      %v4182 = vpack.c.bf16 %v4141, %v4140
      %v4183 = vpack.c.bf16 %v4143, %v4142
      %v4184 = vpack.c.bf16 %v4145, %v4144
      %v4185 = vpack.c.bf16 %v4147, %v4146
      %v4186 = vpack.c.bf16 %v4149, %v4148
      %v4187 = vpack.c.bf16 %v4151, %v4150
      %v4188 = vpack.c.bf16 %v4153, %v4152
      %v4189 = vpack.c.bf16 %v4155, %v4154
      %v4190 = vpack.c.bf16 %v4157, %v4156
      %v4191 = vpack.c.bf16 %v4159, %v4158
      %v4224 = vunpack.c.l.b16 %v4160
      %v4225 = vunpack.c.h.b16 %v4160
      %v4226 = vunpack.c.l.b16 %v4161
      %v4227 = vunpack.c.h.b16 %v4161
      %v4228 = vunpack.c.l.b16 %v4162
      %v4229 = vunpack.c.h.b16 %v4162
      %v4230 = vunpack.c.l.b16 %v4163
      %v4231 = vunpack.c.h.b16 %v4163
      %v4232 = vunpack.c.l.b16 %v4164
      %v4233 = vunpack.c.h.b16 %v4164
      %v4234 = vunpack.c.l.b16 %v4165
      %v4235 = vunpack.c.h.b16 %v4165
      %v4236 = vunpack.c.l.b16 %v4166
      %v4237 = vunpack.c.h.b16 %v4166
      %v4238 = vunpack.c.l.b16 %v4167
      %v4239 = vunpack.c.h.b16 %v4167
      %v4240 = vunpack.c.l.b16 %v4168
      %v4241 = vunpack.c.h.b16 %v4168
      %v4242 = vunpack.c.l.b16 %v4169
      %v4243 = vunpack.c.h.b16 %v4169
      %v4244 = vunpack.c.l.b16 %v4170
      %v4245 = vunpack.c.h.b16 %v4170
      %v4246 = vunpack.c.l.b16 %v4171
      %v4247 = vunpack.c.h.b16 %v4171
      %v4248 = vunpack.c.l.b16 %v4172
      %v4249 = vunpack.c.h.b16 %v4172
      %v4250 = vunpack.c.l.b16 %v4173
      %v4251 = vunpack.c.h.b16 %v4173
      %v4252 = vunpack.c.l.b16 %v4174
      %v4253 = vunpack.c.h.b16 %v4174
      %v4254 = vunpack.c.l.b16 %v4175
      %v4255 = vunpack.c.h.b16 %v4175
      %v4256 = vunpack.c.l.b16 %v4176
      %v4257 = vunpack.c.h.b16 %v4176
      %v4258 = vunpack.c.l.b16 %v4177
      %v4259 = vunpack.c.h.b16 %v4177
      %v4260 = vunpack.c.l.b16 %v4178
      %v4261 = vunpack.c.h.b16 %v4178
      %v4262 = vunpack.c.l.b16 %v4179
      %v4263 = vunpack.c.h.b16 %v4179
      %v4264 = vunpack.c.l.b16 %v4180
      %v4265 = vunpack.c.h.b16 %v4180
      %v4266 = vunpack.c.l.b16 %v4181
      %v4267 = vunpack.c.h.b16 %v4181
      %v4268 = vunpack.c.l.b16 %v4182
      %v4269 = vunpack.c.h.b16 %v4182
      %v4270 = vunpack.c.l.b16 %v4183
      %v4271 = vunpack.c.h.b16 %v4183
      %v4272 = vunpack.c.l.b16 %v4184
      %v4273 = vunpack.c.h.b16 %v4184
      %v4274 = vunpack.c.l.b16 %v4185
      %v4275 = vunpack.c.h.b16 %v4185
      %v4276 = vunpack.c.l.b16 %v4186
      %v4277 = vunpack.c.h.b16 %v4186
      %v4278 = vunpack.c.l.b16 %v4187
      %v4279 = vunpack.c.h.b16 %v4187
      %v4280 = vunpack.c.l.b16 %v4188
      %v4281 = vunpack.c.h.b16 %v4188
      %v4282 = vunpack.c.l.b16 %v4189
      %v4283 = vunpack.c.h.b16 %v4189
      %v4284 = vunpack.c.l.b16 %v4190
      %v4285 = vunpack.c.h.b16 %v4190
      %v4286 = vunpack.c.l.b16 %v4191
      %v4287 = vunpack.c.h.b16 %v4191
      %v4288 = vpack.c.b16 %v4224, %v4224
      %v4289 = vpack.c.b16 %v4225, %v4225
      %v4290 = vpack.c.b16 %v4226, %v4226
      %v4291 = vpack.c.b16 %v4227, %v4227
      %v4292 = vpack.c.b16 %v4228, %v4228
      %v4293 = vpack.c.b16 %v4229, %v4229
      %v4294 = vpack.c.b16 %v4230, %v4230
      %v4295 = vpack.c.b16 %v4231, %v4231
      %v4296 = vpack.c.b16 %v4232, %v4232
      %v4297 = vpack.c.b16 %v4233, %v4233
      %v4298 = vpack.c.b16 %v4234, %v4234
      %v4299 = vpack.c.b16 %v4235, %v4235
      %v4300 = vpack.c.b16 %v4236, %v4236
      %v4301 = vpack.c.b16 %v4237, %v4237
      %v4302 = vpack.c.b16 %v4238, %v4238
      %v4303 = vpack.c.b16 %v4239, %v4239
      %v4304 = vpack.c.b16 %v4240, %v4240
      %v4305 = vpack.c.b16 %v4241, %v4241
      %v4306 = vpack.c.b16 %v4242, %v4242
      %v4307 = vpack.c.b16 %v4243, %v4243
      %v4308 = vpack.c.b16 %v4244, %v4244
      %v4309 = vpack.c.b16 %v4245, %v4245
      %v4310 = vpack.c.b16 %v4246, %v4246
      %v4311 = vpack.c.b16 %v4247, %v4247
      %v4312 = vpack.c.b16 %v4248, %v4248
      %v4313 = vpack.c.b16 %v4249, %v4249
      %v4314 = vpack.c.b16 %v4250, %v4250
      %v4315 = vpack.c.b16 %v4251, %v4251
      %v4316 = vpack.c.b16 %v4252, %v4252
      %v4317 = vpack.c.b16 %v4253, %v4253
      %v4318 = vpack.c.b16 %v4254, %v4254
      %v4319 = vpack.c.b16 %v4255, %v4255
      %v4320 = vpack.c.b16 %v4256, %v4256
      %v4321 = vpack.c.b16 %v4257, %v4257
      %v4322 = vpack.c.b16 %v4258, %v4258
      %v4323 = vpack.c.b16 %v4259, %v4259
      %v4324 = vpack.c.b16 %v4260, %v4260
      %v4325 = vpack.c.b16 %v4261, %v4261
      %v4326 = vpack.c.b16 %v4262, %v4262
      %v4327 = vpack.c.b16 %v4263, %v4263
      %v4328 = vpack.c.b16 %v4264, %v4264
      %v4329 = vpack.c.b16 %v4265, %v4265
      %v4330 = vpack.c.b16 %v4266, %v4266
      %v4331 = vpack.c.b16 %v4267, %v4267
      %v4332 = vpack.c.b16 %v4268, %v4268
      %v4333 = vpack.c.b16 %v4269, %v4269
      %v4334 = vpack.c.b16 %v4270, %v4270
      %v4335 = vpack.c.b16 %v4271, %v4271
      %v4336 = vpack.c.b16 %v4272, %v4272
      %v4337 = vpack.c.b16 %v4273, %v4273
      %v4338 = vpack.c.b16 %v4274, %v4274
      %v4339 = vpack.c.b16 %v4275, %v4275
      %v4340 = vpack.c.b16 %v4276, %v4276
      %v4341 = vpack.c.b16 %v4277, %v4277
      %v4342 = vpack.c.b16 %v4278, %v4278
      %v4343 = vpack.c.b16 %v4279, %v4279
      %v4344 = vpack.c.b16 %v4280, %v4280
      %v4345 = vpack.c.b16 %v4281, %v4281
      %v4346 = vpack.c.b16 %v4282, %v4282
      %v4347 = vpack.c.b16 %v4283, %v4283
      %v4348 = vpack.c.b16 %v4284, %v4284
      %v4349 = vpack.c.b16 %v4285, %v4285
      %v4350 = vpack.c.b16 %v4286, %v4286
      %v4351 = vpack.c.b16 %v4287, %v4287
      %4416 = vst [vmem:[%s202] sm:$0xf] %v4288
      %4417 = vst [vmem:[%s202 + $0x4] sm:$0xf] %v4289
      %4418 = vst [vmem:[%s202 + $0x8] sm:$0xf] %v4290
      %4419 = vst [vmem:[%s202 + $0xc] sm:$0xf] %v4291
      %4420 = vst [vmem:[%s202 + $0x10] sm:$0xf] %v4292
      %4421 = vst [vmem:[%s202 + $0x14] sm:$0xf] %v4293
      %4422 = vst [vmem:[%s202 + $0x18] sm:$0xf] %v4294
      %4423 = vst [vmem:[%s202 + $0x1c] sm:$0xf] %v4295
      %4424 = vst [vmem:[%s202 + $0x20] sm:$0xf] %v4296
      %4425 = vst [vmem:[%s202 + $0x24] sm:$0xf] %v4297
      %4426 = vst [vmem:[%s202 + $0x28] sm:$0xf] %v4298
      %4427 = vst [vmem:[%s202 + $0x2c] sm:$0xf] %v4299
      %4428 = vst [vmem:[%s202 + $0x30] sm:$0xf] %v4300
      %4429 = vst [vmem:[%s202 + $0x34] sm:$0xf] %v4301
      %4430 = vst [vmem:[%s202 + $0x38] sm:$0xf] %v4302
      %4431 = vst [vmem:[%s202 + $0x3c] sm:$0xf] %v4303
      %4432 = vst [vmem:[%s202 + $0x40] sm:$0xf] %v4304
      %4433 = vst [vmem:[%s202 + $0x44] sm:$0xf] %v4305
      %4434 = vst [vmem:[%s202 + $0x48] sm:$0xf] %v4306
      %4435 = vst [vmem:[%s202 + $0x4c] sm:$0xf] %v4307
      %4436 = vst [vmem:[%s202 + $0x50] sm:$0xf] %v4308
      %4437 = vst [vmem:[%s202 + $0x54] sm:$0xf] %v4309
      %4438 = vst [vmem:[%s202 + $0x58] sm:$0xf] %v4310
      %4439 = vst [vmem:[%s202 + $0x5c] sm:$0xf] %v4311
      %4440 = vst [vmem:[%s202 + $0x60] sm:$0xf] %v4312
      %4441 = vst [vmem:[%s202 + $0x64] sm:$0xf] %v4313
      %4442 = vst [vmem:[%s202 + $0x68] sm:$0xf] %v4314
      %4443 = vst [vmem:[%s202 + $0x6c] sm:$0xf] %v4315
      %4444 = vst [vmem:[%s202 + $0x70] sm:$0xf] %v4316
      %4445 = vst [vmem:[%s202 + $0x74] sm:$0xf] %v4317
      %4446 = vst [vmem:[%s202 + $0x78] sm:$0xf] %v4318
      %4447 = vst [vmem:[%s202 + $0x7c] sm:$0xf] %v4319
      %4448 = vst [vmem:[%s202 + $0x80] sm:$0xf] %v4320
      %4449 = vst [vmem:[%s202 + $0x84] sm:$0xf] %v4321
      %4450 = vst [vmem:[%s202 + $0x88] sm:$0xf] %v4322
      %4451 = vst [vmem:[%s202 + $0x8c] sm:$0xf] %v4323
      %4452 = vst [vmem:[%s202 + $0x90] sm:$0xf] %v4324
      %4453 = vst [vmem:[%s202 + $0x94] sm:$0xf] %v4325
      %4454 = vst [vmem:[%s202 + $0x98] sm:$0xf] %v4326
      %4455 = vst [vmem:[%s202 + $0x9c] sm:$0xf] %v4327
      %4456 = vst [vmem:[%s202 + $0xa0] sm:$0xf] %v4328
      %4457 = vst [vmem:[%s202 + $0xa4] sm:$0xf] %v4329
      %4458 = vst [vmem:[%s202 + $0xa8] sm:$0xf] %v4330
      %4459 = vst [vmem:[%s202 + $0xac] sm:$0xf] %v4331
      %4460 = vst [vmem:[%s202 + $0xb0] sm:$0xf] %v4332
      %4461 = vst [vmem:[%s202 + $0xb4] sm:$0xf] %v4333
      %4462 = vst [vmem:[%s202 + $0xb8] sm:$0xf] %v4334
      %4463 = vst [vmem:[%s202 + $0xbc] sm:$0xf] %v4335
      %4464 = vst [vmem:[%s202 + $0xc0] sm:$0xf] %v4336
      %4465 = vst [vmem:[%s202 + $0xc4] sm:$0xf] %v4337
      %4466 = vst [vmem:[%s202 + $0xc8] sm:$0xf] %v4338
      %4467 = vst [vmem:[%s202 + $0xcc] sm:$0xf] %v4339
      %4468 = vst [vmem:[%s202 + $0xd0] sm:$0xf] %v4340
      %4469 = vst [vmem:[%s202 + $0xd4] sm:$0xf] %v4341
      %4470 = vst [vmem:[%s202 + $0xd8] sm:$0xf] %v4342
      %4471 = vst [vmem:[%s202 + $0xdc] sm:$0xf] %v4343
      %4472 = vst [vmem:[%s202 + $0xe0] sm:$0xf] %v4344
      %4473 = vst [vmem:[%s202 + $0xe4] sm:$0xf] %v4345
      %4474 = vst [vmem:[%s202 + $0xe8] sm:$0xf] %v4346
      %4475 = vst [vmem:[%s202 + $0xec] sm:$0xf] %v4347
      %4476 = vst [vmem:[%s202 + $0xf0] sm:$0xf] %v4348
      %4477 = vst [vmem:[%s202 + $0xf4] sm:$0xf] %v4349
      %4478 = vst [vmem:[%s202 + $0xf8] sm:$0xf] %v4350
      %4479 = vst [vmem:[%s202 + $0xfc] sm:$0xf] %v4351
      %s4480 = smul.u32 64, %s15
      %p4481 = scmp.lt.s32.totalorder %s4480, 255
      %s4482 = scalar_select %p4481, %s4480, 255
      %s4483 = smul.addr %s4482, 4
      %s4484 = scalar_lea.vmem %s4, %s4483
      // Predicated region
      $region37: #{_lambda_.5} parent=35 // pred_check
        %p4485 = pneg %p122
      $region38: #{_lambda_.5} parent=35 // pred_check_branch
        %4487 = sbr.rel (%p4485) target = $region40
      $region39: #{_lambda_.5} parent=35 // pred_region
        %s4488 = smul.u32 64, %s15
      $region40: #{_lambda_.5} parent=35 // pred_fallthru
        _
    $region36: #{_lambda_.5} parent=5 // pred_fallthru
      _
    %p4489 = scmp.le.s32.totalorder 2, %s10
    // Predicated region
    $region41: #{_lambda_.5} parent=5 // pred_check
      %p4490 = pneg %p4489
    $region42: #{_lambda_.5} parent=5 // pred_check_branch
      %4492 = sbr.rel (%p4490) target = $region44
    $region43: #{_lambda_.5} parent=5 // pred_region
      %s4493 = ssub.s32 %s10, 2
      // Predicated region
      $region45: #{_lambda_.5} parent=43 // pred_check
        %p4494 = pneg %p128
      $region46: #{_lambda_.5} parent=43 // pred_check_branch
        %4496 = sbr.rel (%p4494) target = $region48
      $region47: #{_lambda_.5} parent=43 // pred_region
        %s4497 = smul.u32 64, %s16
        %p4498 = scmp.lt.s32.totalorder %s4497, 255
        %s4499 = scalar_select %p4498, %s4497, 255
        %s4500 = smul.addr %s4499, 4
        %s4501 = scalar_lea.vmem %s4, %s4500
      $region48: #{_lambda_.5} parent=43 // pred_fallthru
        _
    $region44: #{_lambda_.5} parent=5 // pred_fallthru
      _
  $region6: #{_lambda_.5} parent=0 // loop_footer
    %s14 = sadd.s32 1, %s10
  $region7: #{_lambda_.5} parent=0 // loop_footer_branch
    %9 = sbr.rel target = $region3
  $region8: #{_lambda_.5} parent=0 // loop_exit
    _

</llo_original>
